<compile_context>
chip_gen: v7x
topology: tpu7x:2x2x1
jax: 0.10.0
libtpu: 0.0.40
codegen_flags: <defaults>
</compile_context>

<pallas_src>
import functools

import jax
import jax.numpy as jnp
from jax.experimental import pallas as pl
from jax.experimental.pallas import tpu as pltpu

VMEM_LIMIT = 32 * 1024 * 1024   # scoped VMEM; leaves ample headroom on v7x (64 MiB phys)
LN_EPS = 1e-5
NEG_INF = -1e9


def _round_up(x, m):
    return (x + m - 1) // m * m


# ----------------------------- in-kernel helpers ---------------------------

def _layernorm(y, g, b, eps=LN_EPS):
    mean = jnp.mean(y, axis=-1, keepdims=True)
    var = jnp.mean((y - mean) ** 2, axis=-1, keepdims=True)
    return (y - mean) * jax.lax.rsqrt(var + eps) * g + b


def _mha(q_all, k_all, v_all, bias, wo, n_heads, scale):
    """Multi-head attention with per-head accumulation through the output
    projection (no lane-axis concat).

    q_all:(Tq,D), k_all/v_all:(Tk,D) bf16 (casts hoisted by caller)
    bias:(Tq,Tk) f32 additive bias or None; wo:(D,D) bf16.
    Returns (Tq, D) f32 == concat_h(softmax(q_h k_h^T * scale + bias) v_h) @ wo
    """
    Tq, D = q_all.shape
    Dh = D // n_heads
    out = jnp.zeros((Tq, D), jnp.float32)
    for h in range(n_heads):
        lo, hi = h * Dh, (h + 1) * Dh
        q = q_all[:, lo:hi]
        k = k_all[:, lo:hi]
        v = v_all[:, lo:hi]
        s = jax.lax.dot_general(q, k, (((1,), (1,)), ((), ())),
                                preferred_element_type=jnp.float32) * scale
        if bias is not None:
            s = s + bias
        m = jnp.max(s, axis=-1, keepdims=True)
        p = jnp.exp(s - m)
        p = p * pl.reciprocal(jnp.sum(p, axis=-1, keepdims=True), approx=True)
        attn_h = jnp.dot(p.astype(jnp.bfloat16), v,
                         preferred_element_type=jnp.float32)          # (Tq, Dh)
        # accumulate through the h-th row block of wo (8-aligned sublane slice)
        out = out + jnp.dot(attn_h.astype(jnp.bfloat16), wo[lo:hi, :],
                            preferred_element_type=jnp.float32)
    return out


# ----------------------------- fused Pallas kernel --------------------------

def _fused_decoder_kernel(
        frames_ref, tgt_ref, pad_ref, w_mem_ref, b_mem_ref,
        sa_wqkv_ref, sa_bqkv_ref, sa_wo_ref, sa_bo_ref, sa_g_ref, sa_b_ref,
        ca_wq_ref, ca_bq_ref, ca_wkv_ref, ca_bkv_ref, ca_wo_ref, ca_bo_ref,
        ca_g_ref, ca_b_ref,
        ff_w1_ref, ff_b1_ref, ff_w2_ref, ff_b2_ref, ff_g_ref, ff_b_ref,
        lm_w_ref, o_ref, *, n_heads, n_layers):
    """Per-batch: memory proj -> L x (self-attn, cross-attn, FFN) -> lm_head."""
    # ---- audio memory: frames @ (enc ∘ audio_head), folded offline ----
    mem = jnp.dot(frames_ref[0].astype(jnp.bfloat16), w_mem_ref[...],
                  preferred_element_type=jnp.float32) + b_mem_ref[...]   # (Tk, D)
    mem_bf = mem.astype(jnp.bfloat16)

    x = tgt_ref[0].astype(jnp.float32)                                   # (T, D)
    T, D = x.shape
    scale = 1.0 / float((D // n_heads) ** 0.5)

    # causal + target key-padding additive bias, built in-register (never in HBM)
    row = jax.lax.broadcasted_iota(jnp.int32, (T, T), 0)
    col = jax.lax.broadcasted_iota(jnp.int32, (T, T), 1)
    self_bias = jnp.where(col > row, jnp.float32(NEG_INF), jnp.float32(0.0))
    self_bias = self_bias + pad_ref[0]                                   # (T, T)

    for l in range(n_layers):
        # ----- self attention (post-LN, residual) -----
        qkv = jnp.dot(x.astype(jnp.bfloat16), sa_wqkv_ref[l],
                      preferred_element_type=jnp.float32) + sa_bqkv_ref[l]
        qkv_bf = qkv.astype(jnp.bfloat16)
        attn = _mha(qkv_bf[:, :D], qkv_bf[:, D:2 * D], qkv_bf[:, 2 * D:],
                    self_bias, sa_wo_ref[l], n_heads, scale)
        x = _layernorm(x + attn + sa_bo_ref[l], sa_g_ref[l], sa_b_ref[l])

        # ----- cross attention over audio memory (no key-pad mask: None in ref) -----
        q = jnp.dot(x.astype(jnp.bfloat16), ca_wq_ref[l],
                    preferred_element_type=jnp.float32) + ca_bq_ref[l]
        kv = jnp.dot(mem_bf, ca_wkv_ref[l],
                     preferred_element_type=jnp.float32) + ca_bkv_ref[l]
        kv_bf = kv.astype(jnp.bfloat16)
        attn = _mha(q.astype(jnp.bfloat16), kv_bf[:, :D], kv_bf[:, D:],
                    None, ca_wo_ref[l], n_heads, scale)
        x = _layernorm(x + attn + ca_bo_ref[l], ca_g_ref[l], ca_b_ref[l])

        # ----- feed-forward (hidden stays in VMEM) -----
        h = jnp.dot(x.astype(jnp.bfloat16), ff_w1_ref[l],
                    preferred_element_type=jnp.float32) + ff_b1_ref[l]
        h = jnp.maximum(h, 0.0)
        y = jnp.dot(h.astype(jnp.bfloat16), ff_w2_ref[l],
                    preferred_element_type=jnp.float32) + ff_b2_ref[l]
        x = _layernorm(x + y, ff_g_ref[l], ff_b_ref[l])

    # ----- lm_head (bias=False), vocab lane-padded to a 128 multiple -----
    o_ref[0] = jnp.dot(x.astype(jnp.bfloat16), lm_w_ref[...],
                       preferred_element_type=jnp.float32).astype(o_ref.dtype)


# ------------------------------- wrapper ------------------------------------

def fused_decoder(frames, tgt, pad_bias, p, cfg):
    B, T_enc, frame = frames.shape
    _, T, D = tgt.shape
    L, H, F = cfg["n_layers"], cfg["n_heads"], cfg["ff_dim"]
    Vp = p["lm_head_w"].shape[-1]

    def batch_spec(shape):
        return pl.BlockSpec(shape, lambda b: (b,) + (0,) * (len(shape) - 1))

    def const_spec(shape):
        # constant index_map weights; at production scale these could use
        # pipeline_mode=pl.Buffered(1) or a layer grid axis to stream weights.
        return pl.BlockSpec(shape, lambda b: (0,) * len(shape))

    in_specs = [
        batch_spec((1, T_enc, frame)),     # frames
        batch_spec((1, T, D)),             # tgt embeddings
        batch_spec((1, 1, T)),             # key-pad bias
        const_spec((frame, D)),            # w_mem (folded enc @ audio_head)
        const_spec((1, D)),                # b_mem
        const_spec((L, D, 3 * D)),         # sa_wqkv
        const_spec((L, 1, 3 * D)),         # sa_bqkv
        const_spec((L, D, D)),             # sa_wo
        const_spec((L, 1, D)),             # sa_bo
        const_spec((L, 1, D)),             # sa ln gamma
        const_spec((L, 1, D)),             # sa ln beta
        const_spec((L, D, D)),             # ca_wq
        const_spec((L, 1, D)),             # ca_bq
        const_spec((L, D, 2 * D)),         # ca_wkv
        const_spec((L, 1, 2 * D)),         # ca_bkv
        const_spec((L, D, D)),             # ca_wo
        const_spec((L, 1, D)),             # ca_bo
        const_spec((L, 1, D)),             # ca ln gamma
        const_spec((L, 1, D)),             # ca ln beta
        const_spec((L, D, F)),             # ff_w1
        const_spec((L, 1, F)),             # ff_b1
        const_spec((L, F, D)),             # ff_w2
        const_spec((L, 1, D)),             # ff_b2
        const_spec((L, 1, D)),             # ff ln gamma
        const_spec((L, 1, D)),             # ff ln beta
        const_spec((D, Vp)),               # lm_head (lane-padded)
    ]

    kernel = functools.partial(_fused_decoder_kernel, n_heads=H, n_layers=L)
    return pl.pallas_call(
        kernel,
        out_shape=jax.ShapeDtypeStruct((B, T, Vp), jnp.float32),
        grid=(B,),
        in_specs=in_specs,
        out_specs=pl.BlockSpec((1, T, Vp), lambda b: (b, 0, 0)),
        compiler_params=pltpu.CompilerParams(
            dimension_semantics=("parallel",),   # independent batches; shards across TCs where available
            vmem_limit_bytes=VMEM_LIMIT),
    )(frames, tgt, pad_bias, p["w_mem"], p["b_mem"],
      p["sa_wqkv"], p["sa_bqkv"], p["sa_wo"], p["sa_bo"], p["sa_g"], p["sa_b"],
      p["ca_wq"], p["ca_bq"], p["ca_wkv"], p["ca_bkv"], p["ca_wo"], p["ca_bo"],
      p["ca_g"], p["ca_b"],
      p["ff_w1"], p["ff_b1"], p["ff_w2"], p["ff_b2"], p["ff_g"], p["ff_b"],
      p["lm_head_w"])


# ----------------------------- model glue -----------------------------------

def audio2motion_forward(params, wav, tgt_in, enc_pad_mask, tgt_pad_mask, cfg):
    """
    wav:          (B, T_audio) float32
    tgt_in:       (B, T_dec)   int32 teacher-forcing tokens incl. BOS
    enc_pad_mask: (B, T_audio) bool, True where PAD
    tgt_pad_mask: (B, T_dec)   bool, True where PAD
    returns logits (B, T_dec, vocab_size)
    """
    B, T_audio = wav.shape
    V = cfg["vocab_size"]

    # TODO(synk): Wav2Vec2Model.from_pretrained (frozen external checkpoint) has
    # no Pallas equivalent; a deterministic frame-stack + pre-folded linear
    # projection stands in for the audio encoder (padded samples zeroed).
    wav = jnp.where(enc_pad_mask, 0.0, wav)
    frames = wav.reshape(B, T_audio // cfg["frame"], cfg["frame"])

    # token embedding + learned positional embedding (cheap XLA gather/add)
    seq_len = tgt_in.shape[1]
    tgt = jnp.take(params["tok_emb"], tgt_in, axis=0) + params["pos_emb"][:, :seq_len, :]

    # key-padding additive bias (B,1,T); causal part generated in-kernel via iota
    pad_bias = jnp.where(tgt_pad_mask, jnp.float32(NEG_INF),
                         jnp.float32(0.0)).reshape(B, 1, seq_len)

    logits_p = fused_decoder(frames, tgt.astype(jnp.float32), pad_bias, params, cfg)
    return logits_p[..., :V]


# ------------------------- deterministic init -------------------------------

def init_params(key, cfg):
    """Raw, PyTorch-layout parameters (f32, separate q/k/v weights)."""
    D, V, F = cfg["d_model"], cfg["vocab_size"], cfg["ff_dim"]
    E, L = cfg["enc_dim"], cfg["n_layers"]
    keys = iter(jax.random.split(key, 256))

    def w(shape, scale=0.02):
        return (scale * jax.random.normal(next(keys), shape)).astype(jnp.float32)

    def attn_params():
        return dict(wq=w((D, D)), bq=jnp.zeros((D,), jnp.float32),
                    wk=w((D, D)), bk=jnp.zeros((D,), jnp.float32),
                    wv=w((D, D)), bv=jnp.zeros((D,), jnp.float32),
                    wo=w((D, D)), bo=jnp.zeros((D,), jnp.float32))

    layers = []
    for _ in range(L):
        layers.append(dict(
            self_attn=attn_params(), cross_attn=attn_params(),
            ln1_g=jnp.ones((D,), jnp.float32), ln1_b=jnp.zeros((D,), jnp.float32),
            ln2_g=jnp.ones((D,), jnp.float32), ln2_b=jnp.zeros((D,), jnp.float32),
            ln3_g=jnp.ones((D,), jnp.float32), ln3_b=jnp.zeros((D,), jnp.float32),
            ff_w1=w((D, F)), ff_b1=jnp.zeros((F,), jnp.float32),
            ff_w2=w((F, D)), ff_b2=jnp.zeros((D,), jnp.float32),
        ))

    return dict(
        enc_w=w((cfg["frame"], E)), enc_b=jnp.zeros((E,), jnp.float32),
        audio_head_w=w((E, D)), audio_head_b=jnp.zeros((D,), jnp.float32),
        tok_emb=w((V, D), scale=1.0),                      # nn.Embedding ~ N(0,1)
        pos_emb=w((1, cfg["max_len"], D), scale=1.0),      # torch.randn
        lm_head_w=jax.random.uniform(next(keys), (D, V), jnp.float32, -0.02, 0.02),
        layers=layers,
    )


def prepare_params(raw, cfg):
    """One-time weight prep: fuse QKV / KV, stack layers along a leading axis,
    fold enc @ audio_head, pad lm_head to 128 lanes, cast matmul weights to
    bf16 (biases / LN params stay f32)."""
    D, V, F = cfg["d_model"], cfg["vocab_size"], cfg["ff_dim"]
    bf = lambda a: a.astype(jnp.bfloat16)

    def stack(fn):
        return jnp.stack([fn(lp) for lp in raw["layers"]], axis=0)

    p = dict(
        sa_wqkv=bf(stack(lambda lp: jnp.concatenate(
            [lp["self_attn"]["wq"], lp["self_attn"]["wk"], lp["self_attn"]["wv"]], axis=1))),
        sa_bqkv=stack(lambda lp: jnp.concatenate(
            [lp["self_attn"]["bq"], lp["self_attn"]["bk"], lp["self_attn"]["bv"]]).reshape(1, 3 * D)),
        sa_wo=bf(stack(lambda lp: lp["self_attn"]["wo"])),
        sa_bo=stack(lambda lp: lp["self_attn"]["bo"].reshape(1, D)),
        sa_g=stack(lambda lp: lp["ln1_g"].reshape(1, D)),
        sa_b=stack(lambda lp: lp["ln1_b"].reshape(1, D)),
        ca_wq=bf(stack(lambda lp: lp["cross_attn"]["wq"])),
        ca_bq=stack(lambda lp: lp["cross_attn"]["bq"].reshape(1, D)),
        ca_wkv=bf(stack(lambda lp: jnp.concatenate(
            [lp["cross_attn"]["wk"], lp["cross_attn"]["wv"]], axis=1))),
        ca_bkv=stack(lambda lp: jnp.concatenate(
            [lp["cross_attn"]["bk"], lp["cross_attn"]["bv"]]).reshape(1, 2 * D)),
        ca_wo=bf(stack(lambda lp: lp["cross_attn"]["wo"])),
        ca_bo=stack(lambda lp: lp["cross_attn"]["bo"].reshape(1, D)),
        ca_g=stack(lambda lp: lp["ln2_g"].reshape(1, D)),
        ca_b=stack(lambda lp: lp["ln2_b"].reshape(1, D)),
        ff_w1=bf(stack(lambda lp: lp["ff_w1"])),
        ff_b1=stack(lambda lp: lp["ff_b1"].reshape(1, F)),
        ff_w2=bf(stack(lambda lp: lp["ff_w2"])),
        ff_b2=stack(lambda lp: lp["ff_b2"].reshape(1, D)),
        ff_g=stack(lambda lp: lp["ln3_g"].reshape(1, D)),
        ff_b=stack(lambda lp: lp["ln3_b"].reshape(1, D)),
    )

    # fold the two back-to-back linears of the memory path into one matmul
    w_mem = raw["enc_w"] @ raw["audio_head_w"]
    b_mem = raw["enc_b"] @ raw["audio_head_w"] + raw["audio_head_b"]
    p["w_mem"] = bf(w_mem)
    p["b_mem"] = b_mem.reshape(1, D)

    # lane-pad lm_head output dim (vocab) up to a multiple of 128 (dense stores)
    Vp = _round_up(V, 128)
    p["lm_head_w"] = bf(jnp.pad(raw["lm_head_w"], ((0, 0), (0, Vp - V))))

    p["tok_emb"] = raw["tok_emb"]
    p["pos_emb"] = raw["pos_emb"]
    return p


# --------------------------------- main --------------------------------------

if __name__ == "__main__":
    cfg = dict(vocab_size=35,   # CODEBOOK_SIZE + 3, scaled down
               d_model=32, n_layers=2, n_heads=4, ff_dim=64,
               max_len=16, enc_dim=48, frame=8)

    raw_params = init_params(jax.random.PRNGKey(0), cfg)
    params = prepare_params(raw_params, cfg)

    B, T_audio, T_dec = 2, 64, 8
    kw, kt = jax.random.split(jax.random.PRNGKey(0))
    wav = jax.random.normal(kw, (B, T_audio), jnp.float32)
    tgt_in = jax.random.randint(kt, (B, T_dec), 0, cfg["vocab_size"], dtype=jnp.int32)
    enc_pad_mask = jnp.zeros((B, T_audio), bool).at[:, -8:].set(True)
    tgt_pad_mask = jnp.zeros((B, T_dec), bool).at[:, -2:].set(True)

    logits = audio2motion_forward(params, wav, tgt_in, enc_pad_mask, tgt_pad_mask, cfg)
    jax.block_until_ready(logits)
    assert logits.shape == (B, T_dec, cfg["vocab_size"])
    assert bool(jnp.all(jnp.isfinite(logits)))
    print("KERNEL_OK")
</pallas_src>

<mosaic_0001>
module attributes {stable_mosaic.version = 11 : i64} {
  func.func @_fused_decoder_kernel(%arg0: i32, %arg1: memref<1x8x8xf32, #tpu.memory_space<vmem>>, %arg2: memref<1x8x32xf32, #tpu.memory_space<vmem>>, %arg3: memref<1x1x8xf32, #tpu.memory_space<vmem>>, %arg4: memref<8x32xbf16, #tpu.memory_space<vmem>>, %arg5: memref<1x32xf32, #tpu.memory_space<vmem>>, %arg6: memref<2x32x96xbf16, #tpu.memory_space<vmem>>, %arg7: memref<2x1x96xf32, #tpu.memory_space<vmem>>, %arg8: memref<2x32x32xbf16, #tpu.memory_space<vmem>>, %arg9: memref<2x1x32xf32, #tpu.memory_space<vmem>>, %arg10: memref<2x1x32xf32, #tpu.memory_space<vmem>>, %arg11: memref<2x1x32xf32, #tpu.memory_space<vmem>>, %arg12: memref<2x32x32xbf16, #tpu.memory_space<vmem>>, %arg13: memref<2x1x32xf32, #tpu.memory_space<vmem>>, %arg14: memref<2x32x64xbf16, #tpu.memory_space<vmem>>, %arg15: memref<2x1x64xf32, #tpu.memory_space<vmem>>, %arg16: memref<2x32x32xbf16, #tpu.memory_space<vmem>>, %arg17: memref<2x1x32xf32, #tpu.memory_space<vmem>>, %arg18: memref<2x1x32xf32, #tpu.memory_space<vmem>>, %arg19: memref<2x1x32xf32, #tpu.memory_space<vmem>>, %arg20: memref<2x32x64xbf16, #tpu.memory_space<vmem>>, %arg21: memref<2x1x64xf32, #tpu.memory_space<vmem>>, %arg22: memref<2x64x32xbf16, #tpu.memory_space<vmem>>, %arg23: memref<2x1x32xf32, #tpu.memory_space<vmem>>, %arg24: memref<2x1x32xf32, #tpu.memory_space<vmem>>, %arg25: memref<2x1x32xf32, #tpu.memory_space<vmem>>, %arg26: memref<32x128xbf16, #tpu.memory_space<vmem>>, %arg27: memref<1x8x128xf32, #tpu.memory_space<vmem>>) attributes {dimension_semantics = [#tpu.dimension_semantics<parallel>], iteration_bounds = array<i64: 2>, scalar_prefetch = 0 : i64, scratch_operands = 0 : i64, tpu.core_type = #tpu.core_type<tc>, window_params = [{transform_indices = @transform_0, window_bounds = array<i64: 1, 8, 8>}, {transform_indices = @transform_1, window_bounds = array<i64: 1, 8, 32>}, {transform_indices = @transform_2, window_bounds = array<i64: 1, 1, 8>}, {pipeline_mode = #tpu.pipeline_mode<synchronous>, transform_indices = @transform_3, window_bounds = array<i64: 8, 32>}, {pipeline_mode = #tpu.pipeline_mode<synchronous>, transform_indices = @transform_4, window_bounds = array<i64: 1, 32>}, {pipeline_mode = #tpu.pipeline_mode<synchronous>, transform_indices = @transform_5, window_bounds = array<i64: 2, 32, 96>}, {pipeline_mode = #tpu.pipeline_mode<synchronous>, transform_indices = @transform_6, window_bounds = array<i64: 2, 1, 96>}, {pipeline_mode = #tpu.pipeline_mode<synchronous>, transform_indices = @transform_7, window_bounds = array<i64: 2, 32, 32>}, {pipeline_mode = #tpu.pipeline_mode<synchronous>, transform_indices = @transform_8, window_bounds = array<i64: 2, 1, 32>}, {pipeline_mode = #tpu.pipeline_mode<synchronous>, transform_indices = @transform_9, window_bounds = array<i64: 2, 1, 32>}, {pipeline_mode = #tpu.pipeline_mode<synchronous>, transform_indices = @transform_10, window_bounds = array<i64: 2, 1, 32>}, {pipeline_mode = #tpu.pipeline_mode<synchronous>, transform_indices = @transform_11, window_bounds = array<i64: 2, 32, 32>}, {pipeline_mode = #tpu.pipeline_mode<synchronous>, transform_indices = @transform_12, window_bounds = array<i64: 2, 1, 32>}, {pipeline_mode = #tpu.pipeline_mode<synchronous>, transform_indices = @transform_13, window_bounds = array<i64: 2, 32, 64>}, {pipeline_mode = #tpu.pipeline_mode<synchronous>, transform_indices = @transform_14, window_bounds = array<i64: 2, 1, 64>}, {pipeline_mode = #tpu.pipeline_mode<synchronous>, transform_indices = @transform_15, window_bounds = array<i64: 2, 32, 32>}, {pipeline_mode = #tpu.pipeline_mode<synchronous>, transform_indices = @transform_16, window_bounds = array<i64: 2, 1, 32>}, {pipeline_mode = #tpu.pipeline_mode<synchronous>, transform_indices = @transform_17, window_bounds = array<i64: 2, 1, 32>}, {pipeline_mode = #tpu.pipeline_mode<synchronous>, transform_indices = @transform_18, window_bounds = array<i64: 2, 1, 32>}, {pipeline_mode = #tpu.pipeline_mode<synchronous>, transform_indices = @transform_19, window_bounds = array<i64: 2, 32, 64>}, {pipeline_mode = #tpu.pipeline_mode<synchronous>, transform_indices = @transform_20, window_bounds = array<i64: 2, 1, 64>}, {pipeline_mode = #tpu.pipeline_mode<synchronous>, transform_indices = @transform_21, window_bounds = array<i64: 2, 64, 32>}, {pipeline_mode = #tpu.pipeline_mode<synchronous>, transform_indices = @transform_22, window_bounds = array<i64: 2, 1, 32>}, {pipeline_mode = #tpu.pipeline_mode<synchronous>, transform_indices = @transform_23, window_bounds = array<i64: 2, 1, 32>}, {pipeline_mode = #tpu.pipeline_mode<synchronous>, transform_indices = @transform_24, window_bounds = array<i64: 2, 1, 32>}, {pipeline_mode = #tpu.pipeline_mode<synchronous>, transform_indices = @transform_25, window_bounds = array<i64: 32, 128>}, {transform_indices = @transform_26, window_bounds = array<i64: 1, 8, 128>}]} {
    %c0 = arith.constant 0 : index
    %c0_0 = arith.constant 0 : index
    %c0_1 = arith.constant 0 : index
    %0 = vector.load %arg1[%c0, %c0_0, %c0_1] : memref<1x8x8xf32, #tpu.memory_space<vmem>>, vector<1x8x8xf32>
    %1 = vector.shape_cast %0 : vector<1x8x8xf32> to vector<8x8xf32>
    %2 = arith.truncf %1 : vector<8x8xf32> to vector<8x8xbf16>
    %c0_2 = arith.constant 0 : index
    %c0_3 = arith.constant 0 : index
    %3 = vector.load %arg4[%c0_2, %c0_3] : memref<8x32xbf16, #tpu.memory_space<vmem>>, vector<8x32xbf16>
    %cst = arith.constant dense<0.000000e+00> : vector<8x32xf32>
    %4 = tpu.matmul %2, %3, %cst {dimension_numbers = #tpu.dot_dimension_numbers<[1], [0], [0], [1], [0, 0, 1, 1], [], []>} : vector<8x8xbf16>, vector<8x32xbf16>, vector<8x32xf32> -> vector<8x32xf32>
    %c0_4 = arith.constant 0 : index
    %c0_5 = arith.constant 0 : index
    %5 = vector.load %arg5[%c0_4, %c0_5] : memref<1x32xf32, #tpu.memory_space<vmem>>, vector<1x32xf32>
    %6 = vector.broadcast %5 : vector<1x32xf32> to vector<8x32xf32>
    %7 = arith.addf %4, %6 : vector<8x32xf32>
    %8 = arith.truncf %7 : vector<8x32xf32> to vector<8x32xbf16>
    %c0_6 = arith.constant 0 : index
    %c0_7 = arith.constant 0 : index
    %c0_8 = arith.constant 0 : index
    %9 = vector.load %arg2[%c0_6, %c0_7, %c0_8] : memref<1x8x32xf32, #tpu.memory_space<vmem>>, vector<1x8x32xf32>
    %10 = vector.shape_cast %9 : vector<1x8x32xf32> to vector<8x32xf32>
    %11 = tpu.iota {dimensions = array<i32: 0>} : vector<8x8xi32>
    %12 = tpu.iota {dimensions = array<i32: 1>} : vector<8x8xi32>
    %13 = arith.cmpi sgt, %12, %11 : vector<8x8xi32>
    %cst_9 = arith.constant -1.000000e+09 : f32
    %cst_10 = arith.constant 0.000000e+00 : f32
    %14 = vector.broadcast %cst_9 : f32 to vector<8x8xf32>
    %15 = vector.broadcast %cst_10 : f32 to vector<8x8xf32>
    %16 = arith.select %13, %14, %15 : vector<8x8xi1>, vector<8x8xf32>
    %c0_11 = arith.constant 0 : index
    %c0_12 = arith.constant 0 : index
    %c0_13 = arith.constant 0 : index
    %17 = vector.load %arg3[%c0_11, %c0_12, %c0_13] : memref<1x1x8xf32, #tpu.memory_space<vmem>>, vector<1x1x8xf32>
    %18 = vector.shape_cast %17 : vector<1x1x8xf32> to vector<1x8xf32>
    %19 = vector.broadcast %18 : vector<1x8xf32> to vector<8x8xf32>
    %20 = arith.addf %16, %19 : vector<8x8xf32>
    %21 = arith.truncf %10 : vector<8x32xf32> to vector<8x32xbf16>
    %c0_14 = arith.constant 0 : index
    %c0_15 = arith.constant 0 : index
    %c0_16 = arith.constant 0 : index
    %22 = vector.load %arg6[%c0_14, %c0_15, %c0_16] : memref<2x32x96xbf16, #tpu.memory_space<vmem>>, vector<1x32x96xbf16>
    %23 = vector.shape_cast %22 : vector<1x32x96xbf16> to vector<32x96xbf16>
    %cst_17 = arith.constant dense<0.000000e+00> : vector<8x96xf32>
    %24 = tpu.matmul %21, %23, %cst_17 {dimension_numbers = #tpu.dot_dimension_numbers<[1], [0], [0], [1], [0, 0, 1, 1], [], []>} : vector<8x32xbf16>, vector<32x96xbf16>, vector<8x96xf32> -> vector<8x96xf32>
    %c0_18 = arith.constant 0 : index
    %c0_19 = arith.constant 0 : index
    %c0_20 = arith.constant 0 : index
    %25 = vector.load %arg7[%c0_18, %c0_19, %c0_20] : memref<2x1x96xf32, #tpu.memory_space<vmem>>, vector<1x1x96xf32>
    %26 = vector.shape_cast %25 : vector<1x1x96xf32> to vector<1x96xf32>
    %27 = vector.broadcast %26 : vector<1x96xf32> to vector<8x96xf32>
    %28 = arith.addf %24, %27 : vector<8x96xf32>
    %29 = arith.truncf %28 : vector<8x96xf32> to vector<8x96xbf16>
    %30 = vector.extract_strided_slice %29 {offsets = [0, 0], sizes = [8, 32], strides = [1, 1]} : vector<8x96xbf16> to vector<8x32xbf16>
    %31 = vector.extract_strided_slice %29 {offsets = [0, 32], sizes = [8, 32], strides = [1, 1]} : vector<8x96xbf16> to vector<8x32xbf16>
    %32 = vector.extract_strided_slice %29 {offsets = [0, 64], sizes = [8, 32], strides = [1, 1]} : vector<8x96xbf16> to vector<8x32xbf16>
    %c0_21 = arith.constant 0 : index
    %c0_22 = arith.constant 0 : index
    %c0_23 = arith.constant 0 : index
    %33 = vector.load %arg8[%c0_21, %c0_22, %c0_23] : memref<2x32x32xbf16, #tpu.memory_space<vmem>>, vector<1x32x32xbf16>
    %34 = vector.shape_cast %33 : vector<1x32x32xbf16> to vector<32x32xbf16>
    %cst_24 = arith.constant 0.000000e+00 : f32
    %35 = vector.broadcast %cst_24 : f32 to vector<8x32xf32>
    %36 = vector.extract_strided_slice %30 {offsets = [0, 0], sizes = [8, 8], strides = [1, 1]} : vector<8x32xbf16> to vector<8x8xbf16>
    %37 = vector.extract_strided_slice %31 {offsets = [0, 0], sizes = [8, 8], strides = [1, 1]} : vector<8x32xbf16> to vector<8x8xbf16>
    %38 = vector.extract_strided_slice %32 {offsets = [0, 0], sizes = [8, 8], strides = [1, 1]} : vector<8x32xbf16> to vector<8x8xbf16>
    %cst_25 = arith.constant dense<0.000000e+00> : vector<8x8xf32>
    %39 = tpu.matmul %36, %37, %cst_25 {dimension_numbers = #tpu.dot_dimension_numbers<[1], [1], [0], [0], [0, 0, 1, 0], [], []>} : vector<8x8xbf16>, vector<8x8xbf16>, vector<8x8xf32> -> vector<8x8xf32>
    %cst_26 = arith.constant 0.353553385 : f32
    %40 = vector.broadcast %cst_26 : f32 to vector<8x8xf32>
    %41 = arith.mulf %39, %40 : vector<8x8xf32>
    %42 = arith.addf %41, %20 : vector<8x8xf32>
    %cst_27 = arith.constant dense<0xFF800000> : vector<8xf32>
    %43 = vector.multi_reduction <maximumf>, %42, %cst_27 [1] : vector<8x8xf32> to vector<8xf32>
    %44 = vector.shape_cast %43 : vector<8xf32> to vector<8x1xf32>
    %45 = vector.broadcast %44 : vector<8x1xf32> to vector<8x8xf32>
    %46 = arith.subf %42, %45 : vector<8x8xf32>
    %47 = math.exp %46 : vector<8x8xf32>
    %cst_28 = arith.constant dense<0.000000e+00> : vector<8xf32>
    %48 = vector.multi_reduction <add>, %47, %cst_28 [1] : vector<8x8xf32> to vector<8xf32>
    %49 = vector.shape_cast %48 : vector<8xf32> to vector<8x1xf32>
    %50 = tpu.reciprocal %49 {approx = true} : vector<8x1xf32> -> vector<8x1xf32>
    %51 = vector.broadcast %50 : vector<8x1xf32> to vector<8x8xf32>
    %52 = arith.mulf %47, %51 : vector<8x8xf32>
    %53 = arith.truncf %52 : vector<8x8xf32> to vector<8x8xbf16>
    %cst_29 = arith.constant dense<0.000000e+00> : vector<8x8xf32>
    %54 = tpu.matmul %53, %38, %cst_29 {dimension_numbers = #tpu.dot_dimension_numbers<[1], [0], [0], [1], [0, 0, 1, 1], [], []>} : vector<8x8xbf16>, vector<8x8xbf16>, vector<8x8xf32> -> vector<8x8xf32>
    %55 = arith.truncf %54 : vector<8x8xf32> to vector<8x8xbf16>
    %56 = vector.extract_strided_slice %34 {offsets = [0, 0], sizes = [8, 32], strides = [1, 1]} : vector<32x32xbf16> to vector<8x32xbf16>
    %cst_30 = arith.constant dense<0.000000e+00> : vector<8x32xf32>
    %57 = tpu.matmul %55, %56, %cst_30 {dimension_numbers = #tpu.dot_dimension_numbers<[1], [0], [0], [1], [0, 0, 1, 1], [], []>} : vector<8x8xbf16>, vector<8x32xbf16>, vector<8x32xf32> -> vector<8x32xf32>
    %58 = arith.addf %35, %57 : vector<8x32xf32>
    %59 = vector.extract_strided_slice %30 {offsets = [0, 8], sizes = [8, 8], strides = [1, 1]} : vector<8x32xbf16> to vector<8x8xbf16>
    %60 = vector.extract_strided_slice %31 {offsets = [0, 8], sizes = [8, 8], strides = [1, 1]} : vector<8x32xbf16> to vector<8x8xbf16>
    %61 = vector.extract_strided_slice %32 {offsets = [0, 8], sizes = [8, 8], strides = [1, 1]} : vector<8x32xbf16> to vector<8x8xbf16>
    %cst_31 = arith.constant dense<0.000000e+00> : vector<8x8xf32>
    %62 = tpu.matmul %59, %60, %cst_31 {dimension_numbers = #tpu.dot_dimension_numbers<[1], [1], [0], [0], [0, 0, 1, 0], [], []>} : vector<8x8xbf16>, vector<8x8xbf16>, vector<8x8xf32> -> vector<8x8xf32>
    %cst_32 = arith.constant 0.353553385 : f32
    %63 = vector.broadcast %cst_32 : f32 to vector<8x8xf32>
    %64 = arith.mulf %62, %63 : vector<8x8xf32>
    %65 = arith.addf %64, %20 : vector<8x8xf32>
    %cst_33 = arith.constant dense<0xFF800000> : vector<8xf32>
    %66 = vector.multi_reduction <maximumf>, %65, %cst_33 [1] : vector<8x8xf32> to vector<8xf32>
    %67 = vector.shape_cast %66 : vector<8xf32> to vector<8x1xf32>
    %68 = vector.broadcast %67 : vector<8x1xf32> to vector<8x8xf32>
    %69 = arith.subf %65, %68 : vector<8x8xf32>
    %70 = math.exp %69 : vector<8x8xf32>
    %cst_34 = arith.constant dense<0.000000e+00> : vector<8xf32>
    %71 = vector.multi_reduction <add>, %70, %cst_34 [1] : vector<8x8xf32> to vector<8xf32>
    %72 = vector.shape_cast %71 : vector<8xf32> to vector<8x1xf32>
    %73 = tpu.reciprocal %72 {approx = true} : vector<8x1xf32> -> vector<8x1xf32>
    %74 = vector.broadcast %73 : vector<8x1xf32> to vector<8x8xf32>
    %75 = arith.mulf %70, %74 : vector<8x8xf32>
    %76 = arith.truncf %75 : vector<8x8xf32> to vector<8x8xbf16>
    %cst_35 = arith.constant dense<0.000000e+00> : vector<8x8xf32>
    %77 = tpu.matmul %76, %61, %cst_35 {dimension_numbers = #tpu.dot_dimension_numbers<[1], [0], [0], [1], [0, 0, 1, 1], [], []>} : vector<8x8xbf16>, vector<8x8xbf16>, vector<8x8xf32> -> vector<8x8xf32>
    %78 = arith.truncf %77 : vector<8x8xf32> to vector<8x8xbf16>
    %79 = vector.extract_strided_slice %34 {offsets = [8, 0], sizes = [8, 32], strides = [1, 1]} : vector<32x32xbf16> to vector<8x32xbf16>
    %cst_36 = arith.constant dense<0.000000e+00> : vector<8x32xf32>
    %80 = tpu.matmul %78, %79, %cst_36 {dimension_numbers = #tpu.dot_dimension_numbers<[1], [0], [0], [1], [0, 0, 1, 1], [], []>} : vector<8x8xbf16>, vector<8x32xbf16>, vector<8x32xf32> -> vector<8x32xf32>
    %81 = arith.addf %58, %80 : vector<8x32xf32>
    %82 = vector.extract_strided_slice %30 {offsets = [0, 16], sizes = [8, 8], strides = [1, 1]} : vector<8x32xbf16> to vector<8x8xbf16>
    %83 = vector.extract_strided_slice %31 {offsets = [0, 16], sizes = [8, 8], strides = [1, 1]} : vector<8x32xbf16> to vector<8x8xbf16>
    %84 = vector.extract_strided_slice %32 {offsets = [0, 16], sizes = [8, 8], strides = [1, 1]} : vector<8x32xbf16> to vector<8x8xbf16>
    %cst_37 = arith.constant dense<0.000000e+00> : vector<8x8xf32>
    %85 = tpu.matmul %82, %83, %cst_37 {dimension_numbers = #tpu.dot_dimension_numbers<[1], [1], [0], [0], [0, 0, 1, 0], [], []>} : vector<8x8xbf16>, vector<8x8xbf16>, vector<8x8xf32> -> vector<8x8xf32>
    %cst_38 = arith.constant 0.353553385 : f32
    %86 = vector.broadcast %cst_38 : f32 to vector<8x8xf32>
    %87 = arith.mulf %85, %86 : vector<8x8xf32>
    %88 = arith.addf %87, %20 : vector<8x8xf32>
    %cst_39 = arith.constant dense<0xFF800000> : vector<8xf32>
    %89 = vector.multi_reduction <maximumf>, %88, %cst_39 [1] : vector<8x8xf32> to vector<8xf32>
    %90 = vector.shape_cast %89 : vector<8xf32> to vector<8x1xf32>
    %91 = vector.broadcast %90 : vector<8x1xf32> to vector<8x8xf32>
    %92 = arith.subf %88, %91 : vector<8x8xf32>
    %93 = math.exp %92 : vector<8x8xf32>
    %cst_40 = arith.constant dense<0.000000e+00> : vector<8xf32>
    %94 = vector.multi_reduction <add>, %93, %cst_40 [1] : vector<8x8xf32> to vector<8xf32>
    %95 = vector.shape_cast %94 : vector<8xf32> to vector<8x1xf32>
    %96 = tpu.reciprocal %95 {approx = true} : vector<8x1xf32> -> vector<8x1xf32>
    %97 = vector.broadcast %96 : vector<8x1xf32> to vector<8x8xf32>
    %98 = arith.mulf %93, %97 : vector<8x8xf32>
    %99 = arith.truncf %98 : vector<8x8xf32> to vector<8x8xbf16>
    %cst_41 = arith.constant dense<0.000000e+00> : vector<8x8xf32>
    %100 = tpu.matmul %99, %84, %cst_41 {dimension_numbers = #tpu.dot_dimension_numbers<[1], [0], [0], [1], [0, 0, 1, 1], [], []>} : vector<8x8xbf16>, vector<8x8xbf16>, vector<8x8xf32> -> vector<8x8xf32>
    %101 = arith.truncf %100 : vector<8x8xf32> to vector<8x8xbf16>
    %102 = vector.extract_strided_slice %34 {offsets = [16, 0], sizes = [8, 32], strides = [1, 1]} : vector<32x32xbf16> to vector<8x32xbf16>
    %cst_42 = arith.constant dense<0.000000e+00> : vector<8x32xf32>
    %103 = tpu.matmul %101, %102, %cst_42 {dimension_numbers = #tpu.dot_dimension_numbers<[1], [0], [0], [1], [0, 0, 1, 1], [], []>} : vector<8x8xbf16>, vector<8x32xbf16>, vector<8x32xf32> -> vector<8x32xf32>
    %104 = arith.addf %81, %103 : vector<8x32xf32>
    %105 = vector.extract_strided_slice %30 {offsets = [0, 24], sizes = [8, 8], strides = [1, 1]} : vector<8x32xbf16> to vector<8x8xbf16>
    %106 = vector.extract_strided_slice %31 {offsets = [0, 24], sizes = [8, 8], strides = [1, 1]} : vector<8x32xbf16> to vector<8x8xbf16>
    %107 = vector.extract_strided_slice %32 {offsets = [0, 24], sizes = [8, 8], strides = [1, 1]} : vector<8x32xbf16> to vector<8x8xbf16>
    %cst_43 = arith.constant dense<0.000000e+00> : vector<8x8xf32>
    %108 = tpu.matmul %105, %106, %cst_43 {dimension_numbers = #tpu.dot_dimension_numbers<[1], [1], [0], [0], [0, 0, 1, 0], [], []>} : vector<8x8xbf16>, vector<8x8xbf16>, vector<8x8xf32> -> vector<8x8xf32>
    %cst_44 = arith.constant 0.353553385 : f32
    %109 = vector.broadcast %cst_44 : f32 to vector<8x8xf32>
    %110 = arith.mulf %108, %109 : vector<8x8xf32>
    %111 = arith.addf %110, %20 : vector<8x8xf32>
    %cst_45 = arith.constant dense<0xFF800000> : vector<8xf32>
    %112 = vector.multi_reduction <maximumf>, %111, %cst_45 [1] : vector<8x8xf32> to vector<8xf32>
    %113 = vector.shape_cast %112 : vector<8xf32> to vector<8x1xf32>
    %114 = vector.broadcast %113 : vector<8x1xf32> to vector<8x8xf32>
    %115 = arith.subf %111, %114 : vector<8x8xf32>
    %116 = math.exp %115 : vector<8x8xf32>
    %cst_46 = arith.constant dense<0.000000e+00> : vector<8xf32>
    %117 = vector.multi_reduction <add>, %116, %cst_46 [1] : vector<8x8xf32> to vector<8xf32>
    %118 = vector.shape_cast %117 : vector<8xf32> to vector<8x1xf32>
    %119 = tpu.reciprocal %118 {approx = true} : vector<8x1xf32> -> vector<8x1xf32>
    %120 = vector.broadcast %119 : vector<8x1xf32> to vector<8x8xf32>
    %121 = arith.mulf %116, %120 : vector<8x8xf32>
    %122 = arith.truncf %121 : vector<8x8xf32> to vector<8x8xbf16>
    %cst_47 = arith.constant dense<0.000000e+00> : vector<8x8xf32>
    %123 = tpu.matmul %122, %107, %cst_47 {dimension_numbers = #tpu.dot_dimension_numbers<[1], [0], [0], [1], [0, 0, 1, 1], [], []>} : vector<8x8xbf16>, vector<8x8xbf16>, vector<8x8xf32> -> vector<8x8xf32>
    %124 = arith.truncf %123 : vector<8x8xf32> to vector<8x8xbf16>
    %125 = vector.extract_strided_slice %34 {offsets = [24, 0], sizes = [8, 32], strides = [1, 1]} : vector<32x32xbf16> to vector<8x32xbf16>
    %cst_48 = arith.constant dense<0.000000e+00> : vector<8x32xf32>
    %126 = tpu.matmul %124, %125, %cst_48 {dimension_numbers = #tpu.dot_dimension_numbers<[1], [0], [0], [1], [0, 0, 1, 1], [], []>} : vector<8x8xbf16>, vector<8x32xbf16>, vector<8x32xf32> -> vector<8x32xf32>
    %127 = arith.addf %104, %126 : vector<8x32xf32>
    %128 = arith.addf %10, %127 : vector<8x32xf32>
    %c0_49 = arith.constant 0 : index
    %c0_50 = arith.constant 0 : index
    %c0_51 = arith.constant 0 : index
    %129 = vector.load %arg9[%c0_49, %c0_50, %c0_51] : memref<2x1x32xf32, #tpu.memory_space<vmem>>, vector<1x1x32xf32>
    %130 = vector.shape_cast %129 : vector<1x1x32xf32> to vector<1x32xf32>
    %131 = vector.broadcast %130 : vector<1x32xf32> to vector<8x32xf32>
    %132 = arith.addf %128, %131 : vector<8x32xf32>
    %c0_52 = arith.constant 0 : index
    %c0_53 = arith.constant 0 : index
    %c0_54 = arith.constant 0 : index
    %133 = vector.load %arg10[%c0_52, %c0_53, %c0_54] : memref<2x1x32xf32, #tpu.memory_space<vmem>>, vector<1x1x32xf32>
    %134 = vector.shape_cast %133 : vector<1x1x32xf32> to vector<1x32xf32>
    %c0_55 = arith.constant 0 : index
    %c0_56 = arith.constant 0 : index
    %c0_57 = arith.constant 0 : index
    %135 = vector.load %arg11[%c0_55, %c0_56, %c0_57] : memref<2x1x32xf32, #tpu.memory_space<vmem>>, vector<1x1x32xf32>
    %136 = vector.shape_cast %135 : vector<1x1x32xf32> to vector<1x32xf32>
    %cst_58 = arith.constant dense<0.000000e+00> : vector<8xf32>
    %137 = vector.multi_reduction <add>, %132, %cst_58 [1] : vector<8x32xf32> to vector<8xf32>
    %138 = vector.shape_cast %137 : vector<8xf32> to vector<8x1xf32>
    %cst_59 = arith.constant 3.200000e+01 : f32
    %139 = vector.broadcast %cst_59 : f32 to vector<8x1xf32>
    %140 = arith.divf %138, %139 : vector<8x1xf32>
    %141 = vector.broadcast %140 : vector<8x1xf32> to vector<8x32xf32>
    %142 = arith.subf %132, %141 : vector<8x32xf32>
    %143 = arith.mulf %142, %142 : vector<8x32xf32>
    %cst_60 = arith.constant dense<0.000000e+00> : vector<8xf32>
    %144 = vector.multi_reduction <add>, %143, %cst_60 [1] : vector<8x32xf32> to vector<8xf32>
    %145 = vector.shape_cast %144 : vector<8xf32> to vector<8x1xf32>
    %cst_61 = arith.constant 3.200000e+01 : f32
    %146 = vector.broadcast %cst_61 : f32 to vector<8x1xf32>
    %147 = arith.divf %145, %146 : vector<8x1xf32>
    %148 = vector.broadcast %140 : vector<8x1xf32> to vector<8x32xf32>
    %149 = arith.subf %132, %148 : vector<8x32xf32>
    %cst_62 = arith.constant 9.99999974E-6 : f32
    %150 = vector.broadcast %cst_62 : f32 to vector<8x1xf32>
    %151 = arith.addf %147, %150 : vector<8x1xf32>
    %152 = math.rsqrt %151 : vector<8x1xf32>
    %153 = vector.broadcast %152 : vector<8x1xf32> to vector<8x32xf32>
    %154 = arith.mulf %149, %153 : vector<8x32xf32>
    %155 = vector.broadcast %134 : vector<1x32xf32> to vector<8x32xf32>
    %156 = arith.mulf %154, %155 : vector<8x32xf32>
    %157 = vector.broadcast %136 : vector<1x32xf32> to vector<8x32xf32>
    %158 = arith.addf %156, %157 : vector<8x32xf32>
    %159 = arith.truncf %158 : vector<8x32xf32> to vector<8x32xbf16>
    %c0_63 = arith.constant 0 : index
    %c0_64 = arith.constant 0 : index
    %c0_65 = arith.constant 0 : index
    %160 = vector.load %arg12[%c0_63, %c0_64, %c0_65] : memref<2x32x32xbf16, #tpu.memory_space<vmem>>, vector<1x32x32xbf16>
    %161 = vector.shape_cast %160 : vector<1x32x32xbf16> to vector<32x32xbf16>
    %cst_66 = arith.constant dense<0.000000e+00> : vector<8x32xf32>
    %162 = tpu.matmul %159, %161, %cst_66 {dimension_numbers = #tpu.dot_dimension_numbers<[1], [0], [0], [1], [0, 0, 1, 1], [], []>} : vector<8x32xbf16>, vector<32x32xbf16>, vector<8x32xf32> -> vector<8x32xf32>
    %c0_67 = arith.constant 0 : index
    %c0_68 = arith.constant 0 : index
    %c0_69 = arith.constant 0 : index
    %163 = vector.load %arg13[%c0_67, %c0_68, %c0_69] : memref<2x1x32xf32, #tpu.memory_space<vmem>>, vector<1x1x32xf32>
    %164 = vector.shape_cast %163 : vector<1x1x32xf32> to vector<1x32xf32>
    %165 = vector.broadcast %164 : vector<1x32xf32> to vector<8x32xf32>
    %166 = arith.addf %162, %165 : vector<8x32xf32>
    %c0_70 = arith.constant 0 : index
    %c0_71 = arith.constant 0 : index
    %c0_72 = arith.constant 0 : index
    %167 = vector.load %arg14[%c0_70, %c0_71, %c0_72] : memref<2x32x64xbf16, #tpu.memory_space<vmem>>, vector<1x32x64xbf16>
    %168 = vector.shape_cast %167 : vector<1x32x64xbf16> to vector<32x64xbf16>
    %cst_73 = arith.constant dense<0.000000e+00> : vector<8x64xf32>
    %169 = tpu.matmul %8, %168, %cst_73 {dimension_numbers = #tpu.dot_dimension_numbers<[1], [0], [0], [1], [0, 0, 1, 1], [], []>} : vector<8x32xbf16>, vector<32x64xbf16>, vector<8x64xf32> -> vector<8x64xf32>
    %c0_74 = arith.constant 0 : index
    %c0_75 = arith.constant 0 : index
    %c0_76 = arith.constant 0 : index
    %170 = vector.load %arg15[%c0_74, %c0_75, %c0_76] : memref<2x1x64xf32, #tpu.memory_space<vmem>>, vector<1x1x64xf32>
    %171 = vector.shape_cast %170 : vector<1x1x64xf32> to vector<1x64xf32>
    %172 = vector.broadcast %171 : vector<1x64xf32> to vector<8x64xf32>
    %173 = arith.addf %169, %172 : vector<8x64xf32>
    %174 = arith.truncf %173 : vector<8x64xf32> to vector<8x64xbf16>
    %175 = arith.truncf %166 : vector<8x32xf32> to vector<8x32xbf16>
    %176 = vector.extract_strided_slice %174 {offsets = [0, 0], sizes = [8, 32], strides = [1, 1]} : vector<8x64xbf16> to vector<8x32xbf16>
    %177 = vector.extract_strided_slice %174 {offsets = [0, 32], sizes = [8, 32], strides = [1, 1]} : vector<8x64xbf16> to vector<8x32xbf16>
    %c0_77 = arith.constant 0 : index
    %c0_78 = arith.constant 0 : index
    %c0_79 = arith.constant 0 : index
    %178 = vector.load %arg16[%c0_77, %c0_78, %c0_79] : memref<2x32x32xbf16, #tpu.memory_space<vmem>>, vector<1x32x32xbf16>
    %179 = vector.shape_cast %178 : vector<1x32x32xbf16> to vector<32x32xbf16>
    %cst_80 = arith.constant 0.000000e+00 : f32
    %180 = vector.broadcast %cst_80 : f32 to vector<8x32xf32>
    %181 = vector.extract_strided_slice %175 {offsets = [0, 0], sizes = [8, 8], strides = [1, 1]} : vector<8x32xbf16> to vector<8x8xbf16>
    %182 = vector.extract_strided_slice %176 {offsets = [0, 0], sizes = [8, 8], strides = [1, 1]} : vector<8x32xbf16> to vector<8x8xbf16>
    %183 = vector.extract_strided_slice %177 {offsets = [0, 0], sizes = [8, 8], strides = [1, 1]} : vector<8x32xbf16> to vector<8x8xbf16>
    %cst_81 = arith.constant dense<0.000000e+00> : vector<8x8xf32>
    %184 = tpu.matmul %181, %182, %cst_81 {dimension_numbers = #tpu.dot_dimension_numbers<[1], [1], [0], [0], [0, 0, 1, 0], [], []>} : vector<8x8xbf16>, vector<8x8xbf16>, vector<8x8xf32> -> vector<8x8xf32>
    %cst_82 = arith.constant 0.353553385 : f32
    %185 = vector.broadcast %cst_82 : f32 to vector<8x8xf32>
    %186 = arith.mulf %184, %185 : vector<8x8xf32>
    %cst_83 = arith.constant dense<0xFF800000> : vector<8xf32>
    %187 = vector.multi_reduction <maximumf>, %186, %cst_83 [1] : vector<8x8xf32> to vector<8xf32>
    %188 = vector.shape_cast %187 : vector<8xf32> to vector<8x1xf32>
    %189 = vector.broadcast %188 : vector<8x1xf32> to vector<8x8xf32>
    %190 = arith.subf %186, %189 : vector<8x8xf32>
    %191 = math.exp %190 : vector<8x8xf32>
    %cst_84 = arith.constant dense<0.000000e+00> : vector<8xf32>
    %192 = vector.multi_reduction <add>, %191, %cst_84 [1] : vector<8x8xf32> to vector<8xf32>
    %193 = vector.shape_cast %192 : vector<8xf32> to vector<8x1xf32>
    %194 = tpu.reciprocal %193 {approx = true} : vector<8x1xf32> -> vector<8x1xf32>
    %195 = vector.broadcast %194 : vector<8x1xf32> to vector<8x8xf32>
    %196 = arith.mulf %191, %195 : vector<8x8xf32>
    %197 = arith.truncf %196 : vector<8x8xf32> to vector<8x8xbf16>
    %cst_85 = arith.constant dense<0.000000e+00> : vector<8x8xf32>
    %198 = tpu.matmul %197, %183, %cst_85 {dimension_numbers = #tpu.dot_dimension_numbers<[1], [0], [0], [1], [0, 0, 1, 1], [], []>} : vector<8x8xbf16>, vector<8x8xbf16>, vector<8x8xf32> -> vector<8x8xf32>
    %199 = arith.truncf %198 : vector<8x8xf32> to vector<8x8xbf16>
    %200 = vector.extract_strided_slice %179 {offsets = [0, 0], sizes = [8, 32], strides = [1, 1]} : vector<32x32xbf16> to vector<8x32xbf16>
    %cst_86 = arith.constant dense<0.000000e+00> : vector<8x32xf32>
    %201 = tpu.matmul %199, %200, %cst_86 {dimension_numbers = #tpu.dot_dimension_numbers<[1], [0], [0], [1], [0, 0, 1, 1], [], []>} : vector<8x8xbf16>, vector<8x32xbf16>, vector<8x32xf32> -> vector<8x32xf32>
    %202 = arith.addf %180, %201 : vector<8x32xf32>
    %203 = vector.extract_strided_slice %175 {offsets = [0, 8], sizes = [8, 8], strides = [1, 1]} : vector<8x32xbf16> to vector<8x8xbf16>
    %204 = vector.extract_strided_slice %176 {offsets = [0, 8], sizes = [8, 8], strides = [1, 1]} : vector<8x32xbf16> to vector<8x8xbf16>
    %205 = vector.extract_strided_slice %177 {offsets = [0, 8], sizes = [8, 8], strides = [1, 1]} : vector<8x32xbf16> to vector<8x8xbf16>
    %cst_87 = arith.constant dense<0.000000e+00> : vector<8x8xf32>
    %206 = tpu.matmul %203, %204, %cst_87 {dimension_numbers = #tpu.dot_dimension_numbers<[1], [1], [0], [0], [0, 0, 1, 0], [], []>} : vector<8x8xbf16>, vector<8x8xbf16>, vector<8x8xf32> -> vector<8x8xf32>
    %cst_88 = arith.constant 0.353553385 : f32
    %207 = vector.broadcast %cst_88 : f32 to vector<8x8xf32>
    %208 = arith.mulf %206, %207 : vector<8x8xf32>
    %cst_89 = arith.constant dense<0xFF800000> : vector<8xf32>
    %209 = vector.multi_reduction <maximumf>, %208, %cst_89 [1] : vector<8x8xf32> to vector<8xf32>
    %210 = vector.shape_cast %209 : vector<8xf32> to vector<8x1xf32>
    %211 = vector.broadcast %210 : vector<8x1xf32> to vector<8x8xf32>
    %212 = arith.subf %208, %211 : vector<8x8xf32>
    %213 = math.exp %212 : vector<8x8xf32>
    %cst_90 = arith.constant dense<0.000000e+00> : vector<8xf32>
    %214 = vector.multi_reduction <add>, %213, %cst_90 [1] : vector<8x8xf32> to vector<8xf32>
    %215 = vector.shape_cast %214 : vector<8xf32> to vector<8x1xf32>
    %216 = tpu.reciprocal %215 {approx = true} : vector<8x1xf32> -> vector<8x1xf32>
    %217 = vector.broadcast %216 : vector<8x1xf32> to vector<8x8xf32>
    %218 = arith.mulf %213, %217 : vector<8x8xf32>
    %219 = arith.truncf %218 : vector<8x8xf32> to vector<8x8xbf16>
    %cst_91 = arith.constant dense<0.000000e+00> : vector<8x8xf32>
    %220 = tpu.matmul %219, %205, %cst_91 {dimension_numbers = #tpu.dot_dimension_numbers<[1], [0], [0], [1], [0, 0, 1, 1], [], []>} : vector<8x8xbf16>, vector<8x8xbf16>, vector<8x8xf32> -> vector<8x8xf32>
    %221 = arith.truncf %220 : vector<8x8xf32> to vector<8x8xbf16>
    %222 = vector.extract_strided_slice %179 {offsets = [8, 0], sizes = [8, 32], strides = [1, 1]} : vector<32x32xbf16> to vector<8x32xbf16>
    %cst_92 = arith.constant dense<0.000000e+00> : vector<8x32xf32>
    %223 = tpu.matmul %221, %222, %cst_92 {dimension_numbers = #tpu.dot_dimension_numbers<[1], [0], [0], [1], [0, 0, 1, 1], [], []>} : vector<8x8xbf16>, vector<8x32xbf16>, vector<8x32xf32> -> vector<8x32xf32>
    %224 = arith.addf %202, %223 : vector<8x32xf32>
    %225 = vector.extract_strided_slice %175 {offsets = [0, 16], sizes = [8, 8], strides = [1, 1]} : vector<8x32xbf16> to vector<8x8xbf16>
    %226 = vector.extract_strided_slice %176 {offsets = [0, 16], sizes = [8, 8], strides = [1, 1]} : vector<8x32xbf16> to vector<8x8xbf16>
    %227 = vector.extract_strided_slice %177 {offsets = [0, 16], sizes = [8, 8], strides = [1, 1]} : vector<8x32xbf16> to vector<8x8xbf16>
    %cst_93 = arith.constant dense<0.000000e+00> : vector<8x8xf32>
    %228 = tpu.matmul %225, %226, %cst_93 {dimension_numbers = #tpu.dot_dimension_numbers<[1], [1], [0], [0], [0, 0, 1, 0], [], []>} : vector<8x8xbf16>, vector<8x8xbf16>, vector<8x8xf32> -> vector<8x8xf32>
    %cst_94 = arith.constant 0.353553385 : f32
    %229 = vector.broadcast %cst_94 : f32 to vector<8x8xf32>
    %230 = arith.mulf %228, %229 : vector<8x8xf32>
    %cst_95 = arith.constant dense<0xFF800000> : vector<8xf32>
    %231 = vector.multi_reduction <maximumf>, %230, %cst_95 [1] : vector<8x8xf32> to vector<8xf32>
    %232 = vector.shape_cast %231 : vector<8xf32> to vector<8x1xf32>
    %233 = vector.broadcast %232 : vector<8x1xf32> to vector<8x8xf32>
    %234 = arith.subf %230, %233 : vector<8x8xf32>
    %235 = math.exp %234 : vector<8x8xf32>
    %cst_96 = arith.constant dense<0.000000e+00> : vector<8xf32>
    %236 = vector.multi_reduction <add>, %235, %cst_96 [1] : vector<8x8xf32> to vector<8xf32>
    %237 = vector.shape_cast %236 : vector<8xf32> to vector<8x1xf32>
    %238 = tpu.reciprocal %237 {approx = true} : vector<8x1xf32> -> vector<8x1xf32>
    %239 = vector.broadcast %238 : vector<8x1xf32> to vector<8x8xf32>
    %240 = arith.mulf %235, %239 : vector<8x8xf32>
    %241 = arith.truncf %240 : vector<8x8xf32> to vector<8x8xbf16>
    %cst_97 = arith.constant dense<0.000000e+00> : vector<8x8xf32>
    %242 = tpu.matmul %241, %227, %cst_97 {dimension_numbers = #tpu.dot_dimension_numbers<[1], [0], [0], [1], [0, 0, 1, 1], [], []>} : vector<8x8xbf16>, vector<8x8xbf16>, vector<8x8xf32> -> vector<8x8xf32>
    %243 = arith.truncf %242 : vector<8x8xf32> to vector<8x8xbf16>
    %244 = vector.extract_strided_slice %179 {offsets = [16, 0], sizes = [8, 32], strides = [1, 1]} : vector<32x32xbf16> to vector<8x32xbf16>
    %cst_98 = arith.constant dense<0.000000e+00> : vector<8x32xf32>
    %245 = tpu.matmul %243, %244, %cst_98 {dimension_numbers = #tpu.dot_dimension_numbers<[1], [0], [0], [1], [0, 0, 1, 1], [], []>} : vector<8x8xbf16>, vector<8x32xbf16>, vector<8x32xf32> -> vector<8x32xf32>
    %246 = arith.addf %224, %245 : vector<8x32xf32>
    %247 = vector.extract_strided_slice %175 {offsets = [0, 24], sizes = [8, 8], strides = [1, 1]} : vector<8x32xbf16> to vector<8x8xbf16>
    %248 = vector.extract_strided_slice %176 {offsets = [0, 24], sizes = [8, 8], strides = [1, 1]} : vector<8x32xbf16> to vector<8x8xbf16>
    %249 = vector.extract_strided_slice %177 {offsets = [0, 24], sizes = [8, 8], strides = [1, 1]} : vector<8x32xbf16> to vector<8x8xbf16>
    %cst_99 = arith.constant dense<0.000000e+00> : vector<8x8xf32>
    %250 = tpu.matmul %247, %248, %cst_99 {dimension_numbers = #tpu.dot_dimension_numbers<[1], [1], [0], [0], [0, 0, 1, 0], [], []>} : vector<8x8xbf16>, vector<8x8xbf16>, vector<8x8xf32> -> vector<8x8xf32>
    %cst_100 = arith.constant 0.353553385 : f32
    %251 = vector.broadcast %cst_100 : f32 to vector<8x8xf32>
    %252 = arith.mulf %250, %251 : vector<8x8xf32>
    %cst_101 = arith.constant dense<0xFF800000> : vector<8xf32>
    %253 = vector.multi_reduction <maximumf>, %252, %cst_101 [1] : vector<8x8xf32> to vector<8xf32>
    %254 = vector.shape_cast %253 : vector<8xf32> to vector<8x1xf32>
    %255 = vector.broadcast %254 : vector<8x1xf32> to vector<8x8xf32>
    %256 = arith.subf %252, %255 : vector<8x8xf32>
    %257 = math.exp %256 : vector<8x8xf32>
    %cst_102 = arith.constant dense<0.000000e+00> : vector<8xf32>
    %258 = vector.multi_reduction <add>, %257, %cst_102 [1] : vector<8x8xf32> to vector<8xf32>
    %259 = vector.shape_cast %258 : vector<8xf32> to vector<8x1xf32>
    %260 = tpu.reciprocal %259 {approx = true} : vector<8x1xf32> -> vector<8x1xf32>
    %261 = vector.broadcast %260 : vector<8x1xf32> to vector<8x8xf32>
    %262 = arith.mulf %257, %261 : vector<8x8xf32>
    %263 = arith.truncf %262 : vector<8x8xf32> to vector<8x8xbf16>
    %cst_103 = arith.constant dense<0.000000e+00> : vector<8x8xf32>
    %264 = tpu.matmul %263, %249, %cst_103 {dimension_numbers = #tpu.dot_dimension_numbers<[1], [0], [0], [1], [0, 0, 1, 1], [], []>} : vector<8x8xbf16>, vector<8x8xbf16>, vector<8x8xf32> -> vector<8x8xf32>
    %265 = arith.truncf %264 : vector<8x8xf32> to vector<8x8xbf16>
    %266 = vector.extract_strided_slice %179 {offsets = [24, 0], sizes = [8, 32], strides = [1, 1]} : vector<32x32xbf16> to vector<8x32xbf16>
    %cst_104 = arith.constant dense<0.000000e+00> : vector<8x32xf32>
    %267 = tpu.matmul %265, %266, %cst_104 {dimension_numbers = #tpu.dot_dimension_numbers<[1], [0], [0], [1], [0, 0, 1, 1], [], []>} : vector<8x8xbf16>, vector<8x32xbf16>, vector<8x32xf32> -> vector<8x32xf32>
    %268 = arith.addf %246, %267 : vector<8x32xf32>
    %269 = arith.addf %158, %268 : vector<8x32xf32>
    %c0_105 = arith.constant 0 : index
    %c0_106 = arith.constant 0 : index
    %c0_107 = arith.constant 0 : index
    %270 = vector.load %arg17[%c0_105, %c0_106, %c0_107] : memref<2x1x32xf32, #tpu.memory_space<vmem>>, vector<1x1x32xf32>
    %271 = vector.shape_cast %270 : vector<1x1x32xf32> to vector<1x32xf32>
    %272 = vector.broadcast %271 : vector<1x32xf32> to vector<8x32xf32>
    %273 = arith.addf %269, %272 : vector<8x32xf32>
    %c0_108 = arith.constant 0 : index
    %c0_109 = arith.constant 0 : index
    %c0_110 = arith.constant 0 : index
    %274 = vector.load %arg18[%c0_108, %c0_109, %c0_110] : memref<2x1x32xf32, #tpu.memory_space<vmem>>, vector<1x1x32xf32>
    %275 = vector.shape_cast %274 : vector<1x1x32xf32> to vector<1x32xf32>
    %c0_111 = arith.constant 0 : index
    %c0_112 = arith.constant 0 : index
    %c0_113 = arith.constant 0 : index
    %276 = vector.load %arg19[%c0_111, %c0_112, %c0_113] : memref<2x1x32xf32, #tpu.memory_space<vmem>>, vector<1x1x32xf32>
    %277 = vector.shape_cast %276 : vector<1x1x32xf32> to vector<1x32xf32>
    %cst_114 = arith.constant dense<0.000000e+00> : vector<8xf32>
    %278 = vector.multi_reduction <add>, %273, %cst_114 [1] : vector<8x32xf32> to vector<8xf32>
    %279 = vector.shape_cast %278 : vector<8xf32> to vector<8x1xf32>
    %cst_115 = arith.constant 3.200000e+01 : f32
    %280 = vector.broadcast %cst_115 : f32 to vector<8x1xf32>
    %281 = arith.divf %279, %280 : vector<8x1xf32>
    %282 = vector.broadcast %281 : vector<8x1xf32> to vector<8x32xf32>
    %283 = arith.subf %273, %282 : vector<8x32xf32>
    %284 = arith.mulf %283, %283 : vector<8x32xf32>
    %cst_116 = arith.constant dense<0.000000e+00> : vector<8xf32>
    %285 = vector.multi_reduction <add>, %284, %cst_116 [1] : vector<8x32xf32> to vector<8xf32>
    %286 = vector.shape_cast %285 : vector<8xf32> to vector<8x1xf32>
    %cst_117 = arith.constant 3.200000e+01 : f32
    %287 = vector.broadcast %cst_117 : f32 to vector<8x1xf32>
    %288 = arith.divf %286, %287 : vector<8x1xf32>
    %289 = vector.broadcast %281 : vector<8x1xf32> to vector<8x32xf32>
    %290 = arith.subf %273, %289 : vector<8x32xf32>
    %cst_118 = arith.constant 9.99999974E-6 : f32
    %291 = vector.broadcast %cst_118 : f32 to vector<8x1xf32>
    %292 = arith.addf %288, %291 : vector<8x1xf32>
    %293 = math.rsqrt %292 : vector<8x1xf32>
    %294 = vector.broadcast %293 : vector<8x1xf32> to vector<8x32xf32>
    %295 = arith.mulf %290, %294 : vector<8x32xf32>
    %296 = vector.broadcast %275 : vector<1x32xf32> to vector<8x32xf32>
    %297 = arith.mulf %295, %296 : vector<8x32xf32>
    %298 = vector.broadcast %277 : vector<1x32xf32> to vector<8x32xf32>
    %299 = arith.addf %297, %298 : vector<8x32xf32>
    %300 = arith.truncf %299 : vector<8x32xf32> to vector<8x32xbf16>
    %c0_119 = arith.constant 0 : index
    %c0_120 = arith.constant 0 : index
    %c0_121 = arith.constant 0 : index
    %301 = vector.load %arg20[%c0_119, %c0_120, %c0_121] : memref<2x32x64xbf16, #tpu.memory_space<vmem>>, vector<1x32x64xbf16>
    %302 = vector.shape_cast %301 : vector<1x32x64xbf16> to vector<32x64xbf16>
    %cst_122 = arith.constant dense<0.000000e+00> : vector<8x64xf32>
    %303 = tpu.matmul %300, %302, %cst_122 {dimension_numbers = #tpu.dot_dimension_numbers<[1], [0], [0], [1], [0, 0, 1, 1], [], []>} : vector<8x32xbf16>, vector<32x64xbf16>, vector<8x64xf32> -> vector<8x64xf32>
    %c0_123 = arith.constant 0 : index
    %c0_124 = arith.constant 0 : index
    %c0_125 = arith.constant 0 : index
    %304 = vector.load %arg21[%c0_123, %c0_124, %c0_125] : memref<2x1x64xf32, #tpu.memory_space<vmem>>, vector<1x1x64xf32>
    %305 = vector.shape_cast %304 : vector<1x1x64xf32> to vector<1x64xf32>
    %306 = vector.broadcast %305 : vector<1x64xf32> to vector<8x64xf32>
    %307 = arith.addf %303, %306 : vector<8x64xf32>
    %cst_126 = arith.constant 0.000000e+00 : f32
    %308 = vector.broadcast %cst_126 : f32 to vector<8x64xf32>
    %309 = arith.maximumf %307, %308 : vector<8x64xf32>
    %310 = arith.truncf %309 : vector<8x64xf32> to vector<8x64xbf16>
    %c0_127 = arith.constant 0 : index
    %c0_128 = arith.constant 0 : index
    %c0_129 = arith.constant 0 : index
    %311 = vector.load %arg22[%c0_127, %c0_128, %c0_129] : memref<2x64x32xbf16, #tpu.memory_space<vmem>>, vector<1x64x32xbf16>
    %312 = vector.shape_cast %311 : vector<1x64x32xbf16> to vector<64x32xbf16>
    %cst_130 = arith.constant dense<0.000000e+00> : vector<8x32xf32>
    %313 = tpu.matmul %310, %312, %cst_130 {dimension_numbers = #tpu.dot_dimension_numbers<[1], [0], [0], [1], [0, 0, 1, 1], [], []>} : vector<8x64xbf16>, vector<64x32xbf16>, vector<8x32xf32> -> vector<8x32xf32>
    %c0_131 = arith.constant 0 : index
    %c0_132 = arith.constant 0 : index
    %c0_133 = arith.constant 0 : index
    %314 = vector.load %arg23[%c0_131, %c0_132, %c0_133] : memref<2x1x32xf32, #tpu.memory_space<vmem>>, vector<1x1x32xf32>
    %315 = vector.shape_cast %314 : vector<1x1x32xf32> to vector<1x32xf32>
    %316 = vector.broadcast %315 : vector<1x32xf32> to vector<8x32xf32>
    %317 = arith.addf %313, %316 : vector<8x32xf32>
    %318 = arith.addf %299, %317 : vector<8x32xf32>
    %c0_134 = arith.constant 0 : index
    %c0_135 = arith.constant 0 : index
    %c0_136 = arith.constant 0 : index
    %319 = vector.load %arg24[%c0_134, %c0_135, %c0_136] : memref<2x1x32xf32, #tpu.memory_space<vmem>>, vector<1x1x32xf32>
    %320 = vector.shape_cast %319 : vector<1x1x32xf32> to vector<1x32xf32>
    %c0_137 = arith.constant 0 : index
    %c0_138 = arith.constant 0 : index
    %c0_139 = arith.constant 0 : index
    %321 = vector.load %arg25[%c0_137, %c0_138, %c0_139] : memref<2x1x32xf32, #tpu.memory_space<vmem>>, vector<1x1x32xf32>
    %322 = vector.shape_cast %321 : vector<1x1x32xf32> to vector<1x32xf32>
    %cst_140 = arith.constant dense<0.000000e+00> : vector<8xf32>
    %323 = vector.multi_reduction <add>, %318, %cst_140 [1] : vector<8x32xf32> to vector<8xf32>
    %324 = vector.shape_cast %323 : vector<8xf32> to vector<8x1xf32>
    %cst_141 = arith.constant 3.200000e+01 : f32
    %325 = vector.broadcast %cst_141 : f32 to vector<8x1xf32>
    %326 = arith.divf %324, %325 : vector<8x1xf32>
    %327 = vector.broadcast %326 : vector<8x1xf32> to vector<8x32xf32>
    %328 = arith.subf %318, %327 : vector<8x32xf32>
    %329 = arith.mulf %328, %328 : vector<8x32xf32>
    %cst_142 = arith.constant dense<0.000000e+00> : vector<8xf32>
    %330 = vector.multi_reduction <add>, %329, %cst_142 [1] : vector<8x32xf32> to vector<8xf32>
    %331 = vector.shape_cast %330 : vector<8xf32> to vector<8x1xf32>
    %cst_143 = arith.constant 3.200000e+01 : f32
    %332 = vector.broadcast %cst_143 : f32 to vector<8x1xf32>
    %333 = arith.divf %331, %332 : vector<8x1xf32>
    %334 = vector.broadcast %326 : vector<8x1xf32> to vector<8x32xf32>
    %335 = arith.subf %318, %334 : vector<8x32xf32>
    %cst_144 = arith.constant 9.99999974E-6 : f32
    %336 = vector.broadcast %cst_144 : f32 to vector<8x1xf32>
    %337 = arith.addf %333, %336 : vector<8x1xf32>
    %338 = math.rsqrt %337 : vector<8x1xf32>
    %339 = vector.broadcast %338 : vector<8x1xf32> to vector<8x32xf32>
    %340 = arith.mulf %335, %339 : vector<8x32xf32>
    %341 = vector.broadcast %320 : vector<1x32xf32> to vector<8x32xf32>
    %342 = arith.mulf %340, %341 : vector<8x32xf32>
    %343 = vector.broadcast %322 : vector<1x32xf32> to vector<8x32xf32>
    %344 = arith.addf %342, %343 : vector<8x32xf32>
    %345 = arith.truncf %344 : vector<8x32xf32> to vector<8x32xbf16>
    %c1 = arith.constant 1 : index
    %c0_145 = arith.constant 0 : index
    %c0_146 = arith.constant 0 : index
    %346 = vector.load %arg6[%c1, %c0_145, %c0_146] : memref<2x32x96xbf16, #tpu.memory_space<vmem>>, vector<1x32x96xbf16>
    %347 = vector.shape_cast %346 : vector<1x32x96xbf16> to vector<32x96xbf16>
    %cst_147 = arith.constant dense<0.000000e+00> : vector<8x96xf32>
    %348 = tpu.matmul %345, %347, %cst_147 {dimension_numbers = #tpu.dot_dimension_numbers<[1], [0], [0], [1], [0, 0, 1, 1], [], []>} : vector<8x32xbf16>, vector<32x96xbf16>, vector<8x96xf32> -> vector<8x96xf32>
    %c1_148 = arith.constant 1 : index
    %c0_149 = arith.constant 0 : index
    %c0_150 = arith.constant 0 : index
    %349 = vector.load %arg7[%c1_148, %c0_149, %c0_150] : memref<2x1x96xf32, #tpu.memory_space<vmem>>, vector<1x1x96xf32>
    %350 = vector.shape_cast %349 : vector<1x1x96xf32> to vector<1x96xf32>
    %351 = vector.broadcast %350 : vector<1x96xf32> to vector<8x96xf32>
    %352 = arith.addf %348, %351 : vector<8x96xf32>
    %353 = arith.truncf %352 : vector<8x96xf32> to vector<8x96xbf16>
    %354 = vector.extract_strided_slice %353 {offsets = [0, 0], sizes = [8, 32], strides = [1, 1]} : vector<8x96xbf16> to vector<8x32xbf16>
    %355 = vector.extract_strided_slice %353 {offsets = [0, 32], sizes = [8, 32], strides = [1, 1]} : vector<8x96xbf16> to vector<8x32xbf16>
    %356 = vector.extract_strided_slice %353 {offsets = [0, 64], sizes = [8, 32], strides = [1, 1]} : vector<8x96xbf16> to vector<8x32xbf16>
    %c1_151 = arith.constant 1 : index
    %c0_152 = arith.constant 0 : index
    %c0_153 = arith.constant 0 : index
    %357 = vector.load %arg8[%c1_151, %c0_152, %c0_153] : memref<2x32x32xbf16, #tpu.memory_space<vmem>>, vector<1x32x32xbf16>
    %358 = vector.shape_cast %357 : vector<1x32x32xbf16> to vector<32x32xbf16>
    %cst_154 = arith.constant 0.000000e+00 : f32
    %359 = vector.broadcast %cst_154 : f32 to vector<8x32xf32>
    %360 = vector.extract_strided_slice %354 {offsets = [0, 0], sizes = [8, 8], strides = [1, 1]} : vector<8x32xbf16> to vector<8x8xbf16>
    %361 = vector.extract_strided_slice %355 {offsets = [0, 0], sizes = [8, 8], strides = [1, 1]} : vector<8x32xbf16> to vector<8x8xbf16>
    %362 = vector.extract_strided_slice %356 {offsets = [0, 0], sizes = [8, 8], strides = [1, 1]} : vector<8x32xbf16> to vector<8x8xbf16>
    %cst_155 = arith.constant dense<0.000000e+00> : vector<8x8xf32>
    %363 = tpu.matmul %360, %361, %cst_155 {dimension_numbers = #tpu.dot_dimension_numbers<[1], [1], [0], [0], [0, 0, 1, 0], [], []>} : vector<8x8xbf16>, vector<8x8xbf16>, vector<8x8xf32> -> vector<8x8xf32>
    %cst_156 = arith.constant 0.353553385 : f32
    %364 = vector.broadcast %cst_156 : f32 to vector<8x8xf32>
    %365 = arith.mulf %363, %364 : vector<8x8xf32>
    %366 = arith.addf %365, %20 : vector<8x8xf32>
    %cst_157 = arith.constant dense<0xFF800000> : vector<8xf32>
    %367 = vector.multi_reduction <maximumf>, %366, %cst_157 [1] : vector<8x8xf32> to vector<8xf32>
    %368 = vector.shape_cast %367 : vector<8xf32> to vector<8x1xf32>
    %369 = vector.broadcast %368 : vector<8x1xf32> to vector<8x8xf32>
    %370 = arith.subf %366, %369 : vector<8x8xf32>
    %371 = math.exp %370 : vector<8x8xf32>
    %cst_158 = arith.constant dense<0.000000e+00> : vector<8xf32>
    %372 = vector.multi_reduction <add>, %371, %cst_158 [1] : vector<8x8xf32> to vector<8xf32>
    %373 = vector.shape_cast %372 : vector<8xf32> to vector<8x1xf32>
    %374 = tpu.reciprocal %373 {approx = true} : vector<8x1xf32> -> vector<8x1xf32>
    %375 = vector.broadcast %374 : vector<8x1xf32> to vector<8x8xf32>
    %376 = arith.mulf %371, %375 : vector<8x8xf32>
    %377 = arith.truncf %376 : vector<8x8xf32> to vector<8x8xbf16>
    %cst_159 = arith.constant dense<0.000000e+00> : vector<8x8xf32>
    %378 = tpu.matmul %377, %362, %cst_159 {dimension_numbers = #tpu.dot_dimension_numbers<[1], [0], [0], [1], [0, 0, 1, 1], [], []>} : vector<8x8xbf16>, vector<8x8xbf16>, vector<8x8xf32> -> vector<8x8xf32>
    %379 = arith.truncf %378 : vector<8x8xf32> to vector<8x8xbf16>
    %380 = vector.extract_strided_slice %358 {offsets = [0, 0], sizes = [8, 32], strides = [1, 1]} : vector<32x32xbf16> to vector<8x32xbf16>
    %cst_160 = arith.constant dense<0.000000e+00> : vector<8x32xf32>
    %381 = tpu.matmul %379, %380, %cst_160 {dimension_numbers = #tpu.dot_dimension_numbers<[1], [0], [0], [1], [0, 0, 1, 1], [], []>} : vector<8x8xbf16>, vector<8x32xbf16>, vector<8x32xf32> -> vector<8x32xf32>
    %382 = arith.addf %359, %381 : vector<8x32xf32>
    %383 = vector.extract_strided_slice %354 {offsets = [0, 8], sizes = [8, 8], strides = [1, 1]} : vector<8x32xbf16> to vector<8x8xbf16>
    %384 = vector.extract_strided_slice %355 {offsets = [0, 8], sizes = [8, 8], strides = [1, 1]} : vector<8x32xbf16> to vector<8x8xbf16>
    %385 = vector.extract_strided_slice %356 {offsets = [0, 8], sizes = [8, 8], strides = [1, 1]} : vector<8x32xbf16> to vector<8x8xbf16>
    %cst_161 = arith.constant dense<0.000000e+00> : vector<8x8xf32>
    %386 = tpu.matmul %383, %384, %cst_161 {dimension_numbers = #tpu.dot_dimension_numbers<[1], [1], [0], [0], [0, 0, 1, 0], [], []>} : vector<8x8xbf16>, vector<8x8xbf16>, vector<8x8xf32> -> vector<8x8xf32>
    %cst_162 = arith.constant 0.353553385 : f32
    %387 = vector.broadcast %cst_162 : f32 to vector<8x8xf32>
    %388 = arith.mulf %386, %387 : vector<8x8xf32>
    %389 = arith.addf %388, %20 : vector<8x8xf32>
    %cst_163 = arith.constant dense<0xFF800000> : vector<8xf32>
    %390 = vector.multi_reduction <maximumf>, %389, %cst_163 [1] : vector<8x8xf32> to vector<8xf32>
    %391 = vector.shape_cast %390 : vector<8xf32> to vector<8x1xf32>
    %392 = vector.broadcast %391 : vector<8x1xf32> to vector<8x8xf32>
    %393 = arith.subf %389, %392 : vector<8x8xf32>
    %394 = math.exp %393 : vector<8x8xf32>
    %cst_164 = arith.constant dense<0.000000e+00> : vector<8xf32>
    %395 = vector.multi_reduction <add>, %394, %cst_164 [1] : vector<8x8xf32> to vector<8xf32>
    %396 = vector.shape_cast %395 : vector<8xf32> to vector<8x1xf32>
    %397 = tpu.reciprocal %396 {approx = true} : vector<8x1xf32> -> vector<8x1xf32>
    %398 = vector.broadcast %397 : vector<8x1xf32> to vector<8x8xf32>
    %399 = arith.mulf %394, %398 : vector<8x8xf32>
    %400 = arith.truncf %399 : vector<8x8xf32> to vector<8x8xbf16>
    %cst_165 = arith.constant dense<0.000000e+00> : vector<8x8xf32>
    %401 = tpu.matmul %400, %385, %cst_165 {dimension_numbers = #tpu.dot_dimension_numbers<[1], [0], [0], [1], [0, 0, 1, 1], [], []>} : vector<8x8xbf16>, vector<8x8xbf16>, vector<8x8xf32> -> vector<8x8xf32>
    %402 = arith.truncf %401 : vector<8x8xf32> to vector<8x8xbf16>
    %403 = vector.extract_strided_slice %358 {offsets = [8, 0], sizes = [8, 32], strides = [1, 1]} : vector<32x32xbf16> to vector<8x32xbf16>
    %cst_166 = arith.constant dense<0.000000e+00> : vector<8x32xf32>
    %404 = tpu.matmul %402, %403, %cst_166 {dimension_numbers = #tpu.dot_dimension_numbers<[1], [0], [0], [1], [0, 0, 1, 1], [], []>} : vector<8x8xbf16>, vector<8x32xbf16>, vector<8x32xf32> -> vector<8x32xf32>
    %405 = arith.addf %382, %404 : vector<8x32xf32>
    %406 = vector.extract_strided_slice %354 {offsets = [0, 16], sizes = [8, 8], strides = [1, 1]} : vector<8x32xbf16> to vector<8x8xbf16>
    %407 = vector.extract_strided_slice %355 {offsets = [0, 16], sizes = [8, 8], strides = [1, 1]} : vector<8x32xbf16> to vector<8x8xbf16>
    %408 = vector.extract_strided_slice %356 {offsets = [0, 16], sizes = [8, 8], strides = [1, 1]} : vector<8x32xbf16> to vector<8x8xbf16>
    %cst_167 = arith.constant dense<0.000000e+00> : vector<8x8xf32>
    %409 = tpu.matmul %406, %407, %cst_167 {dimension_numbers = #tpu.dot_dimension_numbers<[1], [1], [0], [0], [0, 0, 1, 0], [], []>} : vector<8x8xbf16>, vector<8x8xbf16>, vector<8x8xf32> -> vector<8x8xf32>
    %cst_168 = arith.constant 0.353553385 : f32
    %410 = vector.broadcast %cst_168 : f32 to vector<8x8xf32>
    %411 = arith.mulf %409, %410 : vector<8x8xf32>
    %412 = arith.addf %411, %20 : vector<8x8xf32>
    %cst_169 = arith.constant dense<0xFF800000> : vector<8xf32>
    %413 = vector.multi_reduction <maximumf>, %412, %cst_169 [1] : vector<8x8xf32> to vector<8xf32>
    %414 = vector.shape_cast %413 : vector<8xf32> to vector<8x1xf32>
    %415 = vector.broadcast %414 : vector<8x1xf32> to vector<8x8xf32>
    %416 = arith.subf %412, %415 : vector<8x8xf32>
    %417 = math.exp %416 : vector<8x8xf32>
    %cst_170 = arith.constant dense<0.000000e+00> : vector<8xf32>
    %418 = vector.multi_reduction <add>, %417, %cst_170 [1] : vector<8x8xf32> to vector<8xf32>
    %419 = vector.shape_cast %418 : vector<8xf32> to vector<8x1xf32>
    %420 = tpu.reciprocal %419 {approx = true} : vector<8x1xf32> -> vector<8x1xf32>
    %421 = vector.broadcast %420 : vector<8x1xf32> to vector<8x8xf32>
    %422 = arith.mulf %417, %421 : vector<8x8xf32>
    %423 = arith.truncf %422 : vector<8x8xf32> to vector<8x8xbf16>
    %cst_171 = arith.constant dense<0.000000e+00> : vector<8x8xf32>
    %424 = tpu.matmul %423, %408, %cst_171 {dimension_numbers = #tpu.dot_dimension_numbers<[1], [0], [0], [1], [0, 0, 1, 1], [], []>} : vector<8x8xbf16>, vector<8x8xbf16>, vector<8x8xf32> -> vector<8x8xf32>
    %425 = arith.truncf %424 : vector<8x8xf32> to vector<8x8xbf16>
    %426 = vector.extract_strided_slice %358 {offsets = [16, 0], sizes = [8, 32], strides = [1, 1]} : vector<32x32xbf16> to vector<8x32xbf16>
    %cst_172 = arith.constant dense<0.000000e+00> : vector<8x32xf32>
    %427 = tpu.matmul %425, %426, %cst_172 {dimension_numbers = #tpu.dot_dimension_numbers<[1], [0], [0], [1], [0, 0, 1, 1], [], []>} : vector<8x8xbf16>, vector<8x32xbf16>, vector<8x32xf32> -> vector<8x32xf32>
    %428 = arith.addf %405, %427 : vector<8x32xf32>
    %429 = vector.extract_strided_slice %354 {offsets = [0, 24], sizes = [8, 8], strides = [1, 1]} : vector<8x32xbf16> to vector<8x8xbf16>
    %430 = vector.extract_strided_slice %355 {offsets = [0, 24], sizes = [8, 8], strides = [1, 1]} : vector<8x32xbf16> to vector<8x8xbf16>
    %431 = vector.extract_strided_slice %356 {offsets = [0, 24], sizes = [8, 8], strides = [1, 1]} : vector<8x32xbf16> to vector<8x8xbf16>
    %cst_173 = arith.constant dense<0.000000e+00> : vector<8x8xf32>
    %432 = tpu.matmul %429, %430, %cst_173 {dimension_numbers = #tpu.dot_dimension_numbers<[1], [1], [0], [0], [0, 0, 1, 0], [], []>} : vector<8x8xbf16>, vector<8x8xbf16>, vector<8x8xf32> -> vector<8x8xf32>
    %cst_174 = arith.constant 0.353553385 : f32
    %433 = vector.broadcast %cst_174 : f32 to vector<8x8xf32>
    %434 = arith.mulf %432, %433 : vector<8x8xf32>
    %435 = arith.addf %434, %20 : vector<8x8xf32>
    %cst_175 = arith.constant dense<0xFF800000> : vector<8xf32>
    %436 = vector.multi_reduction <maximumf>, %435, %cst_175 [1] : vector<8x8xf32> to vector<8xf32>
    %437 = vector.shape_cast %436 : vector<8xf32> to vector<8x1xf32>
    %438 = vector.broadcast %437 : vector<8x1xf32> to vector<8x8xf32>
    %439 = arith.subf %435, %438 : vector<8x8xf32>
    %440 = math.exp %439 : vector<8x8xf32>
    %cst_176 = arith.constant dense<0.000000e+00> : vector<8xf32>
    %441 = vector.multi_reduction <add>, %440, %cst_176 [1] : vector<8x8xf32> to vector<8xf32>
    %442 = vector.shape_cast %441 : vector<8xf32> to vector<8x1xf32>
    %443 = tpu.reciprocal %442 {approx = true} : vector<8x1xf32> -> vector<8x1xf32>
    %444 = vector.broadcast %443 : vector<8x1xf32> to vector<8x8xf32>
    %445 = arith.mulf %440, %444 : vector<8x8xf32>
    %446 = arith.truncf %445 : vector<8x8xf32> to vector<8x8xbf16>
    %cst_177 = arith.constant dense<0.000000e+00> : vector<8x8xf32>
    %447 = tpu.matmul %446, %431, %cst_177 {dimension_numbers = #tpu.dot_dimension_numbers<[1], [0], [0], [1], [0, 0, 1, 1], [], []>} : vector<8x8xbf16>, vector<8x8xbf16>, vector<8x8xf32> -> vector<8x8xf32>
    %448 = arith.truncf %447 : vector<8x8xf32> to vector<8x8xbf16>
    %449 = vector.extract_strided_slice %358 {offsets = [24, 0], sizes = [8, 32], strides = [1, 1]} : vector<32x32xbf16> to vector<8x32xbf16>
    %cst_178 = arith.constant dense<0.000000e+00> : vector<8x32xf32>
    %450 = tpu.matmul %448, %449, %cst_178 {dimension_numbers = #tpu.dot_dimension_numbers<[1], [0], [0], [1], [0, 0, 1, 1], [], []>} : vector<8x8xbf16>, vector<8x32xbf16>, vector<8x32xf32> -> vector<8x32xf32>
    %451 = arith.addf %428, %450 : vector<8x32xf32>
    %452 = arith.addf %344, %451 : vector<8x32xf32>
    %c1_179 = arith.constant 1 : index
    %c0_180 = arith.constant 0 : index
    %c0_181 = arith.constant 0 : index
    %453 = vector.load %arg9[%c1_179, %c0_180, %c0_181] : memref<2x1x32xf32, #tpu.memory_space<vmem>>, vector<1x1x32xf32>
    %454 = vector.shape_cast %453 : vector<1x1x32xf32> to vector<1x32xf32>
    %455 = vector.broadcast %454 : vector<1x32xf32> to vector<8x32xf32>
    %456 = arith.addf %452, %455 : vector<8x32xf32>
    %c1_182 = arith.constant 1 : index
    %c0_183 = arith.constant 0 : index
    %c0_184 = arith.constant 0 : index
    %457 = vector.load %arg10[%c1_182, %c0_183, %c0_184] : memref<2x1x32xf32, #tpu.memory_space<vmem>>, vector<1x1x32xf32>
    %458 = vector.shape_cast %457 : vector<1x1x32xf32> to vector<1x32xf32>
    %c1_185 = arith.constant 1 : index
    %c0_186 = arith.constant 0 : index
    %c0_187 = arith.constant 0 : index
    %459 = vector.load %arg11[%c1_185, %c0_186, %c0_187] : memref<2x1x32xf32, #tpu.memory_space<vmem>>, vector<1x1x32xf32>
    %460 = vector.shape_cast %459 : vector<1x1x32xf32> to vector<1x32xf32>
    %cst_188 = arith.constant dense<0.000000e+00> : vector<8xf32>
    %461 = vector.multi_reduction <add>, %456, %cst_188 [1] : vector<8x32xf32> to vector<8xf32>
    %462 = vector.shape_cast %461 : vector<8xf32> to vector<8x1xf32>
    %cst_189 = arith.constant 3.200000e+01 : f32
    %463 = vector.broadcast %cst_189 : f32 to vector<8x1xf32>
    %464 = arith.divf %462, %463 : vector<8x1xf32>
    %465 = vector.broadcast %464 : vector<8x1xf32> to vector<8x32xf32>
    %466 = arith.subf %456, %465 : vector<8x32xf32>
    %467 = arith.mulf %466, %466 : vector<8x32xf32>
    %cst_190 = arith.constant dense<0.000000e+00> : vector<8xf32>
    %468 = vector.multi_reduction <add>, %467, %cst_190 [1] : vector<8x32xf32> to vector<8xf32>
    %469 = vector.shape_cast %468 : vector<8xf32> to vector<8x1xf32>
    %cst_191 = arith.constant 3.200000e+01 : f32
    %470 = vector.broadcast %cst_191 : f32 to vector<8x1xf32>
    %471 = arith.divf %469, %470 : vector<8x1xf32>
    %472 = vector.broadcast %464 : vector<8x1xf32> to vector<8x32xf32>
    %473 = arith.subf %456, %472 : vector<8x32xf32>
    %cst_192 = arith.constant 9.99999974E-6 : f32
    %474 = vector.broadcast %cst_192 : f32 to vector<8x1xf32>
    %475 = arith.addf %471, %474 : vector<8x1xf32>
    %476 = math.rsqrt %475 : vector<8x1xf32>
    %477 = vector.broadcast %476 : vector<8x1xf32> to vector<8x32xf32>
    %478 = arith.mulf %473, %477 : vector<8x32xf32>
    %479 = vector.broadcast %458 : vector<1x32xf32> to vector<8x32xf32>
    %480 = arith.mulf %478, %479 : vector<8x32xf32>
    %481 = vector.broadcast %460 : vector<1x32xf32> to vector<8x32xf32>
    %482 = arith.addf %480, %481 : vector<8x32xf32>
    %483 = arith.truncf %482 : vector<8x32xf32> to vector<8x32xbf16>
    %c1_193 = arith.constant 1 : index
    %c0_194 = arith.constant 0 : index
    %c0_195 = arith.constant 0 : index
    %484 = vector.load %arg12[%c1_193, %c0_194, %c0_195] : memref<2x32x32xbf16, #tpu.memory_space<vmem>>, vector<1x32x32xbf16>
    %485 = vector.shape_cast %484 : vector<1x32x32xbf16> to vector<32x32xbf16>
    %cst_196 = arith.constant dense<0.000000e+00> : vector<8x32xf32>
    %486 = tpu.matmul %483, %485, %cst_196 {dimension_numbers = #tpu.dot_dimension_numbers<[1], [0], [0], [1], [0, 0, 1, 1], [], []>} : vector<8x32xbf16>, vector<32x32xbf16>, vector<8x32xf32> -> vector<8x32xf32>
    %c1_197 = arith.constant 1 : index
    %c0_198 = arith.constant 0 : index
    %c0_199 = arith.constant 0 : index
    %487 = vector.load %arg13[%c1_197, %c0_198, %c0_199] : memref<2x1x32xf32, #tpu.memory_space<vmem>>, vector<1x1x32xf32>
    %488 = vector.shape_cast %487 : vector<1x1x32xf32> to vector<1x32xf32>
    %489 = vector.broadcast %488 : vector<1x32xf32> to vector<8x32xf32>
    %490 = arith.addf %486, %489 : vector<8x32xf32>
    %c1_200 = arith.constant 1 : index
    %c0_201 = arith.constant 0 : index
    %c0_202 = arith.constant 0 : index
    %491 = vector.load %arg14[%c1_200, %c0_201, %c0_202] : memref<2x32x64xbf16, #tpu.memory_space<vmem>>, vector<1x32x64xbf16>
    %492 = vector.shape_cast %491 : vector<1x32x64xbf16> to vector<32x64xbf16>
    %cst_203 = arith.constant dense<0.000000e+00> : vector<8x64xf32>
    %493 = tpu.matmul %8, %492, %cst_203 {dimension_numbers = #tpu.dot_dimension_numbers<[1], [0], [0], [1], [0, 0, 1, 1], [], []>} : vector<8x32xbf16>, vector<32x64xbf16>, vector<8x64xf32> -> vector<8x64xf32>
    %c1_204 = arith.constant 1 : index
    %c0_205 = arith.constant 0 : index
    %c0_206 = arith.constant 0 : index
    %494 = vector.load %arg15[%c1_204, %c0_205, %c0_206] : memref<2x1x64xf32, #tpu.memory_space<vmem>>, vector<1x1x64xf32>
    %495 = vector.shape_cast %494 : vector<1x1x64xf32> to vector<1x64xf32>
    %496 = vector.broadcast %495 : vector<1x64xf32> to vector<8x64xf32>
    %497 = arith.addf %493, %496 : vector<8x64xf32>
    %498 = arith.truncf %497 : vector<8x64xf32> to vector<8x64xbf16>
    %499 = arith.truncf %490 : vector<8x32xf32> to vector<8x32xbf16>
    %500 = vector.extract_strided_slice %498 {offsets = [0, 0], sizes = [8, 32], strides = [1, 1]} : vector<8x64xbf16> to vector<8x32xbf16>
    %501 = vector.extract_strided_slice %498 {offsets = [0, 32], sizes = [8, 32], strides = [1, 1]} : vector<8x64xbf16> to vector<8x32xbf16>
    %c1_207 = arith.constant 1 : index
    %c0_208 = arith.constant 0 : index
    %c0_209 = arith.constant 0 : index
    %502 = vector.load %arg16[%c1_207, %c0_208, %c0_209] : memref<2x32x32xbf16, #tpu.memory_space<vmem>>, vector<1x32x32xbf16>
    %503 = vector.shape_cast %502 : vector<1x32x32xbf16> to vector<32x32xbf16>
    %cst_210 = arith.constant 0.000000e+00 : f32
    %504 = vector.broadcast %cst_210 : f32 to vector<8x32xf32>
    %505 = vector.extract_strided_slice %499 {offsets = [0, 0], sizes = [8, 8], strides = [1, 1]} : vector<8x32xbf16> to vector<8x8xbf16>
    %506 = vector.extract_strided_slice %500 {offsets = [0, 0], sizes = [8, 8], strides = [1, 1]} : vector<8x32xbf16> to vector<8x8xbf16>
    %507 = vector.extract_strided_slice %501 {offsets = [0, 0], sizes = [8, 8], strides = [1, 1]} : vector<8x32xbf16> to vector<8x8xbf16>
    %cst_211 = arith.constant dense<0.000000e+00> : vector<8x8xf32>
    %508 = tpu.matmul %505, %506, %cst_211 {dimension_numbers = #tpu.dot_dimension_numbers<[1], [1], [0], [0], [0, 0, 1, 0], [], []>} : vector<8x8xbf16>, vector<8x8xbf16>, vector<8x8xf32> -> vector<8x8xf32>
    %cst_212 = arith.constant 0.353553385 : f32
    %509 = vector.broadcast %cst_212 : f32 to vector<8x8xf32>
    %510 = arith.mulf %508, %509 : vector<8x8xf32>
    %cst_213 = arith.constant dense<0xFF800000> : vector<8xf32>
    %511 = vector.multi_reduction <maximumf>, %510, %cst_213 [1] : vector<8x8xf32> to vector<8xf32>
    %512 = vector.shape_cast %511 : vector<8xf32> to vector<8x1xf32>
    %513 = vector.broadcast %512 : vector<8x1xf32> to vector<8x8xf32>
    %514 = arith.subf %510, %513 : vector<8x8xf32>
    %515 = math.exp %514 : vector<8x8xf32>
    %cst_214 = arith.constant dense<0.000000e+00> : vector<8xf32>
    %516 = vector.multi_reduction <add>, %515, %cst_214 [1] : vector<8x8xf32> to vector<8xf32>
    %517 = vector.shape_cast %516 : vector<8xf32> to vector<8x1xf32>
    %518 = tpu.reciprocal %517 {approx = true} : vector<8x1xf32> -> vector<8x1xf32>
    %519 = vector.broadcast %518 : vector<8x1xf32> to vector<8x8xf32>
    %520 = arith.mulf %515, %519 : vector<8x8xf32>
    %521 = arith.truncf %520 : vector<8x8xf32> to vector<8x8xbf16>
    %cst_215 = arith.constant dense<0.000000e+00> : vector<8x8xf32>
    %522 = tpu.matmul %521, %507, %cst_215 {dimension_numbers = #tpu.dot_dimension_numbers<[1], [0], [0], [1], [0, 0, 1, 1], [], []>} : vector<8x8xbf16>, vector<8x8xbf16>, vector<8x8xf32> -> vector<8x8xf32>
    %523 = arith.truncf %522 : vector<8x8xf32> to vector<8x8xbf16>
    %524 = vector.extract_strided_slice %503 {offsets = [0, 0], sizes = [8, 32], strides = [1, 1]} : vector<32x32xbf16> to vector<8x32xbf16>
    %cst_216 = arith.constant dense<0.000000e+00> : vector<8x32xf32>
    %525 = tpu.matmul %523, %524, %cst_216 {dimension_numbers = #tpu.dot_dimension_numbers<[1], [0], [0], [1], [0, 0, 1, 1], [], []>} : vector<8x8xbf16>, vector<8x32xbf16>, vector<8x32xf32> -> vector<8x32xf32>
    %526 = arith.addf %504, %525 : vector<8x32xf32>
    %527 = vector.extract_strided_slice %499 {offsets = [0, 8], sizes = [8, 8], strides = [1, 1]} : vector<8x32xbf16> to vector<8x8xbf16>
    %528 = vector.extract_strided_slice %500 {offsets = [0, 8], sizes = [8, 8], strides = [1, 1]} : vector<8x32xbf16> to vector<8x8xbf16>
    %529 = vector.extract_strided_slice %501 {offsets = [0, 8], sizes = [8, 8], strides = [1, 1]} : vector<8x32xbf16> to vector<8x8xbf16>
    %cst_217 = arith.constant dense<0.000000e+00> : vector<8x8xf32>
    %530 = tpu.matmul %527, %528, %cst_217 {dimension_numbers = #tpu.dot_dimension_numbers<[1], [1], [0], [0], [0, 0, 1, 0], [], []>} : vector<8x8xbf16>, vector<8x8xbf16>, vector<8x8xf32> -> vector<8x8xf32>
    %cst_218 = arith.constant 0.353553385 : f32
    %531 = vector.broadcast %cst_218 : f32 to vector<8x8xf32>
    %532 = arith.mulf %530, %531 : vector<8x8xf32>
    %cst_219 = arith.constant dense<0xFF800000> : vector<8xf32>
    %533 = vector.multi_reduction <maximumf>, %532, %cst_219 [1] : vector<8x8xf32> to vector<8xf32>
    %534 = vector.shape_cast %533 : vector<8xf32> to vector<8x1xf32>
    %535 = vector.broadcast %534 : vector<8x1xf32> to vector<8x8xf32>
    %536 = arith.subf %532, %535 : vector<8x8xf32>
    %537 = math.exp %536 : vector<8x8xf32>
    %cst_220 = arith.constant dense<0.000000e+00> : vector<8xf32>
    %538 = vector.multi_reduction <add>, %537, %cst_220 [1] : vector<8x8xf32> to vector<8xf32>
    %539 = vector.shape_cast %538 : vector<8xf32> to vector<8x1xf32>
    %540 = tpu.reciprocal %539 {approx = true} : vector<8x1xf32> -> vector<8x1xf32>
    %541 = vector.broadcast %540 : vector<8x1xf32> to vector<8x8xf32>
    %542 = arith.mulf %537, %541 : vector<8x8xf32>
    %543 = arith.truncf %542 : vector<8x8xf32> to vector<8x8xbf16>
    %cst_221 = arith.constant dense<0.000000e+00> : vector<8x8xf32>
    %544 = tpu.matmul %543, %529, %cst_221 {dimension_numbers = #tpu.dot_dimension_numbers<[1], [0], [0], [1], [0, 0, 1, 1], [], []>} : vector<8x8xbf16>, vector<8x8xbf16>, vector<8x8xf32> -> vector<8x8xf32>
    %545 = arith.truncf %544 : vector<8x8xf32> to vector<8x8xbf16>
    %546 = vector.extract_strided_slice %503 {offsets = [8, 0], sizes = [8, 32], strides = [1, 1]} : vector<32x32xbf16> to vector<8x32xbf16>
    %cst_222 = arith.constant dense<0.000000e+00> : vector<8x32xf32>
    %547 = tpu.matmul %545, %546, %cst_222 {dimension_numbers = #tpu.dot_dimension_numbers<[1], [0], [0], [1], [0, 0, 1, 1], [], []>} : vector<8x8xbf16>, vector<8x32xbf16>, vector<8x32xf32> -> vector<8x32xf32>
    %548 = arith.addf %526, %547 : vector<8x32xf32>
    %549 = vector.extract_strided_slice %499 {offsets = [0, 16], sizes = [8, 8], strides = [1, 1]} : vector<8x32xbf16> to vector<8x8xbf16>
    %550 = vector.extract_strided_slice %500 {offsets = [0, 16], sizes = [8, 8], strides = [1, 1]} : vector<8x32xbf16> to vector<8x8xbf16>
    %551 = vector.extract_strided_slice %501 {offsets = [0, 16], sizes = [8, 8], strides = [1, 1]} : vector<8x32xbf16> to vector<8x8xbf16>
    %cst_223 = arith.constant dense<0.000000e+00> : vector<8x8xf32>
    %552 = tpu.matmul %549, %550, %cst_223 {dimension_numbers = #tpu.dot_dimension_numbers<[1], [1], [0], [0], [0, 0, 1, 0], [], []>} : vector<8x8xbf16>, vector<8x8xbf16>, vector<8x8xf32> -> vector<8x8xf32>
    %cst_224 = arith.constant 0.353553385 : f32
    %553 = vector.broadcast %cst_224 : f32 to vector<8x8xf32>
    %554 = arith.mulf %552, %553 : vector<8x8xf32>
    %cst_225 = arith.constant dense<0xFF800000> : vector<8xf32>
    %555 = vector.multi_reduction <maximumf>, %554, %cst_225 [1] : vector<8x8xf32> to vector<8xf32>
    %556 = vector.shape_cast %555 : vector<8xf32> to vector<8x1xf32>
    %557 = vector.broadcast %556 : vector<8x1xf32> to vector<8x8xf32>
    %558 = arith.subf %554, %557 : vector<8x8xf32>
    %559 = math.exp %558 : vector<8x8xf32>
    %cst_226 = arith.constant dense<0.000000e+00> : vector<8xf32>
    %560 = vector.multi_reduction <add>, %559, %cst_226 [1] : vector<8x8xf32> to vector<8xf32>
    %561 = vector.shape_cast %560 : vector<8xf32> to vector<8x1xf32>
    %562 = tpu.reciprocal %561 {approx = true} : vector<8x1xf32> -> vector<8x1xf32>
    %563 = vector.broadcast %562 : vector<8x1xf32> to vector<8x8xf32>
    %564 = arith.mulf %559, %563 : vector<8x8xf32>
    %565 = arith.truncf %564 : vector<8x8xf32> to vector<8x8xbf16>
    %cst_227 = arith.constant dense<0.000000e+00> : vector<8x8xf32>
    %566 = tpu.matmul %565, %551, %cst_227 {dimension_numbers = #tpu.dot_dimension_numbers<[1], [0], [0], [1], [0, 0, 1, 1], [], []>} : vector<8x8xbf16>, vector<8x8xbf16>, vector<8x8xf32> -> vector<8x8xf32>
    %567 = arith.truncf %566 : vector<8x8xf32> to vector<8x8xbf16>
    %568 = vector.extract_strided_slice %503 {offsets = [16, 0], sizes = [8, 32], strides = [1, 1]} : vector<32x32xbf16> to vector<8x32xbf16>
    %cst_228 = arith.constant dense<0.000000e+00> : vector<8x32xf32>
    %569 = tpu.matmul %567, %568, %cst_228 {dimension_numbers = #tpu.dot_dimension_numbers<[1], [0], [0], [1], [0, 0, 1, 1], [], []>} : vector<8x8xbf16>, vector<8x32xbf16>, vector<8x32xf32> -> vector<8x32xf32>
    %570 = arith.addf %548, %569 : vector<8x32xf32>
    %571 = vector.extract_strided_slice %499 {offsets = [0, 24], sizes = [8, 8], strides = [1, 1]} : vector<8x32xbf16> to vector<8x8xbf16>
    %572 = vector.extract_strided_slice %500 {offsets = [0, 24], sizes = [8, 8], strides = [1, 1]} : vector<8x32xbf16> to vector<8x8xbf16>
    %573 = vector.extract_strided_slice %501 {offsets = [0, 24], sizes = [8, 8], strides = [1, 1]} : vector<8x32xbf16> to vector<8x8xbf16>
    %cst_229 = arith.constant dense<0.000000e+00> : vector<8x8xf32>
    %574 = tpu.matmul %571, %572, %cst_229 {dimension_numbers = #tpu.dot_dimension_numbers<[1], [1], [0], [0], [0, 0, 1, 0], [], []>} : vector<8x8xbf16>, vector<8x8xbf16>, vector<8x8xf32> -> vector<8x8xf32>
    %cst_230 = arith.constant 0.353553385 : f32
    %575 = vector.broadcast %cst_230 : f32 to vector<8x8xf32>
    %576 = arith.mulf %574, %575 : vector<8x8xf32>
    %cst_231 = arith.constant dense<0xFF800000> : vector<8xf32>
    %577 = vector.multi_reduction <maximumf>, %576, %cst_231 [1] : vector<8x8xf32> to vector<8xf32>
    %578 = vector.shape_cast %577 : vector<8xf32> to vector<8x1xf32>
    %579 = vector.broadcast %578 : vector<8x1xf32> to vector<8x8xf32>
    %580 = arith.subf %576, %579 : vector<8x8xf32>
    %581 = math.exp %580 : vector<8x8xf32>
    %cst_232 = arith.constant dense<0.000000e+00> : vector<8xf32>
    %582 = vector.multi_reduction <add>, %581, %cst_232 [1] : vector<8x8xf32> to vector<8xf32>
    %583 = vector.shape_cast %582 : vector<8xf32> to vector<8x1xf32>
    %584 = tpu.reciprocal %583 {approx = true} : vector<8x1xf32> -> vector<8x1xf32>
    %585 = vector.broadcast %584 : vector<8x1xf32> to vector<8x8xf32>
    %586 = arith.mulf %581, %585 : vector<8x8xf32>
    %587 = arith.truncf %586 : vector<8x8xf32> to vector<8x8xbf16>
    %cst_233 = arith.constant dense<0.000000e+00> : vector<8x8xf32>
    %588 = tpu.matmul %587, %573, %cst_233 {dimension_numbers = #tpu.dot_dimension_numbers<[1], [0], [0], [1], [0, 0, 1, 1], [], []>} : vector<8x8xbf16>, vector<8x8xbf16>, vector<8x8xf32> -> vector<8x8xf32>
    %589 = arith.truncf %588 : vector<8x8xf32> to vector<8x8xbf16>
    %590 = vector.extract_strided_slice %503 {offsets = [24, 0], sizes = [8, 32], strides = [1, 1]} : vector<32x32xbf16> to vector<8x32xbf16>
    %cst_234 = arith.constant dense<0.000000e+00> : vector<8x32xf32>
    %591 = tpu.matmul %589, %590, %cst_234 {dimension_numbers = #tpu.dot_dimension_numbers<[1], [0], [0], [1], [0, 0, 1, 1], [], []>} : vector<8x8xbf16>, vector<8x32xbf16>, vector<8x32xf32> -> vector<8x32xf32>
    %592 = arith.addf %570, %591 : vector<8x32xf32>
    %593 = arith.addf %482, %592 : vector<8x32xf32>
    %c1_235 = arith.constant 1 : index
    %c0_236 = arith.constant 0 : index
    %c0_237 = arith.constant 0 : index
    %594 = vector.load %arg17[%c1_235, %c0_236, %c0_237] : memref<2x1x32xf32, #tpu.memory_space<vmem>>, vector<1x1x32xf32>
    %595 = vector.shape_cast %594 : vector<1x1x32xf32> to vector<1x32xf32>
    %596 = vector.broadcast %595 : vector<1x32xf32> to vector<8x32xf32>
    %597 = arith.addf %593, %596 : vector<8x32xf32>
    %c1_238 = arith.constant 1 : index
    %c0_239 = arith.constant 0 : index
    %c0_240 = arith.constant 0 : index
    %598 = vector.load %arg18[%c1_238, %c0_239, %c0_240] : memref<2x1x32xf32, #tpu.memory_space<vmem>>, vector<1x1x32xf32>
    %599 = vector.shape_cast %598 : vector<1x1x32xf32> to vector<1x32xf32>
    %c1_241 = arith.constant 1 : index
    %c0_242 = arith.constant 0 : index
    %c0_243 = arith.constant 0 : index
    %600 = vector.load %arg19[%c1_241, %c0_242, %c0_243] : memref<2x1x32xf32, #tpu.memory_space<vmem>>, vector<1x1x32xf32>
    %601 = vector.shape_cast %600 : vector<1x1x32xf32> to vector<1x32xf32>
    %cst_244 = arith.constant dense<0.000000e+00> : vector<8xf32>
    %602 = vector.multi_reduction <add>, %597, %cst_244 [1] : vector<8x32xf32> to vector<8xf32>
    %603 = vector.shape_cast %602 : vector<8xf32> to vector<8x1xf32>
    %cst_245 = arith.constant 3.200000e+01 : f32
    %604 = vector.broadcast %cst_245 : f32 to vector<8x1xf32>
    %605 = arith.divf %603, %604 : vector<8x1xf32>
    %606 = vector.broadcast %605 : vector<8x1xf32> to vector<8x32xf32>
    %607 = arith.subf %597, %606 : vector<8x32xf32>
    %608 = arith.mulf %607, %607 : vector<8x32xf32>
    %cst_246 = arith.constant dense<0.000000e+00> : vector<8xf32>
    %609 = vector.multi_reduction <add>, %608, %cst_246 [1] : vector<8x32xf32> to vector<8xf32>
    %610 = vector.shape_cast %609 : vector<8xf32> to vector<8x1xf32>
    %cst_247 = arith.constant 3.200000e+01 : f32
    %611 = vector.broadcast %cst_247 : f32 to vector<8x1xf32>
    %612 = arith.divf %610, %611 : vector<8x1xf32>
    %613 = vector.broadcast %605 : vector<8x1xf32> to vector<8x32xf32>
    %614 = arith.subf %597, %613 : vector<8x32xf32>
    %cst_248 = arith.constant 9.99999974E-6 : f32
    %615 = vector.broadcast %cst_248 : f32 to vector<8x1xf32>
    %616 = arith.addf %612, %615 : vector<8x1xf32>
    %617 = math.rsqrt %616 : vector<8x1xf32>
    %618 = vector.broadcast %617 : vector<8x1xf32> to vector<8x32xf32>
    %619 = arith.mulf %614, %618 : vector<8x32xf32>
    %620 = vector.broadcast %599 : vector<1x32xf32> to vector<8x32xf32>
    %621 = arith.mulf %619, %620 : vector<8x32xf32>
    %622 = vector.broadcast %601 : vector<1x32xf32> to vector<8x32xf32>
    %623 = arith.addf %621, %622 : vector<8x32xf32>
    %624 = arith.truncf %623 : vector<8x32xf32> to vector<8x32xbf16>
    %c1_249 = arith.constant 1 : index
    %c0_250 = arith.constant 0 : index
    %c0_251 = arith.constant 0 : index
    %625 = vector.load %arg20[%c1_249, %c0_250, %c0_251] : memref<2x32x64xbf16, #tpu.memory_space<vmem>>, vector<1x32x64xbf16>
    %626 = vector.shape_cast %625 : vector<1x32x64xbf16> to vector<32x64xbf16>
    %cst_252 = arith.constant dense<0.000000e+00> : vector<8x64xf32>
    %627 = tpu.matmul %624, %626, %cst_252 {dimension_numbers = #tpu.dot_dimension_numbers<[1], [0], [0], [1], [0, 0, 1, 1], [], []>} : vector<8x32xbf16>, vector<32x64xbf16>, vector<8x64xf32> -> vector<8x64xf32>
    %c1_253 = arith.constant 1 : index
    %c0_254 = arith.constant 0 : index
    %c0_255 = arith.constant 0 : index
    %628 = vector.load %arg21[%c1_253, %c0_254, %c0_255] : memref<2x1x64xf32, #tpu.memory_space<vmem>>, vector<1x1x64xf32>
    %629 = vector.shape_cast %628 : vector<1x1x64xf32> to vector<1x64xf32>
    %630 = vector.broadcast %629 : vector<1x64xf32> to vector<8x64xf32>
    %631 = arith.addf %627, %630 : vector<8x64xf32>
    %cst_256 = arith.constant 0.000000e+00 : f32
    %632 = vector.broadcast %cst_256 : f32 to vector<8x64xf32>
    %633 = arith.maximumf %631, %632 : vector<8x64xf32>
    %634 = arith.truncf %633 : vector<8x64xf32> to vector<8x64xbf16>
    %c1_257 = arith.constant 1 : index
    %c0_258 = arith.constant 0 : index
    %c0_259 = arith.constant 0 : index
    %635 = vector.load %arg22[%c1_257, %c0_258, %c0_259] : memref<2x64x32xbf16, #tpu.memory_space<vmem>>, vector<1x64x32xbf16>
    %636 = vector.shape_cast %635 : vector<1x64x32xbf16> to vector<64x32xbf16>
    %cst_260 = arith.constant dense<0.000000e+00> : vector<8x32xf32>
    %637 = tpu.matmul %634, %636, %cst_260 {dimension_numbers = #tpu.dot_dimension_numbers<[1], [0], [0], [1], [0, 0, 1, 1], [], []>} : vector<8x64xbf16>, vector<64x32xbf16>, vector<8x32xf32> -> vector<8x32xf32>
    %c1_261 = arith.constant 1 : index
    %c0_262 = arith.constant 0 : index
    %c0_263 = arith.constant 0 : index
    %638 = vector.load %arg23[%c1_261, %c0_262, %c0_263] : memref<2x1x32xf32, #tpu.memory_space<vmem>>, vector<1x1x32xf32>
    %639 = vector.shape_cast %638 : vector<1x1x32xf32> to vector<1x32xf32>
    %640 = vector.broadcast %639 : vector<1x32xf32> to vector<8x32xf32>
    %641 = arith.addf %637, %640 : vector<8x32xf32>
    %642 = arith.addf %623, %641 : vector<8x32xf32>
    %c1_264 = arith.constant 1 : index
    %c0_265 = arith.constant 0 : index
    %c0_266 = arith.constant 0 : index
    %643 = vector.load %arg24[%c1_264, %c0_265, %c0_266] : memref<2x1x32xf32, #tpu.memory_space<vmem>>, vector<1x1x32xf32>
    %644 = vector.shape_cast %643 : vector<1x1x32xf32> to vector<1x32xf32>
    %c1_267 = arith.constant 1 : index
    %c0_268 = arith.constant 0 : index
    %c0_269 = arith.constant 0 : index
    %645 = vector.load %arg25[%c1_267, %c0_268, %c0_269] : memref<2x1x32xf32, #tpu.memory_space<vmem>>, vector<1x1x32xf32>
    %646 = vector.shape_cast %645 : vector<1x1x32xf32> to vector<1x32xf32>
    %cst_270 = arith.constant dense<0.000000e+00> : vector<8xf32>
    %647 = vector.multi_reduction <add>, %642, %cst_270 [1] : vector<8x32xf32> to vector<8xf32>
    %648 = vector.shape_cast %647 : vector<8xf32> to vector<8x1xf32>
    %cst_271 = arith.constant 3.200000e+01 : f32
    %649 = vector.broadcast %cst_271 : f32 to vector<8x1xf32>
    %650 = arith.divf %648, %649 : vector<8x1xf32>
    %651 = vector.broadcast %650 : vector<8x1xf32> to vector<8x32xf32>
    %652 = arith.subf %642, %651 : vector<8x32xf32>
    %653 = arith.mulf %652, %652 : vector<8x32xf32>
    %cst_272 = arith.constant dense<0.000000e+00> : vector<8xf32>
    %654 = vector.multi_reduction <add>, %653, %cst_272 [1] : vector<8x32xf32> to vector<8xf32>
    %655 = vector.shape_cast %654 : vector<8xf32> to vector<8x1xf32>
    %cst_273 = arith.constant 3.200000e+01 : f32
    %656 = vector.broadcast %cst_273 : f32 to vector<8x1xf32>
    %657 = arith.divf %655, %656 : vector<8x1xf32>
    %658 = vector.broadcast %650 : vector<8x1xf32> to vector<8x32xf32>
    %659 = arith.subf %642, %658 : vector<8x32xf32>
    %cst_274 = arith.constant 9.99999974E-6 : f32
    %660 = vector.broadcast %cst_274 : f32 to vector<8x1xf32>
    %661 = arith.addf %657, %660 : vector<8x1xf32>
    %662 = math.rsqrt %661 : vector<8x1xf32>
    %663 = vector.broadcast %662 : vector<8x1xf32> to vector<8x32xf32>
    %664 = arith.mulf %659, %663 : vector<8x32xf32>
    %665 = vector.broadcast %644 : vector<1x32xf32> to vector<8x32xf32>
    %666 = arith.mulf %664, %665 : vector<8x32xf32>
    %667 = vector.broadcast %646 : vector<1x32xf32> to vector<8x32xf32>
    %668 = arith.addf %666, %667 : vector<8x32xf32>
    %669 = arith.truncf %668 : vector<8x32xf32> to vector<8x32xbf16>
    %c0_275 = arith.constant 0 : index
    %c0_276 = arith.constant 0 : index
    %670 = vector.load %arg26[%c0_275, %c0_276] : memref<32x128xbf16, #tpu.memory_space<vmem>>, vector<32x128xbf16>
    %cst_277 = arith.constant dense<0.000000e+00> : vector<8x128xf32>
    %671 = tpu.matmul %669, %670, %cst_277 {dimension_numbers = #tpu.dot_dimension_numbers<[1], [0], [0], [1], [0, 0, 1, 1], [], []>} : vector<8x32xbf16>, vector<32x128xbf16>, vector<8x128xf32> -> vector<8x128xf32>
    %c0_278 = arith.constant 0 : index
    %c0_279 = arith.constant 0 : index
    %c0_280 = arith.constant 0 : index
    %672 = vector.load %arg27[%c0_278, %c0_279, %c0_280] : memref<1x8x128xf32, #tpu.memory_space<vmem>>, vector<1x8x128xf32>
    %673 = vector.shape_cast %672 : vector<1x8x128xf32> to vector<8x128xf32>
    %674 = vector.shape_cast %671 : vector<8x128xf32> to vector<1x8x128xf32>
    tpu.vector_store %arg27[%c0_278, %c0_279, %c0_280], %674 {strides = array<i32>} : memref<1x8x128xf32, #tpu.memory_space<vmem>>, vector<1x8x128xf32>,
    return
  }
  func.func @transform_0(%arg0: i32) -> (i32, i32, i32) {
    %c0_i32 = arith.constant 0 : i32
    %c0_i32_0 = arith.constant 0 : i32
    %c0_i32_1 = arith.constant 0 : i32
    return %arg0, %c0_i32, %c0_i32_0 : i32, i32, i32
  }
  func.func @transform_1(%arg0: i32) -> (i32, i32, i32) {
    %c0_i32 = arith.constant 0 : i32
    %c0_i32_0 = arith.constant 0 : i32
    %c0_i32_1 = arith.constant 0 : i32
    return %arg0, %c0_i32, %c0_i32_0 : i32, i32, i32
  }
  func.func @transform_2(%arg0: i32) -> (i32, i32, i32) {
    %c0_i32 = arith.constant 0 : i32
    %c0_i32_0 = arith.constant 0 : i32
    %c0_i32_1 = arith.constant 0 : i32
    return %arg0, %c0_i32, %c0_i32_0 : i32, i32, i32
  }
  func.func @transform_3(%arg0: i32) -> (i32, i32) {
    %c0_i32 = arith.constant 0 : i32
    %c0_i32_0 = arith.constant 0 : i32
    %c0_i32_1 = arith.constant 0 : i32
    return %c0_i32, %c0_i32_0 : i32, i32
  }
  func.func @transform_4(%arg0: i32) -> (i32, i32) {
    %c0_i32 = arith.constant 0 : i32
    %c0_i32_0 = arith.constant 0 : i32
    %c0_i32_1 = arith.constant 0 : i32
    return %c0_i32, %c0_i32_0 : i32, i32
  }
  func.func @transform_5(%arg0: i32) -> (i32, i32, i32) {
    %c0_i32 = arith.constant 0 : i32
    %c0_i32_0 = arith.constant 0 : i32
    %c0_i32_1 = arith.constant 0 : i32
    %c0_i32_2 = arith.constant 0 : i32
    return %c0_i32, %c0_i32_0, %c0_i32_1 : i32, i32, i32
  }
  func.func @transform_6(%arg0: i32) -> (i32, i32, i32) {
    %c0_i32 = arith.constant 0 : i32
    %c0_i32_0 = arith.constant 0 : i32
    %c0_i32_1 = arith.constant 0 : i32
    %c0_i32_2 = arith.constant 0 : i32
    return %c0_i32, %c0_i32_0, %c0_i32_1 : i32, i32, i32
  }
  func.func @transform_7(%arg0: i32) -> (i32, i32, i32) {
    %c0_i32 = arith.constant 0 : i32
    %c0_i32_0 = arith.constant 0 : i32
    %c0_i32_1 = arith.constant 0 : i32
    %c0_i32_2 = arith.constant 0 : i32
    return %c0_i32, %c0_i32_0, %c0_i32_1 : i32, i32, i32
  }
  func.func @transform_8(%arg0: i32) -> (i32, i32, i32) {
    %c0_i32 = arith.constant 0 : i32
    %c0_i32_0 = arith.constant 0 : i32
    %c0_i32_1 = arith.constant 0 : i32
    %c0_i32_2 = arith.constant 0 : i32
    return %c0_i32, %c0_i32_0, %c0_i32_1 : i32, i32, i32
  }
  func.func @transform_9(%arg0: i32) -> (i32, i32, i32) {
    %c0_i32 = arith.constant 0 : i32
    %c0_i32_0 = arith.constant 0 : i32
    %c0_i32_1 = arith.constant 0 : i32
    %c0_i32_2 = arith.constant 0 : i32
    return %c0_i32, %c0_i32_0, %c0_i32_1 : i32, i32, i32
  }
  func.func @transform_10(%arg0: i32) -> (i32, i32, i32) {
    %c0_i32 = arith.constant 0 : i32
    %c0_i32_0 = arith.constant 0 : i32
    %c0_i32_1 = arith.constant 0 : i32
    %c0_i32_2 = arith.constant 0 : i32
    return %c0_i32, %c0_i32_0, %c0_i32_1 : i32, i32, i32
  }
  func.func @transform_11(%arg0: i32) -> (i32, i32, i32) {
    %c0_i32 = arith.constant 0 : i32
    %c0_i32_0 = arith.constant 0 : i32
    %c0_i32_1 = arith.constant 0 : i32
    %c0_i32_2 = arith.constant 0 : i32
    return %c0_i32, %c0_i32_0, %c0_i32_1 : i32, i32, i32
  }
  func.func @transform_12(%arg0: i32) -> (i32, i32, i32) {
    %c0_i32 = arith.constant 0 : i32
    %c0_i32_0 = arith.constant 0 : i32
    %c0_i32_1 = arith.constant 0 : i32
    %c0_i32_2 = arith.constant 0 : i32
    return %c0_i32, %c0_i32_0, %c0_i32_1 : i32, i32, i32
  }
  func.func @transform_13(%arg0: i32) -> (i32, i32, i32) {
    %c0_i32 = arith.constant 0 : i32
    %c0_i32_0 = arith.constant 0 : i32
    %c0_i32_1 = arith.constant 0 : i32
    %c0_i32_2 = arith.constant 0 : i32
    return %c0_i32, %c0_i32_0, %c0_i32_1 : i32, i32, i32
  }
  func.func @transform_14(%arg0: i32) -> (i32, i32, i32) {
    %c0_i32 = arith.constant 0 : i32
    %c0_i32_0 = arith.constant 0 : i32
    %c0_i32_1 = arith.constant 0 : i32
    %c0_i32_2 = arith.constant 0 : i32
    return %c0_i32, %c0_i32_0, %c0_i32_1 : i32, i32, i32
  }
  func.func @transform_15(%arg0: i32) -> (i32, i32, i32) {
    %c0_i32 = arith.constant 0 : i32
    %c0_i32_0 = arith.constant 0 : i32
    %c0_i32_1 = arith.constant 0 : i32
    %c0_i32_2 = arith.constant 0 : i32
    return %c0_i32, %c0_i32_0, %c0_i32_1 : i32, i32, i32
  }
  func.func @transform_16(%arg0: i32) -> (i32, i32, i32) {
    %c0_i32 = arith.constant 0 : i32
    %c0_i32_0 = arith.constant 0 : i32
    %c0_i32_1 = arith.constant 0 : i32
    %c0_i32_2 = arith.constant 0 : i32
    return %c0_i32, %c0_i32_0, %c0_i32_1 : i32, i32, i32
  }
  func.func @transform_17(%arg0: i32) -> (i32, i32, i32) {
    %c0_i32 = arith.constant 0 : i32
    %c0_i32_0 = arith.constant 0 : i32
    %c0_i32_1 = arith.constant 0 : i32
    %c0_i32_2 = arith.constant 0 : i32
    return %c0_i32, %c0_i32_0, %c0_i32_1 : i32, i32, i32
  }
  func.func @transform_18(%arg0: i32) -> (i32, i32, i32) {
    %c0_i32 = arith.constant 0 : i32
    %c0_i32_0 = arith.constant 0 : i32
    %c0_i32_1 = arith.constant 0 : i32
    %c0_i32_2 = arith.constant 0 : i32
    return %c0_i32, %c0_i32_0, %c0_i32_1 : i32, i32, i32
  }
  func.func @transform_19(%arg0: i32) -> (i32, i32, i32) {
    %c0_i32 = arith.constant 0 : i32
    %c0_i32_0 = arith.constant 0 : i32
    %c0_i32_1 = arith.constant 0 : i32
    %c0_i32_2 = arith.constant 0 : i32
    return %c0_i32, %c0_i32_0, %c0_i32_1 : i32, i32, i32
  }
  func.func @transform_20(%arg0: i32) -> (i32, i32, i32) {
    %c0_i32 = arith.constant 0 : i32
    %c0_i32_0 = arith.constant 0 : i32
    %c0_i32_1 = arith.constant 0 : i32
    %c0_i32_2 = arith.constant 0 : i32
    return %c0_i32, %c0_i32_0, %c0_i32_1 : i32, i32, i32
  }
  func.func @transform_21(%arg0: i32) -> (i32, i32, i32) {
    %c0_i32 = arith.constant 0 : i32
    %c0_i32_0 = arith.constant 0 : i32
    %c0_i32_1 = arith.constant 0 : i32
    %c0_i32_2 = arith.constant 0 : i32
    return %c0_i32, %c0_i32_0, %c0_i32_1 : i32, i32, i32
  }
  func.func @transform_22(%arg0: i32) -> (i32, i32, i32) {
    %c0_i32 = arith.constant 0 : i32
    %c0_i32_0 = arith.constant 0 : i32
    %c0_i32_1 = arith.constant 0 : i32
    %c0_i32_2 = arith.constant 0 : i32
    return %c0_i32, %c0_i32_0, %c0_i32_1 : i32, i32, i32
  }
  func.func @transform_23(%arg0: i32) -> (i32, i32, i32) {
    %c0_i32 = arith.constant 0 : i32
    %c0_i32_0 = arith.constant 0 : i32
    %c0_i32_1 = arith.constant 0 : i32
    %c0_i32_2 = arith.constant 0 : i32
    return %c0_i32, %c0_i32_0, %c0_i32_1 : i32, i32, i32
  }
  func.func @transform_24(%arg0: i32) -> (i32, i32, i32) {
    %c0_i32 = arith.constant 0 : i32
    %c0_i32_0 = arith.constant 0 : i32
    %c0_i32_1 = arith.constant 0 : i32
    %c0_i32_2 = arith.constant 0 : i32
    return %c0_i32, %c0_i32_0, %c0_i32_1 : i32, i32, i32
  }
  func.func @transform_25(%arg0: i32) -> (i32, i32) {
    %c0_i32 = arith.constant 0 : i32
    %c0_i32_0 = arith.constant 0 : i32
    %c0_i32_1 = arith.constant 0 : i32
    return %c0_i32, %c0_i32_0 : i32, i32
  }
  func.func @transform_26(%arg0: i32) -> (i32, i32, i32) {
    %c0_i32 = arith.constant 0 : i32
    %c0_i32_0 = arith.constant 0 : i32
    %c0_i32_1 = arith.constant 0 : i32
    return %arg0, %c0_i32, %c0_i32_0 : i32, i32, i32
  }
}

</mosaic_0001>

<llo_original>
// kernel: tpu_custom_call.1
$region0: #{tpu_custom_call.1}
  #allocation0 [shape = 'u32[]', space=smem, size = 0x4, offset = 0x4, fixed_abs, tag = 'smem constant byte address 0x4 - core index']
  #allocation1 [shape = 'u32[144,128]{1,0:T(1,128)}', space=vmem, size = 0x12000, scoped, tag = 'internal scratch']
  %s0 = inlined_call_operand.hbm [shape: f32[2,8,8], index: 0, kind: input, shape index: {}]
  %s1 = inlined_call_operand.hbm [shape: f32[2,8,32], index: 1, kind: input, shape index: {}]
  %s2 = inlined_call_operand.hbm [shape: f32[2,1,8], index: 2, kind: input, shape index: {}]
  %s3 = inlined_call_operand.hbm [shape: bf16[8,32], index: 3, kind: input, shape index: {}]
  %s4 = inlined_call_operand.hbm [shape: f32[1,32], index: 4, kind: input, shape index: {}]
  %s5 = inlined_call_operand.vmem [shape: bf16[2,32,96], index: 5, kind: input, shape index: {}]
  %s6 = inlined_call_operand.hbm [shape: f32[2,1,96], index: 6, kind: input, shape index: {}]
  %s7 = inlined_call_operand.vmem [shape: bf16[2,32,32], index: 7, kind: input, shape index: {}]
  %s8 = inlined_call_operand.hbm [shape: f32[2,1,32], index: 8, kind: input, shape index: {}]
  %s9 = inlined_call_operand.hbm [shape: f32[2,1,32], index: 9, kind: input, shape index: {}]
  %s10 = inlined_call_operand.hbm [shape: f32[2,1,32], index: 10, kind: input, shape index: {}]
  %s11 = inlined_call_operand.vmem [shape: bf16[2,32,32], index: 11, kind: input, shape index: {}]
  %s12 = inlined_call_operand.hbm [shape: f32[2,1,32], index: 12, kind: input, shape index: {}]
  %s13 = inlined_call_operand.vmem [shape: bf16[2,32,64], index: 13, kind: input, shape index: {}]
  %s14 = inlined_call_operand.hbm [shape: f32[2,1,64], index: 14, kind: input, shape index: {}]
  %s15 = inlined_call_operand.hbm [shape: bf16[2,32,32], index: 15, kind: input, shape index: {}]
  %s16 = inlined_call_operand.hbm [shape: f32[2,1,32], index: 16, kind: input, shape index: {}]
  %s17 = inlined_call_operand.hbm [shape: f32[2,1,32], index: 17, kind: input, shape index: {}]
  %s18 = inlined_call_operand.vmem [shape: f32[2,1,32], index: 18, kind: input, shape index: {}]
  %s19 = inlined_call_operand.hbm [shape: bf16[2,32,64], index: 19, kind: input, shape index: {}]
  %s20 = inlined_call_operand.hbm [shape: f32[2,1,64], index: 20, kind: input, shape index: {}]
  %s21 = inlined_call_operand.vmem [shape: bf16[2,64,32], index: 21, kind: input, shape index: {}]
  %s22 = inlined_call_operand.hbm [shape: f32[2,1,32], index: 22, kind: input, shape index: {}]
  %s23 = inlined_call_operand.vmem [shape: f32[2,1,32], index: 23, kind: input, shape index: {}]
  %s24 = inlined_call_operand.vmem [shape: f32[2,1,32], index: 24, kind: input, shape index: {}]
  %s25 = inlined_call_operand.vmem [shape: bf16[32,128], index: 25, kind: input, shape index: {}]
  %s26 = inlined_call_operand.hbm [shape: f32[2,8,128], index: 26, kind: output, shape index: {}]
  %s27 = sld [smem:[#allocation0]]
  $region205: #{tpu_custom_call.1} parent=0
    _
  %s29 = ssub.s32 1, %s27
  %s30 = scalar_select 0, %s29, %s27
  $region1: #{tpu_custom_call.1} parent=0
    #allocation2 [shape = 'u8[8192]{0}', space=vmem, size = 0x2000, scoped, tag = 'input window, operand 0']
    #allocation3 [shape = 's32[2]{0}', space=sflag, size = 0x8, scoped, tag = 'scoped memory for tpu_custom_call.1']
    #allocation4 [shape = 's32[2]{0}', space=sflag, size = 0x8, scoped, tag = 'scoped memory for tpu_custom_call.1']
    #allocation5 [shape = 'u8[8192]{0}', space=vmem, size = 0x2000, scoped, tag = 'input window, operand 1']
    #allocation6 [shape = 's32[2]{0}', space=sflag, size = 0x8, scoped, tag = 'scoped memory for tpu_custom_call.1']
    #allocation7 [shape = 'u8[1024]{0}', space=vmem, size = 0x400, scoped, tag = 'input window, operand 2']
    #allocation8 [shape = 'u8[2048]{0}', space=vmem, size = 0x800, scoped, tag = 'input window, operand 3, single buffered']
    #allocation9 [shape = 's32[1]{0}', space=sflag, size = 0x4, scoped, tag = 'scoped memory for tpu_custom_call.1']
    #allocation10 [shape = 'u8[512]{0}', space=vmem, size = 0x400, scoped, tag = 'input window, operand 4, single buffered']
    #allocation11 [shape = 'u8[1024]{0}', space=vmem, size = 0x400, scoped, tag = 'input window, operand 6, single buffered']
    #allocation12 [shape = 's32[1]{0}', space=sflag, size = 0x4, scoped, tag = 'scoped memory for tpu_custom_call.1']
    #allocation13 [shape = 'u8[1024]{0}', space=vmem, size = 0x400, scoped, tag = 'input window, operand 8, single buffered']
    #allocation14 [shape = 'u8[1024]{0}', space=vmem, size = 0x400, scoped, tag = 'input window, operand 9, single buffered']
    #allocation15 [shape = 's32[1]{0}', space=sflag, size = 0x4, scoped, tag = 'scoped memory for tpu_custom_call.1']
    #allocation16 [shape = 'u8[1024]{0}', space=vmem, size = 0x400, scoped, tag = 'input window, operand 10, single buffered']
    #allocation17 [shape = 'u8[1024]{0}', space=vmem, size = 0x400, scoped, tag = 'input window, operand 12, single buffered']
    #allocation18 [shape = 's32[1]{0}', space=sflag, size = 0x4, scoped, tag = 'scoped memory for tpu_custom_call.1']
    #allocation19 [shape = 'u8[1024]{0}', space=vmem, size = 0x400, scoped, tag = 'input window, operand 14, single buffered']
    #allocation20 [shape = 'u8[16384]{0}', space=vmem, size = 0x4000, scoped, tag = 'input window, operand 15, single buffered']
    #allocation21 [shape = 's32[1]{0}', space=sflag, size = 0x4, scoped, tag = 'scoped memory for tpu_custom_call.1']
    #allocation22 [shape = 'u8[1024]{0}', space=vmem, size = 0x400, scoped, tag = 'input window, operand 16, single buffered']
    #allocation23 [shape = 'u8[1024]{0}', space=vmem, size = 0x400, scoped, tag = 'input window, operand 17, single buffered']
    #allocation24 [shape = 's32[1]{0}', space=sflag, size = 0x4, scoped, tag = 'scoped memory for tpu_custom_call.1']
    #allocation25 [shape = 'u8[16384]{0}', space=vmem, size = 0x4000, scoped, tag = 'input window, operand 19, single buffered']
    #allocation26 [shape = 'u8[1024]{0}', space=vmem, size = 0x400, scoped, tag = 'input window, operand 20, single buffered']
    #allocation27 [shape = 's32[1]{0}', space=sflag, size = 0x4, scoped, tag = 'scoped memory for tpu_custom_call.1']
    #allocation28 [shape = 'u8[1024]{0}', space=vmem, size = 0x400, scoped, tag = 'input window, operand 22, single buffered']
    #allocation29 [shape = 'u8[8192]{0}', space=vmem, size = 0x2000, scoped, tag = 'output window, operand 0']
    %31 = vsyncpa [#allocation3], 0
    %s32 = scalar_lea.sflag [#allocation3], 1
    %33 = vsyncpa %s32, 0
    %34 = vsyncpa [#allocation6], 0
    %s35 = scalar_lea.sflag [#allocation6], 1
    %36 = vsyncpa %s35, 0
    %37 = vsyncpa [#allocation9], 0
    %38 = vsyncpa [#allocation12], 0
    %39 = vsyncpa [#allocation15], 0
    %40 = vsyncpa [#allocation18], 0
    %41 = vsyncpa [#allocation21], 0
    %42 = vsyncpa [#allocation24], 0
    %43 = vsyncpa [#allocation27], 0
    %44 = vsyncpa [#allocation4], 0
    %s45 = scalar_lea.sflag [#allocation4], 1
    %46 = vsyncpa %s45, 0
    loop: start=0, step=1, limit=4
    $region2: #{tpu_custom_call.1} parent=1 // loop_pre_header
      _
    $region3: #{tpu_custom_call.1} parent=1 // loop_header
      %s48 = sphi 0, %s52
      %p49 = scmp.ge.s32.totalorder %s48, 4
      %s58 = sphi 0, %s60
      %s61 = sphi 0, %s58
      %s62 = sphi 0, %s61
      %s78 = sphi 0, %s62
      %s84 = sphi 0, %s86
      %s87 = sphi 0, %s84
      %s88 = sphi 0, %s87
      %s104 = sphi 0, %s88
      %s110 = sphi 0, %s112
      %s113 = sphi 0, %s110
      %s114 = sphi 0, %s113
      %s130 = sphi 0, %s114
      %s134 = sphi 0, %s134
      %s136 = sphi 0, %s134
      %s137 = sphi 0, %s136
      %s151 = sphi 0, %s137
      %s155 = sphi 0, %s155
      %s157 = sphi 0, %s155
      %s158 = sphi 0, %s157
      %s172 = sphi 0, %s158
      %s176 = sphi 0, %s176
      %s178 = sphi 0, %s176
      %s179 = sphi 0, %s178
      %s193 = sphi 0, %s179
      %s197 = sphi 0, %s197
      %s199 = sphi 0, %s197
      %s200 = sphi 0, %s199
      %s214 = sphi 0, %s200
      %s218 = sphi 0, %s218
      %s220 = sphi 0, %s218
      %s221 = sphi 0, %s220
      %s235 = sphi 0, %s221
      %s239 = sphi 0, %s239
      %s241 = sphi 0, %s239
      %s242 = sphi 0, %s241
      %s256 = sphi 0, %s242
      %s260 = sphi 0, %s260
      %s262 = sphi 0, %s260
      %s263 = sphi 0, %s262
      %s277 = sphi 0, %s263
      %s281 = sphi 0, %s281
      %s283 = sphi 0, %s281
      %s284 = sphi 0, %s283
      %s298 = sphi 0, %s284
      %s302 = sphi 0, %s302
      %s304 = sphi 0, %s302
      %s305 = sphi 0, %s304
      %s319 = sphi 0, %s305
      %s323 = sphi 0, %s323
      %s325 = sphi 0, %s323
      %s326 = sphi 0, %s325
      %s340 = sphi 0, %s326
      %s344 = sphi 0, %s344
      %s346 = sphi 0, %s344
      %s347 = sphi 0, %s346
      %s361 = sphi 0, %s347
      %s365 = sphi 0, %s365
      %s367 = sphi 0, %s365
      %s368 = sphi 0, %s367
      %s382 = sphi 0, %s368
      %s386 = sphi 0, %s386
      %s388 = sphi 0, %s386
      %s389 = sphi 0, %s388
      %s403 = sphi 0, %s389
      %s407 = sphi 0, %s407
      %s409 = sphi 0, %s407
      %s410 = sphi 0, %s409
      %s424 = sphi 0, %s410
      %s428 = sphi 0, %s428
      %s430 = sphi 0, %s428
      %s431 = sphi 0, %s430
      %s445 = sphi 0, %s431
      %s449 = sphi 0, %s449
      %s451 = sphi 0, %s449
      %s452 = sphi 0, %s451
      %s466 = sphi 0, %s452
      %s470 = sphi 0, %s470
      %s472 = sphi 0, %s470
      %s473 = sphi 0, %s472
      %s487 = sphi 0, %s473
      %s491 = sphi 0, %s491
      %s493 = sphi 0, %s491
      %s494 = sphi 0, %s493
      %s508 = sphi 0, %s494
      %s512 = sphi 0, %s512
      %s514 = sphi 0, %s512
      %s515 = sphi 0, %s514
      %s529 = sphi 0, %s515
      %s533 = sphi 0, %s533
      %s535 = sphi 0, %s533
      %s536 = sphi 0, %s535
      %s550 = sphi 0, %s536
      %s554 = sphi 0, %s554
      %s556 = sphi 0, %s554
      %s557 = sphi 0, %s556
      %s571 = sphi 0, %s557
      %s575 = sphi 0, %s575
      %s577 = sphi 0, %s575
      %s578 = sphi 0, %s577
      %s592 = sphi 0, %s578
      %s596 = sphi 0, %s596
      %s598 = sphi 0, %s596
      %s599 = sphi 0, %s598
      %s613 = sphi 0, %s599
      %s619 = sphi 0, %s621
      %s622 = sphi 0, %s619
      %s623 = sphi 0, %s622
      %s639 = sphi 0, %s623
    $region4: #{tpu_custom_call.1} parent=1 // loop_header_branch
      %51 = sbr.rel (%p49) target = $region8
    $region5: #{tpu_custom_call.1} parent=1 // loop_body
      %s53 = ssub.s32 %s48, 1
      %s54 = ssub.s32 %s48, 2
      %s55 = sadd.s32 %s48, 1
      %s56 = ssub.s32 %s48, %s55
      %p57 = scmp.eq.s32.totalorder %s56, 0
      %s59 = sadd.s32 %s58, 1
      %s60 = scalar_select %p57, %s58, %s59
      %p63 = pneg %p57
      %p64 = scmp.eq.s32.totalorder %s48, 1
      %p65 = por %p63, %p64
      %p66 = scmp.ne.s32.totalorder %s58, %s61
      %p67 = scmp.eq.s32.totalorder %s48, 0
      %p68 = por %p66, %p67
      %p69 = scmp.ne.s32.totalorder %s58, %s61
      %p70 = scmp.eq.s32.totalorder %s53, 1
      %p71 = por %p69, %p70
      %p72 = scmp.ne.s32.totalorder %s61, %s62
      %p73 = scmp.eq.s32.totalorder %s53, 0
      %p74 = por %p72, %p73
      %p75 = scmp.ne.s32.totalorder %s61, %s62
      %p76 = scmp.eq.s32.totalorder %s54, 1
      %p77 = por %p75, %p76
      %p79 = scmp.ne.s32.totalorder %s62, %s78
      %p80 = scmp.eq.s32.totalorder %s54, 0
      %p81 = por %p79, %p80
      %s82 = ssub.s32 %s48, %s55
      %p83 = scmp.eq.s32.totalorder %s82, 0
      %s85 = sadd.s32 %s84, 1
      %s86 = scalar_select %p83, %s84, %s85
      %p89 = pneg %p83
      %p90 = scmp.eq.s32.totalorder %s48, 1
      %p91 = por %p89, %p90
      %p92 = scmp.ne.s32.totalorder %s84, %s87
      %p93 = scmp.eq.s32.totalorder %s48, 0
      %p94 = por %p92, %p93
      %p95 = scmp.ne.s32.totalorder %s84, %s87
      %p96 = scmp.eq.s32.totalorder %s53, 1
      %p97 = por %p95, %p96
      %p98 = scmp.ne.s32.totalorder %s87, %s88
      %p99 = scmp.eq.s32.totalorder %s53, 0
      %p100 = por %p98, %p99
      %p101 = scmp.ne.s32.totalorder %s87, %s88
      %p102 = scmp.eq.s32.totalorder %s54, 1
      %p103 = por %p101, %p102
      %p105 = scmp.ne.s32.totalorder %s88, %s104
      %p106 = scmp.eq.s32.totalorder %s54, 0
      %p107 = por %p105, %p106
      %s108 = ssub.s32 %s48, %s55
      %p109 = scmp.eq.s32.totalorder %s108, 0
      %s111 = sadd.s32 %s110, 1
      %s112 = scalar_select %p109, %s110, %s111
      %p115 = pneg %p109
      %p116 = scmp.eq.s32.totalorder %s48, 1
      %p117 = por %p115, %p116
      %p118 = scmp.ne.s32.totalorder %s110, %s113
      %p119 = scmp.eq.s32.totalorder %s48, 0
      %p120 = por %p118, %p119
      %p121 = scmp.ne.s32.totalorder %s110, %s113
      %p122 = scmp.eq.s32.totalorder %s53, 1
      %p123 = por %p121, %p122
      %p124 = scmp.ne.s32.totalorder %s113, %s114
      %p125 = scmp.eq.s32.totalorder %s53, 0
      %p126 = por %p124, %p125
      %p127 = scmp.ne.s32.totalorder %s113, %s114
      %p128 = scmp.eq.s32.totalorder %s54, 1
      %p129 = por %p127, %p128
      %p131 = scmp.ne.s32.totalorder %s114, %s130
      %p132 = scmp.eq.s32.totalorder %s54, 0
      %p133 = por %p131, %p132
      %s135 = sadd.s32 %s134, 1
      %p138 = scmp.eq.s32.totalorder %s48, 1
      %p139 = scmp.ne.s32.totalorder %s134, %s136
      %p140 = scmp.eq.s32.totalorder %s48, 0
      %p141 = por %p139, %p140
      %p142 = scmp.ne.s32.totalorder %s134, %s136
      %p143 = scmp.eq.s32.totalorder %s53, 1
      %p144 = por %p142, %p143
      %p145 = scmp.ne.s32.totalorder %s136, %s137
      %p146 = scmp.eq.s32.totalorder %s53, 0
      %p147 = por %p145, %p146
      %p148 = scmp.ne.s32.totalorder %s136, %s137
      %p149 = scmp.eq.s32.totalorder %s54, 1
      %p150 = por %p148, %p149
      %p152 = scmp.ne.s32.totalorder %s137, %s151
      %p153 = scmp.eq.s32.totalorder %s54, 0
      %p154 = por %p152, %p153
      %s156 = sadd.s32 %s155, 1
      %p159 = scmp.eq.s32.totalorder %s48, 1
      %p160 = scmp.ne.s32.totalorder %s155, %s157
      %p161 = scmp.eq.s32.totalorder %s48, 0
      %p162 = por %p160, %p161
      %p163 = scmp.ne.s32.totalorder %s155, %s157
      %p164 = scmp.eq.s32.totalorder %s53, 1
      %p165 = por %p163, %p164
      %p166 = scmp.ne.s32.totalorder %s157, %s158
      %p167 = scmp.eq.s32.totalorder %s53, 0
      %p168 = por %p166, %p167
      %p169 = scmp.ne.s32.totalorder %s157, %s158
      %p170 = scmp.eq.s32.totalorder %s54, 1
      %p171 = por %p169, %p170
      %p173 = scmp.ne.s32.totalorder %s158, %s172
      %p174 = scmp.eq.s32.totalorder %s54, 0
      %p175 = por %p173, %p174
      %s177 = sadd.s32 %s176, 1
      %p180 = scmp.eq.s32.totalorder %s48, 1
      %p181 = scmp.ne.s32.totalorder %s176, %s178
      %p182 = scmp.eq.s32.totalorder %s48, 0
      %p183 = por %p181, %p182
      %p184 = scmp.ne.s32.totalorder %s176, %s178
      %p185 = scmp.eq.s32.totalorder %s53, 1
      %p186 = por %p184, %p185
      %p187 = scmp.ne.s32.totalorder %s178, %s179
      %p188 = scmp.eq.s32.totalorder %s53, 0
      %p189 = por %p187, %p188
      %p190 = scmp.ne.s32.totalorder %s178, %s179
      %p191 = scmp.eq.s32.totalorder %s54, 1
      %p192 = por %p190, %p191
      %p194 = scmp.ne.s32.totalorder %s179, %s193
      %p195 = scmp.eq.s32.totalorder %s54, 0
      %p196 = por %p194, %p195
      %s198 = sadd.s32 %s197, 1
      %p201 = scmp.eq.s32.totalorder %s48, 1
      %p202 = scmp.ne.s32.totalorder %s197, %s199
      %p203 = scmp.eq.s32.totalorder %s48, 0
      %p204 = por %p202, %p203
      %p205 = scmp.ne.s32.totalorder %s197, %s199
      %p206 = scmp.eq.s32.totalorder %s53, 1
      %p207 = por %p205, %p206
      %p208 = scmp.ne.s32.totalorder %s199, %s200
      %p209 = scmp.eq.s32.totalorder %s53, 0
      %p210 = por %p208, %p209
      %p211 = scmp.ne.s32.totalorder %s199, %s200
      %p212 = scmp.eq.s32.totalorder %s54, 1
      %p213 = por %p211, %p212
      %p215 = scmp.ne.s32.totalorder %s200, %s214
      %p216 = scmp.eq.s32.totalorder %s54, 0
      %p217 = por %p215, %p216
      %s219 = sadd.s32 %s218, 1
      %p222 = scmp.eq.s32.totalorder %s48, 1
      %p223 = scmp.ne.s32.totalorder %s218, %s220
      %p224 = scmp.eq.s32.totalorder %s48, 0
      %p225 = por %p223, %p224
      %p226 = scmp.ne.s32.totalorder %s218, %s220
      %p227 = scmp.eq.s32.totalorder %s53, 1
      %p228 = por %p226, %p227
      %p229 = scmp.ne.s32.totalorder %s220, %s221
      %p230 = scmp.eq.s32.totalorder %s53, 0
      %p231 = por %p229, %p230
      %p232 = scmp.ne.s32.totalorder %s220, %s221
      %p233 = scmp.eq.s32.totalorder %s54, 1
      %p234 = por %p232, %p233
      %p236 = scmp.ne.s32.totalorder %s221, %s235
      %p237 = scmp.eq.s32.totalorder %s54, 0
      %p238 = por %p236, %p237
      %s240 = sadd.s32 %s239, 1
      %p243 = scmp.eq.s32.totalorder %s48, 1
      %p244 = scmp.ne.s32.totalorder %s239, %s241
      %p245 = scmp.eq.s32.totalorder %s48, 0
      %p246 = por %p244, %p245
      %p247 = scmp.ne.s32.totalorder %s239, %s241
      %p248 = scmp.eq.s32.totalorder %s53, 1
      %p249 = por %p247, %p248
      %p250 = scmp.ne.s32.totalorder %s241, %s242
      %p251 = scmp.eq.s32.totalorder %s53, 0
      %p252 = por %p250, %p251
      %p253 = scmp.ne.s32.totalorder %s241, %s242
      %p254 = scmp.eq.s32.totalorder %s54, 1
      %p255 = por %p253, %p254
      %p257 = scmp.ne.s32.totalorder %s242, %s256
      %p258 = scmp.eq.s32.totalorder %s54, 0
      %p259 = por %p257, %p258
      %s261 = sadd.s32 %s260, 1
      %p264 = scmp.eq.s32.totalorder %s48, 1
      %p265 = scmp.ne.s32.totalorder %s260, %s262
      %p266 = scmp.eq.s32.totalorder %s48, 0
      %p267 = por %p265, %p266
      %p268 = scmp.ne.s32.totalorder %s260, %s262
      %p269 = scmp.eq.s32.totalorder %s53, 1
      %p270 = por %p268, %p269
      %p271 = scmp.ne.s32.totalorder %s262, %s263
      %p272 = scmp.eq.s32.totalorder %s53, 0
      %p273 = por %p271, %p272
      %p274 = scmp.ne.s32.totalorder %s262, %s263
      %p275 = scmp.eq.s32.totalorder %s54, 1
      %p276 = por %p274, %p275
      %p278 = scmp.ne.s32.totalorder %s263, %s277
      %p279 = scmp.eq.s32.totalorder %s54, 0
      %p280 = por %p278, %p279
      %s282 = sadd.s32 %s281, 1
      %p285 = scmp.eq.s32.totalorder %s48, 1
      %p286 = scmp.ne.s32.totalorder %s281, %s283
      %p287 = scmp.eq.s32.totalorder %s48, 0
      %p288 = por %p286, %p287
      %p289 = scmp.ne.s32.totalorder %s281, %s283
      %p290 = scmp.eq.s32.totalorder %s53, 1
      %p291 = por %p289, %p290
      %p292 = scmp.ne.s32.totalorder %s283, %s284
      %p293 = scmp.eq.s32.totalorder %s53, 0
      %p294 = por %p292, %p293
      %p295 = scmp.ne.s32.totalorder %s283, %s284
      %p296 = scmp.eq.s32.totalorder %s54, 1
      %p297 = por %p295, %p296
      %p299 = scmp.ne.s32.totalorder %s284, %s298
      %p300 = scmp.eq.s32.totalorder %s54, 0
      %p301 = por %p299, %p300
      %s303 = sadd.s32 %s302, 1
      %p306 = scmp.eq.s32.totalorder %s48, 1
      %p307 = scmp.ne.s32.totalorder %s302, %s304
      %p308 = scmp.eq.s32.totalorder %s48, 0
      %p309 = por %p307, %p308
      %p310 = scmp.ne.s32.totalorder %s302, %s304
      %p311 = scmp.eq.s32.totalorder %s53, 1
      %p312 = por %p310, %p311
      %p313 = scmp.ne.s32.totalorder %s304, %s305
      %p314 = scmp.eq.s32.totalorder %s53, 0
      %p315 = por %p313, %p314
      %p316 = scmp.ne.s32.totalorder %s304, %s305
      %p317 = scmp.eq.s32.totalorder %s54, 1
      %p318 = por %p316, %p317
      %p320 = scmp.ne.s32.totalorder %s305, %s319
      %p321 = scmp.eq.s32.totalorder %s54, 0
      %p322 = por %p320, %p321
      %s324 = sadd.s32 %s323, 1
      %p327 = scmp.eq.s32.totalorder %s48, 1
      %p328 = scmp.ne.s32.totalorder %s323, %s325
      %p329 = scmp.eq.s32.totalorder %s48, 0
      %p330 = por %p328, %p329
      %p331 = scmp.ne.s32.totalorder %s323, %s325
      %p332 = scmp.eq.s32.totalorder %s53, 1
      %p333 = por %p331, %p332
      %p334 = scmp.ne.s32.totalorder %s325, %s326
      %p335 = scmp.eq.s32.totalorder %s53, 0
      %p336 = por %p334, %p335
      %p337 = scmp.ne.s32.totalorder %s325, %s326
      %p338 = scmp.eq.s32.totalorder %s54, 1
      %p339 = por %p337, %p338
      %p341 = scmp.ne.s32.totalorder %s326, %s340
      %p342 = scmp.eq.s32.totalorder %s54, 0
      %p343 = por %p341, %p342
      %s345 = sadd.s32 %s344, 1
      %p348 = scmp.eq.s32.totalorder %s48, 1
      %p349 = scmp.ne.s32.totalorder %s344, %s346
      %p350 = scmp.eq.s32.totalorder %s48, 0
      %p351 = por %p349, %p350
      %p352 = scmp.ne.s32.totalorder %s344, %s346
      %p353 = scmp.eq.s32.totalorder %s53, 1
      %p354 = por %p352, %p353
      %p355 = scmp.ne.s32.totalorder %s346, %s347
      %p356 = scmp.eq.s32.totalorder %s53, 0
      %p357 = por %p355, %p356
      %p358 = scmp.ne.s32.totalorder %s346, %s347
      %p359 = scmp.eq.s32.totalorder %s54, 1
      %p360 = por %p358, %p359
      %p362 = scmp.ne.s32.totalorder %s347, %s361
      %p363 = scmp.eq.s32.totalorder %s54, 0
      %p364 = por %p362, %p363
      %s366 = sadd.s32 %s365, 1
      %p369 = scmp.eq.s32.totalorder %s48, 1
      %p370 = scmp.ne.s32.totalorder %s365, %s367
      %p371 = scmp.eq.s32.totalorder %s48, 0
      %p372 = por %p370, %p371
      %p373 = scmp.ne.s32.totalorder %s365, %s367
      %p374 = scmp.eq.s32.totalorder %s53, 1
      %p375 = por %p373, %p374
      %p376 = scmp.ne.s32.totalorder %s367, %s368
      %p377 = scmp.eq.s32.totalorder %s53, 0
      %p378 = por %p376, %p377
      %p379 = scmp.ne.s32.totalorder %s367, %s368
      %p380 = scmp.eq.s32.totalorder %s54, 1
      %p381 = por %p379, %p380
      %p383 = scmp.ne.s32.totalorder %s368, %s382
      %p384 = scmp.eq.s32.totalorder %s54, 0
      %p385 = por %p383, %p384
      %s387 = sadd.s32 %s386, 1
      %p390 = scmp.eq.s32.totalorder %s48, 1
      %p391 = scmp.ne.s32.totalorder %s386, %s388
      %p392 = scmp.eq.s32.totalorder %s48, 0
      %p393 = por %p391, %p392
      %p394 = scmp.ne.s32.totalorder %s386, %s388
      %p395 = scmp.eq.s32.totalorder %s53, 1
      %p396 = por %p394, %p395
      %p397 = scmp.ne.s32.totalorder %s388, %s389
      %p398 = scmp.eq.s32.totalorder %s53, 0
      %p399 = por %p397, %p398
      %p400 = scmp.ne.s32.totalorder %s388, %s389
      %p401 = scmp.eq.s32.totalorder %s54, 1
      %p402 = por %p400, %p401
      %p404 = scmp.ne.s32.totalorder %s389, %s403
      %p405 = scmp.eq.s32.totalorder %s54, 0
      %p406 = por %p404, %p405
      %s408 = sadd.s32 %s407, 1
      %p411 = scmp.eq.s32.totalorder %s48, 1
      %p412 = scmp.ne.s32.totalorder %s407, %s409
      %p413 = scmp.eq.s32.totalorder %s48, 0
      %p414 = por %p412, %p413
      %p415 = scmp.ne.s32.totalorder %s407, %s409
      %p416 = scmp.eq.s32.totalorder %s53, 1
      %p417 = por %p415, %p416
      %p418 = scmp.ne.s32.totalorder %s409, %s410
      %p419 = scmp.eq.s32.totalorder %s53, 0
      %p420 = por %p418, %p419
      %p421 = scmp.ne.s32.totalorder %s409, %s410
      %p422 = scmp.eq.s32.totalorder %s54, 1
      %p423 = por %p421, %p422
      %p425 = scmp.ne.s32.totalorder %s410, %s424
      %p426 = scmp.eq.s32.totalorder %s54, 0
      %p427 = por %p425, %p426
      %s429 = sadd.s32 %s428, 1
      %p432 = scmp.eq.s32.totalorder %s48, 1
      %p433 = scmp.ne.s32.totalorder %s428, %s430
      %p434 = scmp.eq.s32.totalorder %s48, 0
      %p435 = por %p433, %p434
      %p436 = scmp.ne.s32.totalorder %s428, %s430
      %p437 = scmp.eq.s32.totalorder %s53, 1
      %p438 = por %p436, %p437
      %p439 = scmp.ne.s32.totalorder %s430, %s431
      %p440 = scmp.eq.s32.totalorder %s53, 0
      %p441 = por %p439, %p440
      %p442 = scmp.ne.s32.totalorder %s430, %s431
      %p443 = scmp.eq.s32.totalorder %s54, 1
      %p444 = por %p442, %p443
      %p446 = scmp.ne.s32.totalorder %s431, %s445
      %p447 = scmp.eq.s32.totalorder %s54, 0
      %p448 = por %p446, %p447
      %s450 = sadd.s32 %s449, 1
      %p453 = scmp.eq.s32.totalorder %s48, 1
      %p454 = scmp.ne.s32.totalorder %s449, %s451
      %p455 = scmp.eq.s32.totalorder %s48, 0
      %p456 = por %p454, %p455
      %p457 = scmp.ne.s32.totalorder %s449, %s451
      %p458 = scmp.eq.s32.totalorder %s53, 1
      %p459 = por %p457, %p458
      %p460 = scmp.ne.s32.totalorder %s451, %s452
      %p461 = scmp.eq.s32.totalorder %s53, 0
      %p462 = por %p460, %p461
      %p463 = scmp.ne.s32.totalorder %s451, %s452
      %p464 = scmp.eq.s32.totalorder %s54, 1
      %p465 = por %p463, %p464
      %p467 = scmp.ne.s32.totalorder %s452, %s466
      %p468 = scmp.eq.s32.totalorder %s54, 0
      %p469 = por %p467, %p468
      %s471 = sadd.s32 %s470, 1
      %p474 = scmp.eq.s32.totalorder %s48, 1
      %p475 = scmp.ne.s32.totalorder %s470, %s472
      %p476 = scmp.eq.s32.totalorder %s48, 0
      %p477 = por %p475, %p476
      %p478 = scmp.ne.s32.totalorder %s470, %s472
      %p479 = scmp.eq.s32.totalorder %s53, 1
      %p480 = por %p478, %p479
      %p481 = scmp.ne.s32.totalorder %s472, %s473
      %p482 = scmp.eq.s32.totalorder %s53, 0
      %p483 = por %p481, %p482
      %p484 = scmp.ne.s32.totalorder %s472, %s473
      %p485 = scmp.eq.s32.totalorder %s54, 1
      %p486 = por %p484, %p485
      %p488 = scmp.ne.s32.totalorder %s473, %s487
      %p489 = scmp.eq.s32.totalorder %s54, 0
      %p490 = por %p488, %p489
      %s492 = sadd.s32 %s491, 1
      %p495 = scmp.eq.s32.totalorder %s48, 1
      %p496 = scmp.ne.s32.totalorder %s491, %s493
      %p497 = scmp.eq.s32.totalorder %s48, 0
      %p498 = por %p496, %p497
      %p499 = scmp.ne.s32.totalorder %s491, %s493
      %p500 = scmp.eq.s32.totalorder %s53, 1
      %p501 = por %p499, %p500
      %p502 = scmp.ne.s32.totalorder %s493, %s494
      %p503 = scmp.eq.s32.totalorder %s53, 0
      %p504 = por %p502, %p503
      %p505 = scmp.ne.s32.totalorder %s493, %s494
      %p506 = scmp.eq.s32.totalorder %s54, 1
      %p507 = por %p505, %p506
      %p509 = scmp.ne.s32.totalorder %s494, %s508
      %p510 = scmp.eq.s32.totalorder %s54, 0
      %p511 = por %p509, %p510
      %s513 = sadd.s32 %s512, 1
      %p516 = scmp.eq.s32.totalorder %s48, 1
      %p517 = scmp.ne.s32.totalorder %s512, %s514
      %p518 = scmp.eq.s32.totalorder %s48, 0
      %p519 = por %p517, %p518
      %p520 = scmp.ne.s32.totalorder %s512, %s514
      %p521 = scmp.eq.s32.totalorder %s53, 1
      %p522 = por %p520, %p521
      %p523 = scmp.ne.s32.totalorder %s514, %s515
      %p524 = scmp.eq.s32.totalorder %s53, 0
      %p525 = por %p523, %p524
      %p526 = scmp.ne.s32.totalorder %s514, %s515
      %p527 = scmp.eq.s32.totalorder %s54, 1
      %p528 = por %p526, %p527
      %p530 = scmp.ne.s32.totalorder %s515, %s529
      %p531 = scmp.eq.s32.totalorder %s54, 0
      %p532 = por %p530, %p531
      %s534 = sadd.s32 %s533, 1
      %p537 = scmp.eq.s32.totalorder %s48, 1
      %p538 = scmp.ne.s32.totalorder %s533, %s535
      %p539 = scmp.eq.s32.totalorder %s48, 0
      %p540 = por %p538, %p539
      %p541 = scmp.ne.s32.totalorder %s533, %s535
      %p542 = scmp.eq.s32.totalorder %s53, 1
      %p543 = por %p541, %p542
      %p544 = scmp.ne.s32.totalorder %s535, %s536
      %p545 = scmp.eq.s32.totalorder %s53, 0
      %p546 = por %p544, %p545
      %p547 = scmp.ne.s32.totalorder %s535, %s536
      %p548 = scmp.eq.s32.totalorder %s54, 1
      %p549 = por %p547, %p548
      %p551 = scmp.ne.s32.totalorder %s536, %s550
      %p552 = scmp.eq.s32.totalorder %s54, 0
      %p553 = por %p551, %p552
      %s555 = sadd.s32 %s554, 1
      %p558 = scmp.eq.s32.totalorder %s48, 1
      %p559 = scmp.ne.s32.totalorder %s554, %s556
      %p560 = scmp.eq.s32.totalorder %s48, 0
      %p561 = por %p559, %p560
      %p562 = scmp.ne.s32.totalorder %s554, %s556
      %p563 = scmp.eq.s32.totalorder %s53, 1
      %p564 = por %p562, %p563
      %p565 = scmp.ne.s32.totalorder %s556, %s557
      %p566 = scmp.eq.s32.totalorder %s53, 0
      %p567 = por %p565, %p566
      %p568 = scmp.ne.s32.totalorder %s556, %s557
      %p569 = scmp.eq.s32.totalorder %s54, 1
      %p570 = por %p568, %p569
      %p572 = scmp.ne.s32.totalorder %s557, %s571
      %p573 = scmp.eq.s32.totalorder %s54, 0
      %p574 = por %p572, %p573
      %s576 = sadd.s32 %s575, 1
      %p579 = scmp.eq.s32.totalorder %s48, 1
      %p580 = scmp.ne.s32.totalorder %s575, %s577
      %p581 = scmp.eq.s32.totalorder %s48, 0
      %p582 = por %p580, %p581
      %p583 = scmp.ne.s32.totalorder %s575, %s577
      %p584 = scmp.eq.s32.totalorder %s53, 1
      %p585 = por %p583, %p584
      %p586 = scmp.ne.s32.totalorder %s577, %s578
      %p587 = scmp.eq.s32.totalorder %s53, 0
      %p588 = por %p586, %p587
      %p589 = scmp.ne.s32.totalorder %s577, %s578
      %p590 = scmp.eq.s32.totalorder %s54, 1
      %p591 = por %p589, %p590
      %p593 = scmp.ne.s32.totalorder %s578, %s592
      %p594 = scmp.eq.s32.totalorder %s54, 0
      %p595 = por %p593, %p594
      %s597 = sadd.s32 %s596, 1
      %p600 = scmp.eq.s32.totalorder %s48, 1
      %p601 = scmp.ne.s32.totalorder %s596, %s598
      %p602 = scmp.eq.s32.totalorder %s48, 0
      %p603 = por %p601, %p602
      %p604 = scmp.ne.s32.totalorder %s596, %s598
      %p605 = scmp.eq.s32.totalorder %s53, 1
      %p606 = por %p604, %p605
      %p607 = scmp.ne.s32.totalorder %s598, %s599
      %p608 = scmp.eq.s32.totalorder %s53, 0
      %p609 = por %p607, %p608
      %p610 = scmp.ne.s32.totalorder %s598, %s599
      %p611 = scmp.eq.s32.totalorder %s54, 1
      %p612 = por %p610, %p611
      %p614 = scmp.ne.s32.totalorder %s599, %s613
      %p615 = scmp.eq.s32.totalorder %s54, 0
      %p616 = por %p614, %p615
      %s617 = ssub.s32 %s48, %s55
      %p618 = scmp.eq.s32.totalorder %s617, 0
      %s620 = sadd.s32 %s619, 1
      %s621 = scalar_select %p618, %s619, %s620
      %p624 = pneg %p618
      %p625 = scmp.eq.s32.totalorder %s48, 1
      %p626 = por %p624, %p625
      %p627 = scmp.ne.s32.totalorder %s619, %s622
      %p628 = scmp.eq.s32.totalorder %s48, 0
      %p629 = por %p627, %p628
      %p630 = scmp.ne.s32.totalorder %s619, %s622
      %p631 = scmp.eq.s32.totalorder %s53, 1
      %p632 = por %p630, %p631
      %p633 = scmp.ne.s32.totalorder %s622, %s623
      %p634 = scmp.eq.s32.totalorder %s53, 0
      %p635 = por %p633, %p634
      %p636 = scmp.ne.s32.totalorder %s622, %s623
      %p637 = scmp.eq.s32.totalorder %s54, 1
      %p638 = por %p636, %p637
      %p640 = scmp.ne.s32.totalorder %s623, %s639
      %p641 = scmp.eq.s32.totalorder %s54, 0
      %p642 = por %p640, %p641
      %p643 = scmp.le.s32.totalorder 1, %s48
      %p644 = scmp.lt.s32.totalorder %s48, 3
      %p645 = pnand %p643, %p644
      %p646 = pneg %p645
      // Predicated region
      $region9: #{tpu_custom_call.1} parent=5 // pred_check
        _
      $region10: #{tpu_custom_call.1} parent=5 // pred_check_branch
        %648 = sbr.rel (%p645) target = $region12
      $region11: #{tpu_custom_call.1} parent=5 // pred_region
        %s649 = ssub.s32 %s48, 1
        // Predicated region
        $region13: #{tpu_custom_call.1} parent=11 // pred_check
          %p650 = pneg %p147
        $region14: #{tpu_custom_call.1} parent=11 // pred_check_branch
          %652 = sbr.rel (%p650) target = $region16
        $region15: #{tpu_custom_call.1} parent=11 // pred_region
          %s654 = ssub.s32 64, 64
          %655 = vsyncadd [#allocation9], %s654
          %s657 = sshll.u32 [#allocation8], 4
          %s658 = int_to_ptr.vmem [resolvable:$true] %s657
          %660 = dma.hbm_to_vmem [thread:$0]  %s3, 64, %s658, [#allocation9]
        $region16: #{tpu_custom_call.1} parent=11 // pred_fallthru
          _
        // Predicated region
        $region17: #{tpu_custom_call.1} parent=11 // pred_check
          %p661 = pneg %p168
        $region18: #{tpu_custom_call.1} parent=11 // pred_check_branch
          %663 = sbr.rel (%p661) target = $region20
        $region19: #{tpu_custom_call.1} parent=11 // pred_region
          %s665 = ssub.s32 16, 16
          %666 = vsyncadd [#allocation9], %s665
          %s668 = sshll.u32 [#allocation10], 4
          %s669 = int_to_ptr.vmem [resolvable:$true] %s668
          %671 = dma.hbm_to_vmem [thread:$0]  %s4, 16, %s669, [#allocation9]
        $region20: #{tpu_custom_call.1} parent=11 // pred_fallthru
          _
        // Predicated region
        $region21: #{tpu_custom_call.1} parent=11 // pred_check
          %p672 = pneg %p189
        $region22: #{tpu_custom_call.1} parent=11 // pred_check_branch
          %674 = sbr.rel (%p672) target = $region24
        $region23: #{tpu_custom_call.1} parent=11 // pred_region
          _
        $region24: #{tpu_custom_call.1} parent=11 // pred_fallthru
          _
        // Predicated region
        $region25: #{tpu_custom_call.1} parent=11 // pred_check
          %p675 = pneg %p210
        $region26: #{tpu_custom_call.1} parent=11 // pred_check_branch
          %677 = sbr.rel (%p675) target = $region28
        $region27: #{tpu_custom_call.1} parent=11 // pred_region
          %s679 = ssub.s32 32, 32
          %680 = vsyncadd [#allocation12], %s679
          %s681 = sshll.u32 [#allocation11], 4
          %s682 = int_to_ptr.vmem [resolvable:$true] %s681
          %687 = dma.hbm_to_vmem [thread:$0]  %s6, 32, %s682, [#allocation12], 16, 16, 1
        $region28: #{tpu_custom_call.1} parent=11 // pred_fallthru
          _
        // Predicated region
        $region29: #{tpu_custom_call.1} parent=11 // pred_check
          %p688 = pneg %p231
        $region30: #{tpu_custom_call.1} parent=11 // pred_check_branch
          %690 = sbr.rel (%p688) target = $region32
        $region31: #{tpu_custom_call.1} parent=11 // pred_region
          _
        $region32: #{tpu_custom_call.1} parent=11 // pred_fallthru
          _
        // Predicated region
        $region33: #{tpu_custom_call.1} parent=11 // pred_check
          %p691 = pneg %p252
        $region34: #{tpu_custom_call.1} parent=11 // pred_check_branch
          %693 = sbr.rel (%p691) target = $region36
        $region35: #{tpu_custom_call.1} parent=11 // pred_region
          %s695 = ssub.s32 32, 32
          %696 = vsyncadd [#allocation12], %s695
          %s697 = sshll.u32 [#allocation13], 4
          %s698 = int_to_ptr.vmem [resolvable:$true] %s697
          %703 = dma.hbm_to_vmem [thread:$0]  %s8, 32, %s698, [#allocation12], 16, 16, 1
        $region36: #{tpu_custom_call.1} parent=11 // pred_fallthru
          _
        // Predicated region
        $region37: #{tpu_custom_call.1} parent=11 // pred_check
          %p704 = pneg %p273
        $region38: #{tpu_custom_call.1} parent=11 // pred_check_branch
          %706 = sbr.rel (%p704) target = $region40
        $region39: #{tpu_custom_call.1} parent=11 // pred_region
          %s708 = ssub.s32 32, 32
          %709 = vsyncadd [#allocation15], %s708
          %s710 = sshll.u32 [#allocation14], 4
          %s711 = int_to_ptr.vmem [resolvable:$true] %s710
          %716 = dma.hbm_to_vmem [thread:$0]  %s9, 32, %s711, [#allocation15], 16, 16, 1
        $region40: #{tpu_custom_call.1} parent=11 // pred_fallthru
          _
        // Predicated region
        $region41: #{tpu_custom_call.1} parent=11 // pred_check
          %p717 = pneg %p294
        $region42: #{tpu_custom_call.1} parent=11 // pred_check_branch
          %719 = sbr.rel (%p717) target = $region44
        $region43: #{tpu_custom_call.1} parent=11 // pred_region
          %s721 = ssub.s32 32, 32
          %722 = vsyncadd [#allocation15], %s721
          %s723 = sshll.u32 [#allocation16], 4
          %s724 = int_to_ptr.vmem [resolvable:$true] %s723
          %729 = dma.hbm_to_vmem [thread:$0]  %s10, 32, %s724, [#allocation15], 16, 16, 1
        $region44: #{tpu_custom_call.1} parent=11 // pred_fallthru
          _
        // Predicated region
        $region45: #{tpu_custom_call.1} parent=11 // pred_check
          %p730 = pneg %p315
        $region46: #{tpu_custom_call.1} parent=11 // pred_check_branch
          %732 = sbr.rel (%p730) target = $region48
        $region47: #{tpu_custom_call.1} parent=11 // pred_region
          _
        $region48: #{tpu_custom_call.1} parent=11 // pred_fallthru
          _
        // Predicated region
        $region49: #{tpu_custom_call.1} parent=11 // pred_check
          %p733 = pneg %p336
        $region50: #{tpu_custom_call.1} parent=11 // pred_check_branch
          %735 = sbr.rel (%p733) target = $region52
        $region51: #{tpu_custom_call.1} parent=11 // pred_region
          %s737 = ssub.s32 32, 32
          %738 = vsyncadd [#allocation18], %s737
          %s739 = sshll.u32 [#allocation17], 4
          %s740 = int_to_ptr.vmem [resolvable:$true] %s739
          %745 = dma.hbm_to_vmem [thread:$0]  %s12, 32, %s740, [#allocation18], 16, 16, 1
        $region52: #{tpu_custom_call.1} parent=11 // pred_fallthru
          _
        // Predicated region
        $region53: #{tpu_custom_call.1} parent=11 // pred_check
          %p746 = pneg %p357
        $region54: #{tpu_custom_call.1} parent=11 // pred_check_branch
          %748 = sbr.rel (%p746) target = $region56
        $region55: #{tpu_custom_call.1} parent=11 // pred_region
          _
        $region56: #{tpu_custom_call.1} parent=11 // pred_fallthru
          _
        // Predicated region
        $region57: #{tpu_custom_call.1} parent=11 // pred_check
          %p749 = pneg %p378
        $region58: #{tpu_custom_call.1} parent=11 // pred_check_branch
          %751 = sbr.rel (%p749) target = $region60
        $region59: #{tpu_custom_call.1} parent=11 // pred_region
          %s753 = ssub.s32 32, 32
          %754 = vsyncadd [#allocation18], %s753
          %s755 = sshll.u32 [#allocation19], 4
          %s756 = int_to_ptr.vmem [resolvable:$true] %s755
          %761 = dma.hbm_to_vmem [thread:$0]  %s14, 32, %s756, [#allocation18], 16, 16, 1
        $region60: #{tpu_custom_call.1} parent=11 // pred_fallthru
          _
        // Predicated region
        $region61: #{tpu_custom_call.1} parent=11 // pred_check
          %p762 = pneg %p399
        $region62: #{tpu_custom_call.1} parent=11 // pred_check_branch
          %764 = sbr.rel (%p762) target = $region64
        $region63: #{tpu_custom_call.1} parent=11 // pred_region
          %s766 = ssub.s32 512, 512
          %767 = vsyncadd [#allocation21], %s766
          %s768 = sshll.u32 [#allocation20], 4
          %s769 = int_to_ptr.vmem [resolvable:$true] %s768
          %774 = dma.hbm_to_vmem [thread:$0]  %s15, 512, %s769, [#allocation21], 64, 64, 4
        $region64: #{tpu_custom_call.1} parent=11 // pred_fallthru
          _
        // Predicated region
        $region65: #{tpu_custom_call.1} parent=11 // pred_check
          %p775 = pneg %p420
        $region66: #{tpu_custom_call.1} parent=11 // pred_check_branch
          %777 = sbr.rel (%p775) target = $region68
        $region67: #{tpu_custom_call.1} parent=11 // pred_region
          %s779 = ssub.s32 32, 32
          %780 = vsyncadd [#allocation21], %s779
          %s781 = sshll.u32 [#allocation22], 4
          %s782 = int_to_ptr.vmem [resolvable:$true] %s781
          %787 = dma.hbm_to_vmem [thread:$0]  %s16, 32, %s782, [#allocation21], 16, 16, 1
        $region68: #{tpu_custom_call.1} parent=11 // pred_fallthru
          _
        // Predicated region
        $region69: #{tpu_custom_call.1} parent=11 // pred_check
          %p788 = pneg %p441
        $region70: #{tpu_custom_call.1} parent=11 // pred_check_branch
          %790 = sbr.rel (%p788) target = $region72
        $region71: #{tpu_custom_call.1} parent=11 // pred_region
          %s792 = ssub.s32 32, 32
          %793 = vsyncadd [#allocation24], %s792
          %s794 = sshll.u32 [#allocation23], 4
          %s795 = int_to_ptr.vmem [resolvable:$true] %s794
          %800 = dma.hbm_to_vmem [thread:$0]  %s17, 32, %s795, [#allocation24], 16, 16, 1
        $region72: #{tpu_custom_call.1} parent=11 // pred_fallthru
          _
        // Predicated region
        $region73: #{tpu_custom_call.1} parent=11 // pred_check
          %p801 = pneg %p462
        $region74: #{tpu_custom_call.1} parent=11 // pred_check_branch
          %803 = sbr.rel (%p801) target = $region76
        $region75: #{tpu_custom_call.1} parent=11 // pred_region
          _
        $region76: #{tpu_custom_call.1} parent=11 // pred_fallthru
          _
        // Predicated region
        $region77: #{tpu_custom_call.1} parent=11 // pred_check
          %p804 = pneg %p483
        $region78: #{tpu_custom_call.1} parent=11 // pred_check_branch
          %806 = sbr.rel (%p804) target = $region80
        $region79: #{tpu_custom_call.1} parent=11 // pred_region
          %s808 = ssub.s32 512, 512
          %809 = vsyncadd [#allocation24], %s808
          %s810 = sshll.u32 [#allocation25], 4
          %s811 = int_to_ptr.vmem [resolvable:$true] %s810
          %816 = dma.hbm_to_vmem [thread:$0]  %s19, 512, %s811, [#allocation24], 64, 64, 4
        $region80: #{tpu_custom_call.1} parent=11 // pred_fallthru
          _
        // Predicated region
        $region81: #{tpu_custom_call.1} parent=11 // pred_check
          %p817 = pneg %p504
        $region82: #{tpu_custom_call.1} parent=11 // pred_check_branch
          %819 = sbr.rel (%p817) target = $region84
        $region83: #{tpu_custom_call.1} parent=11 // pred_region
          %s821 = ssub.s32 32, 32
          %822 = vsyncadd [#allocation27], %s821
          %s823 = sshll.u32 [#allocation26], 4
          %s824 = int_to_ptr.vmem [resolvable:$true] %s823
          %829 = dma.hbm_to_vmem [thread:$0]  %s20, 32, %s824, [#allocation27], 16, 16, 1
        $region84: #{tpu_custom_call.1} parent=11 // pred_fallthru
          _
        // Predicated region
        $region85: #{tpu_custom_call.1} parent=11 // pred_check
          %p830 = pneg %p525
        $region86: #{tpu_custom_call.1} parent=11 // pred_check_branch
          %832 = sbr.rel (%p830) target = $region88
        $region87: #{tpu_custom_call.1} parent=11 // pred_region
          _
        $region88: #{tpu_custom_call.1} parent=11 // pred_fallthru
          _
        // Predicated region
        $region89: #{tpu_custom_call.1} parent=11 // pred_check
          %p833 = pneg %p546
        $region90: #{tpu_custom_call.1} parent=11 // pred_check_branch
          %835 = sbr.rel (%p833) target = $region92
        $region91: #{tpu_custom_call.1} parent=11 // pred_region
          %s837 = ssub.s32 32, 32
          %838 = vsyncadd [#allocation27], %s837
          %s839 = sshll.u32 [#allocation28], 4
          %s840 = int_to_ptr.vmem [resolvable:$true] %s839
          %845 = dma.hbm_to_vmem [thread:$0]  %s22, 32, %s840, [#allocation27], 16, 16, 1
        $region92: #{tpu_custom_call.1} parent=11 // pred_fallthru
          _
        // Predicated region
        $region93: #{tpu_custom_call.1} parent=11 // pred_check
          %p846 = pneg %p567
        $region94: #{tpu_custom_call.1} parent=11 // pred_check_branch
          %848 = sbr.rel (%p846) target = $region96
        $region95: #{tpu_custom_call.1} parent=11 // pred_region
          _
        $region96: #{tpu_custom_call.1} parent=11 // pred_fallthru
          _
        // Predicated region
        $region97: #{tpu_custom_call.1} parent=11 // pred_check
          %p849 = pneg %p588
        $region98: #{tpu_custom_call.1} parent=11 // pred_check_branch
          %851 = sbr.rel (%p849) target = $region100
        $region99: #{tpu_custom_call.1} parent=11 // pred_region
          _
        $region100: #{tpu_custom_call.1} parent=11 // pred_fallthru
          _
        // Predicated region
        $region101: #{tpu_custom_call.1} parent=11 // pred_check
          %p852 = pneg %p609
        $region102: #{tpu_custom_call.1} parent=11 // pred_check_branch
          %854 = sbr.rel (%p852) target = $region104
        $region103: #{tpu_custom_call.1} parent=11 // pred_region
          _
        $region104: #{tpu_custom_call.1} parent=11 // pred_fallthru
          _
      $region12: #{tpu_custom_call.1} parent=5 // pred_fallthru
        _
      %p855 = scmp.lt.s32.totalorder %s48, 2
      // Predicated region
      $region105: #{tpu_custom_call.1} parent=5 // pred_check
        %p856 = pneg %p855
      $region106: #{tpu_custom_call.1} parent=5 // pred_check_branch
        %858 = sbr.rel (%p856) target = $region108
      $region107: #{tpu_custom_call.1} parent=5 // pred_region
        // Predicated region
        $region109: #{tpu_custom_call.1} parent=107 // pred_check
          %p859 = pneg %p68
        $region110: #{tpu_custom_call.1} parent=107 // pred_check_branch
          %861 = sbr.rel (%p859) target = $region112
        $region111: #{tpu_custom_call.1} parent=107 // pred_region
          %s862 = sand.u32 %s58, 1
          %s863 = scalar_lea.sflag [#allocation3], %s862
          %s864 = sand.u32 %s58, 1
          %s865 = smul.addr %s864, 8
          %s866 = scalar_lea.vmem [#allocation2], %s865
          %s868 = ssub.s32 128, 128
          %869 = vsyncadd %s863, %s868
          %s870 = smul.addr %s48, 128
          %s871 = scalar_lea.hbm %s0, %s870
          %s873 = sshll.u32 %s866, 4
          %s874 = int_to_ptr.vmem [resolvable:$true] %s873
          %876 = dma.hbm_to_vmem [thread:$0]  %s871, 128, %s874, %s863
        $region112: #{tpu_custom_call.1} parent=107 // pred_fallthru
          _
        // Predicated region
        $region113: #{tpu_custom_call.1} parent=107 // pred_check
          %p877 = pneg %p94
        $region114: #{tpu_custom_call.1} parent=107 // pred_check_branch
          %879 = sbr.rel (%p877) target = $region116
        $region115: #{tpu_custom_call.1} parent=107 // pred_region
          %s880 = sand.u32 %s48, 1
          %s881 = scalar_lea.sflag [#allocation6], %s880
          %s882 = sand.u32 %s84, 1
          %s883 = smul.addr %s882, 8
          %s884 = scalar_lea.vmem [#allocation5], %s883
          %s886 = ssub.s32 128, 128
          %887 = vsyncadd %s881, %s886
          %s888 = smul.addr %s48, 128
          %s889 = scalar_lea.hbm %s1, %s888
          %s891 = sshll.u32 %s884, 4
          %s892 = int_to_ptr.vmem [resolvable:$true] %s891
          %894 = dma.hbm_to_vmem [thread:$0]  %s889, 128, %s892, %s881
        $region116: #{tpu_custom_call.1} parent=107 // pred_fallthru
          _
        // Predicated region
        $region117: #{tpu_custom_call.1} parent=107 // pred_check
          %p895 = pneg %p120
        $region118: #{tpu_custom_call.1} parent=107 // pred_check_branch
          %897 = sbr.rel (%p895) target = $region120
        $region119: #{tpu_custom_call.1} parent=107 // pred_region
          %s898 = sand.u32 %s48, 1
          %s899 = scalar_lea.sflag [#allocation6], %s898
          %s900 = sand.u32 %s110, 1
          %s901 = scalar_lea.vmem [#allocation7], %s900
          %s903 = ssub.s32 16, 16
          %904 = vsyncadd %s899, %s903
          %s905 = smul.addr %s48, 16
          %s906 = scalar_lea.hbm %s2, %s905
          %s908 = sshll.u32 %s901, 4
          %s909 = int_to_ptr.vmem [resolvable:$true] %s908
          %911 = dma.hbm_to_vmem [thread:$0]  %s906, 16, %s909, %s899
        $region120: #{tpu_custom_call.1} parent=107 // pred_fallthru
          _
      $region108: #{tpu_custom_call.1} parent=5 // pred_fallthru
        _
      %p912 = scmp.le.s32.totalorder 1, %s48
      %p913 = scmp.lt.s32.totalorder %s48, 3
      %p914 = pnand %p912, %p913
      %p915 = pneg %p914
      // Predicated region
      $region121: #{tpu_custom_call.1} parent=5 // pred_check
        _
      $region122: #{tpu_custom_call.1} parent=5 // pred_check_branch
        %917 = sbr.rel (%p914) target = $region124
      $region123: #{tpu_custom_call.1} parent=5 // pred_region
        %s918 = ssub.s32 %s48, 1
        %s919 = sand.u32 %s61, 1
        %s920 = scalar_lea.sflag [#allocation3], %s919
        %s921 = sand.u32 %s61, 1
        %s922 = smul.addr %s921, 8
        %s923 = scalar_lea.vmem [#allocation2], %s922
        // Predicated region
        $region125: #{tpu_custom_call.1} parent=123 // pred_check
          %p924 = pneg %p74
        $region126: #{tpu_custom_call.1} parent=123 // pred_check_branch
          %926 = sbr.rel (%p924) target = $region128
        $region127: #{tpu_custom_call.1} parent=123 // pred_region
          %927 = dma.done %s920, 128
        $region128: #{tpu_custom_call.1} parent=123 // pred_fallthru
          _
        %s928 = sand.u32 %s53, 1
        %s929 = scalar_lea.sflag [#allocation6], %s928
        %s930 = sand.u32 %s87, 1
        %s931 = smul.addr %s930, 8
        %s932 = scalar_lea.vmem [#allocation5], %s931
        // Predicated region
        $region129: #{tpu_custom_call.1} parent=123 // pred_check
          %p933 = pneg %p100
        $region130: #{tpu_custom_call.1} parent=123 // pred_check_branch
          %935 = sbr.rel (%p933) target = $region132
        $region131: #{tpu_custom_call.1} parent=123 // pred_region
          %936 = dma.done %s929, 128
        $region132: #{tpu_custom_call.1} parent=123 // pred_fallthru
          _
        %s937 = sand.u32 %s53, 1
        %s938 = scalar_lea.sflag [#allocation6], %s937
        %s939 = sand.u32 %s113, 1
        %s940 = scalar_lea.vmem [#allocation7], %s939
        // Predicated region
        $region133: #{tpu_custom_call.1} parent=123 // pred_check
          %p941 = pneg %p126
        $region134: #{tpu_custom_call.1} parent=123 // pred_check_branch
          %943 = sbr.rel (%p941) target = $region136
        $region135: #{tpu_custom_call.1} parent=123 // pred_region
          %944 = dma.done %s938, 16
        $region136: #{tpu_custom_call.1} parent=123 // pred_fallthru
          _
        // Predicated region
        $region137: #{tpu_custom_call.1} parent=123 // pred_check
          %p945 = pneg %p147
        $region138: #{tpu_custom_call.1} parent=123 // pred_check_branch
          %947 = sbr.rel (%p945) target = $region140
        $region139: #{tpu_custom_call.1} parent=123 // pred_region
          %948 = dma.done [#allocation9], 64
        $region140: #{tpu_custom_call.1} parent=123 // pred_fallthru
          _
        // Predicated region
        $region141: #{tpu_custom_call.1} parent=123 // pred_check
          %p949 = pneg %p168
        $region142: #{tpu_custom_call.1} parent=123 // pred_check_branch
          %951 = sbr.rel (%p949) target = $region144
        $region143: #{tpu_custom_call.1} parent=123 // pred_region
          %952 = dma.done [#allocation9], 16
        $region144: #{tpu_custom_call.1} parent=123 // pred_fallthru
          _
        // Predicated region
        $region145: #{tpu_custom_call.1} parent=123 // pred_check
          %p953 = pneg %p210
        $region146: #{tpu_custom_call.1} parent=123 // pred_check_branch
          %955 = sbr.rel (%p953) target = $region148
        $region147: #{tpu_custom_call.1} parent=123 // pred_region
          %956 = dma.done [#allocation12], 32
        $region148: #{tpu_custom_call.1} parent=123 // pred_fallthru
          _
        // Predicated region
        $region149: #{tpu_custom_call.1} parent=123 // pred_check
          %p957 = pneg %p252
        $region150: #{tpu_custom_call.1} parent=123 // pred_check_branch
          %959 = sbr.rel (%p957) target = $region152
        $region151: #{tpu_custom_call.1} parent=123 // pred_region
          %960 = dma.done [#allocation12], 32
        $region152: #{tpu_custom_call.1} parent=123 // pred_fallthru
          _
        // Predicated region
        $region153: #{tpu_custom_call.1} parent=123 // pred_check
          %p961 = pneg %p273
        $region154: #{tpu_custom_call.1} parent=123 // pred_check_branch
          %963 = sbr.rel (%p961) target = $region156
        $region155: #{tpu_custom_call.1} parent=123 // pred_region
          %964 = dma.done [#allocation15], 32
        $region156: #{tpu_custom_call.1} parent=123 // pred_fallthru
          _
        // Predicated region
        $region157: #{tpu_custom_call.1} parent=123 // pred_check
          %p965 = pneg %p294
        $region158: #{tpu_custom_call.1} parent=123 // pred_check_branch
          %967 = sbr.rel (%p965) target = $region160
        $region159: #{tpu_custom_call.1} parent=123 // pred_region
          %968 = dma.done [#allocation15], 32
        $region160: #{tpu_custom_call.1} parent=123 // pred_fallthru
          _
        // Predicated region
        $region161: #{tpu_custom_call.1} parent=123 // pred_check
          %p969 = pneg %p336
        $region162: #{tpu_custom_call.1} parent=123 // pred_check_branch
          %971 = sbr.rel (%p969) target = $region164
        $region163: #{tpu_custom_call.1} parent=123 // pred_region
          %972 = dma.done [#allocation18], 32
        $region164: #{tpu_custom_call.1} parent=123 // pred_fallthru
          _
        // Predicated region
        $region165: #{tpu_custom_call.1} parent=123 // pred_check
          %p973 = pneg %p378
        $region166: #{tpu_custom_call.1} parent=123 // pred_check_branch
          %975 = sbr.rel (%p973) target = $region168
        $region167: #{tpu_custom_call.1} parent=123 // pred_region
          %976 = dma.done [#allocation18], 32
        $region168: #{tpu_custom_call.1} parent=123 // pred_fallthru
          _
        // Predicated region
        $region169: #{tpu_custom_call.1} parent=123 // pred_check
          %p977 = pneg %p399
        $region170: #{tpu_custom_call.1} parent=123 // pred_check_branch
          %979 = sbr.rel (%p977) target = $region172
        $region171: #{tpu_custom_call.1} parent=123 // pred_region
          %980 = dma.done [#allocation21], 512
        $region172: #{tpu_custom_call.1} parent=123 // pred_fallthru
          _
        // Predicated region
        $region173: #{tpu_custom_call.1} parent=123 // pred_check
          %p981 = pneg %p420
        $region174: #{tpu_custom_call.1} parent=123 // pred_check_branch
          %983 = sbr.rel (%p981) target = $region176
        $region175: #{tpu_custom_call.1} parent=123 // pred_region
          %984 = dma.done [#allocation21], 32
        $region176: #{tpu_custom_call.1} parent=123 // pred_fallthru
          _
        // Predicated region
        $region177: #{tpu_custom_call.1} parent=123 // pred_check
          %p985 = pneg %p441
        $region178: #{tpu_custom_call.1} parent=123 // pred_check_branch
          %987 = sbr.rel (%p985) target = $region180
        $region179: #{tpu_custom_call.1} parent=123 // pred_region
          %988 = dma.done [#allocation24], 32
        $region180: #{tpu_custom_call.1} parent=123 // pred_fallthru
          _
        // Predicated region
        $region181: #{tpu_custom_call.1} parent=123 // pred_check
          %p989 = pneg %p483
        $region182: #{tpu_custom_call.1} parent=123 // pred_check_branch
          %991 = sbr.rel (%p989) target = $region184
        $region183: #{tpu_custom_call.1} parent=123 // pred_region
          %992 = dma.done [#allocation24], 512
        $region184: #{tpu_custom_call.1} parent=123 // pred_fallthru
          _
        // Predicated region
        $region185: #{tpu_custom_call.1} parent=123 // pred_check
          %p993 = pneg %p504
        $region186: #{tpu_custom_call.1} parent=123 // pred_check_branch
          %995 = sbr.rel (%p993) target = $region188
        $region187: #{tpu_custom_call.1} parent=123 // pred_region
          %996 = dma.done [#allocation27], 32
        $region188: #{tpu_custom_call.1} parent=123 // pred_fallthru
          _
        // Predicated region
        $region189: #{tpu_custom_call.1} parent=123 // pred_check
          %p997 = pneg %p546
        $region190: #{tpu_custom_call.1} parent=123 // pred_check_branch
          %999 = sbr.rel (%p997) target = $region192
        $region191: #{tpu_custom_call.1} parent=123 // pred_region
          %1000 = dma.done [#allocation27], 32
        $region192: #{tpu_custom_call.1} parent=123 // pred_fallthru
          _
        %s1001 = sand.u32 %s61, 1
        %s1002 = scalar_lea.sflag [#allocation3], %s1001
        %s1003 = sand.u32 %s61, 1
        %s1004 = smul.addr %s1003, 8
        %s1005 = scalar_lea.vmem [#allocation2], %s1004
        %p1006 = pneg %p74
        %p1007 = pneg %p71
        %s1008 = sand.u32 %s53, 1
        %s1009 = scalar_lea.sflag [#allocation6], %s1008
        %s1010 = sand.u32 %s87, 1
        %s1011 = smul.addr %s1010, 8
        %s1012 = scalar_lea.vmem [#allocation5], %s1011
        %p1013 = pneg %p100
        %p1014 = pneg %p97
        %s1015 = sand.u32 %s53, 1
        %s1016 = scalar_lea.sflag [#allocation6], %s1015
        %s1017 = sand.u32 %s113, 1
        %s1018 = scalar_lea.vmem [#allocation7], %s1017
        %p1019 = pneg %p126
        %p1020 = pneg %p123
        %p1021 = pneg %p147
        %p1022 = pneg %p144
        %p1023 = pneg %p168
        %p1024 = pneg %p165
        %p1025 = pneg %p189
        %p1026 = pneg %p186
        %p1027 = pneg %p210
        %p1028 = pneg %p207
        %p1029 = pneg %p231
        %p1030 = pneg %p228
        %p1031 = pneg %p252
        %p1032 = pneg %p249
        %p1033 = pneg %p273
        %p1034 = pneg %p270
        %p1035 = pneg %p294
        %p1036 = pneg %p291
        %p1037 = pneg %p315
        %p1038 = pneg %p312
        %p1039 = pneg %p336
        %p1040 = pneg %p333
        %p1041 = pneg %p357
        %p1042 = pneg %p354
        %p1043 = pneg %p378
        %p1044 = pneg %p375
        %p1045 = pneg %p399
        %p1046 = pneg %p396
        %p1047 = pneg %p420
        %p1048 = pneg %p417
        %p1049 = pneg %p441
        %p1050 = pneg %p438
        %p1051 = pneg %p462
        %p1052 = pneg %p459
        %p1053 = pneg %p483
        %p1054 = pneg %p480
        %p1055 = pneg %p504
        %p1056 = pneg %p501
        %p1057 = pneg %p525
        %p1058 = pneg %p522
        %p1059 = pneg %p546
        %p1060 = pneg %p543
        %p1061 = pneg %p567
        %p1062 = pneg %p564
        %p1063 = pneg %p588
        %p1064 = pneg %p585
        %p1065 = pneg %p609
        %p1066 = pneg %p606
        %p1067 = pneg %p635
        %p1068 = pneg %p632
        %s1069 = sand.u32 %s622, 1
        %s1070 = scalar_lea.sflag [#allocation4], %s1069
        %s1071 = sand.u32 %s622, 1
        %s1072 = smul.addr %s1071, 8
        %s1073 = scalar_lea.vmem [#allocation29], %s1072
        %v1075 = vld [vmem:[%s923] sm:$0xff]
        %v1076 = vpack.c.bf16 %v1075, %v1075
        %v1077 = vld [vmem:[#allocation8] sm:$0xf]
        %v1078 = vld [vmem:[#allocation10] sm:$0x1]
        %v1080 = vlaneseq
        %v1081 = vshrl.u32 %v1080, 7
        %v1082 = vsub.s32 0, %v1081
        %v1083 = vrot.slane %v1078, %v1082
        %vm1085 = vcmask 64512
        %v1087 = vsel %vm1085, %v1076, 0
        %vm1089 = vcmask 1043456
        %v1091 = vsel %vm1089, %v1077, 0
        %1093 = vmatprep.subr.bf16.mxu0 0
        %1094 = vmatpush1.bf16.msra.mxu0 %v1091
        %1095 = vmatprep.subr.bf16.mxu0 0
        %1096 = vmatpush1.bf16.msra.mxu0 0
        %1097 = vmatprep.subr.bf16.mxu0 0
        %1098 = vmatpush1.bf16.msra.mxu0 0
        %1099 = vmatprep.subr.bf16.mxu0 0
        %1100 = vmatpush1.bf16.msra.mxu0 0
        %1101 = vmatprep.subr.bf16.mxu0 0
        %1102 = vmatpush1.bf16.msra.mxu0 0
        %1103 = vmatprep.subr.bf16.mxu0 0
        %1104 = vmatpush1.bf16.msra.mxu0 0
        %1105 = vmatprep.subr.bf16.mxu0 0
        %1106 = vmatpush1.bf16.msra.mxu0 0
        %1107 = vmatprep.subr.bf16.mxu0 0
        %1108 = vmatpush1.bf16.msra.mxu0 0
        %1109 = vmatprep.subr.bf16.mxu0 0
        %1110 = vmatpush1.bf16.msra.mxu0 0
        %1111 = vmatprep.subr.bf16.mxu0 0
        %1112 = vmatpush1.bf16.msra.mxu0 0
        %1113 = vmatprep.subr.bf16.mxu0 0
        %1114 = vmatpush1.bf16.msra.mxu0 0
        %1115 = vmatprep.subr.bf16.mxu0 0
        %1116 = vmatpush1.bf16.msra.mxu0 0
        %1117 = vmatprep.subr.bf16.mxu0 0
        %1118 = vmatpush1.bf16.msra.mxu0 0
        %1119 = vmatprep.subr.bf16.mxu0 0
        %1120 = vmatpush1.bf16.msra.mxu0 0
        %1121 = vmatprep.subr.bf16.mxu0 0
        %1122 = vmatpush1.bf16.msra.mxu0 0
        %1123 = vmatprep.subr.bf16.mxu0 0
        %1124 = vmatpush1.bf16.msra.mxu0 0
        %1125 = vmatprep.mubr.bf16.mxu0 0
        %1126 = vmatmul.mubr.bf16.gmra.mrb[0].mxu0 %v1087
        %v1127 = vpop.f32.mrb[0].mxu0
        %v1128 = vadd.f32 %v1083, %v1127
        %v1129 = vpop.f32.mrb[0].mxu0
        %v1130 = vpop.f32.mrb[0].mxu0
        %v1131 = vpop.f32.mrb[0].mxu0
        %1132 = vdwg.mxu0
        %v1133 = vpack.c.bf16 %v1128, %v1128
        %v1134 = vld [vmem:[%s932] sm:$0xff]
        %v1135 = vlaneseq
        %v1136 = vshrl.u32 %v1135, 7
        %v1137 = vlaneseq
        %v1138 = vand.u32 %v1137, 127
        %vm1139 = vcmp.gt.s32.totalorder %v1138, %v1136
        %v1140 = vsel %vm1139, -1e+09, 0.0
        %v1141 = vld [vmem:[%s940] sm:$0x1]
        %v1143 = vlaneseq
        %v1144 = vshrl.u32 %v1143, 7
        %v1145 = vsub.s32 0, %v1144
        %v1146 = vrot.slane %v1141, %v1145
        %v1148 = vadd.f32 %v1140, %v1146
        %v1149 = vpack.c.bf16 %v1134, %v1134
        %v1150 = vld [vmem:[%s5] sm:$0xf]
        %v1151 = vld [vmem:[%s5 + $0x4] sm:$0xf]
        %v1152 = vld [vmem:[%s5 + $0x8] sm:$0xf]
        %v1153 = vld [vmem:[%s5 + $0xc] sm:$0xf]
        %v1154 = vld [vmem:[#allocation11] sm:$0x1]
        %v1156 = vlaneseq
        %v1157 = vshrl.u32 %v1156, 7
        %v1158 = vsub.s32 0, %v1157
        %v1159 = vrot.slane %v1154, %v1158
        %v1165 = vunpack.c.l.b16 %v1150
        %v1166 = vunpack.c.l.b16 %v1151
        %v1167 = vunpack.c.l.b16 %v1152
        %v1168 = vunpack.c.l.b16 %v1153
        %v1169 = vpack.c.b16 %v1166, %v1165
        %v1170 = vpack.c.b16 %v1168, %v1167
        %vm1173 = vcmask 261120
        %v1175 = vsel %vm1173, %v1149, 0
        %1177 = vmatprep.subr.bf16.mxu0 0
        %1178 = vmatpush1.bf16.msra.mxu0 %v1169
        %1179 = vmatprep.subr.bf16.mxu0 0
        %1180 = vmatpush1.bf16.msra.mxu0 %v1170
        %1181 = vmatprep.subr.bf16.mxu0 0
        %1182 = vmatpush1.bf16.msra.mxu0 0
        %1183 = vmatprep.subr.bf16.mxu0 0
        %1184 = vmatpush1.bf16.msra.mxu0 0
        %1185 = vmatprep.subr.bf16.mxu0 0
        %1186 = vmatpush1.bf16.msra.mxu0 0
        %1187 = vmatprep.subr.bf16.mxu0 0
        %1188 = vmatpush1.bf16.msra.mxu0 0
        %1189 = vmatprep.subr.bf16.mxu0 0
        %1190 = vmatpush1.bf16.msra.mxu0 0
        %1191 = vmatprep.subr.bf16.mxu0 0
        %1192 = vmatpush1.bf16.msra.mxu0 0
        %1193 = vmatprep.subr.bf16.mxu0 0
        %1194 = vmatpush1.bf16.msra.mxu0 0
        %1195 = vmatprep.subr.bf16.mxu0 0
        %1196 = vmatpush1.bf16.msra.mxu0 0
        %1197 = vmatprep.subr.bf16.mxu0 0
        %1198 = vmatpush1.bf16.msra.mxu0 0
        %1199 = vmatprep.subr.bf16.mxu0 0
        %1200 = vmatpush1.bf16.msra.mxu0 0
        %1201 = vmatprep.subr.bf16.mxu0 0
        %1202 = vmatpush1.bf16.msra.mxu0 0
        %1203 = vmatprep.subr.bf16.mxu0 0
        %1204 = vmatpush1.bf16.msra.mxu0 0
        %1205 = vmatprep.subr.bf16.mxu0 0
        %1206 = vmatpush1.bf16.msra.mxu0 0
        %1207 = vmatprep.subr.bf16.mxu0 0
        %1208 = vmatpush1.bf16.msra.mxu0 0
        %1209 = vmatprep.mubr.bf16.mxu0 0
        %1210 = vmatmul.mubr.bf16.gmra.mrb[0].mxu0 %v1175
        %v1211 = vpop.f32.mrb[0].mxu0
        %v1212 = vadd.f32 %v1159, %v1211
        %v1213 = vpop.f32.mrb[0].mxu0
        %v1214 = vpop.f32.mrb[0].mxu0
        %v1215 = vpop.f32.mrb[0].mxu0
        %1216 = vdwg.mxu0
        %v1217 = vpack.c.bf16 %v1212, %v1212
        %v1218 = vld [vmem:[%s7] sm:$0xf]
        %v1219 = vld [vmem:[%s7 + $0x4] sm:$0xf]
        %v1220 = vld [vmem:[%s7 + $0x8] sm:$0xf]
        %v1221 = vld [vmem:[%s7 + $0xc] sm:$0xf]
        %1223 = vrot.lane.b32.xlu0 %v1217, 96
        %v1224 = vpop.permute.xlu0 %1223
        %v1226 = vsel %vm1085, %v1217, 0
        %v1229 = vsel %vm1085, %v1224, 0
        %1231 = vmatprep.subr.bf16.mxu0 0
        %1232 = vmatpush1.bf16.xpose.msra.mxu0 %v1229
        %1233 = vmatprep.subr.bf16.mxu0 0
        %1234 = vmatpush1.bf16.xpose.msra.mxu0 0
        %1235 = vmatprep.subr.bf16.mxu0 0
        %1236 = vmatpush1.bf16.xpose.msra.mxu0 0
        %1237 = vmatprep.subr.bf16.mxu0 0
        %1238 = vmatpush1.bf16.xpose.msra.mxu0 0
        %1239 = vmatprep.subr.bf16.mxu0 0
        %1240 = vmatpush1.bf16.xpose.msra.mxu0 0
        %1241 = vmatprep.subr.bf16.mxu0 0
        %1242 = vmatpush1.bf16.xpose.msra.mxu0 0
        %1243 = vmatprep.subr.bf16.mxu0 0
        %1244 = vmatpush1.bf16.xpose.msra.mxu0 0
        %1245 = vmatprep.subr.bf16.mxu0 0
        %1246 = vmatpush1.bf16.xpose.msra.mxu0 0
        %1247 = vmatprep.subr.bf16.mxu0 0
        %1248 = vmatpush1.bf16.xpose.msra.mxu0 0
        %1249 = vmatprep.subr.bf16.mxu0 0
        %1250 = vmatpush1.bf16.xpose.msra.mxu0 0
        %1251 = vmatprep.subr.bf16.mxu0 0
        %1252 = vmatpush1.bf16.xpose.msra.mxu0 0
        %1253 = vmatprep.subr.bf16.mxu0 0
        %1254 = vmatpush1.bf16.xpose.msra.mxu0 0
        %1255 = vmatprep.subr.bf16.mxu0 0
        %1256 = vmatpush1.bf16.xpose.msra.mxu0 0
        %1257 = vmatprep.subr.bf16.mxu0 0
        %1258 = vmatpush1.bf16.xpose.msra.mxu0 0
        %1259 = vmatprep.subr.bf16.mxu0 0
        %1260 = vmatpush1.bf16.xpose.msra.mxu0 0
        %1261 = vmatprep.subr.bf16.mxu0 0
        %1262 = vmatpush1.bf16.xpose.msra.mxu0 0
        %1263 = vmatprep.mubr.bf16.mxu0 0
        %1264 = vmatmul.mubr.bf16.gmra.mrb[0].mxu0 %v1226
        %v1265 = vpop.f32.mrb[0].mxu0
        %v1266 = vadd.f32 0.0, %v1265
        %v1267 = vpop.f32.mrb[0].mxu0
        %v1268 = vpop.f32.mrb[0].mxu0
        %v1269 = vpop.f32.mrb[0].mxu0
        %1270 = vdwg.mxu0
        %v1271 = vmul.f32 %v1266, 0.35355338
        %v1272 = vadd.f32 %v1271, %v1148
        %v1273 = vsel %vm1085, %v1272, -inf
        %1274 = vmax.xlane.f32.xlu0 %v1273
        %v1275 = vpop.xlane.xlu0 %1274
        %v1276 = vsub.f32 %v1272, %v1275
        %v1277 = vmul.f32 %v1276, 1.442695
        %v1278 = vpow.pop %v1277
        %v1279 = vsel %vm1085, %v1278, 0.0
        %1280 = vadd.xlane.f32.xlu0 %v1279
        %v1281 = vpop.xlane.xlu0 %1280
        %v1282 = vrcp.pop %v1281
        %v1283 = vmul.f32 %v1278, %v1282
        %v1284 = vpack.c.bf16 %v1283, %v1283
        %1285 = vrot.lane.b32.xlu0 %v1217, 64
        %v1286 = vpop.permute.xlu0 %1285
        %v1288 = vsel %vm1085, %v1284, 0
        %v1291 = vsel %vm1089, %v1286, 0
        %1293 = vmatprep.subr.bf16.mxu0 0
        %1294 = vmatpush1.bf16.msra.mxu0 %v1291
        %1295 = vmatprep.subr.bf16.mxu0 0
        %1296 = vmatpush1.bf16.msra.mxu0 0
        %1297 = vmatprep.subr.bf16.mxu0 0
        %1298 = vmatpush1.bf16.msra.mxu0 0
        %1299 = vmatprep.subr.bf16.mxu0 0
        %1300 = vmatpush1.bf16.msra.mxu0 0
        %1301 = vmatprep.subr.bf16.mxu0 0
        %1302 = vmatpush1.bf16.msra.mxu0 0
        %1303 = vmatprep.subr.bf16.mxu0 0
        %1304 = vmatpush1.bf16.msra.mxu0 0
        %1305 = vmatprep.subr.bf16.mxu0 0
        %1306 = vmatpush1.bf16.msra.mxu0 0
        %1307 = vmatprep.subr.bf16.mxu0 0
        %1308 = vmatpush1.bf16.msra.mxu0 0
        %1309 = vmatprep.subr.bf16.mxu0 0
        %1310 = vmatpush1.bf16.msra.mxu0 0
        %1311 = vmatprep.subr.bf16.mxu0 0
        %1312 = vmatpush1.bf16.msra.mxu0 0
        %1313 = vmatprep.subr.bf16.mxu0 0
        %1314 = vmatpush1.bf16.msra.mxu0 0
        %1315 = vmatprep.subr.bf16.mxu0 0
        %1316 = vmatpush1.bf16.msra.mxu0 0
        %1317 = vmatprep.subr.bf16.mxu0 0
        %1318 = vmatpush1.bf16.msra.mxu0 0
        %1319 = vmatprep.subr.bf16.mxu0 0
        %1320 = vmatpush1.bf16.msra.mxu0 0
        %1321 = vmatprep.subr.bf16.mxu0 0
        %1322 = vmatpush1.bf16.msra.mxu0 0
        %1323 = vmatprep.subr.bf16.mxu0 0
        %1324 = vmatpush1.bf16.msra.mxu0 0
        %1325 = vmatprep.mubr.bf16.mxu0 0
        %1326 = vmatmul.mubr.bf16.gmra.mrb[0].mxu0 %v1288
        %v1327 = vpop.f32.mrb[0].mxu0
        %v1328 = vadd.f32 0.0, %v1327
        %v1329 = vpop.f32.mrb[0].mxu0
        %v1330 = vpop.f32.mrb[0].mxu0
        %v1331 = vpop.f32.mrb[0].mxu0
        %1332 = vdwg.mxu0
        %v1333 = vpack.c.bf16 %v1328, %v1328
        %1334 = vrot.lane.b32.xlu0 %v1217, 120
        %v1335 = vpop.permute.xlu0 %1334
        %1336 = vrot.lane.b32.xlu0 %v1217, 88
        %v1337 = vpop.permute.xlu0 %1336
        %v1339 = vsel %vm1085, %v1335, 0
        %v1342 = vsel %vm1085, %v1337, 0
        %1344 = vmatprep.subr.bf16.mxu0 0
        %1345 = vmatpush1.bf16.xpose.msra.mxu0 %v1342
        %1346 = vmatprep.subr.bf16.mxu0 0
        %1347 = vmatpush1.bf16.xpose.msra.mxu0 0
        %1348 = vmatprep.subr.bf16.mxu0 0
        %1349 = vmatpush1.bf16.xpose.msra.mxu0 0
        %1350 = vmatprep.subr.bf16.mxu0 0
        %1351 = vmatpush1.bf16.xpose.msra.mxu0 0
        %1352 = vmatprep.subr.bf16.mxu0 0
        %1353 = vmatpush1.bf16.xpose.msra.mxu0 0
        %1354 = vmatprep.subr.bf16.mxu0 0
        %1355 = vmatpush1.bf16.xpose.msra.mxu0 0
        %1356 = vmatprep.subr.bf16.mxu0 0
        %1357 = vmatpush1.bf16.xpose.msra.mxu0 0
        %1358 = vmatprep.subr.bf16.mxu0 0
        %1359 = vmatpush1.bf16.xpose.msra.mxu0 0
        %1360 = vmatprep.subr.bf16.mxu0 0
        %1361 = vmatpush1.bf16.xpose.msra.mxu0 0
        %1362 = vmatprep.subr.bf16.mxu0 0
        %1363 = vmatpush1.bf16.xpose.msra.mxu0 0
        %1364 = vmatprep.subr.bf16.mxu0 0
        %1365 = vmatpush1.bf16.xpose.msra.mxu0 0
        %1366 = vmatprep.subr.bf16.mxu0 0
        %1367 = vmatpush1.bf16.xpose.msra.mxu0 0
        %1368 = vmatprep.subr.bf16.mxu0 0
        %1369 = vmatpush1.bf16.xpose.msra.mxu0 0
        %1370 = vmatprep.subr.bf16.mxu0 0
        %1371 = vmatpush1.bf16.xpose.msra.mxu0 0
        %1372 = vmatprep.subr.bf16.mxu0 0
        %1373 = vmatpush1.bf16.xpose.msra.mxu0 0
        %1374 = vmatprep.subr.bf16.mxu0 0
        %1375 = vmatpush1.bf16.xpose.msra.mxu0 0
        %1376 = vmatprep.mubr.bf16.mxu0 0
        %1377 = vmatmul.mubr.bf16.gmra.mrb[0].mxu0 %v1339
        %v1378 = vpop.f32.mrb[0].mxu0
        %v1379 = vadd.f32 0.0, %v1378
        %v1380 = vpop.f32.mrb[0].mxu0
        %v1381 = vpop.f32.mrb[0].mxu0
        %v1382 = vpop.f32.mrb[0].mxu0
        %1383 = vdwg.mxu0
        %v1384 = vmul.f32 %v1379, 0.35355338
        %v1385 = vadd.f32 %v1384, %v1148
        %v1386 = vsel %vm1085, %v1385, -inf
        %1387 = vmax.xlane.f32.xlu0 %v1386
        %v1388 = vpop.xlane.xlu0 %1387
        %v1389 = vsub.f32 %v1385, %v1388
        %v1390 = vmul.f32 %v1389, 1.442695
        %v1391 = vpow.pop %v1390
        %v1392 = vsel %vm1085, %v1391, 0.0
        %1393 = vadd.xlane.f32.xlu0 %v1392
        %v1394 = vpop.xlane.xlu0 %1393
        %v1395 = vrcp.pop %v1394
        %v1396 = vmul.f32 %v1391, %v1395
        %v1397 = vpack.c.bf16 %v1396, %v1396
        %1398 = vrot.lane.b32.xlu0 %v1217, 56
        %v1399 = vpop.permute.xlu0 %1398
        %v1401 = vsel %vm1085, %v1397, 0
        %v1404 = vsel %vm1089, %v1399, 0
        %1406 = vmatprep.subr.bf16.mxu0 0
        %1407 = vmatpush1.bf16.msra.mxu0 %v1404
        %1408 = vmatprep.subr.bf16.mxu0 0
        %1409 = vmatpush1.bf16.msra.mxu0 0
        %1410 = vmatprep.subr.bf16.mxu0 0
        %1411 = vmatpush1.bf16.msra.mxu0 0
        %1412 = vmatprep.subr.bf16.mxu0 0
        %1413 = vmatpush1.bf16.msra.mxu0 0
        %1414 = vmatprep.subr.bf16.mxu0 0
        %1415 = vmatpush1.bf16.msra.mxu0 0
        %1416 = vmatprep.subr.bf16.mxu0 0
        %1417 = vmatpush1.bf16.msra.mxu0 0
        %1418 = vmatprep.subr.bf16.mxu0 0
        %1419 = vmatpush1.bf16.msra.mxu0 0
        %1420 = vmatprep.subr.bf16.mxu0 0
        %1421 = vmatpush1.bf16.msra.mxu0 0
        %1422 = vmatprep.subr.bf16.mxu0 0
        %1423 = vmatpush1.bf16.msra.mxu0 0
        %1424 = vmatprep.subr.bf16.mxu0 0
        %1425 = vmatpush1.bf16.msra.mxu0 0
        %1426 = vmatprep.subr.bf16.mxu0 0
        %1427 = vmatpush1.bf16.msra.mxu0 0
        %1428 = vmatprep.subr.bf16.mxu0 0
        %1429 = vmatpush1.bf16.msra.mxu0 0
        %1430 = vmatprep.subr.bf16.mxu0 0
        %1431 = vmatpush1.bf16.msra.mxu0 0
        %1432 = vmatprep.subr.bf16.mxu0 0
        %1433 = vmatpush1.bf16.msra.mxu0 0
        %1434 = vmatprep.subr.bf16.mxu0 0
        %1435 = vmatpush1.bf16.msra.mxu0 0
        %1436 = vmatprep.subr.bf16.mxu0 0
        %1437 = vmatpush1.bf16.msra.mxu0 0
        %1438 = vmatprep.mubr.bf16.mxu0 0
        %1439 = vmatmul.mubr.bf16.gmra.mrb[0].mxu0 %v1401
        %v1440 = vpop.f32.mrb[0].mxu0
        %v1441 = vadd.f32 0.0, %v1440
        %v1442 = vpop.f32.mrb[0].mxu0
        %v1443 = vpop.f32.mrb[0].mxu0
        %v1444 = vpop.f32.mrb[0].mxu0
        %1445 = vdwg.mxu0
        %v1446 = vpack.c.bf16 %v1441, %v1441
        %v1448 = vsel %vm1085, %v1446, 0
        %v1451 = vsel %vm1089, %v1219, 0
        %1453 = vmatprep.subr.bf16.mxu0 0
        %1454 = vmatpush1.bf16.msra.mxu0 %v1451
        %1455 = vmatprep.subr.bf16.mxu0 0
        %1456 = vmatpush1.bf16.msra.mxu0 0
        %1457 = vmatprep.subr.bf16.mxu0 0
        %1458 = vmatpush1.bf16.msra.mxu0 0
        %1459 = vmatprep.subr.bf16.mxu0 0
        %1460 = vmatpush1.bf16.msra.mxu0 0
        %1461 = vmatprep.subr.bf16.mxu0 0
        %1462 = vmatpush1.bf16.msra.mxu0 0
        %1463 = vmatprep.subr.bf16.mxu0 0
        %1464 = vmatpush1.bf16.msra.mxu0 0
        %1465 = vmatprep.subr.bf16.mxu0 0
        %1466 = vmatpush1.bf16.msra.mxu0 0
        %1467 = vmatprep.subr.bf16.mxu0 0
        %1468 = vmatpush1.bf16.msra.mxu0 0
        %1469 = vmatprep.subr.bf16.mxu0 0
        %1470 = vmatpush1.bf16.msra.mxu0 0
        %1471 = vmatprep.subr.bf16.mxu0 0
        %1472 = vmatpush1.bf16.msra.mxu0 0
        %1473 = vmatprep.subr.bf16.mxu0 0
        %1474 = vmatpush1.bf16.msra.mxu0 0
        %1475 = vmatprep.subr.bf16.mxu0 0
        %1476 = vmatpush1.bf16.msra.mxu0 0
        %1477 = vmatprep.subr.bf16.mxu0 0
        %1478 = vmatpush1.bf16.msra.mxu0 0
        %1479 = vmatprep.subr.bf16.mxu0 0
        %1480 = vmatpush1.bf16.msra.mxu0 0
        %1481 = vmatprep.subr.bf16.mxu0 0
        %1482 = vmatpush1.bf16.msra.mxu0 0
        %1483 = vmatprep.subr.bf16.mxu0 0
        %1484 = vmatpush1.bf16.msra.mxu0 0
        %1485 = vmatprep.mubr.bf16.mxu0 0
        %1486 = vmatmul.mubr.bf16.gmra.mrb[0].mxu0 %v1448
        %v1487 = vpop.f32.mrb[0].mxu0
        %v1488 = vadd.f32 0.0, %v1487
        %v1489 = vpop.f32.mrb[0].mxu0
        %v1490 = vpop.f32.mrb[0].mxu0
        %v1491 = vpop.f32.mrb[0].mxu0
        %1492 = vdwg.mxu0
        %v1494 = vsel %vm1085, %v1333, 0
        %v1497 = vsel %vm1089, %v1218, 0
        %1499 = vmatprep.subr.bf16.mxu0 0
        %1500 = vmatpush1.bf16.msra.mxu0 %v1497
        %1501 = vmatprep.subr.bf16.mxu0 0
        %1502 = vmatpush1.bf16.msra.mxu0 0
        %1503 = vmatprep.subr.bf16.mxu0 0
        %1504 = vmatpush1.bf16.msra.mxu0 0
        %1505 = vmatprep.subr.bf16.mxu0 0
        %1506 = vmatpush1.bf16.msra.mxu0 0
        %1507 = vmatprep.subr.bf16.mxu0 0
        %1508 = vmatpush1.bf16.msra.mxu0 0
        %1509 = vmatprep.subr.bf16.mxu0 0
        %1510 = vmatpush1.bf16.msra.mxu0 0
        %1511 = vmatprep.subr.bf16.mxu0 0
        %1512 = vmatpush1.bf16.msra.mxu0 0
        %1513 = vmatprep.subr.bf16.mxu0 0
        %1514 = vmatpush1.bf16.msra.mxu0 0
        %1515 = vmatprep.subr.bf16.mxu0 0
        %1516 = vmatpush1.bf16.msra.mxu0 0
        %1517 = vmatprep.subr.bf16.mxu0 0
        %1518 = vmatpush1.bf16.msra.mxu0 0
        %1519 = vmatprep.subr.bf16.mxu0 0
        %1520 = vmatpush1.bf16.msra.mxu0 0
        %1521 = vmatprep.subr.bf16.mxu0 0
        %1522 = vmatpush1.bf16.msra.mxu0 0
        %1523 = vmatprep.subr.bf16.mxu0 0
        %1524 = vmatpush1.bf16.msra.mxu0 0
        %1525 = vmatprep.subr.bf16.mxu0 0
        %1526 = vmatpush1.bf16.msra.mxu0 0
        %1527 = vmatprep.subr.bf16.mxu0 0
        %1528 = vmatpush1.bf16.msra.mxu0 0
        %1529 = vmatprep.subr.bf16.mxu0 0
        %1530 = vmatpush1.bf16.msra.mxu0 0
        %1531 = vmatprep.mubr.bf16.mxu0 0
        %1532 = vmatmul.mubr.bf16.gmra.mrb[0].mxu0 %v1494
        %v1533 = vpop.f32.mrb[0].mxu0
        %v1534 = vadd.f32 %v1488, %v1533
        %v1535 = vpop.f32.mrb[0].mxu0
        %v1536 = vpop.f32.mrb[0].mxu0
        %v1537 = vpop.f32.mrb[0].mxu0
        %1538 = vdwg.mxu0
        %1539 = vrot.lane.b32.xlu0 %v1217, 112
        %v1540 = vpop.permute.xlu0 %1539
        %1541 = vrot.lane.b32.xlu0 %v1217, 80
        %v1542 = vpop.permute.xlu0 %1541
        %v1544 = vsel %vm1085, %v1540, 0
        %v1547 = vsel %vm1085, %v1542, 0
        %1549 = vmatprep.subr.bf16.mxu0 0
        %1550 = vmatpush1.bf16.xpose.msra.mxu0 %v1547
        %1551 = vmatprep.subr.bf16.mxu0 0
        %1552 = vmatpush1.bf16.xpose.msra.mxu0 0
        %1553 = vmatprep.subr.bf16.mxu0 0
        %1554 = vmatpush1.bf16.xpose.msra.mxu0 0
        %1555 = vmatprep.subr.bf16.mxu0 0
        %1556 = vmatpush1.bf16.xpose.msra.mxu0 0
        %1557 = vmatprep.subr.bf16.mxu0 0
        %1558 = vmatpush1.bf16.xpose.msra.mxu0 0
        %1559 = vmatprep.subr.bf16.mxu0 0
        %1560 = vmatpush1.bf16.xpose.msra.mxu0 0
        %1561 = vmatprep.subr.bf16.mxu0 0
        %1562 = vmatpush1.bf16.xpose.msra.mxu0 0
        %1563 = vmatprep.subr.bf16.mxu0 0
        %1564 = vmatpush1.bf16.xpose.msra.mxu0 0
        %1565 = vmatprep.subr.bf16.mxu0 0
        %1566 = vmatpush1.bf16.xpose.msra.mxu0 0
        %1567 = vmatprep.subr.bf16.mxu0 0
        %1568 = vmatpush1.bf16.xpose.msra.mxu0 0
        %1569 = vmatprep.subr.bf16.mxu0 0
        %1570 = vmatpush1.bf16.xpose.msra.mxu0 0
        %1571 = vmatprep.subr.bf16.mxu0 0
        %1572 = vmatpush1.bf16.xpose.msra.mxu0 0
        %1573 = vmatprep.subr.bf16.mxu0 0
        %1574 = vmatpush1.bf16.xpose.msra.mxu0 0
        %1575 = vmatprep.subr.bf16.mxu0 0
        %1576 = vmatpush1.bf16.xpose.msra.mxu0 0
        %1577 = vmatprep.subr.bf16.mxu0 0
        %1578 = vmatpush1.bf16.xpose.msra.mxu0 0
        %1579 = vmatprep.subr.bf16.mxu0 0
        %1580 = vmatpush1.bf16.xpose.msra.mxu0 0
        %1581 = vmatprep.mubr.bf16.mxu0 0
        %1582 = vmatmul.mubr.bf16.gmra.mrb[0].mxu0 %v1544
        %v1583 = vpop.f32.mrb[0].mxu0
        %v1584 = vadd.f32 0.0, %v1583
        %v1585 = vpop.f32.mrb[0].mxu0
        %v1586 = vpop.f32.mrb[0].mxu0
        %v1587 = vpop.f32.mrb[0].mxu0
        %1588 = vdwg.mxu0
        %v1589 = vmul.f32 %v1584, 0.35355338
        %v1590 = vadd.f32 %v1589, %v1148
        %v1591 = vsel %vm1085, %v1590, -inf
        %1592 = vmax.xlane.f32.xlu0 %v1591
        %v1593 = vpop.xlane.xlu0 %1592
        %v1594 = vsub.f32 %v1590, %v1593
        %v1595 = vmul.f32 %v1594, 1.442695
        %v1596 = vpow.pop %v1595
        %v1597 = vsel %vm1085, %v1596, 0.0
        %1598 = vadd.xlane.f32.xlu0 %v1597
        %v1599 = vpop.xlane.xlu0 %1598
        %v1600 = vrcp.pop %v1599
        %v1601 = vmul.f32 %v1596, %v1600
        %v1602 = vpack.c.bf16 %v1601, %v1601
        %1603 = vrot.lane.b32.xlu0 %v1217, 48
        %v1604 = vpop.permute.xlu0 %1603
        %v1606 = vsel %vm1085, %v1602, 0
        %v1609 = vsel %vm1089, %v1604, 0
        %1611 = vmatprep.subr.bf16.mxu0 0
        %1612 = vmatpush1.bf16.msra.mxu0 %v1609
        %1613 = vmatprep.subr.bf16.mxu0 0
        %1614 = vmatpush1.bf16.msra.mxu0 0
        %1615 = vmatprep.subr.bf16.mxu0 0
        %1616 = vmatpush1.bf16.msra.mxu0 0
        %1617 = vmatprep.subr.bf16.mxu0 0
        %1618 = vmatpush1.bf16.msra.mxu0 0
        %1619 = vmatprep.subr.bf16.mxu0 0
        %1620 = vmatpush1.bf16.msra.mxu0 0
        %1621 = vmatprep.subr.bf16.mxu0 0
        %1622 = vmatpush1.bf16.msra.mxu0 0
        %1623 = vmatprep.subr.bf16.mxu0 0
        %1624 = vmatpush1.bf16.msra.mxu0 0
        %1625 = vmatprep.subr.bf16.mxu0 0
        %1626 = vmatpush1.bf16.msra.mxu0 0
        %1627 = vmatprep.subr.bf16.mxu0 0
        %1628 = vmatpush1.bf16.msra.mxu0 0
        %1629 = vmatprep.subr.bf16.mxu0 0
        %1630 = vmatpush1.bf16.msra.mxu0 0
        %1631 = vmatprep.subr.bf16.mxu0 0
        %1632 = vmatpush1.bf16.msra.mxu0 0
        %1633 = vmatprep.subr.bf16.mxu0 0
        %1634 = vmatpush1.bf16.msra.mxu0 0
        %1635 = vmatprep.subr.bf16.mxu0 0
        %1636 = vmatpush1.bf16.msra.mxu0 0
        %1637 = vmatprep.subr.bf16.mxu0 0
        %1638 = vmatpush1.bf16.msra.mxu0 0
        %1639 = vmatprep.subr.bf16.mxu0 0
        %1640 = vmatpush1.bf16.msra.mxu0 0
        %1641 = vmatprep.subr.bf16.mxu0 0
        %1642 = vmatpush1.bf16.msra.mxu0 0
        %1643 = vmatprep.mubr.bf16.mxu0 0
        %1644 = vmatmul.mubr.bf16.gmra.mrb[0].mxu0 %v1606
        %v1645 = vpop.f32.mrb[0].mxu0
        %v1646 = vadd.f32 0.0, %v1645
        %v1647 = vpop.f32.mrb[0].mxu0
        %v1648 = vpop.f32.mrb[0].mxu0
        %v1649 = vpop.f32.mrb[0].mxu0
        %1650 = vdwg.mxu0
        %v1651 = vpack.c.bf16 %v1646, %v1646
        %v1653 = vsel %vm1085, %v1651, 0
        %v1656 = vsel %vm1089, %v1220, 0
        %1658 = vmatprep.subr.bf16.mxu0 0
        %1659 = vmatpush1.bf16.msra.mxu0 %v1656
        %1660 = vmatprep.subr.bf16.mxu0 0
        %1661 = vmatpush1.bf16.msra.mxu0 0
        %1662 = vmatprep.subr.bf16.mxu0 0
        %1663 = vmatpush1.bf16.msra.mxu0 0
        %1664 = vmatprep.subr.bf16.mxu0 0
        %1665 = vmatpush1.bf16.msra.mxu0 0
        %1666 = vmatprep.subr.bf16.mxu0 0
        %1667 = vmatpush1.bf16.msra.mxu0 0
        %1668 = vmatprep.subr.bf16.mxu0 0
        %1669 = vmatpush1.bf16.msra.mxu0 0
        %1670 = vmatprep.subr.bf16.mxu0 0
        %1671 = vmatpush1.bf16.msra.mxu0 0
        %1672 = vmatprep.subr.bf16.mxu0 0
        %1673 = vmatpush1.bf16.msra.mxu0 0
        %1674 = vmatprep.subr.bf16.mxu0 0
        %1675 = vmatpush1.bf16.msra.mxu0 0
        %1676 = vmatprep.subr.bf16.mxu0 0
        %1677 = vmatpush1.bf16.msra.mxu0 0
        %1678 = vmatprep.subr.bf16.mxu0 0
        %1679 = vmatpush1.bf16.msra.mxu0 0
        %1680 = vmatprep.subr.bf16.mxu0 0
        %1681 = vmatpush1.bf16.msra.mxu0 0
        %1682 = vmatprep.subr.bf16.mxu0 0
        %1683 = vmatpush1.bf16.msra.mxu0 0
        %1684 = vmatprep.subr.bf16.mxu0 0
        %1685 = vmatpush1.bf16.msra.mxu0 0
        %1686 = vmatprep.subr.bf16.mxu0 0
        %1687 = vmatpush1.bf16.msra.mxu0 0
        %1688 = vmatprep.subr.bf16.mxu0 0
        %1689 = vmatpush1.bf16.msra.mxu0 0
        %1690 = vmatprep.mubr.bf16.mxu0 0
        %1691 = vmatmul.mubr.bf16.gmra.mrb[0].mxu0 %v1653
        %v1692 = vpop.f32.mrb[0].mxu0
        %v1693 = vadd.f32 0.0, %v1692
        %v1694 = vpop.f32.mrb[0].mxu0
        %v1695 = vpop.f32.mrb[0].mxu0
        %v1696 = vpop.f32.mrb[0].mxu0
        %1697 = vdwg.mxu0
        %v1698 = vadd.f32 %v1534, %v1693
        %1699 = vrot.lane.b32.xlu0 %v1217, 104
        %v1700 = vpop.permute.xlu0 %1699
        %1701 = vrot.lane.b32.xlu0 %v1217, 72
        %v1702 = vpop.permute.xlu0 %1701
        %v1704 = vsel %vm1085, %v1700, 0
        %v1707 = vsel %vm1085, %v1702, 0
        %1709 = vmatprep.subr.bf16.mxu0 0
        %1710 = vmatpush1.bf16.xpose.msra.mxu0 %v1707
        %1711 = vmatprep.subr.bf16.mxu0 0
        %1712 = vmatpush1.bf16.xpose.msra.mxu0 0
        %1713 = vmatprep.subr.bf16.mxu0 0
        %1714 = vmatpush1.bf16.xpose.msra.mxu0 0
        %1715 = vmatprep.subr.bf16.mxu0 0
        %1716 = vmatpush1.bf16.xpose.msra.mxu0 0
        %1717 = vmatprep.subr.bf16.mxu0 0
        %1718 = vmatpush1.bf16.xpose.msra.mxu0 0
        %1719 = vmatprep.subr.bf16.mxu0 0
        %1720 = vmatpush1.bf16.xpose.msra.mxu0 0
        %1721 = vmatprep.subr.bf16.mxu0 0
        %1722 = vmatpush1.bf16.xpose.msra.mxu0 0
        %1723 = vmatprep.subr.bf16.mxu0 0
        %1724 = vmatpush1.bf16.xpose.msra.mxu0 0
        %1725 = vmatprep.subr.bf16.mxu0 0
        %1726 = vmatpush1.bf16.xpose.msra.mxu0 0
        %1727 = vmatprep.subr.bf16.mxu0 0
        %1728 = vmatpush1.bf16.xpose.msra.mxu0 0
        %1729 = vmatprep.subr.bf16.mxu0 0
        %1730 = vmatpush1.bf16.xpose.msra.mxu0 0
        %1731 = vmatprep.subr.bf16.mxu0 0
        %1732 = vmatpush1.bf16.xpose.msra.mxu0 0
        %1733 = vmatprep.subr.bf16.mxu0 0
        %1734 = vmatpush1.bf16.xpose.msra.mxu0 0
        %1735 = vmatprep.subr.bf16.mxu0 0
        %1736 = vmatpush1.bf16.xpose.msra.mxu0 0
        %1737 = vmatprep.subr.bf16.mxu0 0
        %1738 = vmatpush1.bf16.xpose.msra.mxu0 0
        %1739 = vmatprep.subr.bf16.mxu0 0
        %1740 = vmatpush1.bf16.xpose.msra.mxu0 0
        %1741 = vmatprep.mubr.bf16.mxu0 0
        %1742 = vmatmul.mubr.bf16.gmra.mrb[0].mxu0 %v1704
        %v1743 = vpop.f32.mrb[0].mxu0
        %v1744 = vadd.f32 0.0, %v1743
        %v1745 = vpop.f32.mrb[0].mxu0
        %v1746 = vpop.f32.mrb[0].mxu0
        %v1747 = vpop.f32.mrb[0].mxu0
        %1748 = vdwg.mxu0
        %v1749 = vmul.f32 %v1744, 0.35355338
        %v1750 = vadd.f32 %v1749, %v1148
        %v1751 = vsel %vm1085, %v1750, -inf
        %1752 = vmax.xlane.f32.xlu0 %v1751
        %v1753 = vpop.xlane.xlu0 %1752
        %v1754 = vsub.f32 %v1750, %v1753
        %v1755 = vmul.f32 %v1754, 1.442695
        %v1756 = vpow.pop %v1755
        %v1757 = vsel %vm1085, %v1756, 0.0
        %1758 = vadd.xlane.f32.xlu0 %v1757
        %v1759 = vpop.xlane.xlu0 %1758
        %v1760 = vrcp.pop %v1759
        %v1761 = vmul.f32 %v1756, %v1760
        %v1762 = vpack.c.bf16 %v1761, %v1761
        %1763 = vrot.lane.b32.xlu0 %v1217, 40
        %v1764 = vpop.permute.xlu0 %1763
        %v1766 = vsel %vm1085, %v1762, 0
        %v1769 = vsel %vm1089, %v1764, 0
        %1771 = vmatprep.subr.bf16.mxu0 0
        %1772 = vmatpush1.bf16.msra.mxu0 %v1769
        %1773 = vmatprep.subr.bf16.mxu0 0
        %1774 = vmatpush1.bf16.msra.mxu0 0
        %1775 = vmatprep.subr.bf16.mxu0 0
        %1776 = vmatpush1.bf16.msra.mxu0 0
        %1777 = vmatprep.subr.bf16.mxu0 0
        %1778 = vmatpush1.bf16.msra.mxu0 0
        %1779 = vmatprep.subr.bf16.mxu0 0
        %1780 = vmatpush1.bf16.msra.mxu0 0
        %1781 = vmatprep.subr.bf16.mxu0 0
        %1782 = vmatpush1.bf16.msra.mxu0 0
        %1783 = vmatprep.subr.bf16.mxu0 0
        %1784 = vmatpush1.bf16.msra.mxu0 0
        %1785 = vmatprep.subr.bf16.mxu0 0
        %1786 = vmatpush1.bf16.msra.mxu0 0
        %1787 = vmatprep.subr.bf16.mxu0 0
        %1788 = vmatpush1.bf16.msra.mxu0 0
        %1789 = vmatprep.subr.bf16.mxu0 0
        %1790 = vmatpush1.bf16.msra.mxu0 0
        %1791 = vmatprep.subr.bf16.mxu0 0
        %1792 = vmatpush1.bf16.msra.mxu0 0
        %1793 = vmatprep.subr.bf16.mxu0 0
        %1794 = vmatpush1.bf16.msra.mxu0 0
        %1795 = vmatprep.subr.bf16.mxu0 0
        %1796 = vmatpush1.bf16.msra.mxu0 0
        %1797 = vmatprep.subr.bf16.mxu0 0
        %1798 = vmatpush1.bf16.msra.mxu0 0
        %1799 = vmatprep.subr.bf16.mxu0 0
        %1800 = vmatpush1.bf16.msra.mxu0 0
        %1801 = vmatprep.subr.bf16.mxu0 0
        %1802 = vmatpush1.bf16.msra.mxu0 0
        %1803 = vmatprep.mubr.bf16.mxu0 0
        %1804 = vmatmul.mubr.bf16.gmra.mrb[0].mxu0 %v1766
        %v1805 = vpop.f32.mrb[0].mxu0
        %v1806 = vadd.f32 0.0, %v1805
        %v1807 = vpop.f32.mrb[0].mxu0
        %v1808 = vpop.f32.mrb[0].mxu0
        %v1809 = vpop.f32.mrb[0].mxu0
        %1810 = vdwg.mxu0
        %v1811 = vpack.c.bf16 %v1806, %v1806
        %v1813 = vsel %vm1085, %v1811, 0
        %v1816 = vsel %vm1089, %v1221, 0
        %1818 = vmatprep.subr.bf16.mxu0 0
        %1819 = vmatpush1.bf16.msra.mxu0 %v1816
        %1820 = vmatprep.subr.bf16.mxu0 0
        %1821 = vmatpush1.bf16.msra.mxu0 0
        %1822 = vmatprep.subr.bf16.mxu0 0
        %1823 = vmatpush1.bf16.msra.mxu0 0
        %1824 = vmatprep.subr.bf16.mxu0 0
        %1825 = vmatpush1.bf16.msra.mxu0 0
        %1826 = vmatprep.subr.bf16.mxu0 0
        %1827 = vmatpush1.bf16.msra.mxu0 0
        %1828 = vmatprep.subr.bf16.mxu0 0
        %1829 = vmatpush1.bf16.msra.mxu0 0
        %1830 = vmatprep.subr.bf16.mxu0 0
        %1831 = vmatpush1.bf16.msra.mxu0 0
        %1832 = vmatprep.subr.bf16.mxu0 0
        %1833 = vmatpush1.bf16.msra.mxu0 0
        %1834 = vmatprep.subr.bf16.mxu0 0
        %1835 = vmatpush1.bf16.msra.mxu0 0
        %1836 = vmatprep.subr.bf16.mxu0 0
        %1837 = vmatpush1.bf16.msra.mxu0 0
        %1838 = vmatprep.subr.bf16.mxu0 0
        %1839 = vmatpush1.bf16.msra.mxu0 0
        %1840 = vmatprep.subr.bf16.mxu0 0
        %1841 = vmatpush1.bf16.msra.mxu0 0
        %1842 = vmatprep.subr.bf16.mxu0 0
        %1843 = vmatpush1.bf16.msra.mxu0 0
        %1844 = vmatprep.subr.bf16.mxu0 0
        %1845 = vmatpush1.bf16.msra.mxu0 0
        %1846 = vmatprep.subr.bf16.mxu0 0
        %1847 = vmatpush1.bf16.msra.mxu0 0
        %1848 = vmatprep.subr.bf16.mxu0 0
        %1849 = vmatpush1.bf16.msra.mxu0 0
        %1850 = vmatprep.mubr.bf16.mxu0 0
        %1851 = vmatmul.mubr.bf16.gmra.mrb[0].mxu0 %v1813
        %v1852 = vpop.f32.mrb[0].mxu0
        %v1853 = vadd.f32 0.0, %v1852
        %v1854 = vpop.f32.mrb[0].mxu0
        %v1855 = vpop.f32.mrb[0].mxu0
        %v1856 = vpop.f32.mrb[0].mxu0
        %1857 = vdwg.mxu0
        %v1858 = vadd.f32 %v1698, %v1853
        %v1859 = vadd.f32 %v1134, %v1858
        %v1860 = vld [vmem:[#allocation13] sm:$0x1]
        %v1862 = vlaneseq
        %v1863 = vshrl.u32 %v1862, 7
        %v1864 = vsub.s32 0, %v1863
        %v1865 = vrot.slane %v1860, %v1864
        %v1867 = vadd.f32 %v1859, %v1865
        %v1868 = vld [vmem:[#allocation14] sm:$0x1]
        %v1869 = vld [vmem:[#allocation16] sm:$0x1]
        %v1870 = vsel %vm1173, %v1867, 0.0
        %1871 = vadd.xlane.f32.xlu0 %v1870
        %v1872 = vpop.xlane.xlu0 %1871
        %v1873 = vrcp.pop 32.0
        %v1874 = vmul.f32 %v1872, %v1873
        %v1875 = vsub.f32 %v1867, %v1874
        %v1876 = vmul.f32 %v1875, %v1875
        %v1877 = vsel %vm1173, %v1876, 0.0
        %1878 = vadd.xlane.f32.xlu0 %v1877
        %v1879 = vpop.xlane.xlu0 %1878
        %v1880 = vmul.f32 %v1879, %v1873
        %v1881 = vadd.f32 %v1880, 1e-05
        %v1882 = vrsqrt.pop %v1881
        %v1883 = vmul.f32 %v1875, %v1882
        %v1885 = vlaneseq
        %v1886 = vshrl.u32 %v1885, 7
        %v1887 = vsub.s32 0, %v1886
        %v1888 = vrot.slane %v1868, %v1887
        %v1890 = vmul.f32 %v1883, %v1888
        %v1892 = vlaneseq
        %v1893 = vshrl.u32 %v1892, 7
        %v1894 = vsub.s32 0, %v1893
        %v1895 = vrot.slane %v1869, %v1894
        %v1897 = vadd.f32 %v1890, %v1895
        %v1898 = vpack.c.bf16 %v1897, %v1897
        %v1899 = vld [vmem:[%s11] sm:$0xf]
        %v1900 = vld [vmem:[%s11 + $0x4] sm:$0xf]
        %v1901 = vld [vmem:[%s11 + $0x8] sm:$0xf]
        %v1902 = vld [vmem:[%s11 + $0xc] sm:$0xf]
        %v1903 = vld [vmem:[#allocation17] sm:$0x1]
        %v1905 = vlaneseq
        %v1906 = vshrl.u32 %v1905, 7
        %v1907 = vsub.s32 0, %v1906
        %v1908 = vrot.slane %v1903, %v1907
        %v1914 = vunpack.c.l.b16 %v1899
        %v1915 = vunpack.c.l.b16 %v1900
        %v1916 = vunpack.c.l.b16 %v1901
        %v1917 = vunpack.c.l.b16 %v1902
        %v1918 = vpack.c.b16 %v1915, %v1914
        %v1919 = vpack.c.b16 %v1917, %v1916
        %v1923 = vsel %vm1173, %v1898, 0
        %1925 = vmatprep.subr.bf16.mxu0 0
        %1926 = vmatpush1.bf16.msra.mxu0 %v1918
        %1927 = vmatprep.subr.bf16.mxu0 0
        %1928 = vmatpush1.bf16.msra.mxu0 %v1919
        %1929 = vmatprep.subr.bf16.mxu0 0
        %1930 = vmatpush1.bf16.msra.mxu0 0
        %1931 = vmatprep.subr.bf16.mxu0 0
        %1932 = vmatpush1.bf16.msra.mxu0 0
        %1933 = vmatprep.subr.bf16.mxu0 0
        %1934 = vmatpush1.bf16.msra.mxu0 0
        %1935 = vmatprep.subr.bf16.mxu0 0
        %1936 = vmatpush1.bf16.msra.mxu0 0
        %1937 = vmatprep.subr.bf16.mxu0 0
        %1938 = vmatpush1.bf16.msra.mxu0 0
        %1939 = vmatprep.subr.bf16.mxu0 0
        %1940 = vmatpush1.bf16.msra.mxu0 0
        %1941 = vmatprep.subr.bf16.mxu0 0
        %1942 = vmatpush1.bf16.msra.mxu0 0
        %1943 = vmatprep.subr.bf16.mxu0 0
        %1944 = vmatpush1.bf16.msra.mxu0 0
        %1945 = vmatprep.subr.bf16.mxu0 0
        %1946 = vmatpush1.bf16.msra.mxu0 0
        %1947 = vmatprep.subr.bf16.mxu0 0
        %1948 = vmatpush1.bf16.msra.mxu0 0
        %1949 = vmatprep.subr.bf16.mxu0 0
        %1950 = vmatpush1.bf16.msra.mxu0 0
        %1951 = vmatprep.subr.bf16.mxu0 0
        %1952 = vmatpush1.bf16.msra.mxu0 0
        %1953 = vmatprep.subr.bf16.mxu0 0
        %1954 = vmatpush1.bf16.msra.mxu0 0
        %1955 = vmatprep.subr.bf16.mxu0 0
        %1956 = vmatpush1.bf16.msra.mxu0 0
        %1957 = vmatprep.mubr.bf16.mxu0 0
        %1958 = vmatmul.mubr.bf16.gmra.mrb[0].mxu0 %v1923
        %v1959 = vpop.f32.mrb[0].mxu0
        %v1960 = vadd.f32 %v1908, %v1959
        %v1961 = vpop.f32.mrb[0].mxu0
        %v1962 = vpop.f32.mrb[0].mxu0
        %v1963 = vpop.f32.mrb[0].mxu0
        %1964 = vdwg.mxu0
        %v1965 = vld [vmem:[%s13] sm:$0xf]
        %v1966 = vld [vmem:[%s13 + $0x4] sm:$0xf]
        %v1967 = vld [vmem:[%s13 + $0x8] sm:$0xf]
        %v1968 = vld [vmem:[%s13 + $0xc] sm:$0xf]
        %v1969 = vld [vmem:[#allocation19] sm:$0x1]
        %v1971 = vlaneseq
        %v1972 = vshrl.u32 %v1971, 7
        %v1973 = vsub.s32 0, %v1972
        %v1974 = vrot.slane %v1969, %v1973
        %v1980 = vunpack.c.l.b16 %v1965
        %v1981 = vunpack.c.l.b16 %v1966
        %v1982 = vunpack.c.l.b16 %v1967
        %v1983 = vunpack.c.l.b16 %v1968
        %v1984 = vpack.c.b16 %v1981, %v1980
        %v1985 = vpack.c.b16 %v1983, %v1982
        %v1989 = vsel %vm1173, %v1133, 0
        %1991 = vmatprep.subr.bf16.mxu0 0
        %1992 = vmatpush1.bf16.msra.mxu0 %v1984
        %1993 = vmatprep.subr.bf16.mxu0 0
        %1994 = vmatpush1.bf16.msra.mxu0 %v1985
        %1995 = vmatprep.subr.bf16.mxu0 0
        %1996 = vmatpush1.bf16.msra.mxu0 0
        %1997 = vmatprep.subr.bf16.mxu0 0
        %1998 = vmatpush1.bf16.msra.mxu0 0
        %1999 = vmatprep.subr.bf16.mxu0 0
        %2000 = vmatpush1.bf16.msra.mxu0 0
        %2001 = vmatprep.subr.bf16.mxu0 0
        %2002 = vmatpush1.bf16.msra.mxu0 0
        %2003 = vmatprep.subr.bf16.mxu0 0
        %2004 = vmatpush1.bf16.msra.mxu0 0
        %2005 = vmatprep.subr.bf16.mxu0 0
        %2006 = vmatpush1.bf16.msra.mxu0 0
        %2007 = vmatprep.subr.bf16.mxu0 0
        %2008 = vmatpush1.bf16.msra.mxu0 0
        %2009 = vmatprep.subr.bf16.mxu0 0
        %2010 = vmatpush1.bf16.msra.mxu0 0
        %2011 = vmatprep.subr.bf16.mxu0 0
        %2012 = vmatpush1.bf16.msra.mxu0 0
        %2013 = vmatprep.subr.bf16.mxu0 0
        %2014 = vmatpush1.bf16.msra.mxu0 0
        %2015 = vmatprep.subr.bf16.mxu0 0
        %2016 = vmatpush1.bf16.msra.mxu0 0
        %2017 = vmatprep.subr.bf16.mxu0 0
        %2018 = vmatpush1.bf16.msra.mxu0 0
        %2019 = vmatprep.subr.bf16.mxu0 0
        %2020 = vmatpush1.bf16.msra.mxu0 0
        %2021 = vmatprep.subr.bf16.mxu0 0
        %2022 = vmatpush1.bf16.msra.mxu0 0
        %2023 = vmatprep.mubr.bf16.mxu0 0
        %2024 = vmatmul.mubr.bf16.gmra.mrb[0].mxu0 %v1989
        %v2025 = vpop.f32.mrb[0].mxu0
        %v2026 = vadd.f32 %v1974, %v2025
        %v2027 = vpop.f32.mrb[0].mxu0
        %v2028 = vpop.f32.mrb[0].mxu0
        %v2029 = vpop.f32.mrb[0].mxu0
        %2030 = vdwg.mxu0
        %v2031 = vpack.c.bf16 %v2026, %v2026
        %v2032 = vpack.c.bf16 %v1960, %v1960
        %v2033 = vld [vmem:[#allocation20] sm:$0xf]
        %v2034 = vld [vmem:[#allocation20 + $0x4] sm:$0xf]
        %v2035 = vld [vmem:[#allocation20 + $0x8] sm:$0xf]
        %v2036 = vld [vmem:[#allocation20 + $0xc] sm:$0xf]
        %v2038 = vsel %vm1085, %v2032, 0
        %v2041 = vsel %vm1085, %v2031, 0
        %2043 = vmatprep.subr.bf16.mxu0 0
        %2044 = vmatpush1.bf16.xpose.msra.mxu0 %v2041
        %2045 = vmatprep.subr.bf16.mxu0 0
        %2046 = vmatpush1.bf16.xpose.msra.mxu0 0
        %2047 = vmatprep.subr.bf16.mxu0 0
        %2048 = vmatpush1.bf16.xpose.msra.mxu0 0
        %2049 = vmatprep.subr.bf16.mxu0 0
        %2050 = vmatpush1.bf16.xpose.msra.mxu0 0
        %2051 = vmatprep.subr.bf16.mxu0 0
        %2052 = vmatpush1.bf16.xpose.msra.mxu0 0
        %2053 = vmatprep.subr.bf16.mxu0 0
        %2054 = vmatpush1.bf16.xpose.msra.mxu0 0
        %2055 = vmatprep.subr.bf16.mxu0 0
        %2056 = vmatpush1.bf16.xpose.msra.mxu0 0
        %2057 = vmatprep.subr.bf16.mxu0 0
        %2058 = vmatpush1.bf16.xpose.msra.mxu0 0
        %2059 = vmatprep.subr.bf16.mxu0 0
        %2060 = vmatpush1.bf16.xpose.msra.mxu0 0
        %2061 = vmatprep.subr.bf16.mxu0 0
        %2062 = vmatpush1.bf16.xpose.msra.mxu0 0
        %2063 = vmatprep.subr.bf16.mxu0 0
        %2064 = vmatpush1.bf16.xpose.msra.mxu0 0
        %2065 = vmatprep.subr.bf16.mxu0 0
        %2066 = vmatpush1.bf16.xpose.msra.mxu0 0
        %2067 = vmatprep.subr.bf16.mxu0 0
        %2068 = vmatpush1.bf16.xpose.msra.mxu0 0
        %2069 = vmatprep.subr.bf16.mxu0 0
        %2070 = vmatpush1.bf16.xpose.msra.mxu0 0
        %2071 = vmatprep.subr.bf16.mxu0 0
        %2072 = vmatpush1.bf16.xpose.msra.mxu0 0
        %2073 = vmatprep.subr.bf16.mxu0 0
        %2074 = vmatpush1.bf16.xpose.msra.mxu0 0
        %2075 = vmatprep.mubr.bf16.mxu0 0
        %2076 = vmatmul.mubr.bf16.gmra.mrb[0].mxu0 %v2038
        %v2077 = vpop.f32.mrb[0].mxu0
        %v2078 = vadd.f32 0.0, %v2077
        %v2079 = vpop.f32.mrb[0].mxu0
        %v2080 = vpop.f32.mrb[0].mxu0
        %v2081 = vpop.f32.mrb[0].mxu0
        %2082 = vdwg.mxu0
        %v2083 = vmul.f32 %v2078, 0.35355338
        %v2084 = vsel %vm1085, %v2083, -inf
        %2085 = vmax.xlane.f32.xlu0 %v2084
        %v2086 = vpop.xlane.xlu0 %2085
        %v2087 = vsub.f32 %v2083, %v2086
        %v2088 = vmul.f32 %v2087, 1.442695
        %v2089 = vpow.pop %v2088
        %v2090 = vsel %vm1085, %v2089, 0.0
        %2091 = vadd.xlane.f32.xlu0 %v2090
        %v2092 = vpop.xlane.xlu0 %2091
        %v2093 = vrcp.pop %v2092
        %v2094 = vmul.f32 %v2089, %v2093
        %v2095 = vpack.c.bf16 %v2094, %v2094
        %2097 = vrot.lane.b32.xlu0 %v2031, 96
        %v2098 = vpop.permute.xlu0 %2097
        %v2100 = vsel %vm1085, %v2095, 0
        %v2103 = vsel %vm1089, %v2098, 0
        %2105 = vmatprep.subr.bf16.mxu0 0
        %2106 = vmatpush1.bf16.msra.mxu0 %v2103
        %2107 = vmatprep.subr.bf16.mxu0 0
        %2108 = vmatpush1.bf16.msra.mxu0 0
        %2109 = vmatprep.subr.bf16.mxu0 0
        %2110 = vmatpush1.bf16.msra.mxu0 0
        %2111 = vmatprep.subr.bf16.mxu0 0
        %2112 = vmatpush1.bf16.msra.mxu0 0
        %2113 = vmatprep.subr.bf16.mxu0 0
        %2114 = vmatpush1.bf16.msra.mxu0 0
        %2115 = vmatprep.subr.bf16.mxu0 0
        %2116 = vmatpush1.bf16.msra.mxu0 0
        %2117 = vmatprep.subr.bf16.mxu0 0
        %2118 = vmatpush1.bf16.msra.mxu0 0
        %2119 = vmatprep.subr.bf16.mxu0 0
        %2120 = vmatpush1.bf16.msra.mxu0 0
        %2121 = vmatprep.subr.bf16.mxu0 0
        %2122 = vmatpush1.bf16.msra.mxu0 0
        %2123 = vmatprep.subr.bf16.mxu0 0
        %2124 = vmatpush1.bf16.msra.mxu0 0
        %2125 = vmatprep.subr.bf16.mxu0 0
        %2126 = vmatpush1.bf16.msra.mxu0 0
        %2127 = vmatprep.subr.bf16.mxu0 0
        %2128 = vmatpush1.bf16.msra.mxu0 0
        %2129 = vmatprep.subr.bf16.mxu0 0
        %2130 = vmatpush1.bf16.msra.mxu0 0
        %2131 = vmatprep.subr.bf16.mxu0 0
        %2132 = vmatpush1.bf16.msra.mxu0 0
        %2133 = vmatprep.subr.bf16.mxu0 0
        %2134 = vmatpush1.bf16.msra.mxu0 0
        %2135 = vmatprep.subr.bf16.mxu0 0
        %2136 = vmatpush1.bf16.msra.mxu0 0
        %2137 = vmatprep.mubr.bf16.mxu0 0
        %2138 = vmatmul.mubr.bf16.gmra.mrb[0].mxu0 %v2100
        %v2139 = vpop.f32.mrb[0].mxu0
        %v2140 = vadd.f32 0.0, %v2139
        %v2141 = vpop.f32.mrb[0].mxu0
        %v2142 = vpop.f32.mrb[0].mxu0
        %v2143 = vpop.f32.mrb[0].mxu0
        %2144 = vdwg.mxu0
        %v2145 = vpack.c.bf16 %v2140, %v2140
        %2147 = vrot.lane.b32.xlu0 %v2032, 120
        %v2148 = vpop.permute.xlu0 %2147
        %2149 = vrot.lane.b32.xlu0 %v2031, 120
        %v2150 = vpop.permute.xlu0 %2149
        %v2152 = vsel %vm1085, %v2148, 0
        %v2155 = vsel %vm1085, %v2150, 0
        %2157 = vmatprep.subr.bf16.mxu0 0
        %2158 = vmatpush1.bf16.xpose.msra.mxu0 %v2155
        %2159 = vmatprep.subr.bf16.mxu0 0
        %2160 = vmatpush1.bf16.xpose.msra.mxu0 0
        %2161 = vmatprep.subr.bf16.mxu0 0
        %2162 = vmatpush1.bf16.xpose.msra.mxu0 0
        %2163 = vmatprep.subr.bf16.mxu0 0
        %2164 = vmatpush1.bf16.xpose.msra.mxu0 0
        %2165 = vmatprep.subr.bf16.mxu0 0
        %2166 = vmatpush1.bf16.xpose.msra.mxu0 0
        %2167 = vmatprep.subr.bf16.mxu0 0
        %2168 = vmatpush1.bf16.xpose.msra.mxu0 0
        %2169 = vmatprep.subr.bf16.mxu0 0
        %2170 = vmatpush1.bf16.xpose.msra.mxu0 0
        %2171 = vmatprep.subr.bf16.mxu0 0
        %2172 = vmatpush1.bf16.xpose.msra.mxu0 0
        %2173 = vmatprep.subr.bf16.mxu0 0
        %2174 = vmatpush1.bf16.xpose.msra.mxu0 0
        %2175 = vmatprep.subr.bf16.mxu0 0
        %2176 = vmatpush1.bf16.xpose.msra.mxu0 0
        %2177 = vmatprep.subr.bf16.mxu0 0
        %2178 = vmatpush1.bf16.xpose.msra.mxu0 0
        %2179 = vmatprep.subr.bf16.mxu0 0
        %2180 = vmatpush1.bf16.xpose.msra.mxu0 0
        %2181 = vmatprep.subr.bf16.mxu0 0
        %2182 = vmatpush1.bf16.xpose.msra.mxu0 0
        %2183 = vmatprep.subr.bf16.mxu0 0
        %2184 = vmatpush1.bf16.xpose.msra.mxu0 0
        %2185 = vmatprep.subr.bf16.mxu0 0
        %2186 = vmatpush1.bf16.xpose.msra.mxu0 0
        %2187 = vmatprep.subr.bf16.mxu0 0
        %2188 = vmatpush1.bf16.xpose.msra.mxu0 0
        %2189 = vmatprep.mubr.bf16.mxu0 0
        %2190 = vmatmul.mubr.bf16.gmra.mrb[0].mxu0 %v2152
        %v2191 = vpop.f32.mrb[0].mxu0
        %v2192 = vadd.f32 0.0, %v2191
        %v2193 = vpop.f32.mrb[0].mxu0
        %v2194 = vpop.f32.mrb[0].mxu0
        %v2195 = vpop.f32.mrb[0].mxu0
        %2196 = vdwg.mxu0
        %v2197 = vmul.f32 %v2192, 0.35355338
        %v2198 = vsel %vm1085, %v2197, -inf
        %2199 = vmax.xlane.f32.xlu0 %v2198
        %v2200 = vpop.xlane.xlu0 %2199
        %v2201 = vsub.f32 %v2197, %v2200
        %v2202 = vmul.f32 %v2201, 1.442695
        %v2203 = vpow.pop %v2202
        %v2204 = vsel %vm1085, %v2203, 0.0
        %2205 = vadd.xlane.f32.xlu0 %v2204
        %v2206 = vpop.xlane.xlu0 %2205
        %v2207 = vrcp.pop %v2206
        %v2208 = vmul.f32 %v2203, %v2207
        %v2209 = vpack.c.bf16 %v2208, %v2208
        %2210 = vrot.lane.b32.xlu0 %v2031, 88
        %v2211 = vpop.permute.xlu0 %2210
        %v2213 = vsel %vm1085, %v2209, 0
        %v2216 = vsel %vm1089, %v2211, 0
        %2218 = vmatprep.subr.bf16.mxu0 0
        %2219 = vmatpush1.bf16.msra.mxu0 %v2216
        %2220 = vmatprep.subr.bf16.mxu0 0
        %2221 = vmatpush1.bf16.msra.mxu0 0
        %2222 = vmatprep.subr.bf16.mxu0 0
        %2223 = vmatpush1.bf16.msra.mxu0 0
        %2224 = vmatprep.subr.bf16.mxu0 0
        %2225 = vmatpush1.bf16.msra.mxu0 0
        %2226 = vmatprep.subr.bf16.mxu0 0
        %2227 = vmatpush1.bf16.msra.mxu0 0
        %2228 = vmatprep.subr.bf16.mxu0 0
        %2229 = vmatpush1.bf16.msra.mxu0 0
        %2230 = vmatprep.subr.bf16.mxu0 0
        %2231 = vmatpush1.bf16.msra.mxu0 0
        %2232 = vmatprep.subr.bf16.mxu0 0
        %2233 = vmatpush1.bf16.msra.mxu0 0
        %2234 = vmatprep.subr.bf16.mxu0 0
        %2235 = vmatpush1.bf16.msra.mxu0 0
        %2236 = vmatprep.subr.bf16.mxu0 0
        %2237 = vmatpush1.bf16.msra.mxu0 0
        %2238 = vmatprep.subr.bf16.mxu0 0
        %2239 = vmatpush1.bf16.msra.mxu0 0
        %2240 = vmatprep.subr.bf16.mxu0 0
        %2241 = vmatpush1.bf16.msra.mxu0 0
        %2242 = vmatprep.subr.bf16.mxu0 0
        %2243 = vmatpush1.bf16.msra.mxu0 0
        %2244 = vmatprep.subr.bf16.mxu0 0
        %2245 = vmatpush1.bf16.msra.mxu0 0
        %2246 = vmatprep.subr.bf16.mxu0 0
        %2247 = vmatpush1.bf16.msra.mxu0 0
        %2248 = vmatprep.subr.bf16.mxu0 0
        %2249 = vmatpush1.bf16.msra.mxu0 0
        %2250 = vmatprep.mubr.bf16.mxu0 0
        %2251 = vmatmul.mubr.bf16.gmra.mrb[0].mxu0 %v2213
        %v2252 = vpop.f32.mrb[0].mxu0
        %v2253 = vadd.f32 0.0, %v2252
        %v2254 = vpop.f32.mrb[0].mxu0
        %v2255 = vpop.f32.mrb[0].mxu0
        %v2256 = vpop.f32.mrb[0].mxu0
        %2257 = vdwg.mxu0
        %v2258 = vpack.c.bf16 %v2253, %v2253
        %v2260 = vsel %vm1085, %v2258, 0
        %v2263 = vsel %vm1089, %v2034, 0
        %2265 = vmatprep.subr.bf16.mxu0 0
        %2266 = vmatpush1.bf16.msra.mxu0 %v2263
        %2267 = vmatprep.subr.bf16.mxu0 0
        %2268 = vmatpush1.bf16.msra.mxu0 0
        %2269 = vmatprep.subr.bf16.mxu0 0
        %2270 = vmatpush1.bf16.msra.mxu0 0
        %2271 = vmatprep.subr.bf16.mxu0 0
        %2272 = vmatpush1.bf16.msra.mxu0 0
        %2273 = vmatprep.subr.bf16.mxu0 0
        %2274 = vmatpush1.bf16.msra.mxu0 0
        %2275 = vmatprep.subr.bf16.mxu0 0
        %2276 = vmatpush1.bf16.msra.mxu0 0
        %2277 = vmatprep.subr.bf16.mxu0 0
        %2278 = vmatpush1.bf16.msra.mxu0 0
        %2279 = vmatprep.subr.bf16.mxu0 0
        %2280 = vmatpush1.bf16.msra.mxu0 0
        %2281 = vmatprep.subr.bf16.mxu0 0
        %2282 = vmatpush1.bf16.msra.mxu0 0
        %2283 = vmatprep.subr.bf16.mxu0 0
        %2284 = vmatpush1.bf16.msra.mxu0 0
        %2285 = vmatprep.subr.bf16.mxu0 0
        %2286 = vmatpush1.bf16.msra.mxu0 0
        %2287 = vmatprep.subr.bf16.mxu0 0
        %2288 = vmatpush1.bf16.msra.mxu0 0
        %2289 = vmatprep.subr.bf16.mxu0 0
        %2290 = vmatpush1.bf16.msra.mxu0 0
        %2291 = vmatprep.subr.bf16.mxu0 0
        %2292 = vmatpush1.bf16.msra.mxu0 0
        %2293 = vmatprep.subr.bf16.mxu0 0
        %2294 = vmatpush1.bf16.msra.mxu0 0
        %2295 = vmatprep.subr.bf16.mxu0 0
        %2296 = vmatpush1.bf16.msra.mxu0 0
        %2297 = vmatprep.mubr.bf16.mxu0 0
        %2298 = vmatmul.mubr.bf16.gmra.mrb[0].mxu0 %v2260
        %v2299 = vpop.f32.mrb[0].mxu0
        %v2300 = vadd.f32 0.0, %v2299
        %v2301 = vpop.f32.mrb[0].mxu0
        %v2302 = vpop.f32.mrb[0].mxu0
        %v2303 = vpop.f32.mrb[0].mxu0
        %2304 = vdwg.mxu0
        %v2306 = vsel %vm1085, %v2145, 0
        %v2309 = vsel %vm1089, %v2033, 0
        %2311 = vmatprep.subr.bf16.mxu0 0
        %2312 = vmatpush1.bf16.msra.mxu0 %v2309
        %2313 = vmatprep.subr.bf16.mxu0 0
        %2314 = vmatpush1.bf16.msra.mxu0 0
        %2315 = vmatprep.subr.bf16.mxu0 0
        %2316 = vmatpush1.bf16.msra.mxu0 0
        %2317 = vmatprep.subr.bf16.mxu0 0
        %2318 = vmatpush1.bf16.msra.mxu0 0
        %2319 = vmatprep.subr.bf16.mxu0 0
        %2320 = vmatpush1.bf16.msra.mxu0 0
        %2321 = vmatprep.subr.bf16.mxu0 0
        %2322 = vmatpush1.bf16.msra.mxu0 0
        %2323 = vmatprep.subr.bf16.mxu0 0
        %2324 = vmatpush1.bf16.msra.mxu0 0
        %2325 = vmatprep.subr.bf16.mxu0 0
        %2326 = vmatpush1.bf16.msra.mxu0 0
        %2327 = vmatprep.subr.bf16.mxu0 0
        %2328 = vmatpush1.bf16.msra.mxu0 0
        %2329 = vmatprep.subr.bf16.mxu0 0
        %2330 = vmatpush1.bf16.msra.mxu0 0
        %2331 = vmatprep.subr.bf16.mxu0 0
        %2332 = vmatpush1.bf16.msra.mxu0 0
        %2333 = vmatprep.subr.bf16.mxu0 0
        %2334 = vmatpush1.bf16.msra.mxu0 0
        %2335 = vmatprep.subr.bf16.mxu0 0
        %2336 = vmatpush1.bf16.msra.mxu0 0
        %2337 = vmatprep.subr.bf16.mxu0 0
        %2338 = vmatpush1.bf16.msra.mxu0 0
        %2339 = vmatprep.subr.bf16.mxu0 0
        %2340 = vmatpush1.bf16.msra.mxu0 0
        %2341 = vmatprep.subr.bf16.mxu0 0
        %2342 = vmatpush1.bf16.msra.mxu0 0
        %2343 = vmatprep.mubr.bf16.mxu0 0
        %2344 = vmatmul.mubr.bf16.gmra.mrb[0].mxu0 %v2306
        %v2345 = vpop.f32.mrb[0].mxu0
        %v2346 = vadd.f32 %v2300, %v2345
        %v2347 = vpop.f32.mrb[0].mxu0
        %v2348 = vpop.f32.mrb[0].mxu0
        %v2349 = vpop.f32.mrb[0].mxu0
        %2350 = vdwg.mxu0
        %2351 = vrot.lane.b32.xlu0 %v2032, 112
        %v2352 = vpop.permute.xlu0 %2351
        %2353 = vrot.lane.b32.xlu0 %v2031, 112
        %v2354 = vpop.permute.xlu0 %2353
        %v2356 = vsel %vm1085, %v2352, 0
        %v2359 = vsel %vm1085, %v2354, 0
        %2361 = vmatprep.subr.bf16.mxu0 0
        %2362 = vmatpush1.bf16.xpose.msra.mxu0 %v2359
        %2363 = vmatprep.subr.bf16.mxu0 0
        %2364 = vmatpush1.bf16.xpose.msra.mxu0 0
        %2365 = vmatprep.subr.bf16.mxu0 0
        %2366 = vmatpush1.bf16.xpose.msra.mxu0 0
        %2367 = vmatprep.subr.bf16.mxu0 0
        %2368 = vmatpush1.bf16.xpose.msra.mxu0 0
        %2369 = vmatprep.subr.bf16.mxu0 0
        %2370 = vmatpush1.bf16.xpose.msra.mxu0 0
        %2371 = vmatprep.subr.bf16.mxu0 0
        %2372 = vmatpush1.bf16.xpose.msra.mxu0 0
        %2373 = vmatprep.subr.bf16.mxu0 0
        %2374 = vmatpush1.bf16.xpose.msra.mxu0 0
        %2375 = vmatprep.subr.bf16.mxu0 0
        %2376 = vmatpush1.bf16.xpose.msra.mxu0 0
        %2377 = vmatprep.subr.bf16.mxu0 0
        %2378 = vmatpush1.bf16.xpose.msra.mxu0 0
        %2379 = vmatprep.subr.bf16.mxu0 0
        %2380 = vmatpush1.bf16.xpose.msra.mxu0 0
        %2381 = vmatprep.subr.bf16.mxu0 0
        %2382 = vmatpush1.bf16.xpose.msra.mxu0 0
        %2383 = vmatprep.subr.bf16.mxu0 0
        %2384 = vmatpush1.bf16.xpose.msra.mxu0 0
        %2385 = vmatprep.subr.bf16.mxu0 0
        %2386 = vmatpush1.bf16.xpose.msra.mxu0 0
        %2387 = vmatprep.subr.bf16.mxu0 0
        %2388 = vmatpush1.bf16.xpose.msra.mxu0 0
        %2389 = vmatprep.subr.bf16.mxu0 0
        %2390 = vmatpush1.bf16.xpose.msra.mxu0 0
        %2391 = vmatprep.subr.bf16.mxu0 0
        %2392 = vmatpush1.bf16.xpose.msra.mxu0 0
        %2393 = vmatprep.mubr.bf16.mxu0 0
        %2394 = vmatmul.mubr.bf16.gmra.mrb[0].mxu0 %v2356
        %v2395 = vpop.f32.mrb[0].mxu0
        %v2396 = vadd.f32 0.0, %v2395
        %v2397 = vpop.f32.mrb[0].mxu0
        %v2398 = vpop.f32.mrb[0].mxu0
        %v2399 = vpop.f32.mrb[0].mxu0
        %2400 = vdwg.mxu0
        %v2401 = vmul.f32 %v2396, 0.35355338
        %v2402 = vsel %vm1085, %v2401, -inf
        %2403 = vmax.xlane.f32.xlu0 %v2402
        %v2404 = vpop.xlane.xlu0 %2403
        %v2405 = vsub.f32 %v2401, %v2404
        %v2406 = vmul.f32 %v2405, 1.442695
        %v2407 = vpow.pop %v2406
        %v2408 = vsel %vm1085, %v2407, 0.0
        %2409 = vadd.xlane.f32.xlu0 %v2408
        %v2410 = vpop.xlane.xlu0 %2409
        %v2411 = vrcp.pop %v2410
        %v2412 = vmul.f32 %v2407, %v2411
        %v2413 = vpack.c.bf16 %v2412, %v2412
        %2414 = vrot.lane.b32.xlu0 %v2031, 80
        %v2415 = vpop.permute.xlu0 %2414
        %v2417 = vsel %vm1085, %v2413, 0
        %v2420 = vsel %vm1089, %v2415, 0
        %2422 = vmatprep.subr.bf16.mxu0 0
        %2423 = vmatpush1.bf16.msra.mxu0 %v2420
        %2424 = vmatprep.subr.bf16.mxu0 0
        %2425 = vmatpush1.bf16.msra.mxu0 0
        %2426 = vmatprep.subr.bf16.mxu0 0
        %2427 = vmatpush1.bf16.msra.mxu0 0
        %2428 = vmatprep.subr.bf16.mxu0 0
        %2429 = vmatpush1.bf16.msra.mxu0 0
        %2430 = vmatprep.subr.bf16.mxu0 0
        %2431 = vmatpush1.bf16.msra.mxu0 0
        %2432 = vmatprep.subr.bf16.mxu0 0
        %2433 = vmatpush1.bf16.msra.mxu0 0
        %2434 = vmatprep.subr.bf16.mxu0 0
        %2435 = vmatpush1.bf16.msra.mxu0 0
        %2436 = vmatprep.subr.bf16.mxu0 0
        %2437 = vmatpush1.bf16.msra.mxu0 0
        %2438 = vmatprep.subr.bf16.mxu0 0
        %2439 = vmatpush1.bf16.msra.mxu0 0
        %2440 = vmatprep.subr.bf16.mxu0 0
        %2441 = vmatpush1.bf16.msra.mxu0 0
        %2442 = vmatprep.subr.bf16.mxu0 0
        %2443 = vmatpush1.bf16.msra.mxu0 0
        %2444 = vmatprep.subr.bf16.mxu0 0
        %2445 = vmatpush1.bf16.msra.mxu0 0
        %2446 = vmatprep.subr.bf16.mxu0 0
        %2447 = vmatpush1.bf16.msra.mxu0 0
        %2448 = vmatprep.subr.bf16.mxu0 0
        %2449 = vmatpush1.bf16.msra.mxu0 0
        %2450 = vmatprep.subr.bf16.mxu0 0
        %2451 = vmatpush1.bf16.msra.mxu0 0
        %2452 = vmatprep.subr.bf16.mxu0 0
        %2453 = vmatpush1.bf16.msra.mxu0 0
        %2454 = vmatprep.mubr.bf16.mxu0 0
        %2455 = vmatmul.mubr.bf16.gmra.mrb[0].mxu0 %v2417
        %v2456 = vpop.f32.mrb[0].mxu0
        %v2457 = vadd.f32 0.0, %v2456
        %v2458 = vpop.f32.mrb[0].mxu0
        %v2459 = vpop.f32.mrb[0].mxu0
        %v2460 = vpop.f32.mrb[0].mxu0
        %2461 = vdwg.mxu0
        %v2462 = vpack.c.bf16 %v2457, %v2457
        %v2464 = vsel %vm1085, %v2462, 0
        %v2467 = vsel %vm1089, %v2035, 0
        %2469 = vmatprep.subr.bf16.mxu0 0
        %2470 = vmatpush1.bf16.msra.mxu0 %v2467
        %2471 = vmatprep.subr.bf16.mxu0 0
        %2472 = vmatpush1.bf16.msra.mxu0 0
        %2473 = vmatprep.subr.bf16.mxu0 0
        %2474 = vmatpush1.bf16.msra.mxu0 0
        %2475 = vmatprep.subr.bf16.mxu0 0
        %2476 = vmatpush1.bf16.msra.mxu0 0
        %2477 = vmatprep.subr.bf16.mxu0 0
        %2478 = vmatpush1.bf16.msra.mxu0 0
        %2479 = vmatprep.subr.bf16.mxu0 0
        %2480 = vmatpush1.bf16.msra.mxu0 0
        %2481 = vmatprep.subr.bf16.mxu0 0
        %2482 = vmatpush1.bf16.msra.mxu0 0
        %2483 = vmatprep.subr.bf16.mxu0 0
        %2484 = vmatpush1.bf16.msra.mxu0 0
        %2485 = vmatprep.subr.bf16.mxu0 0
        %2486 = vmatpush1.bf16.msra.mxu0 0
        %2487 = vmatprep.subr.bf16.mxu0 0
        %2488 = vmatpush1.bf16.msra.mxu0 0
        %2489 = vmatprep.subr.bf16.mxu0 0
        %2490 = vmatpush1.bf16.msra.mxu0 0
        %2491 = vmatprep.subr.bf16.mxu0 0
        %2492 = vmatpush1.bf16.msra.mxu0 0
        %2493 = vmatprep.subr.bf16.mxu0 0
        %2494 = vmatpush1.bf16.msra.mxu0 0
        %2495 = vmatprep.subr.bf16.mxu0 0
        %2496 = vmatpush1.bf16.msra.mxu0 0
        %2497 = vmatprep.subr.bf16.mxu0 0
        %2498 = vmatpush1.bf16.msra.mxu0 0
        %2499 = vmatprep.subr.bf16.mxu0 0
        %2500 = vmatpush1.bf16.msra.mxu0 0
        %2501 = vmatprep.mubr.bf16.mxu0 0
        %2502 = vmatmul.mubr.bf16.gmra.mrb[0].mxu0 %v2464
        %v2503 = vpop.f32.mrb[0].mxu0
        %v2504 = vadd.f32 0.0, %v2503
        %v2505 = vpop.f32.mrb[0].mxu0
        %v2506 = vpop.f32.mrb[0].mxu0
        %v2507 = vpop.f32.mrb[0].mxu0
        %2508 = vdwg.mxu0
        %v2509 = vadd.f32 %v2346, %v2504
        %2510 = vrot.lane.b32.xlu0 %v2032, 104
        %v2511 = vpop.permute.xlu0 %2510
        %2512 = vrot.lane.b32.xlu0 %v2031, 104
        %v2513 = vpop.permute.xlu0 %2512
        %v2515 = vsel %vm1085, %v2511, 0
        %v2518 = vsel %vm1085, %v2513, 0
        %2520 = vmatprep.subr.bf16.mxu0 0
        %2521 = vmatpush1.bf16.xpose.msra.mxu0 %v2518
        %2522 = vmatprep.subr.bf16.mxu0 0
        %2523 = vmatpush1.bf16.xpose.msra.mxu0 0
        %2524 = vmatprep.subr.bf16.mxu0 0
        %2525 = vmatpush1.bf16.xpose.msra.mxu0 0
        %2526 = vmatprep.subr.bf16.mxu0 0
        %2527 = vmatpush1.bf16.xpose.msra.mxu0 0
        %2528 = vmatprep.subr.bf16.mxu0 0
        %2529 = vmatpush1.bf16.xpose.msra.mxu0 0
        %2530 = vmatprep.subr.bf16.mxu0 0
        %2531 = vmatpush1.bf16.xpose.msra.mxu0 0
        %2532 = vmatprep.subr.bf16.mxu0 0
        %2533 = vmatpush1.bf16.xpose.msra.mxu0 0
        %2534 = vmatprep.subr.bf16.mxu0 0
        %2535 = vmatpush1.bf16.xpose.msra.mxu0 0
        %2536 = vmatprep.subr.bf16.mxu0 0
        %2537 = vmatpush1.bf16.xpose.msra.mxu0 0
        %2538 = vmatprep.subr.bf16.mxu0 0
        %2539 = vmatpush1.bf16.xpose.msra.mxu0 0
        %2540 = vmatprep.subr.bf16.mxu0 0
        %2541 = vmatpush1.bf16.xpose.msra.mxu0 0
        %2542 = vmatprep.subr.bf16.mxu0 0
        %2543 = vmatpush1.bf16.xpose.msra.mxu0 0
        %2544 = vmatprep.subr.bf16.mxu0 0
        %2545 = vmatpush1.bf16.xpose.msra.mxu0 0
        %2546 = vmatprep.subr.bf16.mxu0 0
        %2547 = vmatpush1.bf16.xpose.msra.mxu0 0
        %2548 = vmatprep.subr.bf16.mxu0 0
        %2549 = vmatpush1.bf16.xpose.msra.mxu0 0
        %2550 = vmatprep.subr.bf16.mxu0 0
        %2551 = vmatpush1.bf16.xpose.msra.mxu0 0
        %2552 = vmatprep.mubr.bf16.mxu0 0
        %2553 = vmatmul.mubr.bf16.gmra.mrb[0].mxu0 %v2515
        %v2554 = vpop.f32.mrb[0].mxu0
        %v2555 = vadd.f32 0.0, %v2554
        %v2556 = vpop.f32.mrb[0].mxu0
        %v2557 = vpop.f32.mrb[0].mxu0
        %v2558 = vpop.f32.mrb[0].mxu0
        %2559 = vdwg.mxu0
        %v2560 = vmul.f32 %v2555, 0.35355338
        %v2561 = vsel %vm1085, %v2560, -inf
        %2562 = vmax.xlane.f32.xlu0 %v2561
        %v2563 = vpop.xlane.xlu0 %2562
        %v2564 = vsub.f32 %v2560, %v2563
        %v2565 = vmul.f32 %v2564, 1.442695
        %v2566 = vpow.pop %v2565
        %v2567 = vsel %vm1085, %v2566, 0.0
        %2568 = vadd.xlane.f32.xlu0 %v2567
        %v2569 = vpop.xlane.xlu0 %2568
        %v2570 = vrcp.pop %v2569
        %v2571 = vmul.f32 %v2566, %v2570
        %v2572 = vpack.c.bf16 %v2571, %v2571
        %2573 = vrot.lane.b32.xlu0 %v2031, 72
        %v2574 = vpop.permute.xlu0 %2573
        %v2576 = vsel %vm1085, %v2572, 0
        %v2579 = vsel %vm1089, %v2574, 0
        %2581 = vmatprep.subr.bf16.mxu0 0
        %2582 = vmatpush1.bf16.msra.mxu0 %v2579
        %2583 = vmatprep.subr.bf16.mxu0 0
        %2584 = vmatpush1.bf16.msra.mxu0 0
        %2585 = vmatprep.subr.bf16.mxu0 0
        %2586 = vmatpush1.bf16.msra.mxu0 0
        %2587 = vmatprep.subr.bf16.mxu0 0
        %2588 = vmatpush1.bf16.msra.mxu0 0
        %2589 = vmatprep.subr.bf16.mxu0 0
        %2590 = vmatpush1.bf16.msra.mxu0 0
        %2591 = vmatprep.subr.bf16.mxu0 0
        %2592 = vmatpush1.bf16.msra.mxu0 0
        %2593 = vmatprep.subr.bf16.mxu0 0
        %2594 = vmatpush1.bf16.msra.mxu0 0
        %2595 = vmatprep.subr.bf16.mxu0 0
        %2596 = vmatpush1.bf16.msra.mxu0 0
        %2597 = vmatprep.subr.bf16.mxu0 0
        %2598 = vmatpush1.bf16.msra.mxu0 0
        %2599 = vmatprep.subr.bf16.mxu0 0
        %2600 = vmatpush1.bf16.msra.mxu0 0
        %2601 = vmatprep.subr.bf16.mxu0 0
        %2602 = vmatpush1.bf16.msra.mxu0 0
        %2603 = vmatprep.subr.bf16.mxu0 0
        %2604 = vmatpush1.bf16.msra.mxu0 0
        %2605 = vmatprep.subr.bf16.mxu0 0
        %2606 = vmatpush1.bf16.msra.mxu0 0
        %2607 = vmatprep.subr.bf16.mxu0 0
        %2608 = vmatpush1.bf16.msra.mxu0 0
        %2609 = vmatprep.subr.bf16.mxu0 0
        %2610 = vmatpush1.bf16.msra.mxu0 0
        %2611 = vmatprep.subr.bf16.mxu0 0
        %2612 = vmatpush1.bf16.msra.mxu0 0
        %2613 = vmatprep.mubr.bf16.mxu0 0
        %2614 = vmatmul.mubr.bf16.gmra.mrb[0].mxu0 %v2576
        %v2615 = vpop.f32.mrb[0].mxu0
        %v2616 = vadd.f32 0.0, %v2615
        %v2617 = vpop.f32.mrb[0].mxu0
        %v2618 = vpop.f32.mrb[0].mxu0
        %v2619 = vpop.f32.mrb[0].mxu0
        %2620 = vdwg.mxu0
        %v2621 = vpack.c.bf16 %v2616, %v2616
        %v2623 = vsel %vm1085, %v2621, 0
        %v2626 = vsel %vm1089, %v2036, 0
        %2628 = vmatprep.subr.bf16.mxu0 0
        %2629 = vmatpush1.bf16.msra.mxu0 %v2626
        %2630 = vmatprep.subr.bf16.mxu0 0
        %2631 = vmatpush1.bf16.msra.mxu0 0
        %2632 = vmatprep.subr.bf16.mxu0 0
        %2633 = vmatpush1.bf16.msra.mxu0 0
        %2634 = vmatprep.subr.bf16.mxu0 0
        %2635 = vmatpush1.bf16.msra.mxu0 0
        %2636 = vmatprep.subr.bf16.mxu0 0
        %2637 = vmatpush1.bf16.msra.mxu0 0
        %2638 = vmatprep.subr.bf16.mxu0 0
        %2639 = vmatpush1.bf16.msra.mxu0 0
        %2640 = vmatprep.subr.bf16.mxu0 0
        %2641 = vmatpush1.bf16.msra.mxu0 0
        %2642 = vmatprep.subr.bf16.mxu0 0
        %2643 = vmatpush1.bf16.msra.mxu0 0
        %2644 = vmatprep.subr.bf16.mxu0 0
        %2645 = vmatpush1.bf16.msra.mxu0 0
        %2646 = vmatprep.subr.bf16.mxu0 0
        %2647 = vmatpush1.bf16.msra.mxu0 0
        %2648 = vmatprep.subr.bf16.mxu0 0
        %2649 = vmatpush1.bf16.msra.mxu0 0
        %2650 = vmatprep.subr.bf16.mxu0 0
        %2651 = vmatpush1.bf16.msra.mxu0 0
        %2652 = vmatprep.subr.bf16.mxu0 0
        %2653 = vmatpush1.bf16.msra.mxu0 0
        %2654 = vmatprep.subr.bf16.mxu0 0
        %2655 = vmatpush1.bf16.msra.mxu0 0
        %2656 = vmatprep.subr.bf16.mxu0 0
        %2657 = vmatpush1.bf16.msra.mxu0 0
        %2658 = vmatprep.subr.bf16.mxu0 0
        %2659 = vmatpush1.bf16.msra.mxu0 0
        %2660 = vmatprep.mubr.bf16.mxu0 0
        %2661 = vmatmul.mubr.bf16.gmra.mrb[0].mxu0 %v2623
        %v2662 = vpop.f32.mrb[0].mxu0
        %v2663 = vadd.f32 0.0, %v2662
        %v2664 = vpop.f32.mrb[0].mxu0
        %v2665 = vpop.f32.mrb[0].mxu0
        %v2666 = vpop.f32.mrb[0].mxu0
        %2667 = vdwg.mxu0
        %v2668 = vadd.f32 %v2509, %v2663
        %v2669 = vadd.f32 %v1897, %v2668
        %v2670 = vld [vmem:[#allocation22] sm:$0x1]
        %v2672 = vlaneseq
        %v2673 = vshrl.u32 %v2672, 7
        %v2674 = vsub.s32 0, %v2673
        %v2675 = vrot.slane %v2670, %v2674
        %v2677 = vadd.f32 %v2669, %v2675
        %v2678 = vld [vmem:[#allocation23] sm:$0x1]
        %v2679 = vld [vmem:[%s18] sm:$0x1]
        %v2680 = vsel %vm1173, %v2677, 0.0
        %2681 = vadd.xlane.f32.xlu0 %v2680
        %v2682 = vpop.xlane.xlu0 %2681
        %v2683 = vmul.f32 %v2682, %v1873
        %v2684 = vsub.f32 %v2677, %v2683
        %v2685 = vmul.f32 %v2684, %v2684
        %v2686 = vsel %vm1173, %v2685, 0.0
        %2687 = vadd.xlane.f32.xlu0 %v2686
        %v2688 = vpop.xlane.xlu0 %2687
        %v2689 = vmul.f32 %v2688, %v1873
        %v2690 = vadd.f32 %v2689, 1e-05
        %v2691 = vrsqrt.pop %v2690
        %v2692 = vmul.f32 %v2684, %v2691
        %v2694 = vlaneseq
        %v2695 = vshrl.u32 %v2694, 7
        %v2696 = vsub.s32 0, %v2695
        %v2697 = vrot.slane %v2678, %v2696
        %v2699 = vmul.f32 %v2692, %v2697
        %v2701 = vlaneseq
        %v2702 = vshrl.u32 %v2701, 7
        %v2703 = vsub.s32 0, %v2702
        %v2704 = vrot.slane %v2679, %v2703
        %v2706 = vadd.f32 %v2699, %v2704
        %v2707 = vpack.c.bf16 %v2706, %v2706
        %v2708 = vld [vmem:[#allocation25] sm:$0xf]
        %v2709 = vld [vmem:[#allocation25 + $0x4] sm:$0xf]
        %v2710 = vld [vmem:[#allocation25 + $0x8] sm:$0xf]
        %v2711 = vld [vmem:[#allocation25 + $0xc] sm:$0xf]
        %v2712 = vld [vmem:[#allocation26] sm:$0x1]
        %v2714 = vlaneseq
        %v2715 = vshrl.u32 %v2714, 7
        %v2716 = vsub.s32 0, %v2715
        %v2717 = vrot.slane %v2712, %v2716
        %v2723 = vunpack.c.l.b16 %v2708
        %v2724 = vunpack.c.l.b16 %v2709
        %v2725 = vunpack.c.l.b16 %v2710
        %v2726 = vunpack.c.l.b16 %v2711
        %v2727 = vpack.c.b16 %v2724, %v2723
        %v2728 = vpack.c.b16 %v2726, %v2725
        %v2732 = vsel %vm1173, %v2707, 0
        %2734 = vmatprep.subr.bf16.mxu0 0
        %2735 = vmatpush1.bf16.msra.mxu0 %v2727
        %2736 = vmatprep.subr.bf16.mxu0 0
        %2737 = vmatpush1.bf16.msra.mxu0 %v2728
        %2738 = vmatprep.subr.bf16.mxu0 0
        %2739 = vmatpush1.bf16.msra.mxu0 0
        %2740 = vmatprep.subr.bf16.mxu0 0
        %2741 = vmatpush1.bf16.msra.mxu0 0
        %2742 = vmatprep.subr.bf16.mxu0 0
        %2743 = vmatpush1.bf16.msra.mxu0 0
        %2744 = vmatprep.subr.bf16.mxu0 0
        %2745 = vmatpush1.bf16.msra.mxu0 0
        %2746 = vmatprep.subr.bf16.mxu0 0
        %2747 = vmatpush1.bf16.msra.mxu0 0
        %2748 = vmatprep.subr.bf16.mxu0 0
        %2749 = vmatpush1.bf16.msra.mxu0 0
        %2750 = vmatprep.subr.bf16.mxu0 0
        %2751 = vmatpush1.bf16.msra.mxu0 0
        %2752 = vmatprep.subr.bf16.mxu0 0
        %2753 = vmatpush1.bf16.msra.mxu0 0
        %2754 = vmatprep.subr.bf16.mxu0 0
        %2755 = vmatpush1.bf16.msra.mxu0 0
        %2756 = vmatprep.subr.bf16.mxu0 0
        %2757 = vmatpush1.bf16.msra.mxu0 0
        %2758 = vmatprep.subr.bf16.mxu0 0
        %2759 = vmatpush1.bf16.msra.mxu0 0
        %2760 = vmatprep.subr.bf16.mxu0 0
        %2761 = vmatpush1.bf16.msra.mxu0 0
        %2762 = vmatprep.subr.bf16.mxu0 0
        %2763 = vmatpush1.bf16.msra.mxu0 0
        %2764 = vmatprep.subr.bf16.mxu0 0
        %2765 = vmatpush1.bf16.msra.mxu0 0
        %2766 = vmatprep.mubr.bf16.mxu0 0
        %2767 = vmatmul.mubr.bf16.gmra.mrb[0].mxu0 %v2732
        %v2768 = vpop.f32.mrb[0].mxu0
        %v2769 = vadd.f32 %v2717, %v2768
        %v2770 = vpop.f32.mrb[0].mxu0
        %v2771 = vpop.f32.mrb[0].mxu0
        %v2772 = vpop.f32.mrb[0].mxu0
        %2773 = vdwg.mxu0
        %v2774 = vmax.f32 %v2769, 0.0
        %v2775 = vpack.c.bf16 %v2774, %v2774
        %v2776 = vld [vmem:[%s21] sm:$0xf]
        %v2777 = vld [vmem:[%s21 + $0x4] sm:$0xf]
        %v2778 = vld [vmem:[%s21 + $0x8] sm:$0xf]
        %v2779 = vld [vmem:[%s21 + $0xc] sm:$0xf]
        %v2780 = vld [vmem:[%s21 + $0x10] sm:$0xf]
        %v2781 = vld [vmem:[%s21 + $0x14] sm:$0xf]
        %v2782 = vld [vmem:[%s21 + $0x18] sm:$0xf]
        %v2783 = vld [vmem:[%s21 + $0x1c] sm:$0xf]
        %v2784 = vld [vmem:[#allocation28] sm:$0x1]
        %v2786 = vlaneseq
        %v2787 = vshrl.u32 %v2786, 7
        %v2788 = vsub.s32 0, %v2787
        %v2789 = vrot.slane %v2784, %v2788
        %v2799 = vunpack.c.l.b16 %v2776
        %v2800 = vunpack.c.l.b16 %v2777
        %v2801 = vunpack.c.l.b16 %v2778
        %v2802 = vunpack.c.l.b16 %v2779
        %v2803 = vunpack.c.l.b16 %v2780
        %v2804 = vunpack.c.l.b16 %v2781
        %v2805 = vunpack.c.l.b16 %v2782
        %v2806 = vunpack.c.l.b16 %v2783
        %v2807 = vpack.c.b16 %v2800, %v2799
        %v2808 = vpack.c.b16 %v2802, %v2801
        %v2809 = vpack.c.b16 %v2804, %v2803
        %v2810 = vpack.c.b16 %v2806, %v2805
        %vm2815 = vcmask 523264
        %v2817 = vsel %vm2815, %v2775, 0
        %2819 = vmatprep.subr.bf16.mxu0 0
        %2820 = vmatpush1.bf16.msra.mxu0 %v2807
        %2821 = vmatprep.subr.bf16.mxu0 0
        %2822 = vmatpush1.bf16.msra.mxu0 %v2808
        %2823 = vmatprep.subr.bf16.mxu0 0
        %2824 = vmatpush1.bf16.msra.mxu0 %v2809
        %2825 = vmatprep.subr.bf16.mxu0 0
        %2826 = vmatpush1.bf16.msra.mxu0 %v2810
        %2827 = vmatprep.subr.bf16.mxu0 0
        %2828 = vmatpush1.bf16.msra.mxu0 0
        %2829 = vmatprep.subr.bf16.mxu0 0
        %2830 = vmatpush1.bf16.msra.mxu0 0
        %2831 = vmatprep.subr.bf16.mxu0 0
        %2832 = vmatpush1.bf16.msra.mxu0 0
        %2833 = vmatprep.subr.bf16.mxu0 0
        %2834 = vmatpush1.bf16.msra.mxu0 0
        %2835 = vmatprep.subr.bf16.mxu0 0
        %2836 = vmatpush1.bf16.msra.mxu0 0
        %2837 = vmatprep.subr.bf16.mxu0 0
        %2838 = vmatpush1.bf16.msra.mxu0 0
        %2839 = vmatprep.subr.bf16.mxu0 0
        %2840 = vmatpush1.bf16.msra.mxu0 0
        %2841 = vmatprep.subr.bf16.mxu0 0
        %2842 = vmatpush1.bf16.msra.mxu0 0
        %2843 = vmatprep.subr.bf16.mxu0 0
        %2844 = vmatpush1.bf16.msra.mxu0 0
        %2845 = vmatprep.subr.bf16.mxu0 0
        %2846 = vmatpush1.bf16.msra.mxu0 0
        %2847 = vmatprep.subr.bf16.mxu0 0
        %2848 = vmatpush1.bf16.msra.mxu0 0
        %2849 = vmatprep.subr.bf16.mxu0 0
        %2850 = vmatpush1.bf16.msra.mxu0 0
        %2851 = vmatprep.mubr.bf16.mxu0 0
        %2852 = vmatmul.mubr.bf16.gmra.mrb[0].mxu0 %v2817
        %v2853 = vpop.f32.mrb[0].mxu0
        %v2854 = vadd.f32 %v2789, %v2853
        %v2855 = vpop.f32.mrb[0].mxu0
        %v2856 = vpop.f32.mrb[0].mxu0
        %v2857 = vpop.f32.mrb[0].mxu0
        %2858 = vdwg.mxu0
        %v2859 = vadd.f32 %v2706, %v2854
        %v2860 = vld [vmem:[%s23] sm:$0x1]
        %v2861 = vld [vmem:[%s24] sm:$0x1]
        %v2862 = vsel %vm1173, %v2859, 0.0
        %2863 = vadd.xlane.f32.xlu0 %v2862
        %v2864 = vpop.xlane.xlu0 %2863
        %v2865 = vmul.f32 %v2864, %v1873
        %v2866 = vsub.f32 %v2859, %v2865
        %v2867 = vmul.f32 %v2866, %v2866
        %v2868 = vsel %vm1173, %v2867, 0.0
        %2869 = vadd.xlane.f32.xlu0 %v2868
        %v2870 = vpop.xlane.xlu0 %2869
        %v2871 = vmul.f32 %v2870, %v1873
        %v2872 = vadd.f32 %v2871, 1e-05
        %v2873 = vrsqrt.pop %v2872
        %v2874 = vmul.f32 %v2866, %v2873
        %v2876 = vlaneseq
        %v2877 = vshrl.u32 %v2876, 7
        %v2878 = vsub.s32 0, %v2877
        %v2879 = vrot.slane %v2860, %v2878
        %v2881 = vmul.f32 %v2874, %v2879
        %v2883 = vlaneseq
        %v2884 = vshrl.u32 %v2883, 7
        %v2885 = vsub.s32 0, %v2884
        %v2886 = vrot.slane %v2861, %v2885
        %v2888 = vadd.f32 %v2881, %v2886
        %v2889 = vpack.c.bf16 %v2888, %v2888
        %s2890 = scalar_lea.vmem %s5, 16
        %v2891 = vld [vmem:[%s2890] sm:$0xf]
        %v2892 = vld [vmem:[%s2890 + $0x4] sm:$0xf]
        %v2893 = vld [vmem:[%s2890 + $0x8] sm:$0xf]
        %v2894 = vld [vmem:[%s2890 + $0xc] sm:$0xf]
        %s2895 = scalar_lea.vmem [#allocation11], 1
        %v2896 = vld [vmem:[%s2895] sm:$0x1]
        %v2898 = vlaneseq
        %v2899 = vshrl.u32 %v2898, 7
        %v2900 = vsub.s32 0, %v2899
        %v2901 = vrot.slane %v2896, %v2900
        %v2907 = vunpack.c.l.b16 %v2891
        %v2908 = vunpack.c.l.b16 %v2892
        %v2909 = vunpack.c.l.b16 %v2893
        %v2910 = vunpack.c.l.b16 %v2894
        %v2911 = vpack.c.b16 %v2908, %v2907
        %v2912 = vpack.c.b16 %v2910, %v2909
        %v2916 = vsel %vm1173, %v2889, 0
        %2918 = vmatprep.subr.bf16.mxu0 0
        %2919 = vmatpush1.bf16.msra.mxu0 %v2911
        %2920 = vmatprep.subr.bf16.mxu0 0
        %2921 = vmatpush1.bf16.msra.mxu0 %v2912
        %2922 = vmatprep.subr.bf16.mxu0 0
        %2923 = vmatpush1.bf16.msra.mxu0 0
        %2924 = vmatprep.subr.bf16.mxu0 0
        %2925 = vmatpush1.bf16.msra.mxu0 0
        %2926 = vmatprep.subr.bf16.mxu0 0
        %2927 = vmatpush1.bf16.msra.mxu0 0
        %2928 = vmatprep.subr.bf16.mxu0 0
        %2929 = vmatpush1.bf16.msra.mxu0 0
        %2930 = vmatprep.subr.bf16.mxu0 0
        %2931 = vmatpush1.bf16.msra.mxu0 0
        %2932 = vmatprep.subr.bf16.mxu0 0
        %2933 = vmatpush1.bf16.msra.mxu0 0
        %2934 = vmatprep.subr.bf16.mxu0 0
        %2935 = vmatpush1.bf16.msra.mxu0 0
        %2936 = vmatprep.subr.bf16.mxu0 0
        %2937 = vmatpush1.bf16.msra.mxu0 0
        %2938 = vmatprep.subr.bf16.mxu0 0
        %2939 = vmatpush1.bf16.msra.mxu0 0
        %2940 = vmatprep.subr.bf16.mxu0 0
        %2941 = vmatpush1.bf16.msra.mxu0 0
        %2942 = vmatprep.subr.bf16.mxu0 0
        %2943 = vmatpush1.bf16.msra.mxu0 0
        %2944 = vmatprep.subr.bf16.mxu0 0
        %2945 = vmatpush1.bf16.msra.mxu0 0
        %2946 = vmatprep.subr.bf16.mxu0 0
        %2947 = vmatpush1.bf16.msra.mxu0 0
        %2948 = vmatprep.subr.bf16.mxu0 0
        %2949 = vmatpush1.bf16.msra.mxu0 0
        %2950 = vmatprep.mubr.bf16.mxu0 0
        %2951 = vmatmul.mubr.bf16.gmra.mrb[0].mxu0 %v2916
        %v2952 = vpop.f32.mrb[0].mxu0
        %v2953 = vadd.f32 %v2901, %v2952
        %v2954 = vpop.f32.mrb[0].mxu0
        %v2955 = vpop.f32.mrb[0].mxu0
        %v2956 = vpop.f32.mrb[0].mxu0
        %2957 = vdwg.mxu0
        %v2958 = vpack.c.bf16 %v2953, %v2953
        %s2959 = scalar_lea.vmem %s7, 16
        %v2960 = vld [vmem:[%s2959] sm:$0xf]
        %v2961 = vld [vmem:[%s2959 + $0x4] sm:$0xf]
        %v2962 = vld [vmem:[%s2959 + $0x8] sm:$0xf]
        %v2963 = vld [vmem:[%s2959 + $0xc] sm:$0xf]
        %2965 = vrot.lane.b32.xlu0 %v2958, 96
        %v2966 = vpop.permute.xlu0 %2965
        %v2968 = vsel %vm1085, %v2958, 0
        %v2971 = vsel %vm1085, %v2966, 0
        %2973 = vmatprep.subr.bf16.mxu0 0
        %2974 = vmatpush1.bf16.xpose.msra.mxu0 %v2971
        %2975 = vmatprep.subr.bf16.mxu0 0
        %2976 = vmatpush1.bf16.xpose.msra.mxu0 0
        %2977 = vmatprep.subr.bf16.mxu0 0
        %2978 = vmatpush1.bf16.xpose.msra.mxu0 0
        %2979 = vmatprep.subr.bf16.mxu0 0
        %2980 = vmatpush1.bf16.xpose.msra.mxu0 0
        %2981 = vmatprep.subr.bf16.mxu0 0
        %2982 = vmatpush1.bf16.xpose.msra.mxu0 0
        %2983 = vmatprep.subr.bf16.mxu0 0
        %2984 = vmatpush1.bf16.xpose.msra.mxu0 0
        %2985 = vmatprep.subr.bf16.mxu0 0
        %2986 = vmatpush1.bf16.xpose.msra.mxu0 0
        %2987 = vmatprep.subr.bf16.mxu0 0
        %2988 = vmatpush1.bf16.xpose.msra.mxu0 0
        %2989 = vmatprep.subr.bf16.mxu0 0
        %2990 = vmatpush1.bf16.xpose.msra.mxu0 0
        %2991 = vmatprep.subr.bf16.mxu0 0
        %2992 = vmatpush1.bf16.xpose.msra.mxu0 0
        %2993 = vmatprep.subr.bf16.mxu0 0
        %2994 = vmatpush1.bf16.xpose.msra.mxu0 0
        %2995 = vmatprep.subr.bf16.mxu0 0
        %2996 = vmatpush1.bf16.xpose.msra.mxu0 0
        %2997 = vmatprep.subr.bf16.mxu0 0
        %2998 = vmatpush1.bf16.xpose.msra.mxu0 0
        %2999 = vmatprep.subr.bf16.mxu0 0
        %3000 = vmatpush1.bf16.xpose.msra.mxu0 0
        %3001 = vmatprep.subr.bf16.mxu0 0
        %3002 = vmatpush1.bf16.xpose.msra.mxu0 0
        %3003 = vmatprep.subr.bf16.mxu0 0
        %3004 = vmatpush1.bf16.xpose.msra.mxu0 0
        %3005 = vmatprep.mubr.bf16.mxu0 0
        %3006 = vmatmul.mubr.bf16.gmra.mrb[0].mxu0 %v2968
        %v3007 = vpop.f32.mrb[0].mxu0
        %v3008 = vadd.f32 0.0, %v3007
        %v3009 = vpop.f32.mrb[0].mxu0
        %v3010 = vpop.f32.mrb[0].mxu0
        %v3011 = vpop.f32.mrb[0].mxu0
        %3012 = vdwg.mxu0
        %v3013 = vmul.f32 %v3008, 0.35355338
        %v3014 = vadd.f32 %v3013, %v1148
        %v3015 = vsel %vm1085, %v3014, -inf
        %3016 = vmax.xlane.f32.xlu0 %v3015
        %v3017 = vpop.xlane.xlu0 %3016
        %v3018 = vsub.f32 %v3014, %v3017
        %v3019 = vmul.f32 %v3018, 1.442695
        %v3020 = vpow.pop %v3019
        %v3021 = vsel %vm1085, %v3020, 0.0
        %3022 = vadd.xlane.f32.xlu0 %v3021
        %v3023 = vpop.xlane.xlu0 %3022
        %v3024 = vrcp.pop %v3023
        %v3025 = vmul.f32 %v3020, %v3024
        %v3026 = vpack.c.bf16 %v3025, %v3025
        %3027 = vrot.lane.b32.xlu0 %v2958, 64
        %v3028 = vpop.permute.xlu0 %3027
        %v3030 = vsel %vm1085, %v3026, 0
        %v3033 = vsel %vm1089, %v3028, 0
        %3035 = vmatprep.subr.bf16.mxu0 0
        %3036 = vmatpush1.bf16.msra.mxu0 %v3033
        %3037 = vmatprep.subr.bf16.mxu0 0
        %3038 = vmatpush1.bf16.msra.mxu0 0
        %3039 = vmatprep.subr.bf16.mxu0 0
        %3040 = vmatpush1.bf16.msra.mxu0 0
        %3041 = vmatprep.subr.bf16.mxu0 0
        %3042 = vmatpush1.bf16.msra.mxu0 0
        %3043 = vmatprep.subr.bf16.mxu0 0
        %3044 = vmatpush1.bf16.msra.mxu0 0
        %3045 = vmatprep.subr.bf16.mxu0 0
        %3046 = vmatpush1.bf16.msra.mxu0 0
        %3047 = vmatprep.subr.bf16.mxu0 0
        %3048 = vmatpush1.bf16.msra.mxu0 0
        %3049 = vmatprep.subr.bf16.mxu0 0
        %3050 = vmatpush1.bf16.msra.mxu0 0
        %3051 = vmatprep.subr.bf16.mxu0 0
        %3052 = vmatpush1.bf16.msra.mxu0 0
        %3053 = vmatprep.subr.bf16.mxu0 0
        %3054 = vmatpush1.bf16.msra.mxu0 0
        %3055 = vmatprep.subr.bf16.mxu0 0
        %3056 = vmatpush1.bf16.msra.mxu0 0
        %3057 = vmatprep.subr.bf16.mxu0 0
        %3058 = vmatpush1.bf16.msra.mxu0 0
        %3059 = vmatprep.subr.bf16.mxu0 0
        %3060 = vmatpush1.bf16.msra.mxu0 0
        %3061 = vmatprep.subr.bf16.mxu0 0
        %3062 = vmatpush1.bf16.msra.mxu0 0
        %3063 = vmatprep.subr.bf16.mxu0 0
        %3064 = vmatpush1.bf16.msra.mxu0 0
        %3065 = vmatprep.subr.bf16.mxu0 0
        %3066 = vmatpush1.bf16.msra.mxu0 0
        %3067 = vmatprep.mubr.bf16.mxu0 0
        %3068 = vmatmul.mubr.bf16.gmra.mrb[0].mxu0 %v3030
        %v3069 = vpop.f32.mrb[0].mxu0
        %v3070 = vadd.f32 0.0, %v3069
        %v3071 = vpop.f32.mrb[0].mxu0
        %v3072 = vpop.f32.mrb[0].mxu0
        %v3073 = vpop.f32.mrb[0].mxu0
        %3074 = vdwg.mxu0
        %v3075 = vpack.c.bf16 %v3070, %v3070
        %3076 = vrot.lane.b32.xlu0 %v2958, 120
        %v3077 = vpop.permute.xlu0 %3076
        %3078 = vrot.lane.b32.xlu0 %v2958, 88
        %v3079 = vpop.permute.xlu0 %3078
        %v3081 = vsel %vm1085, %v3077, 0
        %v3084 = vsel %vm1085, %v3079, 0
        %3086 = vmatprep.subr.bf16.mxu0 0
        %3087 = vmatpush1.bf16.xpose.msra.mxu0 %v3084
        %3088 = vmatprep.subr.bf16.mxu0 0
        %3089 = vmatpush1.bf16.xpose.msra.mxu0 0
        %3090 = vmatprep.subr.bf16.mxu0 0
        %3091 = vmatpush1.bf16.xpose.msra.mxu0 0
        %3092 = vmatprep.subr.bf16.mxu0 0
        %3093 = vmatpush1.bf16.xpose.msra.mxu0 0
        %3094 = vmatprep.subr.bf16.mxu0 0
        %3095 = vmatpush1.bf16.xpose.msra.mxu0 0
        %3096 = vmatprep.subr.bf16.mxu0 0
        %3097 = vmatpush1.bf16.xpose.msra.mxu0 0
        %3098 = vmatprep.subr.bf16.mxu0 0
        %3099 = vmatpush1.bf16.xpose.msra.mxu0 0
        %3100 = vmatprep.subr.bf16.mxu0 0
        %3101 = vmatpush1.bf16.xpose.msra.mxu0 0
        %3102 = vmatprep.subr.bf16.mxu0 0
        %3103 = vmatpush1.bf16.xpose.msra.mxu0 0
        %3104 = vmatprep.subr.bf16.mxu0 0
        %3105 = vmatpush1.bf16.xpose.msra.mxu0 0
        %3106 = vmatprep.subr.bf16.mxu0 0
        %3107 = vmatpush1.bf16.xpose.msra.mxu0 0
        %3108 = vmatprep.subr.bf16.mxu0 0
        %3109 = vmatpush1.bf16.xpose.msra.mxu0 0
        %3110 = vmatprep.subr.bf16.mxu0 0
        %3111 = vmatpush1.bf16.xpose.msra.mxu0 0
        %3112 = vmatprep.subr.bf16.mxu0 0
        %3113 = vmatpush1.bf16.xpose.msra.mxu0 0
        %3114 = vmatprep.subr.bf16.mxu0 0
        %3115 = vmatpush1.bf16.xpose.msra.mxu0 0
        %3116 = vmatprep.subr.bf16.mxu0 0
        %3117 = vmatpush1.bf16.xpose.msra.mxu0 0
        %3118 = vmatprep.mubr.bf16.mxu0 0
        %3119 = vmatmul.mubr.bf16.gmra.mrb[0].mxu0 %v3081
        %v3120 = vpop.f32.mrb[0].mxu0
        %v3121 = vadd.f32 0.0, %v3120
        %v3122 = vpop.f32.mrb[0].mxu0
        %v3123 = vpop.f32.mrb[0].mxu0
        %v3124 = vpop.f32.mrb[0].mxu0
        %3125 = vdwg.mxu0
        %v3126 = vmul.f32 %v3121, 0.35355338
        %v3127 = vadd.f32 %v3126, %v1148
        %v3128 = vsel %vm1085, %v3127, -inf
        %3129 = vmax.xlane.f32.xlu0 %v3128
        %v3130 = vpop.xlane.xlu0 %3129
        %v3131 = vsub.f32 %v3127, %v3130
        %v3132 = vmul.f32 %v3131, 1.442695
        %v3133 = vpow.pop %v3132
        %v3134 = vsel %vm1085, %v3133, 0.0
        %3135 = vadd.xlane.f32.xlu0 %v3134
        %v3136 = vpop.xlane.xlu0 %3135
        %v3137 = vrcp.pop %v3136
        %v3138 = vmul.f32 %v3133, %v3137
        %v3139 = vpack.c.bf16 %v3138, %v3138
        %3140 = vrot.lane.b32.xlu0 %v2958, 56
        %v3141 = vpop.permute.xlu0 %3140
        %v3143 = vsel %vm1085, %v3139, 0
        %v3146 = vsel %vm1089, %v3141, 0
        %3148 = vmatprep.subr.bf16.mxu0 0
        %3149 = vmatpush1.bf16.msra.mxu0 %v3146
        %3150 = vmatprep.subr.bf16.mxu0 0
        %3151 = vmatpush1.bf16.msra.mxu0 0
        %3152 = vmatprep.subr.bf16.mxu0 0
        %3153 = vmatpush1.bf16.msra.mxu0 0
        %3154 = vmatprep.subr.bf16.mxu0 0
        %3155 = vmatpush1.bf16.msra.mxu0 0
        %3156 = vmatprep.subr.bf16.mxu0 0
        %3157 = vmatpush1.bf16.msra.mxu0 0
        %3158 = vmatprep.subr.bf16.mxu0 0
        %3159 = vmatpush1.bf16.msra.mxu0 0
        %3160 = vmatprep.subr.bf16.mxu0 0
        %3161 = vmatpush1.bf16.msra.mxu0 0
        %3162 = vmatprep.subr.bf16.mxu0 0
        %3163 = vmatpush1.bf16.msra.mxu0 0
        %3164 = vmatprep.subr.bf16.mxu0 0
        %3165 = vmatpush1.bf16.msra.mxu0 0
        %3166 = vmatprep.subr.bf16.mxu0 0
        %3167 = vmatpush1.bf16.msra.mxu0 0
        %3168 = vmatprep.subr.bf16.mxu0 0
        %3169 = vmatpush1.bf16.msra.mxu0 0
        %3170 = vmatprep.subr.bf16.mxu0 0
        %3171 = vmatpush1.bf16.msra.mxu0 0
        %3172 = vmatprep.subr.bf16.mxu0 0
        %3173 = vmatpush1.bf16.msra.mxu0 0
        %3174 = vmatprep.subr.bf16.mxu0 0
        %3175 = vmatpush1.bf16.msra.mxu0 0
        %3176 = vmatprep.subr.bf16.mxu0 0
        %3177 = vmatpush1.bf16.msra.mxu0 0
        %3178 = vmatprep.subr.bf16.mxu0 0
        %3179 = vmatpush1.bf16.msra.mxu0 0
        %3180 = vmatprep.mubr.bf16.mxu0 0
        %3181 = vmatmul.mubr.bf16.gmra.mrb[0].mxu0 %v3143
        %v3182 = vpop.f32.mrb[0].mxu0
        %v3183 = vadd.f32 0.0, %v3182
        %v3184 = vpop.f32.mrb[0].mxu0
        %v3185 = vpop.f32.mrb[0].mxu0
        %v3186 = vpop.f32.mrb[0].mxu0
        %3187 = vdwg.mxu0
        %v3188 = vpack.c.bf16 %v3183, %v3183
        %v3190 = vsel %vm1085, %v3188, 0
        %v3193 = vsel %vm1089, %v2961, 0
        %3195 = vmatprep.subr.bf16.mxu0 0
        %3196 = vmatpush1.bf16.msra.mxu0 %v3193
        %3197 = vmatprep.subr.bf16.mxu0 0
        %3198 = vmatpush1.bf16.msra.mxu0 0
        %3199 = vmatprep.subr.bf16.mxu0 0
        %3200 = vmatpush1.bf16.msra.mxu0 0
        %3201 = vmatprep.subr.bf16.mxu0 0
        %3202 = vmatpush1.bf16.msra.mxu0 0
        %3203 = vmatprep.subr.bf16.mxu0 0
        %3204 = vmatpush1.bf16.msra.mxu0 0
        %3205 = vmatprep.subr.bf16.mxu0 0
        %3206 = vmatpush1.bf16.msra.mxu0 0
        %3207 = vmatprep.subr.bf16.mxu0 0
        %3208 = vmatpush1.bf16.msra.mxu0 0
        %3209 = vmatprep.subr.bf16.mxu0 0
        %3210 = vmatpush1.bf16.msra.mxu0 0
        %3211 = vmatprep.subr.bf16.mxu0 0
        %3212 = vmatpush1.bf16.msra.mxu0 0
        %3213 = vmatprep.subr.bf16.mxu0 0
        %3214 = vmatpush1.bf16.msra.mxu0 0
        %3215 = vmatprep.subr.bf16.mxu0 0
        %3216 = vmatpush1.bf16.msra.mxu0 0
        %3217 = vmatprep.subr.bf16.mxu0 0
        %3218 = vmatpush1.bf16.msra.mxu0 0
        %3219 = vmatprep.subr.bf16.mxu0 0
        %3220 = vmatpush1.bf16.msra.mxu0 0
        %3221 = vmatprep.subr.bf16.mxu0 0
        %3222 = vmatpush1.bf16.msra.mxu0 0
        %3223 = vmatprep.subr.bf16.mxu0 0
        %3224 = vmatpush1.bf16.msra.mxu0 0
        %3225 = vmatprep.subr.bf16.mxu0 0
        %3226 = vmatpush1.bf16.msra.mxu0 0
        %3227 = vmatprep.mubr.bf16.mxu0 0
        %3228 = vmatmul.mubr.bf16.gmra.mrb[0].mxu0 %v3190
        %v3229 = vpop.f32.mrb[0].mxu0
        %v3230 = vadd.f32 0.0, %v3229
        %v3231 = vpop.f32.mrb[0].mxu0
        %v3232 = vpop.f32.mrb[0].mxu0
        %v3233 = vpop.f32.mrb[0].mxu0
        %3234 = vdwg.mxu0
        %v3236 = vsel %vm1085, %v3075, 0
        %v3239 = vsel %vm1089, %v2960, 0
        %3241 = vmatprep.subr.bf16.mxu0 0
        %3242 = vmatpush1.bf16.msra.mxu0 %v3239
        %3243 = vmatprep.subr.bf16.mxu0 0
        %3244 = vmatpush1.bf16.msra.mxu0 0
        %3245 = vmatprep.subr.bf16.mxu0 0
        %3246 = vmatpush1.bf16.msra.mxu0 0
        %3247 = vmatprep.subr.bf16.mxu0 0
        %3248 = vmatpush1.bf16.msra.mxu0 0
        %3249 = vmatprep.subr.bf16.mxu0 0
        %3250 = vmatpush1.bf16.msra.mxu0 0
        %3251 = vmatprep.subr.bf16.mxu0 0
        %3252 = vmatpush1.bf16.msra.mxu0 0
        %3253 = vmatprep.subr.bf16.mxu0 0
        %3254 = vmatpush1.bf16.msra.mxu0 0
        %3255 = vmatprep.subr.bf16.mxu0 0
        %3256 = vmatpush1.bf16.msra.mxu0 0
        %3257 = vmatprep.subr.bf16.mxu0 0
        %3258 = vmatpush1.bf16.msra.mxu0 0
        %3259 = vmatprep.subr.bf16.mxu0 0
        %3260 = vmatpush1.bf16.msra.mxu0 0
        %3261 = vmatprep.subr.bf16.mxu0 0
        %3262 = vmatpush1.bf16.msra.mxu0 0
        %3263 = vmatprep.subr.bf16.mxu0 0
        %3264 = vmatpush1.bf16.msra.mxu0 0
        %3265 = vmatprep.subr.bf16.mxu0 0
        %3266 = vmatpush1.bf16.msra.mxu0 0
        %3267 = vmatprep.subr.bf16.mxu0 0
        %3268 = vmatpush1.bf16.msra.mxu0 0
        %3269 = vmatprep.subr.bf16.mxu0 0
        %3270 = vmatpush1.bf16.msra.mxu0 0
        %3271 = vmatprep.subr.bf16.mxu0 0
        %3272 = vmatpush1.bf16.msra.mxu0 0
        %3273 = vmatprep.mubr.bf16.mxu0 0
        %3274 = vmatmul.mubr.bf16.gmra.mrb[0].mxu0 %v3236
        %v3275 = vpop.f32.mrb[0].mxu0
        %v3276 = vadd.f32 %v3230, %v3275
        %v3277 = vpop.f32.mrb[0].mxu0
        %v3278 = vpop.f32.mrb[0].mxu0
        %v3279 = vpop.f32.mrb[0].mxu0
        %3280 = vdwg.mxu0
        %3281 = vrot.lane.b32.xlu0 %v2958, 112
        %v3282 = vpop.permute.xlu0 %3281
        %3283 = vrot.lane.b32.xlu0 %v2958, 80
        %v3284 = vpop.permute.xlu0 %3283
        %v3286 = vsel %vm1085, %v3282, 0
        %v3289 = vsel %vm1085, %v3284, 0
        %3291 = vmatprep.subr.bf16.mxu0 0
        %3292 = vmatpush1.bf16.xpose.msra.mxu0 %v3289
        %3293 = vmatprep.subr.bf16.mxu0 0
        %3294 = vmatpush1.bf16.xpose.msra.mxu0 0
        %3295 = vmatprep.subr.bf16.mxu0 0
        %3296 = vmatpush1.bf16.xpose.msra.mxu0 0
        %3297 = vmatprep.subr.bf16.mxu0 0
        %3298 = vmatpush1.bf16.xpose.msra.mxu0 0
        %3299 = vmatprep.subr.bf16.mxu0 0
        %3300 = vmatpush1.bf16.xpose.msra.mxu0 0
        %3301 = vmatprep.subr.bf16.mxu0 0
        %3302 = vmatpush1.bf16.xpose.msra.mxu0 0
        %3303 = vmatprep.subr.bf16.mxu0 0
        %3304 = vmatpush1.bf16.xpose.msra.mxu0 0
        %3305 = vmatprep.subr.bf16.mxu0 0
        %3306 = vmatpush1.bf16.xpose.msra.mxu0 0
        %3307 = vmatprep.subr.bf16.mxu0 0
        %3308 = vmatpush1.bf16.xpose.msra.mxu0 0
        %3309 = vmatprep.subr.bf16.mxu0 0
        %3310 = vmatpush1.bf16.xpose.msra.mxu0 0
        %3311 = vmatprep.subr.bf16.mxu0 0
        %3312 = vmatpush1.bf16.xpose.msra.mxu0 0
        %3313 = vmatprep.subr.bf16.mxu0 0
        %3314 = vmatpush1.bf16.xpose.msra.mxu0 0
        %3315 = vmatprep.subr.bf16.mxu0 0
        %3316 = vmatpush1.bf16.xpose.msra.mxu0 0
        %3317 = vmatprep.subr.bf16.mxu0 0
        %3318 = vmatpush1.bf16.xpose.msra.mxu0 0
        %3319 = vmatprep.subr.bf16.mxu0 0
        %3320 = vmatpush1.bf16.xpose.msra.mxu0 0
        %3321 = vmatprep.subr.bf16.mxu0 0
        %3322 = vmatpush1.bf16.xpose.msra.mxu0 0
        %3323 = vmatprep.mubr.bf16.mxu0 0
        %3324 = vmatmul.mubr.bf16.gmra.mrb[0].mxu0 %v3286
        %v3325 = vpop.f32.mrb[0].mxu0
        %v3326 = vadd.f32 0.0, %v3325
        %v3327 = vpop.f32.mrb[0].mxu0
        %v3328 = vpop.f32.mrb[0].mxu0
        %v3329 = vpop.f32.mrb[0].mxu0
        %3330 = vdwg.mxu0
        %v3331 = vmul.f32 %v3326, 0.35355338
        %v3332 = vadd.f32 %v3331, %v1148
        %v3333 = vsel %vm1085, %v3332, -inf
        %3334 = vmax.xlane.f32.xlu0 %v3333
        %v3335 = vpop.xlane.xlu0 %3334
        %v3336 = vsub.f32 %v3332, %v3335
        %v3337 = vmul.f32 %v3336, 1.442695
        %v3338 = vpow.pop %v3337
        %v3339 = vsel %vm1085, %v3338, 0.0
        %3340 = vadd.xlane.f32.xlu0 %v3339
        %v3341 = vpop.xlane.xlu0 %3340
        %v3342 = vrcp.pop %v3341
        %v3343 = vmul.f32 %v3338, %v3342
        %v3344 = vpack.c.bf16 %v3343, %v3343
        %3345 = vrot.lane.b32.xlu0 %v2958, 48
        %v3346 = vpop.permute.xlu0 %3345
        %v3348 = vsel %vm1085, %v3344, 0
        %v3351 = vsel %vm1089, %v3346, 0
        %3353 = vmatprep.subr.bf16.mxu0 0
        %3354 = vmatpush1.bf16.msra.mxu0 %v3351
        %3355 = vmatprep.subr.bf16.mxu0 0
        %3356 = vmatpush1.bf16.msra.mxu0 0
        %3357 = vmatprep.subr.bf16.mxu0 0
        %3358 = vmatpush1.bf16.msra.mxu0 0
        %3359 = vmatprep.subr.bf16.mxu0 0
        %3360 = vmatpush1.bf16.msra.mxu0 0
        %3361 = vmatprep.subr.bf16.mxu0 0
        %3362 = vmatpush1.bf16.msra.mxu0 0
        %3363 = vmatprep.subr.bf16.mxu0 0
        %3364 = vmatpush1.bf16.msra.mxu0 0
        %3365 = vmatprep.subr.bf16.mxu0 0
        %3366 = vmatpush1.bf16.msra.mxu0 0
        %3367 = vmatprep.subr.bf16.mxu0 0
        %3368 = vmatpush1.bf16.msra.mxu0 0
        %3369 = vmatprep.subr.bf16.mxu0 0
        %3370 = vmatpush1.bf16.msra.mxu0 0
        %3371 = vmatprep.subr.bf16.mxu0 0
        %3372 = vmatpush1.bf16.msra.mxu0 0
        %3373 = vmatprep.subr.bf16.mxu0 0
        %3374 = vmatpush1.bf16.msra.mxu0 0
        %3375 = vmatprep.subr.bf16.mxu0 0
        %3376 = vmatpush1.bf16.msra.mxu0 0
        %3377 = vmatprep.subr.bf16.mxu0 0
        %3378 = vmatpush1.bf16.msra.mxu0 0
        %3379 = vmatprep.subr.bf16.mxu0 0
        %3380 = vmatpush1.bf16.msra.mxu0 0
        %3381 = vmatprep.subr.bf16.mxu0 0
        %3382 = vmatpush1.bf16.msra.mxu0 0
        %3383 = vmatprep.subr.bf16.mxu0 0
        %3384 = vmatpush1.bf16.msra.mxu0 0
        %3385 = vmatprep.mubr.bf16.mxu0 0
        %3386 = vmatmul.mubr.bf16.gmra.mrb[0].mxu0 %v3348
        %v3387 = vpop.f32.mrb[0].mxu0
        %v3388 = vadd.f32 0.0, %v3387
        %v3389 = vpop.f32.mrb[0].mxu0
        %v3390 = vpop.f32.mrb[0].mxu0
        %v3391 = vpop.f32.mrb[0].mxu0
        %3392 = vdwg.mxu0
        %v3393 = vpack.c.bf16 %v3388, %v3388
        %v3395 = vsel %vm1085, %v3393, 0
        %v3398 = vsel %vm1089, %v2962, 0
        %3400 = vmatprep.subr.bf16.mxu0 0
        %3401 = vmatpush1.bf16.msra.mxu0 %v3398
        %3402 = vmatprep.subr.bf16.mxu0 0
        %3403 = vmatpush1.bf16.msra.mxu0 0
        %3404 = vmatprep.subr.bf16.mxu0 0
        %3405 = vmatpush1.bf16.msra.mxu0 0
        %3406 = vmatprep.subr.bf16.mxu0 0
        %3407 = vmatpush1.bf16.msra.mxu0 0
        %3408 = vmatprep.subr.bf16.mxu0 0
        %3409 = vmatpush1.bf16.msra.mxu0 0
        %3410 = vmatprep.subr.bf16.mxu0 0
        %3411 = vmatpush1.bf16.msra.mxu0 0
        %3412 = vmatprep.subr.bf16.mxu0 0
        %3413 = vmatpush1.bf16.msra.mxu0 0
        %3414 = vmatprep.subr.bf16.mxu0 0
        %3415 = vmatpush1.bf16.msra.mxu0 0
        %3416 = vmatprep.subr.bf16.mxu0 0
        %3417 = vmatpush1.bf16.msra.mxu0 0
        %3418 = vmatprep.subr.bf16.mxu0 0
        %3419 = vmatpush1.bf16.msra.mxu0 0
        %3420 = vmatprep.subr.bf16.mxu0 0
        %3421 = vmatpush1.bf16.msra.mxu0 0
        %3422 = vmatprep.subr.bf16.mxu0 0
        %3423 = vmatpush1.bf16.msra.mxu0 0
        %3424 = vmatprep.subr.bf16.mxu0 0
        %3425 = vmatpush1.bf16.msra.mxu0 0
        %3426 = vmatprep.subr.bf16.mxu0 0
        %3427 = vmatpush1.bf16.msra.mxu0 0
        %3428 = vmatprep.subr.bf16.mxu0 0
        %3429 = vmatpush1.bf16.msra.mxu0 0
        %3430 = vmatprep.subr.bf16.mxu0 0
        %3431 = vmatpush1.bf16.msra.mxu0 0
        %3432 = vmatprep.mubr.bf16.mxu0 0
        %3433 = vmatmul.mubr.bf16.gmra.mrb[0].mxu0 %v3395
        %v3434 = vpop.f32.mrb[0].mxu0
        %v3435 = vadd.f32 0.0, %v3434
        %v3436 = vpop.f32.mrb[0].mxu0
        %v3437 = vpop.f32.mrb[0].mxu0
        %v3438 = vpop.f32.mrb[0].mxu0
        %3439 = vdwg.mxu0
        %v3440 = vadd.f32 %v3276, %v3435
        %3441 = vrot.lane.b32.xlu0 %v2958, 104
        %v3442 = vpop.permute.xlu0 %3441
        %3443 = vrot.lane.b32.xlu0 %v2958, 72
        %v3444 = vpop.permute.xlu0 %3443
        %v3446 = vsel %vm1085, %v3442, 0
        %v3449 = vsel %vm1085, %v3444, 0
        %3451 = vmatprep.subr.bf16.mxu0 0
        %3452 = vmatpush1.bf16.xpose.msra.mxu0 %v3449
        %3453 = vmatprep.subr.bf16.mxu0 0
        %3454 = vmatpush1.bf16.xpose.msra.mxu0 0
        %3455 = vmatprep.subr.bf16.mxu0 0
        %3456 = vmatpush1.bf16.xpose.msra.mxu0 0
        %3457 = vmatprep.subr.bf16.mxu0 0
        %3458 = vmatpush1.bf16.xpose.msra.mxu0 0
        %3459 = vmatprep.subr.bf16.mxu0 0
        %3460 = vmatpush1.bf16.xpose.msra.mxu0 0
        %3461 = vmatprep.subr.bf16.mxu0 0
        %3462 = vmatpush1.bf16.xpose.msra.mxu0 0
        %3463 = vmatprep.subr.bf16.mxu0 0
        %3464 = vmatpush1.bf16.xpose.msra.mxu0 0
        %3465 = vmatprep.subr.bf16.mxu0 0
        %3466 = vmatpush1.bf16.xpose.msra.mxu0 0
        %3467 = vmatprep.subr.bf16.mxu0 0
        %3468 = vmatpush1.bf16.xpose.msra.mxu0 0
        %3469 = vmatprep.subr.bf16.mxu0 0
        %3470 = vmatpush1.bf16.xpose.msra.mxu0 0
        %3471 = vmatprep.subr.bf16.mxu0 0
        %3472 = vmatpush1.bf16.xpose.msra.mxu0 0
        %3473 = vmatprep.subr.bf16.mxu0 0
        %3474 = vmatpush1.bf16.xpose.msra.mxu0 0
        %3475 = vmatprep.subr.bf16.mxu0 0
        %3476 = vmatpush1.bf16.xpose.msra.mxu0 0
        %3477 = vmatprep.subr.bf16.mxu0 0
        %3478 = vmatpush1.bf16.xpose.msra.mxu0 0
        %3479 = vmatprep.subr.bf16.mxu0 0
        %3480 = vmatpush1.bf16.xpose.msra.mxu0 0
        %3481 = vmatprep.subr.bf16.mxu0 0
        %3482 = vmatpush1.bf16.xpose.msra.mxu0 0
        %3483 = vmatprep.mubr.bf16.mxu0 0
        %3484 = vmatmul.mubr.bf16.gmra.mrb[0].mxu0 %v3446
        %v3485 = vpop.f32.mrb[0].mxu0
        %v3486 = vadd.f32 0.0, %v3485
        %v3487 = vpop.f32.mrb[0].mxu0
        %v3488 = vpop.f32.mrb[0].mxu0
        %v3489 = vpop.f32.mrb[0].mxu0
        %3490 = vdwg.mxu0
        %v3491 = vmul.f32 %v3486, 0.35355338
        %v3492 = vadd.f32 %v3491, %v1148
        %v3493 = vsel %vm1085, %v3492, -inf
        %3494 = vmax.xlane.f32.xlu0 %v3493
        %v3495 = vpop.xlane.xlu0 %3494
        %v3496 = vsub.f32 %v3492, %v3495
        %v3497 = vmul.f32 %v3496, 1.442695
        %v3498 = vpow.pop %v3497
        %v3499 = vsel %vm1085, %v3498, 0.0
        %3500 = vadd.xlane.f32.xlu0 %v3499
        %v3501 = vpop.xlane.xlu0 %3500
        %v3502 = vrcp.pop %v3501
        %v3503 = vmul.f32 %v3498, %v3502
        %v3504 = vpack.c.bf16 %v3503, %v3503
        %3505 = vrot.lane.b32.xlu0 %v2958, 40
        %v3506 = vpop.permute.xlu0 %3505
        %v3508 = vsel %vm1085, %v3504, 0
        %v3511 = vsel %vm1089, %v3506, 0
        %3513 = vmatprep.subr.bf16.mxu0 0
        %3514 = vmatpush1.bf16.msra.mxu0 %v3511
        %3515 = vmatprep.subr.bf16.mxu0 0
        %3516 = vmatpush1.bf16.msra.mxu0 0
        %3517 = vmatprep.subr.bf16.mxu0 0
        %3518 = vmatpush1.bf16.msra.mxu0 0
        %3519 = vmatprep.subr.bf16.mxu0 0
        %3520 = vmatpush1.bf16.msra.mxu0 0
        %3521 = vmatprep.subr.bf16.mxu0 0
        %3522 = vmatpush1.bf16.msra.mxu0 0
        %3523 = vmatprep.subr.bf16.mxu0 0
        %3524 = vmatpush1.bf16.msra.mxu0 0
        %3525 = vmatprep.subr.bf16.mxu0 0
        %3526 = vmatpush1.bf16.msra.mxu0 0
        %3527 = vmatprep.subr.bf16.mxu0 0
        %3528 = vmatpush1.bf16.msra.mxu0 0
        %3529 = vmatprep.subr.bf16.mxu0 0
        %3530 = vmatpush1.bf16.msra.mxu0 0
        %3531 = vmatprep.subr.bf16.mxu0 0
        %3532 = vmatpush1.bf16.msra.mxu0 0
        %3533 = vmatprep.subr.bf16.mxu0 0
        %3534 = vmatpush1.bf16.msra.mxu0 0
        %3535 = vmatprep.subr.bf16.mxu0 0
        %3536 = vmatpush1.bf16.msra.mxu0 0
        %3537 = vmatprep.subr.bf16.mxu0 0
        %3538 = vmatpush1.bf16.msra.mxu0 0
        %3539 = vmatprep.subr.bf16.mxu0 0
        %3540 = vmatpush1.bf16.msra.mxu0 0
        %3541 = vmatprep.subr.bf16.mxu0 0
        %3542 = vmatpush1.bf16.msra.mxu0 0
        %3543 = vmatprep.subr.bf16.mxu0 0
        %3544 = vmatpush1.bf16.msra.mxu0 0
        %3545 = vmatprep.mubr.bf16.mxu0 0
        %3546 = vmatmul.mubr.bf16.gmra.mrb[0].mxu0 %v3508
        %v3547 = vpop.f32.mrb[0].mxu0
        %v3548 = vadd.f32 0.0, %v3547
        %v3549 = vpop.f32.mrb[0].mxu0
        %v3550 = vpop.f32.mrb[0].mxu0
        %v3551 = vpop.f32.mrb[0].mxu0
        %3552 = vdwg.mxu0
        %v3553 = vpack.c.bf16 %v3548, %v3548
        %v3555 = vsel %vm1085, %v3553, 0
        %v3558 = vsel %vm1089, %v2963, 0
        %3560 = vmatprep.subr.bf16.mxu0 0
        %3561 = vmatpush1.bf16.msra.mxu0 %v3558
        %3562 = vmatprep.subr.bf16.mxu0 0
        %3563 = vmatpush1.bf16.msra.mxu0 0
        %3564 = vmatprep.subr.bf16.mxu0 0
        %3565 = vmatpush1.bf16.msra.mxu0 0
        %3566 = vmatprep.subr.bf16.mxu0 0
        %3567 = vmatpush1.bf16.msra.mxu0 0
        %3568 = vmatprep.subr.bf16.mxu0 0
        %3569 = vmatpush1.bf16.msra.mxu0 0
        %3570 = vmatprep.subr.bf16.mxu0 0
        %3571 = vmatpush1.bf16.msra.mxu0 0
        %3572 = vmatprep.subr.bf16.mxu0 0
        %3573 = vmatpush1.bf16.msra.mxu0 0
        %3574 = vmatprep.subr.bf16.mxu0 0
        %3575 = vmatpush1.bf16.msra.mxu0 0
        %3576 = vmatprep.subr.bf16.mxu0 0
        %3577 = vmatpush1.bf16.msra.mxu0 0
        %3578 = vmatprep.subr.bf16.mxu0 0
        %3579 = vmatpush1.bf16.msra.mxu0 0
        %3580 = vmatprep.subr.bf16.mxu0 0
        %3581 = vmatpush1.bf16.msra.mxu0 0
        %3582 = vmatprep.subr.bf16.mxu0 0
        %3583 = vmatpush1.bf16.msra.mxu0 0
        %3584 = vmatprep.subr.bf16.mxu0 0
        %3585 = vmatpush1.bf16.msra.mxu0 0
        %3586 = vmatprep.subr.bf16.mxu0 0
        %3587 = vmatpush1.bf16.msra.mxu0 0
        %3588 = vmatprep.subr.bf16.mxu0 0
        %3589 = vmatpush1.bf16.msra.mxu0 0
        %3590 = vmatprep.subr.bf16.mxu0 0
        %3591 = vmatpush1.bf16.msra.mxu0 0
        %3592 = vmatprep.mubr.bf16.mxu0 0
        %3593 = vmatmul.mubr.bf16.gmra.mrb[0].mxu0 %v3555
        %v3594 = vpop.f32.mrb[0].mxu0
        %v3595 = vadd.f32 0.0, %v3594
        %v3596 = vpop.f32.mrb[0].mxu0
        %v3597 = vpop.f32.mrb[0].mxu0
        %v3598 = vpop.f32.mrb[0].mxu0
        %3599 = vdwg.mxu0
        %v3600 = vadd.f32 %v3440, %v3595
        %v3601 = vadd.f32 %v2888, %v3600
        %s3602 = scalar_lea.vmem [#allocation13], 1
        %v3603 = vld [vmem:[%s3602] sm:$0x1]
        %v3605 = vlaneseq
        %v3606 = vshrl.u32 %v3605, 7
        %v3607 = vsub.s32 0, %v3606
        %v3608 = vrot.slane %v3603, %v3607
        %v3610 = vadd.f32 %v3601, %v3608
        %s3611 = scalar_lea.vmem [#allocation14], 1
        %v3612 = vld [vmem:[%s3611] sm:$0x1]
        %s3613 = scalar_lea.vmem [#allocation16], 1
        %v3614 = vld [vmem:[%s3613] sm:$0x1]
        %v3615 = vsel %vm1173, %v3610, 0.0
        %3616 = vadd.xlane.f32.xlu0 %v3615
        %v3617 = vpop.xlane.xlu0 %3616
        %v3618 = vmul.f32 %v3617, %v1873
        %v3619 = vsub.f32 %v3610, %v3618
        %v3620 = vmul.f32 %v3619, %v3619
        %v3621 = vsel %vm1173, %v3620, 0.0
        %3622 = vadd.xlane.f32.xlu0 %v3621
        %v3623 = vpop.xlane.xlu0 %3622
        %v3624 = vmul.f32 %v3623, %v1873
        %v3625 = vadd.f32 %v3624, 1e-05
        %v3626 = vrsqrt.pop %v3625
        %v3627 = vmul.f32 %v3619, %v3626
        %v3629 = vlaneseq
        %v3630 = vshrl.u32 %v3629, 7
        %v3631 = vsub.s32 0, %v3630
        %v3632 = vrot.slane %v3612, %v3631
        %v3634 = vmul.f32 %v3627, %v3632
        %v3636 = vlaneseq
        %v3637 = vshrl.u32 %v3636, 7
        %v3638 = vsub.s32 0, %v3637
        %v3639 = vrot.slane %v3614, %v3638
        %v3641 = vadd.f32 %v3634, %v3639
        %v3642 = vpack.c.bf16 %v3641, %v3641
        %s3643 = scalar_lea.vmem %s11, 16
        %v3644 = vld [vmem:[%s3643] sm:$0xf]
        %v3645 = vld [vmem:[%s3643 + $0x4] sm:$0xf]
        %v3646 = vld [vmem:[%s3643 + $0x8] sm:$0xf]
        %v3647 = vld [vmem:[%s3643 + $0xc] sm:$0xf]
        %s3648 = scalar_lea.vmem [#allocation17], 1
        %v3649 = vld [vmem:[%s3648] sm:$0x1]
        %v3651 = vlaneseq
        %v3652 = vshrl.u32 %v3651, 7
        %v3653 = vsub.s32 0, %v3652
        %v3654 = vrot.slane %v3649, %v3653
        %v3660 = vunpack.c.l.b16 %v3644
        %v3661 = vunpack.c.l.b16 %v3645
        %v3662 = vunpack.c.l.b16 %v3646
        %v3663 = vunpack.c.l.b16 %v3647
        %v3664 = vpack.c.b16 %v3661, %v3660
        %v3665 = vpack.c.b16 %v3663, %v3662
        %v3669 = vsel %vm1173, %v3642, 0
        %3671 = vmatprep.subr.bf16.mxu0 0
        %3672 = vmatpush1.bf16.msra.mxu0 %v3664
        %3673 = vmatprep.subr.bf16.mxu0 0
        %3674 = vmatpush1.bf16.msra.mxu0 %v3665
        %3675 = vmatprep.subr.bf16.mxu0 0
        %3676 = vmatpush1.bf16.msra.mxu0 0
        %3677 = vmatprep.subr.bf16.mxu0 0
        %3678 = vmatpush1.bf16.msra.mxu0 0
        %3679 = vmatprep.subr.bf16.mxu0 0
        %3680 = vmatpush1.bf16.msra.mxu0 0
        %3681 = vmatprep.subr.bf16.mxu0 0
        %3682 = vmatpush1.bf16.msra.mxu0 0
        %3683 = vmatprep.subr.bf16.mxu0 0
        %3684 = vmatpush1.bf16.msra.mxu0 0
        %3685 = vmatprep.subr.bf16.mxu0 0
        %3686 = vmatpush1.bf16.msra.mxu0 0
        %3687 = vmatprep.subr.bf16.mxu0 0
        %3688 = vmatpush1.bf16.msra.mxu0 0
        %3689 = vmatprep.subr.bf16.mxu0 0
        %3690 = vmatpush1.bf16.msra.mxu0 0
        %3691 = vmatprep.subr.bf16.mxu0 0
        %3692 = vmatpush1.bf16.msra.mxu0 0
        %3693 = vmatprep.subr.bf16.mxu0 0
        %3694 = vmatpush1.bf16.msra.mxu0 0
        %3695 = vmatprep.subr.bf16.mxu0 0
        %3696 = vmatpush1.bf16.msra.mxu0 0
        %3697 = vmatprep.subr.bf16.mxu0 0
        %3698 = vmatpush1.bf16.msra.mxu0 0
        %3699 = vmatprep.subr.bf16.mxu0 0
        %3700 = vmatpush1.bf16.msra.mxu0 0
        %3701 = vmatprep.subr.bf16.mxu0 0
        %3702 = vmatpush1.bf16.msra.mxu0 0
        %3703 = vmatprep.mubr.bf16.mxu0 0
        %3704 = vmatmul.mubr.bf16.gmra.mrb[0].mxu0 %v3669
        %v3705 = vpop.f32.mrb[0].mxu0
        %v3706 = vadd.f32 %v3654, %v3705
        %v3707 = vpop.f32.mrb[0].mxu0
        %v3708 = vpop.f32.mrb[0].mxu0
        %v3709 = vpop.f32.mrb[0].mxu0
        %3710 = vdwg.mxu0
        %s3711 = scalar_lea.vmem %s13, 16
        %v3712 = vld [vmem:[%s3711] sm:$0xf]
        %v3713 = vld [vmem:[%s3711 + $0x4] sm:$0xf]
        %v3714 = vld [vmem:[%s3711 + $0x8] sm:$0xf]
        %v3715 = vld [vmem:[%s3711 + $0xc] sm:$0xf]
        %s3716 = scalar_lea.vmem [#allocation19], 1
        %v3717 = vld [vmem:[%s3716] sm:$0x1]
        %v3719 = vlaneseq
        %v3720 = vshrl.u32 %v3719, 7
        %v3721 = vsub.s32 0, %v3720
        %v3722 = vrot.slane %v3717, %v3721
        %v3728 = vunpack.c.l.b16 %v3712
        %v3729 = vunpack.c.l.b16 %v3713
        %v3730 = vunpack.c.l.b16 %v3714
        %v3731 = vunpack.c.l.b16 %v3715
        %v3732 = vpack.c.b16 %v3729, %v3728
        %v3733 = vpack.c.b16 %v3731, %v3730
        %3736 = vmatprep.subr.bf16.mxu0 0
        %3737 = vmatpush1.bf16.msra.mxu0 %v3732
        %3738 = vmatprep.subr.bf16.mxu0 0
        %3739 = vmatpush1.bf16.msra.mxu0 %v3733
        %3740 = vmatprep.subr.bf16.mxu0 0
        %3741 = vmatpush1.bf16.msra.mxu0 0
        %3742 = vmatprep.subr.bf16.mxu0 0
        %3743 = vmatpush1.bf16.msra.mxu0 0
        %3744 = vmatprep.subr.bf16.mxu0 0
        %3745 = vmatpush1.bf16.msra.mxu0 0
        %3746 = vmatprep.subr.bf16.mxu0 0
        %3747 = vmatpush1.bf16.msra.mxu0 0
        %3748 = vmatprep.subr.bf16.mxu0 0
        %3749 = vmatpush1.bf16.msra.mxu0 0
        %3750 = vmatprep.subr.bf16.mxu0 0
        %3751 = vmatpush1.bf16.msra.mxu0 0
        %3752 = vmatprep.subr.bf16.mxu0 0
        %3753 = vmatpush1.bf16.msra.mxu0 0
        %3754 = vmatprep.subr.bf16.mxu0 0
        %3755 = vmatpush1.bf16.msra.mxu0 0
        %3756 = vmatprep.subr.bf16.mxu0 0
        %3757 = vmatpush1.bf16.msra.mxu0 0
        %3758 = vmatprep.subr.bf16.mxu0 0
        %3759 = vmatpush1.bf16.msra.mxu0 0
        %3760 = vmatprep.subr.bf16.mxu0 0
        %3761 = vmatpush1.bf16.msra.mxu0 0
        %3762 = vmatprep.subr.bf16.mxu0 0
        %3763 = vmatpush1.bf16.msra.mxu0 0
        %3764 = vmatprep.subr.bf16.mxu0 0
        %3765 = vmatpush1.bf16.msra.mxu0 0
        %3766 = vmatprep.subr.bf16.mxu0 0
        %3767 = vmatpush1.bf16.msra.mxu0 0
        %3768 = vmatprep.mubr.bf16.mxu0 0
        %3769 = vmatmul.mubr.bf16.gmra.mrb[0].mxu0 %v1989
        %v3770 = vpop.f32.mrb[0].mxu0
        %v3771 = vadd.f32 %v3722, %v3770
        %v3772 = vpop.f32.mrb[0].mxu0
        %v3773 = vpop.f32.mrb[0].mxu0
        %v3774 = vpop.f32.mrb[0].mxu0
        %3775 = vdwg.mxu0
        %v3776 = vpack.c.bf16 %v3771, %v3771
        %v3777 = vpack.c.bf16 %v3706, %v3706
        %s3778 = scalar_lea.vmem [#allocation20], 16
        %v3779 = vld [vmem:[%s3778] sm:$0xf]
        %v3780 = vld [vmem:[%s3778 + $0x4] sm:$0xf]
        %v3781 = vld [vmem:[%s3778 + $0x8] sm:$0xf]
        %v3782 = vld [vmem:[%s3778 + $0xc] sm:$0xf]
        %v3784 = vsel %vm1085, %v3777, 0
        %v3787 = vsel %vm1085, %v3776, 0
        %3789 = vmatprep.subr.bf16.mxu0 0
        %3790 = vmatpush1.bf16.xpose.msra.mxu0 %v3787
        %3791 = vmatprep.subr.bf16.mxu0 0
        %3792 = vmatpush1.bf16.xpose.msra.mxu0 0
        %3793 = vmatprep.subr.bf16.mxu0 0
        %3794 = vmatpush1.bf16.xpose.msra.mxu0 0
        %3795 = vmatprep.subr.bf16.mxu0 0
        %3796 = vmatpush1.bf16.xpose.msra.mxu0 0
        %3797 = vmatprep.subr.bf16.mxu0 0
        %3798 = vmatpush1.bf16.xpose.msra.mxu0 0
        %3799 = vmatprep.subr.bf16.mxu0 0
        %3800 = vmatpush1.bf16.xpose.msra.mxu0 0
        %3801 = vmatprep.subr.bf16.mxu0 0
        %3802 = vmatpush1.bf16.xpose.msra.mxu0 0
        %3803 = vmatprep.subr.bf16.mxu0 0
        %3804 = vmatpush1.bf16.xpose.msra.mxu0 0
        %3805 = vmatprep.subr.bf16.mxu0 0
        %3806 = vmatpush1.bf16.xpose.msra.mxu0 0
        %3807 = vmatprep.subr.bf16.mxu0 0
        %3808 = vmatpush1.bf16.xpose.msra.mxu0 0
        %3809 = vmatprep.subr.bf16.mxu0 0
        %3810 = vmatpush1.bf16.xpose.msra.mxu0 0
        %3811 = vmatprep.subr.bf16.mxu0 0
        %3812 = vmatpush1.bf16.xpose.msra.mxu0 0
        %3813 = vmatprep.subr.bf16.mxu0 0
        %3814 = vmatpush1.bf16.xpose.msra.mxu0 0
        %3815 = vmatprep.subr.bf16.mxu0 0
        %3816 = vmatpush1.bf16.xpose.msra.mxu0 0
        %3817 = vmatprep.subr.bf16.mxu0 0
        %3818 = vmatpush1.bf16.xpose.msra.mxu0 0
        %3819 = vmatprep.subr.bf16.mxu0 0
        %3820 = vmatpush1.bf16.xpose.msra.mxu0 0
        %3821 = vmatprep.mubr.bf16.mxu0 0
        %3822 = vmatmul.mubr.bf16.gmra.mrb[0].mxu0 %v3784
        %v3823 = vpop.f32.mrb[0].mxu0
        %v3824 = vadd.f32 0.0, %v3823
        %v3825 = vpop.f32.mrb[0].mxu0
        %v3826 = vpop.f32.mrb[0].mxu0
        %v3827 = vpop.f32.mrb[0].mxu0
        %3828 = vdwg.mxu0
        %v3829 = vmul.f32 %v3824, 0.35355338
        %v3830 = vsel %vm1085, %v3829, -inf
        %3831 = vmax.xlane.f32.xlu0 %v3830
        %v3832 = vpop.xlane.xlu0 %3831
        %v3833 = vsub.f32 %v3829, %v3832
        %v3834 = vmul.f32 %v3833, 1.442695
        %v3835 = vpow.pop %v3834
        %v3836 = vsel %vm1085, %v3835, 0.0
        %3837 = vadd.xlane.f32.xlu0 %v3836
        %v3838 = vpop.xlane.xlu0 %3837
        %v3839 = vrcp.pop %v3838
        %v3840 = vmul.f32 %v3835, %v3839
        %v3841 = vpack.c.bf16 %v3840, %v3840
        %3843 = vrot.lane.b32.xlu0 %v3776, 96
        %v3844 = vpop.permute.xlu0 %3843
        %v3846 = vsel %vm1085, %v3841, 0
        %v3849 = vsel %vm1089, %v3844, 0
        %3851 = vmatprep.subr.bf16.mxu0 0
        %3852 = vmatpush1.bf16.msra.mxu0 %v3849
        %3853 = vmatprep.subr.bf16.mxu0 0
        %3854 = vmatpush1.bf16.msra.mxu0 0
        %3855 = vmatprep.subr.bf16.mxu0 0
        %3856 = vmatpush1.bf16.msra.mxu0 0
        %3857 = vmatprep.subr.bf16.mxu0 0
        %3858 = vmatpush1.bf16.msra.mxu0 0
        %3859 = vmatprep.subr.bf16.mxu0 0
        %3860 = vmatpush1.bf16.msra.mxu0 0
        %3861 = vmatprep.subr.bf16.mxu0 0
        %3862 = vmatpush1.bf16.msra.mxu0 0
        %3863 = vmatprep.subr.bf16.mxu0 0
        %3864 = vmatpush1.bf16.msra.mxu0 0
        %3865 = vmatprep.subr.bf16.mxu0 0
        %3866 = vmatpush1.bf16.msra.mxu0 0
        %3867 = vmatprep.subr.bf16.mxu0 0
        %3868 = vmatpush1.bf16.msra.mxu0 0
        %3869 = vmatprep.subr.bf16.mxu0 0
        %3870 = vmatpush1.bf16.msra.mxu0 0
        %3871 = vmatprep.subr.bf16.mxu0 0
        %3872 = vmatpush1.bf16.msra.mxu0 0
        %3873 = vmatprep.subr.bf16.mxu0 0
        %3874 = vmatpush1.bf16.msra.mxu0 0
        %3875 = vmatprep.subr.bf16.mxu0 0
        %3876 = vmatpush1.bf16.msra.mxu0 0
        %3877 = vmatprep.subr.bf16.mxu0 0
        %3878 = vmatpush1.bf16.msra.mxu0 0
        %3879 = vmatprep.subr.bf16.mxu0 0
        %3880 = vmatpush1.bf16.msra.mxu0 0
        %3881 = vmatprep.subr.bf16.mxu0 0
        %3882 = vmatpush1.bf16.msra.mxu0 0
        %3883 = vmatprep.mubr.bf16.mxu0 0
        %3884 = vmatmul.mubr.bf16.gmra.mrb[0].mxu0 %v3846
        %v3885 = vpop.f32.mrb[0].mxu0
        %v3886 = vadd.f32 0.0, %v3885
        %v3887 = vpop.f32.mrb[0].mxu0
        %v3888 = vpop.f32.mrb[0].mxu0
        %v3889 = vpop.f32.mrb[0].mxu0
        %3890 = vdwg.mxu0
        %v3891 = vpack.c.bf16 %v3886, %v3886
        %3893 = vrot.lane.b32.xlu0 %v3777, 120
        %v3894 = vpop.permute.xlu0 %3893
        %3895 = vrot.lane.b32.xlu0 %v3776, 120
        %v3896 = vpop.permute.xlu0 %3895
        %v3898 = vsel %vm1085, %v3894, 0
        %v3901 = vsel %vm1085, %v3896, 0
        %3903 = vmatprep.subr.bf16.mxu0 0
        %3904 = vmatpush1.bf16.xpose.msra.mxu0 %v3901
        %3905 = vmatprep.subr.bf16.mxu0 0
        %3906 = vmatpush1.bf16.xpose.msra.mxu0 0
        %3907 = vmatprep.subr.bf16.mxu0 0
        %3908 = vmatpush1.bf16.xpose.msra.mxu0 0
        %3909 = vmatprep.subr.bf16.mxu0 0
        %3910 = vmatpush1.bf16.xpose.msra.mxu0 0
        %3911 = vmatprep.subr.bf16.mxu0 0
        %3912 = vmatpush1.bf16.xpose.msra.mxu0 0
        %3913 = vmatprep.subr.bf16.mxu0 0
        %3914 = vmatpush1.bf16.xpose.msra.mxu0 0
        %3915 = vmatprep.subr.bf16.mxu0 0
        %3916 = vmatpush1.bf16.xpose.msra.mxu0 0
        %3917 = vmatprep.subr.bf16.mxu0 0
        %3918 = vmatpush1.bf16.xpose.msra.mxu0 0
        %3919 = vmatprep.subr.bf16.mxu0 0
        %3920 = vmatpush1.bf16.xpose.msra.mxu0 0
        %3921 = vmatprep.subr.bf16.mxu0 0
        %3922 = vmatpush1.bf16.xpose.msra.mxu0 0
        %3923 = vmatprep.subr.bf16.mxu0 0
        %3924 = vmatpush1.bf16.xpose.msra.mxu0 0
        %3925 = vmatprep.subr.bf16.mxu0 0
        %3926 = vmatpush1.bf16.xpose.msra.mxu0 0
        %3927 = vmatprep.subr.bf16.mxu0 0
        %3928 = vmatpush1.bf16.xpose.msra.mxu0 0
        %3929 = vmatprep.subr.bf16.mxu0 0
        %3930 = vmatpush1.bf16.xpose.msra.mxu0 0
        %3931 = vmatprep.subr.bf16.mxu0 0
        %3932 = vmatpush1.bf16.xpose.msra.mxu0 0
        %3933 = vmatprep.subr.bf16.mxu0 0
        %3934 = vmatpush1.bf16.xpose.msra.mxu0 0
        %3935 = vmatprep.mubr.bf16.mxu0 0
        %3936 = vmatmul.mubr.bf16.gmra.mrb[0].mxu0 %v3898
        %v3937 = vpop.f32.mrb[0].mxu0
        %v3938 = vadd.f32 0.0, %v3937
        %v3939 = vpop.f32.mrb[0].mxu0
        %v3940 = vpop.f32.mrb[0].mxu0
        %v3941 = vpop.f32.mrb[0].mxu0
        %3942 = vdwg.mxu0
        %v3943 = vmul.f32 %v3938, 0.35355338
        %v3944 = vsel %vm1085, %v3943, -inf
        %3945 = vmax.xlane.f32.xlu0 %v3944
        %v3946 = vpop.xlane.xlu0 %3945
        %v3947 = vsub.f32 %v3943, %v3946
        %v3948 = vmul.f32 %v3947, 1.442695
        %v3949 = vpow.pop %v3948
        %v3950 = vsel %vm1085, %v3949, 0.0
        %3951 = vadd.xlane.f32.xlu0 %v3950
        %v3952 = vpop.xlane.xlu0 %3951
        %v3953 = vrcp.pop %v3952
        %v3954 = vmul.f32 %v3949, %v3953
        %v3955 = vpack.c.bf16 %v3954, %v3954
        %3956 = vrot.lane.b32.xlu0 %v3776, 88
        %v3957 = vpop.permute.xlu0 %3956
        %v3959 = vsel %vm1085, %v3955, 0
        %v3962 = vsel %vm1089, %v3957, 0
        %3964 = vmatprep.subr.bf16.mxu0 0
        %3965 = vmatpush1.bf16.msra.mxu0 %v3962
        %3966 = vmatprep.subr.bf16.mxu0 0
        %3967 = vmatpush1.bf16.msra.mxu0 0
        %3968 = vmatprep.subr.bf16.mxu0 0
        %3969 = vmatpush1.bf16.msra.mxu0 0
        %3970 = vmatprep.subr.bf16.mxu0 0
        %3971 = vmatpush1.bf16.msra.mxu0 0
        %3972 = vmatprep.subr.bf16.mxu0 0
        %3973 = vmatpush1.bf16.msra.mxu0 0
        %3974 = vmatprep.subr.bf16.mxu0 0
        %3975 = vmatpush1.bf16.msra.mxu0 0
        %3976 = vmatprep.subr.bf16.mxu0 0
        %3977 = vmatpush1.bf16.msra.mxu0 0
        %3978 = vmatprep.subr.bf16.mxu0 0
        %3979 = vmatpush1.bf16.msra.mxu0 0
        %3980 = vmatprep.subr.bf16.mxu0 0
        %3981 = vmatpush1.bf16.msra.mxu0 0
        %3982 = vmatprep.subr.bf16.mxu0 0
        %3983 = vmatpush1.bf16.msra.mxu0 0
        %3984 = vmatprep.subr.bf16.mxu0 0
        %3985 = vmatpush1.bf16.msra.mxu0 0
        %3986 = vmatprep.subr.bf16.mxu0 0
        %3987 = vmatpush1.bf16.msra.mxu0 0
        %3988 = vmatprep.subr.bf16.mxu0 0
        %3989 = vmatpush1.bf16.msra.mxu0 0
        %3990 = vmatprep.subr.bf16.mxu0 0
        %3991 = vmatpush1.bf16.msra.mxu0 0
        %3992 = vmatprep.subr.bf16.mxu0 0
        %3993 = vmatpush1.bf16.msra.mxu0 0
        %3994 = vmatprep.subr.bf16.mxu0 0
        %3995 = vmatpush1.bf16.msra.mxu0 0
        %3996 = vmatprep.mubr.bf16.mxu0 0
        %3997 = vmatmul.mubr.bf16.gmra.mrb[0].mxu0 %v3959
        %v3998 = vpop.f32.mrb[0].mxu0
        %v3999 = vadd.f32 0.0, %v3998
        %v4000 = vpop.f32.mrb[0].mxu0
        %v4001 = vpop.f32.mrb[0].mxu0
        %v4002 = vpop.f32.mrb[0].mxu0
        %4003 = vdwg.mxu0
        %v4004 = vpack.c.bf16 %v3999, %v3999
        %v4006 = vsel %vm1085, %v4004, 0
        %v4009 = vsel %vm1089, %v3780, 0
        %4011 = vmatprep.subr.bf16.mxu0 0
        %4012 = vmatpush1.bf16.msra.mxu0 %v4009
        %4013 = vmatprep.subr.bf16.mxu0 0
        %4014 = vmatpush1.bf16.msra.mxu0 0
        %4015 = vmatprep.subr.bf16.mxu0 0
        %4016 = vmatpush1.bf16.msra.mxu0 0
        %4017 = vmatprep.subr.bf16.mxu0 0
        %4018 = vmatpush1.bf16.msra.mxu0 0
        %4019 = vmatprep.subr.bf16.mxu0 0
        %4020 = vmatpush1.bf16.msra.mxu0 0
        %4021 = vmatprep.subr.bf16.mxu0 0
        %4022 = vmatpush1.bf16.msra.mxu0 0
        %4023 = vmatprep.subr.bf16.mxu0 0
        %4024 = vmatpush1.bf16.msra.mxu0 0
        %4025 = vmatprep.subr.bf16.mxu0 0
        %4026 = vmatpush1.bf16.msra.mxu0 0
        %4027 = vmatprep.subr.bf16.mxu0 0
        %4028 = vmatpush1.bf16.msra.mxu0 0
        %4029 = vmatprep.subr.bf16.mxu0 0
        %4030 = vmatpush1.bf16.msra.mxu0 0
        %4031 = vmatprep.subr.bf16.mxu0 0
        %4032 = vmatpush1.bf16.msra.mxu0 0
        %4033 = vmatprep.subr.bf16.mxu0 0
        %4034 = vmatpush1.bf16.msra.mxu0 0
        %4035 = vmatprep.subr.bf16.mxu0 0
        %4036 = vmatpush1.bf16.msra.mxu0 0
        %4037 = vmatprep.subr.bf16.mxu0 0
        %4038 = vmatpush1.bf16.msra.mxu0 0
        %4039 = vmatprep.subr.bf16.mxu0 0
        %4040 = vmatpush1.bf16.msra.mxu0 0
        %4041 = vmatprep.subr.bf16.mxu0 0
        %4042 = vmatpush1.bf16.msra.mxu0 0
        %4043 = vmatprep.mubr.bf16.mxu0 0
        %4044 = vmatmul.mubr.bf16.gmra.mrb[0].mxu0 %v4006
        %v4045 = vpop.f32.mrb[0].mxu0
        %v4046 = vadd.f32 0.0, %v4045
        %v4047 = vpop.f32.mrb[0].mxu0
        %v4048 = vpop.f32.mrb[0].mxu0
        %v4049 = vpop.f32.mrb[0].mxu0
        %4050 = vdwg.mxu0
        %v4052 = vsel %vm1085, %v3891, 0
        %v4055 = vsel %vm1089, %v3779, 0
        %4057 = vmatprep.subr.bf16.mxu0 0
        %4058 = vmatpush1.bf16.msra.mxu0 %v4055
        %4059 = vmatprep.subr.bf16.mxu0 0
        %4060 = vmatpush1.bf16.msra.mxu0 0
        %4061 = vmatprep.subr.bf16.mxu0 0
        %4062 = vmatpush1.bf16.msra.mxu0 0
        %4063 = vmatprep.subr.bf16.mxu0 0
        %4064 = vmatpush1.bf16.msra.mxu0 0
        %4065 = vmatprep.subr.bf16.mxu0 0
        %4066 = vmatpush1.bf16.msra.mxu0 0
        %4067 = vmatprep.subr.bf16.mxu0 0
        %4068 = vmatpush1.bf16.msra.mxu0 0
        %4069 = vmatprep.subr.bf16.mxu0 0
        %4070 = vmatpush1.bf16.msra.mxu0 0
        %4071 = vmatprep.subr.bf16.mxu0 0
        %4072 = vmatpush1.bf16.msra.mxu0 0
        %4073 = vmatprep.subr.bf16.mxu0 0
        %4074 = vmatpush1.bf16.msra.mxu0 0
        %4075 = vmatprep.subr.bf16.mxu0 0
        %4076 = vmatpush1.bf16.msra.mxu0 0
        %4077 = vmatprep.subr.bf16.mxu0 0
        %4078 = vmatpush1.bf16.msra.mxu0 0
        %4079 = vmatprep.subr.bf16.mxu0 0
        %4080 = vmatpush1.bf16.msra.mxu0 0
        %4081 = vmatprep.subr.bf16.mxu0 0
        %4082 = vmatpush1.bf16.msra.mxu0 0
        %4083 = vmatprep.subr.bf16.mxu0 0
        %4084 = vmatpush1.bf16.msra.mxu0 0
        %4085 = vmatprep.subr.bf16.mxu0 0
        %4086 = vmatpush1.bf16.msra.mxu0 0
        %4087 = vmatprep.subr.bf16.mxu0 0
        %4088 = vmatpush1.bf16.msra.mxu0 0
        %4089 = vmatprep.mubr.bf16.mxu0 0
        %4090 = vmatmul.mubr.bf16.gmra.mrb[0].mxu0 %v4052
        %v4091 = vpop.f32.mrb[0].mxu0
        %v4092 = vadd.f32 %v4046, %v4091
        %v4093 = vpop.f32.mrb[0].mxu0
        %v4094 = vpop.f32.mrb[0].mxu0
        %v4095 = vpop.f32.mrb[0].mxu0
        %4096 = vdwg.mxu0
        %4097 = vrot.lane.b32.xlu0 %v3777, 112
        %v4098 = vpop.permute.xlu0 %4097
        %4099 = vrot.lane.b32.xlu0 %v3776, 112
        %v4100 = vpop.permute.xlu0 %4099
        %v4102 = vsel %vm1085, %v4098, 0
        %v4105 = vsel %vm1085, %v4100, 0
        %4107 = vmatprep.subr.bf16.mxu0 0
        %4108 = vmatpush1.bf16.xpose.msra.mxu0 %v4105
        %4109 = vmatprep.subr.bf16.mxu0 0
        %4110 = vmatpush1.bf16.xpose.msra.mxu0 0
        %4111 = vmatprep.subr.bf16.mxu0 0
        %4112 = vmatpush1.bf16.xpose.msra.mxu0 0
        %4113 = vmatprep.subr.bf16.mxu0 0
        %4114 = vmatpush1.bf16.xpose.msra.mxu0 0
        %4115 = vmatprep.subr.bf16.mxu0 0
        %4116 = vmatpush1.bf16.xpose.msra.mxu0 0
        %4117 = vmatprep.subr.bf16.mxu0 0
        %4118 = vmatpush1.bf16.xpose.msra.mxu0 0
        %4119 = vmatprep.subr.bf16.mxu0 0
        %4120 = vmatpush1.bf16.xpose.msra.mxu0 0
        %4121 = vmatprep.subr.bf16.mxu0 0
        %4122 = vmatpush1.bf16.xpose.msra.mxu0 0
        %4123 = vmatprep.subr.bf16.mxu0 0
        %4124 = vmatpush1.bf16.xpose.msra.mxu0 0
        %4125 = vmatprep.subr.bf16.mxu0 0
        %4126 = vmatpush1.bf16.xpose.msra.mxu0 0
        %4127 = vmatprep.subr.bf16.mxu0 0
        %4128 = vmatpush1.bf16.xpose.msra.mxu0 0
        %4129 = vmatprep.subr.bf16.mxu0 0
        %4130 = vmatpush1.bf16.xpose.msra.mxu0 0
        %4131 = vmatprep.subr.bf16.mxu0 0
        %4132 = vmatpush1.bf16.xpose.msra.mxu0 0
        %4133 = vmatprep.subr.bf16.mxu0 0
        %4134 = vmatpush1.bf16.xpose.msra.mxu0 0
        %4135 = vmatprep.subr.bf16.mxu0 0
        %4136 = vmatpush1.bf16.xpose.msra.mxu0 0
        %4137 = vmatprep.subr.bf16.mxu0 0
        %4138 = vmatpush1.bf16.xpose.msra.mxu0 0
        %4139 = vmatprep.mubr.bf16.mxu0 0
        %4140 = vmatmul.mubr.bf16.gmra.mrb[0].mxu0 %v4102
        %v4141 = vpop.f32.mrb[0].mxu0
        %v4142 = vadd.f32 0.0, %v4141
        %v4143 = vpop.f32.mrb[0].mxu0
        %v4144 = vpop.f32.mrb[0].mxu0
        %v4145 = vpop.f32.mrb[0].mxu0
        %4146 = vdwg.mxu0
        %v4147 = vmul.f32 %v4142, 0.35355338
        %v4148 = vsel %vm1085, %v4147, -inf
        %4149 = vmax.xlane.f32.xlu0 %v4148
        %v4150 = vpop.xlane.xlu0 %4149
        %v4151 = vsub.f32 %v4147, %v4150
        %v4152 = vmul.f32 %v4151, 1.442695
        %v4153 = vpow.pop %v4152
        %v4154 = vsel %vm1085, %v4153, 0.0
        %4155 = vadd.xlane.f32.xlu0 %v4154
        %v4156 = vpop.xlane.xlu0 %4155
        %v4157 = vrcp.pop %v4156
        %v4158 = vmul.f32 %v4153, %v4157
        %v4159 = vpack.c.bf16 %v4158, %v4158
        %4160 = vrot.lane.b32.xlu0 %v3776, 80
        %v4161 = vpop.permute.xlu0 %4160
        %v4163 = vsel %vm1085, %v4159, 0
        %v4166 = vsel %vm1089, %v4161, 0
        %4168 = vmatprep.subr.bf16.mxu0 0
        %4169 = vmatpush1.bf16.msra.mxu0 %v4166
        %4170 = vmatprep.subr.bf16.mxu0 0
        %4171 = vmatpush1.bf16.msra.mxu0 0
        %4172 = vmatprep.subr.bf16.mxu0 0
        %4173 = vmatpush1.bf16.msra.mxu0 0
        %4174 = vmatprep.subr.bf16.mxu0 0
        %4175 = vmatpush1.bf16.msra.mxu0 0
        %4176 = vmatprep.subr.bf16.mxu0 0
        %4177 = vmatpush1.bf16.msra.mxu0 0
        %4178 = vmatprep.subr.bf16.mxu0 0
        %4179 = vmatpush1.bf16.msra.mxu0 0
        %4180 = vmatprep.subr.bf16.mxu0 0
        %4181 = vmatpush1.bf16.msra.mxu0 0
        %4182 = vmatprep.subr.bf16.mxu0 0
        %4183 = vmatpush1.bf16.msra.mxu0 0
        %4184 = vmatprep.subr.bf16.mxu0 0
        %4185 = vmatpush1.bf16.msra.mxu0 0
        %4186 = vmatprep.subr.bf16.mxu0 0
        %4187 = vmatpush1.bf16.msra.mxu0 0
        %4188 = vmatprep.subr.bf16.mxu0 0
        %4189 = vmatpush1.bf16.msra.mxu0 0
        %4190 = vmatprep.subr.bf16.mxu0 0
        %4191 = vmatpush1.bf16.msra.mxu0 0
        %4192 = vmatprep.subr.bf16.mxu0 0
        %4193 = vmatpush1.bf16.msra.mxu0 0
        %4194 = vmatprep.subr.bf16.mxu0 0
        %4195 = vmatpush1.bf16.msra.mxu0 0
        %4196 = vmatprep.subr.bf16.mxu0 0
        %4197 = vmatpush1.bf16.msra.mxu0 0
        %4198 = vmatprep.subr.bf16.mxu0 0
        %4199 = vmatpush1.bf16.msra.mxu0 0
        %4200 = vmatprep.mubr.bf16.mxu0 0
        %4201 = vmatmul.mubr.bf16.gmra.mrb[0].mxu0 %v4163
        %v4202 = vpop.f32.mrb[0].mxu0
        %v4203 = vadd.f32 0.0, %v4202
        %v4204 = vpop.f32.mrb[0].mxu0
        %v4205 = vpop.f32.mrb[0].mxu0
        %v4206 = vpop.f32.mrb[0].mxu0
        %4207 = vdwg.mxu0
        %v4208 = vpack.c.bf16 %v4203, %v4203
        %v4210 = vsel %vm1085, %v4208, 0
        %v4213 = vsel %vm1089, %v3781, 0
        %4215 = vmatprep.subr.bf16.mxu0 0
        %4216 = vmatpush1.bf16.msra.mxu0 %v4213
        %4217 = vmatprep.subr.bf16.mxu0 0
        %4218 = vmatpush1.bf16.msra.mxu0 0
        %4219 = vmatprep.subr.bf16.mxu0 0
        %4220 = vmatpush1.bf16.msra.mxu0 0
        %4221 = vmatprep.subr.bf16.mxu0 0
        %4222 = vmatpush1.bf16.msra.mxu0 0
        %4223 = vmatprep.subr.bf16.mxu0 0
        %4224 = vmatpush1.bf16.msra.mxu0 0
        %4225 = vmatprep.subr.bf16.mxu0 0
        %4226 = vmatpush1.bf16.msra.mxu0 0
        %4227 = vmatprep.subr.bf16.mxu0 0
        %4228 = vmatpush1.bf16.msra.mxu0 0
        %4229 = vmatprep.subr.bf16.mxu0 0
        %4230 = vmatpush1.bf16.msra.mxu0 0
        %4231 = vmatprep.subr.bf16.mxu0 0
        %4232 = vmatpush1.bf16.msra.mxu0 0
        %4233 = vmatprep.subr.bf16.mxu0 0
        %4234 = vmatpush1.bf16.msra.mxu0 0
        %4235 = vmatprep.subr.bf16.mxu0 0
        %4236 = vmatpush1.bf16.msra.mxu0 0
        %4237 = vmatprep.subr.bf16.mxu0 0
        %4238 = vmatpush1.bf16.msra.mxu0 0
        %4239 = vmatprep.subr.bf16.mxu0 0
        %4240 = vmatpush1.bf16.msra.mxu0 0
        %4241 = vmatprep.subr.bf16.mxu0 0
        %4242 = vmatpush1.bf16.msra.mxu0 0
        %4243 = vmatprep.subr.bf16.mxu0 0
        %4244 = vmatpush1.bf16.msra.mxu0 0
        %4245 = vmatprep.subr.bf16.mxu0 0
        %4246 = vmatpush1.bf16.msra.mxu0 0
        %4247 = vmatprep.mubr.bf16.mxu0 0
        %4248 = vmatmul.mubr.bf16.gmra.mrb[0].mxu0 %v4210
        %v4249 = vpop.f32.mrb[0].mxu0
        %v4250 = vadd.f32 0.0, %v4249
        %v4251 = vpop.f32.mrb[0].mxu0
        %v4252 = vpop.f32.mrb[0].mxu0
        %v4253 = vpop.f32.mrb[0].mxu0
        %4254 = vdwg.mxu0
        %v4255 = vadd.f32 %v4092, %v4250
        %4256 = vrot.lane.b32.xlu0 %v3777, 104
        %v4257 = vpop.permute.xlu0 %4256
        %4258 = vrot.lane.b32.xlu0 %v3776, 104
        %v4259 = vpop.permute.xlu0 %4258
        %v4261 = vsel %vm1085, %v4257, 0
        %v4264 = vsel %vm1085, %v4259, 0
        %4266 = vmatprep.subr.bf16.mxu0 0
        %4267 = vmatpush1.bf16.xpose.msra.mxu0 %v4264
        %4268 = vmatprep.subr.bf16.mxu0 0
        %4269 = vmatpush1.bf16.xpose.msra.mxu0 0
        %4270 = vmatprep.subr.bf16.mxu0 0
        %4271 = vmatpush1.bf16.xpose.msra.mxu0 0
        %4272 = vmatprep.subr.bf16.mxu0 0
        %4273 = vmatpush1.bf16.xpose.msra.mxu0 0
        %4274 = vmatprep.subr.bf16.mxu0 0
        %4275 = vmatpush1.bf16.xpose.msra.mxu0 0
        %4276 = vmatprep.subr.bf16.mxu0 0
        %4277 = vmatpush1.bf16.xpose.msra.mxu0 0
        %4278 = vmatprep.subr.bf16.mxu0 0
        %4279 = vmatpush1.bf16.xpose.msra.mxu0 0
        %4280 = vmatprep.subr.bf16.mxu0 0
        %4281 = vmatpush1.bf16.xpose.msra.mxu0 0
        %4282 = vmatprep.subr.bf16.mxu0 0
        %4283 = vmatpush1.bf16.xpose.msra.mxu0 0
        %4284 = vmatprep.subr.bf16.mxu0 0
        %4285 = vmatpush1.bf16.xpose.msra.mxu0 0
        %4286 = vmatprep.subr.bf16.mxu0 0
        %4287 = vmatpush1.bf16.xpose.msra.mxu0 0
        %4288 = vmatprep.subr.bf16.mxu0 0
        %4289 = vmatpush1.bf16.xpose.msra.mxu0 0
        %4290 = vmatprep.subr.bf16.mxu0 0
        %4291 = vmatpush1.bf16.xpose.msra.mxu0 0
        %4292 = vmatprep.subr.bf16.mxu0 0
        %4293 = vmatpush1.bf16.xpose.msra.mxu0 0
        %4294 = vmatprep.subr.bf16.mxu0 0
        %4295 = vmatpush1.bf16.xpose.msra.mxu0 0
        %4296 = vmatprep.subr.bf16.mxu0 0
        %4297 = vmatpush1.bf16.xpose.msra.mxu0 0
        %4298 = vmatprep.mubr.bf16.mxu0 0
        %4299 = vmatmul.mubr.bf16.gmra.mrb[0].mxu0 %v4261
        %v4300 = vpop.f32.mrb[0].mxu0
        %v4301 = vadd.f32 0.0, %v4300
        %v4302 = vpop.f32.mrb[0].mxu0
        %v4303 = vpop.f32.mrb[0].mxu0
        %v4304 = vpop.f32.mrb[0].mxu0
        %4305 = vdwg.mxu0
        %v4306 = vmul.f32 %v4301, 0.35355338
        %v4307 = vsel %vm1085, %v4306, -inf
        %4308 = vmax.xlane.f32.xlu0 %v4307
        %v4309 = vpop.xlane.xlu0 %4308
        %v4310 = vsub.f32 %v4306, %v4309
        %v4311 = vmul.f32 %v4310, 1.442695
        %v4312 = vpow.pop %v4311
        %v4313 = vsel %vm1085, %v4312, 0.0
        %4314 = vadd.xlane.f32.xlu0 %v4313
        %v4315 = vpop.xlane.xlu0 %4314
        %v4316 = vrcp.pop %v4315
        %v4317 = vmul.f32 %v4312, %v4316
        %v4318 = vpack.c.bf16 %v4317, %v4317
        %4319 = vrot.lane.b32.xlu0 %v3776, 72
        %v4320 = vpop.permute.xlu0 %4319
        %v4322 = vsel %vm1085, %v4318, 0
        %v4325 = vsel %vm1089, %v4320, 0
        %4327 = vmatprep.subr.bf16.mxu0 0
        %4328 = vmatpush1.bf16.msra.mxu0 %v4325
        %4329 = vmatprep.subr.bf16.mxu0 0
        %4330 = vmatpush1.bf16.msra.mxu0 0
        %4331 = vmatprep.subr.bf16.mxu0 0
        %4332 = vmatpush1.bf16.msra.mxu0 0
        %4333 = vmatprep.subr.bf16.mxu0 0
        %4334 = vmatpush1.bf16.msra.mxu0 0
        %4335 = vmatprep.subr.bf16.mxu0 0
        %4336 = vmatpush1.bf16.msra.mxu0 0
        %4337 = vmatprep.subr.bf16.mxu0 0
        %4338 = vmatpush1.bf16.msra.mxu0 0
        %4339 = vmatprep.subr.bf16.mxu0 0
        %4340 = vmatpush1.bf16.msra.mxu0 0
        %4341 = vmatprep.subr.bf16.mxu0 0
        %4342 = vmatpush1.bf16.msra.mxu0 0
        %4343 = vmatprep.subr.bf16.mxu0 0
        %4344 = vmatpush1.bf16.msra.mxu0 0
        %4345 = vmatprep.subr.bf16.mxu0 0
        %4346 = vmatpush1.bf16.msra.mxu0 0
        %4347 = vmatprep.subr.bf16.mxu0 0
        %4348 = vmatpush1.bf16.msra.mxu0 0
        %4349 = vmatprep.subr.bf16.mxu0 0
        %4350 = vmatpush1.bf16.msra.mxu0 0
        %4351 = vmatprep.subr.bf16.mxu0 0
        %4352 = vmatpush1.bf16.msra.mxu0 0
        %4353 = vmatprep.subr.bf16.mxu0 0
        %4354 = vmatpush1.bf16.msra.mxu0 0
        %4355 = vmatprep.subr.bf16.mxu0 0
        %4356 = vmatpush1.bf16.msra.mxu0 0
        %4357 = vmatprep.subr.bf16.mxu0 0
        %4358 = vmatpush1.bf16.msra.mxu0 0
        %4359 = vmatprep.mubr.bf16.mxu0 0
        %4360 = vmatmul.mubr.bf16.gmra.mrb[0].mxu0 %v4322
        %v4361 = vpop.f32.mrb[0].mxu0
        %v4362 = vadd.f32 0.0, %v4361
        %v4363 = vpop.f32.mrb[0].mxu0
        %v4364 = vpop.f32.mrb[0].mxu0
        %v4365 = vpop.f32.mrb[0].mxu0
        %4366 = vdwg.mxu0
        %v4367 = vpack.c.bf16 %v4362, %v4362
        %v4369 = vsel %vm1085, %v4367, 0
        %v4372 = vsel %vm1089, %v3782, 0
        %4374 = vmatprep.subr.bf16.mxu0 0
        %4375 = vmatpush1.bf16.msra.mxu0 %v4372
        %4376 = vmatprep.subr.bf16.mxu0 0
        %4377 = vmatpush1.bf16.msra.mxu0 0
        %4378 = vmatprep.subr.bf16.mxu0 0
        %4379 = vmatpush1.bf16.msra.mxu0 0
        %4380 = vmatprep.subr.bf16.mxu0 0
        %4381 = vmatpush1.bf16.msra.mxu0 0
        %4382 = vmatprep.subr.bf16.mxu0 0
        %4383 = vmatpush1.bf16.msra.mxu0 0
        %4384 = vmatprep.subr.bf16.mxu0 0
        %4385 = vmatpush1.bf16.msra.mxu0 0
        %4386 = vmatprep.subr.bf16.mxu0 0
        %4387 = vmatpush1.bf16.msra.mxu0 0
        %4388 = vmatprep.subr.bf16.mxu0 0
        %4389 = vmatpush1.bf16.msra.mxu0 0
        %4390 = vmatprep.subr.bf16.mxu0 0
        %4391 = vmatpush1.bf16.msra.mxu0 0
        %4392 = vmatprep.subr.bf16.mxu0 0
        %4393 = vmatpush1.bf16.msra.mxu0 0
        %4394 = vmatprep.subr.bf16.mxu0 0
        %4395 = vmatpush1.bf16.msra.mxu0 0
        %4396 = vmatprep.subr.bf16.mxu0 0
        %4397 = vmatpush1.bf16.msra.mxu0 0
        %4398 = vmatprep.subr.bf16.mxu0 0
        %4399 = vmatpush1.bf16.msra.mxu0 0
        %4400 = vmatprep.subr.bf16.mxu0 0
        %4401 = vmatpush1.bf16.msra.mxu0 0
        %4402 = vmatprep.subr.bf16.mxu0 0
        %4403 = vmatpush1.bf16.msra.mxu0 0
        %4404 = vmatprep.subr.bf16.mxu0 0
        %4405 = vmatpush1.bf16.msra.mxu0 0
        %4406 = vmatprep.mubr.bf16.mxu0 0
        %4407 = vmatmul.mubr.bf16.gmra.mrb[0].mxu0 %v4369
        %v4408 = vpop.f32.mrb[0].mxu0
        %v4409 = vadd.f32 0.0, %v4408
        %v4410 = vpop.f32.mrb[0].mxu0
        %v4411 = vpop.f32.mrb[0].mxu0
        %v4412 = vpop.f32.mrb[0].mxu0
        %4413 = vdwg.mxu0
        %v4414 = vadd.f32 %v4255, %v4409
        %v4415 = vadd.f32 %v3641, %v4414
        %s4416 = scalar_lea.vmem [#allocation22], 1
        %v4417 = vld [vmem:[%s4416] sm:$0x1]
        %v4419 = vlaneseq
        %v4420 = vshrl.u32 %v4419, 7
        %v4421 = vsub.s32 0, %v4420
        %v4422 = vrot.slane %v4417, %v4421
        %v4424 = vadd.f32 %v4415, %v4422
        %s4425 = scalar_lea.vmem [#allocation23], 1
        %v4426 = vld [vmem:[%s4425] sm:$0x1]
        %s4427 = scalar_lea.vmem %s18, 1
        %v4428 = vld [vmem:[%s4427] sm:$0x1]
        %v4429 = vsel %vm1173, %v4424, 0.0
        %4430 = vadd.xlane.f32.xlu0 %v4429
        %v4431 = vpop.xlane.xlu0 %4430
        %v4432 = vmul.f32 %v4431, %v1873
        %v4433 = vsub.f32 %v4424, %v4432
        %v4434 = vmul.f32 %v4433, %v4433
        %v4435 = vsel %vm1173, %v4434, 0.0
        %4436 = vadd.xlane.f32.xlu0 %v4435
        %v4437 = vpop.xlane.xlu0 %4436
        %v4438 = vmul.f32 %v4437, %v1873
        %v4439 = vadd.f32 %v4438, 1e-05
        %v4440 = vrsqrt.pop %v4439
        %v4441 = vmul.f32 %v4433, %v4440
        %v4443 = vlaneseq
        %v4444 = vshrl.u32 %v4443, 7
        %v4445 = vsub.s32 0, %v4444
        %v4446 = vrot.slane %v4426, %v4445
        %v4448 = vmul.f32 %v4441, %v4446
        %v4450 = vlaneseq
        %v4451 = vshrl.u32 %v4450, 7
        %v4452 = vsub.s32 0, %v4451
        %v4453 = vrot.slane %v4428, %v4452
        %v4455 = vadd.f32 %v4448, %v4453
        %v4456 = vpack.c.bf16 %v4455, %v4455
        %s4457 = scalar_lea.vmem [#allocation25], 16
        %v4458 = vld [vmem:[%s4457] sm:$0xf]
        %v4459 = vld [vmem:[%s4457 + $0x4] sm:$0xf]
        %v4460 = vld [vmem:[%s4457 + $0x8] sm:$0xf]
        %v4461 = vld [vmem:[%s4457 + $0xc] sm:$0xf]
        %s4462 = scalar_lea.vmem [#allocation26], 1
        %v4463 = vld [vmem:[%s4462] sm:$0x1]
        %v4465 = vlaneseq
        %v4466 = vshrl.u32 %v4465, 7
        %v4467 = vsub.s32 0, %v4466
        %v4468 = vrot.slane %v4463, %v4467
        %v4474 = vunpack.c.l.b16 %v4458
        %v4475 = vunpack.c.l.b16 %v4459
        %v4476 = vunpack.c.l.b16 %v4460
        %v4477 = vunpack.c.l.b16 %v4461
        %v4478 = vpack.c.b16 %v4475, %v4474
        %v4479 = vpack.c.b16 %v4477, %v4476
        %v4483 = vsel %vm1173, %v4456, 0
        %4485 = vmatprep.subr.bf16.mxu0 0
        %4486 = vmatpush1.bf16.msra.mxu0 %v4478
        %4487 = vmatprep.subr.bf16.mxu0 0
        %4488 = vmatpush1.bf16.msra.mxu0 %v4479
        %4489 = vmatprep.subr.bf16.mxu0 0
        %4490 = vmatpush1.bf16.msra.mxu0 0
        %4491 = vmatprep.subr.bf16.mxu0 0
        %4492 = vmatpush1.bf16.msra.mxu0 0
        %4493 = vmatprep.subr.bf16.mxu0 0
        %4494 = vmatpush1.bf16.msra.mxu0 0
        %4495 = vmatprep.subr.bf16.mxu0 0
        %4496 = vmatpush1.bf16.msra.mxu0 0
        %4497 = vmatprep.subr.bf16.mxu0 0
        %4498 = vmatpush1.bf16.msra.mxu0 0
        %4499 = vmatprep.subr.bf16.mxu0 0
        %4500 = vmatpush1.bf16.msra.mxu0 0
        %4501 = vmatprep.subr.bf16.mxu0 0
        %4502 = vmatpush1.bf16.msra.mxu0 0
        %4503 = vmatprep.subr.bf16.mxu0 0
        %4504 = vmatpush1.bf16.msra.mxu0 0
        %4505 = vmatprep.subr.bf16.mxu0 0
        %4506 = vmatpush1.bf16.msra.mxu0 0
        %4507 = vmatprep.subr.bf16.mxu0 0
        %4508 = vmatpush1.bf16.msra.mxu0 0
        %4509 = vmatprep.subr.bf16.mxu0 0
        %4510 = vmatpush1.bf16.msra.mxu0 0
        %4511 = vmatprep.subr.bf16.mxu0 0
        %4512 = vmatpush1.bf16.msra.mxu0 0
        %4513 = vmatprep.subr.bf16.mxu0 0
        %4514 = vmatpush1.bf16.msra.mxu0 0
        %4515 = vmatprep.subr.bf16.mxu0 0
        %4516 = vmatpush1.bf16.msra.mxu0 0
        %4517 = vmatprep.mubr.bf16.mxu0 0
        %4518 = vmatmul.mubr.bf16.gmra.mrb[0].mxu0 %v4483
        %v4519 = vpop.f32.mrb[0].mxu0
        %v4520 = vadd.f32 %v4468, %v4519
        %v4521 = vpop.f32.mrb[0].mxu0
        %v4522 = vpop.f32.mrb[0].mxu0
        %v4523 = vpop.f32.mrb[0].mxu0
        %4524 = vdwg.mxu0
        %v4525 = vmax.f32 %v4520, 0.0
        %v4526 = vpack.c.bf16 %v4525, %v4525
        %s4527 = scalar_lea.vmem %s21, 32
        %v4528 = vld [vmem:[%s4527] sm:$0xf]
        %v4529 = vld [vmem:[%s4527 + $0x4] sm:$0xf]
        %v4530 = vld [vmem:[%s4527 + $0x8] sm:$0xf]
        %v4531 = vld [vmem:[%s4527 + $0xc] sm:$0xf]
        %v4532 = vld [vmem:[%s4527 + $0x10] sm:$0xf]
        %v4533 = vld [vmem:[%s4527 + $0x14] sm:$0xf]
        %v4534 = vld [vmem:[%s4527 + $0x18] sm:$0xf]
        %v4535 = vld [vmem:[%s4527 + $0x1c] sm:$0xf]
        %s4536 = scalar_lea.vmem [#allocation28], 1
        %v4537 = vld [vmem:[%s4536] sm:$0x1]
        %v4539 = vlaneseq
        %v4540 = vshrl.u32 %v4539, 7
        %v4541 = vsub.s32 0, %v4540
        %v4542 = vrot.slane %v4537, %v4541
        %v4552 = vunpack.c.l.b16 %v4528
        %v4553 = vunpack.c.l.b16 %v4529
        %v4554 = vunpack.c.l.b16 %v4530
        %v4555 = vunpack.c.l.b16 %v4531
        %v4556 = vunpack.c.l.b16 %v4532
        %v4557 = vunpack.c.l.b16 %v4533
        %v4558 = vunpack.c.l.b16 %v4534
        %v4559 = vunpack.c.l.b16 %v4535
        %v4560 = vpack.c.b16 %v4553, %v4552
        %v4561 = vpack.c.b16 %v4555, %v4554
        %v4562 = vpack.c.b16 %v4557, %v4556
        %v4563 = vpack.c.b16 %v4559, %v4558
        %v4569 = vsel %vm2815, %v4526, 0
        %4571 = vmatprep.subr.bf16.mxu0 0
        %4572 = vmatpush1.bf16.msra.mxu0 %v4560
        %4573 = vmatprep.subr.bf16.mxu0 0
        %4574 = vmatpush1.bf16.msra.mxu0 %v4561
        %4575 = vmatprep.subr.bf16.mxu0 0
        %4576 = vmatpush1.bf16.msra.mxu0 %v4562
        %4577 = vmatprep.subr.bf16.mxu0 0
        %4578 = vmatpush1.bf16.msra.mxu0 %v4563
        %4579 = vmatprep.subr.bf16.mxu0 0
        %4580 = vmatpush1.bf16.msra.mxu0 0
        %4581 = vmatprep.subr.bf16.mxu0 0
        %4582 = vmatpush1.bf16.msra.mxu0 0
        %4583 = vmatprep.subr.bf16.mxu0 0
        %4584 = vmatpush1.bf16.msra.mxu0 0
        %4585 = vmatprep.subr.bf16.mxu0 0
        %4586 = vmatpush1.bf16.msra.mxu0 0
        %4587 = vmatprep.subr.bf16.mxu0 0
        %4588 = vmatpush1.bf16.msra.mxu0 0
        %4589 = vmatprep.subr.bf16.mxu0 0
        %4590 = vmatpush1.bf16.msra.mxu0 0
        %4591 = vmatprep.subr.bf16.mxu0 0
        %4592 = vmatpush1.bf16.msra.mxu0 0
        %4593 = vmatprep.subr.bf16.mxu0 0
        %4594 = vmatpush1.bf16.msra.mxu0 0
        %4595 = vmatprep.subr.bf16.mxu0 0
        %4596 = vmatpush1.bf16.msra.mxu0 0
        %4597 = vmatprep.subr.bf16.mxu0 0
        %4598 = vmatpush1.bf16.msra.mxu0 0
        %4599 = vmatprep.subr.bf16.mxu0 0
        %4600 = vmatpush1.bf16.msra.mxu0 0
        %4601 = vmatprep.subr.bf16.mxu0 0
        %4602 = vmatpush1.bf16.msra.mxu0 0
        %4603 = vmatprep.mubr.bf16.mxu0 0
        %4604 = vmatmul.mubr.bf16.gmra.mrb[0].mxu0 %v4569
        %v4605 = vpop.f32.mrb[0].mxu0
        %v4606 = vadd.f32 %v4542, %v4605
        %v4607 = vpop.f32.mrb[0].mxu0
        %v4608 = vpop.f32.mrb[0].mxu0
        %v4609 = vpop.f32.mrb[0].mxu0
        %4610 = vdwg.mxu0
        %v4611 = vadd.f32 %v4455, %v4606
        %s4612 = scalar_lea.vmem %s23, 1
        %v4613 = vld [vmem:[%s4612] sm:$0x1]
        %s4614 = scalar_lea.vmem %s24, 1
        %v4615 = vld [vmem:[%s4614] sm:$0x1]
        %v4616 = vsel %vm1173, %v4611, 0.0
        %4617 = vadd.xlane.f32.xlu0 %v4616
        %v4618 = vpop.xlane.xlu0 %4617
        %v4619 = vmul.f32 %v4618, %v1873
        %v4620 = vsub.f32 %v4611, %v4619
        %v4621 = vmul.f32 %v4620, %v4620
        %v4622 = vsel %vm1173, %v4621, 0.0
        %4623 = vadd.xlane.f32.xlu0 %v4622
        %v4624 = vpop.xlane.xlu0 %4623
        %v4625 = vmul.f32 %v4624, %v1873
        %v4626 = vadd.f32 %v4625, 1e-05
        %v4627 = vrsqrt.pop %v4626
        %v4628 = vmul.f32 %v4620, %v4627
        %v4630 = vlaneseq
        %v4631 = vshrl.u32 %v4630, 7
        %v4632 = vsub.s32 0, %v4631
        %v4633 = vrot.slane %v4613, %v4632
        %v4635 = vmul.f32 %v4628, %v4633
        %v4637 = vlaneseq
        %v4638 = vshrl.u32 %v4637, 7
        %v4639 = vsub.s32 0, %v4638
        %v4640 = vrot.slane %v4615, %v4639
        %v4642 = vadd.f32 %v4635, %v4640
        %v4643 = vpack.c.bf16 %v4642, %v4642
        %v4644 = vld [vmem:[%s25] sm:$0xf]
        %v4645 = vld [vmem:[%s25 + $0x4] sm:$0xf]
        %v4646 = vld [vmem:[%s25 + $0x8] sm:$0xf]
        %v4647 = vld [vmem:[%s25 + $0xc] sm:$0xf]
        %v4652 = vunpack.c.l.b16 %v4644
        %v4653 = vunpack.c.l.b16 %v4645
        %v4654 = vunpack.c.l.b16 %v4646
        %v4655 = vunpack.c.l.b16 %v4647
        %v4656 = vpack.c.b16 %v4653, %v4652
        %v4657 = vpack.c.b16 %v4655, %v4654
        %v4661 = vsel %vm1173, %v4643, 0
        %4663 = vmatprep.subr.bf16.mxu0 0
        %4664 = vmatpush1.bf16.msra.mxu0 %v4656
        %4665 = vmatprep.subr.bf16.mxu0 0
        %4666 = vmatpush1.bf16.msra.mxu0 %v4657
        %4667 = vmatprep.subr.bf16.mxu0 0
        %4668 = vmatpush1.bf16.msra.mxu0 0
        %4669 = vmatprep.subr.bf16.mxu0 0
        %4670 = vmatpush1.bf16.msra.mxu0 0
        %4671 = vmatprep.subr.bf16.mxu0 0
        %4672 = vmatpush1.bf16.msra.mxu0 0
        %4673 = vmatprep.subr.bf16.mxu0 0
        %4674 = vmatpush1.bf16.msra.mxu0 0
        %4675 = vmatprep.subr.bf16.mxu0 0
        %4676 = vmatpush1.bf16.msra.mxu0 0
        %4677 = vmatprep.subr.bf16.mxu0 0
        %4678 = vmatpush1.bf16.msra.mxu0 0
        %4679 = vmatprep.subr.bf16.mxu0 0
        %4680 = vmatpush1.bf16.msra.mxu0 0
        %4681 = vmatprep.subr.bf16.mxu0 0
        %4682 = vmatpush1.bf16.msra.mxu0 0
        %4683 = vmatprep.subr.bf16.mxu0 0
        %4684 = vmatpush1.bf16.msra.mxu0 0
        %4685 = vmatprep.subr.bf16.mxu0 0
        %4686 = vmatpush1.bf16.msra.mxu0 0
        %4687 = vmatprep.subr.bf16.mxu0 0
        %4688 = vmatpush1.bf16.msra.mxu0 0
        %4689 = vmatprep.subr.bf16.mxu0 0
        %4690 = vmatpush1.bf16.msra.mxu0 0
        %4691 = vmatprep.subr.bf16.mxu0 0
        %4692 = vmatpush1.bf16.msra.mxu0 0
        %4693 = vmatprep.subr.bf16.mxu0 0
        %4694 = vmatpush1.bf16.msra.mxu0 0
        %4695 = vmatprep.mubr.bf16.mxu0 0
        %4696 = vmatmul.mubr.bf16.gmra.mrb[0].mxu0 %v4661
        %v4697 = vpop.f32.mrb[0].mxu0
        %v4698 = vadd.f32 0.0, %v4697
        %v4699 = vpop.f32.mrb[0].mxu0
        %v4700 = vpop.f32.mrb[0].mxu0
        %v4701 = vpop.f32.mrb[0].mxu0
        %4702 = vdwg.mxu0
        %4703 = vst [vmem:[%s1073] sm:$0xff] %v4698
        %s4704 = sand.u32 %s622, 1
        %s4705 = scalar_lea.sflag [#allocation4], %s4704
        %s4706 = sand.u32 %s622, 1
        %s4707 = smul.addr %s4706, 8
        %s4708 = scalar_lea.vmem [#allocation29], %s4707
        // Predicated region
        $region193: #{tpu_custom_call.1} parent=123 // pred_check
          %p4709 = pneg %p632
        $region194: #{tpu_custom_call.1} parent=123 // pred_check_branch
          %4711 = sbr.rel (%p4709) target = $region196
        $region195: #{tpu_custom_call.1} parent=123 // pred_region
          %s4713 = ssub.s32 128, 128
          %4714 = vsyncadd %s4705, %s4713
          %s4715 = smul.addr %s53, 128
          %s4716 = scalar_lea.hbm %s26, %s4715
          %s4718 = sshll.u32 %s4708, 4
          %s4719 = int_to_ptr.vmem [resolvable:$true] %s4718
          %4721 = dma.vmem_to_hbm [thread:$0]  %s4719, 128, %s4716, %s4705
        $region196: #{tpu_custom_call.1} parent=123 // pred_fallthru
          _
      $region124: #{tpu_custom_call.1} parent=5 // pred_fallthru
        _
      %p4722 = scmp.le.s32.totalorder 2, %s48
      // Predicated region
      $region197: #{tpu_custom_call.1} parent=5 // pred_check
        %p4723 = pneg %p4722
      $region198: #{tpu_custom_call.1} parent=5 // pred_check_branch
        %4725 = sbr.rel (%p4723) target = $region200
      $region199: #{tpu_custom_call.1} parent=5 // pred_region
        %s4726 = ssub.s32 %s48, 2
        // Predicated region
        $region201: #{tpu_custom_call.1} parent=199 // pred_check
          %p4727 = pneg %p638
        $region202: #{tpu_custom_call.1} parent=199 // pred_check_branch
          %4729 = sbr.rel (%p4727) target = $region204
        $region203: #{tpu_custom_call.1} parent=199 // pred_region
          %s4730 = sand.u32 %s623, 1
          %s4731 = scalar_lea.sflag [#allocation4], %s4730
          %s4732 = sand.u32 %s623, 1
          %s4733 = smul.addr %s4732, 8
          %s4734 = scalar_lea.vmem [#allocation29], %s4733
          %4735 = dma.done %s4731, 128
        $region204: #{tpu_custom_call.1} parent=199 // pred_fallthru
          _
      $region200: #{tpu_custom_call.1} parent=5 // pred_fallthru
        _
    $region6: #{tpu_custom_call.1} parent=1 // loop_footer
      %s52 = sadd.s32 1, %s48
    $region7: #{tpu_custom_call.1} parent=1 // loop_footer_branch
      %47 = sbr.rel target = $region3
    $region8: #{tpu_custom_call.1} parent=1 // loop_exit
      _
    %4736 = vsyncpa [#allocation3], 1
    %s4737 = scalar_lea.sflag [#allocation3], 1
    %4738 = vsyncpa %s4737, 1
    %4739 = vsyncpa [#allocation6], 1
    %s4740 = scalar_lea.sflag [#allocation6], 1
    %4741 = vsyncpa %s4740, 1
    %4742 = vsyncpa [#allocation9], 1
    %4743 = vsyncpa [#allocation12], 1
    %4744 = vsyncpa [#allocation15], 1
    %4745 = vsyncpa [#allocation18], 1
    %4746 = vsyncpa [#allocation21], 1
    %4747 = vsyncpa [#allocation24], 1
    %4748 = vsyncpa [#allocation27], 1
    %4749 = vsyncpa [#allocation4], 1
    %s4750 = scalar_lea.sflag [#allocation4], 1
    %4751 = vsyncpa %s4750, 1

</llo_original>
